<compile_context>
chip_gen: v6e
topology: v6e:2x2x1
jax: 0.10.0
libtpu: 0.0.40
codegen_flags: <defaults>
</compile_context>

<pallas_src>
import functools

import jax
import jax.numpy as jnp
from jax import lax
from jax.experimental import pallas as pl
from jax.experimental.pallas import tpu as pltpu

CPAD = 128  # lane-padded channel*rotation width carried end-to-end


# ----------------------------------------------------------------------------
# Pallas kernels
# ----------------------------------------------------------------------------
def _gconv_kernel(x_ref, w_ref, b_ref, o_ref, *, ks, Ho, Wo):
    """P4 group conv ('valid', stride 1) + bias + ReLU, channel-last.

    x_ref: (1, H, W, CPAD)      one image (padded lanes are zero)
    w_ref: (ks*ks, CPAD, CPAD)  packed filters: w[di*ks+dj, cin_lane, cout_lane]
    b_ref: (1, CPAD)
    o_ref: (1, Ho, Wo, CPAD)

    For each output row i: acc = sum_{di,dj} x[i+di, dj:dj+Wo, :] @ w[di*ks+dj]
    (nine lane-dense MXU matmuls), then bias + ReLU, one dense row store.
    """
    bias = b_ref[...]                                     # (1, CPAD)
    cp = bias.shape[-1]

    def row_body(i, carry):
        acc = jnp.zeros((Wo, cp), jnp.float32)
        for di in range(ks):
            row = x_ref[0, i + di]                        # (W, CPAD)
            for dj in range(ks):
                acc = acc + jnp.dot(row[dj:dj + Wo, :], w_ref[di * ks + dj],
                                    preferred_element_type=jnp.float32)
        o_ref[0, i] = jnp.maximum(acc + bias, 0.0).astype(o_ref.dtype)
        return carry

    lax.fori_loop(0, Ho, row_body, 0)


def _pool2x2_kernel(x_ref, o_ref, *, Ho):
    """2x2 / stride-2 max pool on a channel-last image.

    x_ref: (1, H, Wo, 2, CPAD)   (W was pre-split into (Wo, 2) by a free reshape)
    o_ref: (1, Ho, Wo, CPAD)
    """
    def row_body(i, carry):
        m = jnp.maximum(x_ref[0, 2 * i], x_ref[0, 2 * i + 1])   # (Wo, 2, CPAD)
        o_ref[0, i] = jnp.max(m, axis=1)                        # (Wo, CPAD)
        return carry

    lax.fori_loop(0, Ho, row_body, 0)


def _head_kernel(x_ref, w1_ref, b1_ref, w2_ref, b2_ref, o_ref, *, n_classes):
    """Fused AdaptiveAvgPool3d(1) + fc1 + ReLU + (dropout=id) + fc2 + log_softmax.

    The average pool is folded into w1 (W1_eff = repeat(fc1_w)/64), so this is
    two lane-dense matmuls plus a log_softmax masked to the first n_classes lanes.
    """
    h = jnp.dot(x_ref[...], w1_ref[...], preferred_element_type=jnp.float32)
    h = jnp.maximum(h + b1_ref[...], 0.0)
    # TODO(synk): F.dropout(training=False) is identity at inference.
    logits = jnp.dot(h, w2_ref[...], preferred_element_type=jnp.float32)
    logits = logits + b2_ref[...]
    col = lax.broadcasted_iota(jnp.int32, logits.shape, 1)
    logits = jnp.where(col < n_classes, logits, -1e30)    # exclude padded lanes
    m = jnp.max(logits, axis=-1, keepdims=True)
    lse = m + jnp.log(jnp.sum(jnp.exp(logits - m), axis=-1, keepdims=True))
    o_ref[...] = (logits - lse).astype(o_ref.dtype)


# ----------------------------------------------------------------------------
# Pallas wrappers
# ----------------------------------------------------------------------------
def gconv(x, w_packed, b_packed, *, ks=3):
    """x: (N, H, W, CPAD) -> (N, H-ks+1, W-ks+1, CPAD), fused bias + ReLU."""
    N, H, W, C = x.shape
    Ho, Wo = H - ks + 1, W - ks + 1
    kernel = functools.partial(_gconv_kernel, ks=ks, Ho=Ho, Wo=Wo)
    return pl.pallas_call(
        kernel,
        out_shape=jax.ShapeDtypeStruct((N, Ho, Wo, C), jnp.float32),
        grid=(N,),
        in_specs=[
            pl.BlockSpec((1, H, W, C), lambda n: (n, 0, 0, 0)),
            pl.BlockSpec((ks * ks, C, C), lambda n: (0, 0, 0)),   # weights resident
            pl.BlockSpec((1, C), lambda n: (0, 0)),
        ],
        out_specs=pl.BlockSpec((1, Ho, Wo, C), lambda n: (n, 0, 0, 0)),
        compiler_params=pltpu.CompilerParams(
            dimension_semantics=("parallel",)),
    )(x, w_packed, b_packed)


def pool2x2(x):
    """x: (N, H, W, C) -> (N, H//2, W//2, C), 2x2 max pool, lane-dense."""
    N, H, W, C = x.shape
    Ho, Wo = H // 2, W // 2
    xr = x.reshape(N, H, Wo, 2, C)        # row-major split of W: free (bitcast)
    kernel = functools.partial(_pool2x2_kernel, Ho=Ho)
    return pl.pallas_call(
        kernel,
        out_shape=jax.ShapeDtypeStruct((N, Ho, Wo, C), jnp.float32),
        grid=(N,),
        in_specs=[pl.BlockSpec((1, H, Wo, 2, C), lambda n: (n, 0, 0, 0, 0))],
        out_specs=pl.BlockSpec((1, Ho, Wo, C), lambda n: (n, 0, 0, 0)),
        compiler_params=pltpu.CompilerParams(
            dimension_semantics=("parallel",)),
    )(xr)


def head(x_flat, w1, b1, w2, b2, *, n_classes=10):
    """x_flat: (N, S*CPAD) -> (N, CPAD) log-probs (first n_classes lanes valid)."""
    N, K = x_flat.shape
    kernel = functools.partial(_head_kernel, n_classes=n_classes)
    return pl.pallas_call(
        kernel,
        out_shape=jax.ShapeDtypeStruct((N, CPAD), jnp.float32),
        grid=(1,),
        in_specs=[
            pl.BlockSpec((N, K), lambda i: (0, 0)),
            pl.BlockSpec((K, CPAD), lambda i: (0, 0)),
            pl.BlockSpec((1, CPAD), lambda i: (0, 0)),
            pl.BlockSpec((CPAD, CPAD), lambda i: (0, 0)),
            pl.BlockSpec((1, CPAD), lambda i: (0, 0)),
        ],
        out_specs=pl.BlockSpec((N, CPAD), lambda i: (0, 0)),
    )(x_flat, w1, b1, w2, b2)


# ----------------------------------------------------------------------------
# Weight packing (host-side, hoisted out of the jitted forward)
# ----------------------------------------------------------------------------
def _pad_to(a, shape):
    return jnp.pad(a, [(0, s - d) for s, d in zip(shape, a.shape)])


def pack_z2_p4_weight(w):
    """w: (Co, Ci, ks, ks) -> (ks*ks, CPAD, CPAD); out lane = co*4 + r."""
    Co, Ci, ks, _ = w.shape
    rots = [jnp.rot90(w, k=r, axes=(-2, -1)) for r in range(4)]
    filt = jnp.stack(rots, axis=1)                               # (Co, 4, Ci, ks, ks)
    wk = jnp.transpose(filt, (3, 4, 2, 0, 1)).reshape(ks * ks, Ci, Co * 4)
    return _pad_to(wk, (ks * ks, CPAD, CPAD))


def pack_p4_p4_weight(w):
    """w: (Co, Ci, 4, ks, ks) -> (ks*ks, CPAD, CPAD); in lane ci*4+s, out co*4+r.

    For output rotation r the filter on input group s is the spatial rotation by
    r of w[..., (s-r) % 4, :, :] (standard P4 g-conv).
    """
    Co, Ci, G, ks, _ = w.shape
    per_r = []
    for r in range(4):
        per_s = [jnp.rot90(w[:, :, (s - r) % 4], k=r, axes=(-2, -1))
                 for s in range(4)]
        per_r.append(jnp.stack(per_s, axis=2))                   # (Co, Ci, 4, ks, ks)
    filt = jnp.stack(per_r, axis=1)                              # (Co, 4, Ci, 4, ks, ks)
    wk = jnp.transpose(filt, (4, 5, 2, 3, 0, 1)).reshape(ks * ks, Ci * G, Co * 4)
    return _pad_to(wk, (ks * ks, CPAD, CPAD))


def pack_bias(b):
    """b: (Co,) -> (1, CPAD); lane co*4 + r gets b[co], padded lanes get 0."""
    return _pad_to(jnp.repeat(b, 4)[None, :], (1, CPAD))


def pack_head(fc1_w, fc1_b, fc2_w, fc2_b, *, spatial):
    """Fold AdaptiveAvgPool3d(1) into fc1.

    W1_eff[(h*Ws + w)*CPAD + c*4 + g, :] = fc1_w[c, :] / (4 * spatial); padded
    input lanes / output columns are zero so they stay inert through ReLU & fc2.
    """
    C, H1 = fc1_w.shape
    lane_w = jnp.repeat(fc1_w, 4, axis=0)                        # lane c*4+g -> fc1_w[c]
    per_lane = _pad_to(lane_w, (CPAD, H1))
    w1 = jnp.tile(per_lane, (spatial, 1)) / (4.0 * spatial)
    return (_pad_to(w1, (spatial * CPAD, CPAD)),
            _pad_to(fc1_b[None, :], (1, CPAD)),
            _pad_to(fc2_w, (CPAD, CPAD)),
            _pad_to(fc2_b[None, :], (1, CPAD)))


def prepare(params, image_size=28, ks=3):
    """Precompute all packed/padded inference weights once (Freeze model)."""
    s = image_size - (ks - 1)   # conv1
    s = s - (ks - 1)            # conv2
    s = s // 2                  # pool1
    s = s - (ks - 1)            # conv3
    s = s - (ks - 1)            # conv4
    s = s // 2                  # pool2
    hw1, hb1, hw2, hb2 = pack_head(params["fc1_w"], params["fc1_b"],
                                   params["fc2_w"], params["fc2_b"],
                                   spatial=s * s)
    return {
        "c1w": pack_z2_p4_weight(params["conv1_w"]), "c1b": pack_bias(params["conv1_b"]),
        "c2w": pack_p4_p4_weight(params["conv2_w"]), "c2b": pack_bias(params["conv2_b"]),
        "c3w": pack_p4_p4_weight(params["conv3_w"]), "c3b": pack_bias(params["conv3_b"]),
        "c4w": pack_p4_p4_weight(params["conv4_w"]), "c4b": pack_bias(params["conv4_b"]),
        "hw1": hw1, "hb1": hb1, "hw2": hw2, "hb2": hb2,
    }


# ----------------------------------------------------------------------------
# Full forward pass of MLPGConvNet_Freeze (inference)
# ----------------------------------------------------------------------------
def forward(prep, x, *, n_classes=10):
    """x: (N, 1, 28, 28) NCHW (as in the PyTorch module) -> (N, 10) log-probs."""
    N = x.shape[0]
    x = jnp.transpose(x, (0, 2, 3, 1))                           # (N, 28, 28, 1); C==1 -> free
    x = jnp.pad(x, ((0, 0), (0, 0), (0, 0), (0, CPAD - x.shape[-1])))
    x = gconv(x, prep["c1w"], prep["c1b"])                       # (N, 26, 26, 128)
    x = gconv(x, prep["c2w"], prep["c2b"])                       # (N, 24, 24, 128)
    x = pool2x2(x)                                               # (N, 12, 12, 128)
    x = gconv(x, prep["c3w"], prep["c3b"])                       # (N, 10, 10, 128)
    x = gconv(x, prep["c4w"], prep["c4b"])                       # (N,  8,  8, 128)
    x = pool2x2(x)                                               # (N,  4,  4, 128)
    x_flat = x.reshape(N, -1)                                    # (N, 2048), free reshape
    logp = head(x_flat, prep["hw1"], prep["hb1"], prep["hw2"], prep["hb2"],
                n_classes=n_classes)                             # (N, 128)
    return logp[:, :n_classes]


def init_params(key):
    ks = jax.random.split(key, 12)
    scale = 0.1
    return {
        # conv1: Z2 -> P4, 1 -> 10 channels, 3x3
        "conv1_w": scale * jax.random.normal(ks[0], (10, 1, 3, 3), jnp.float32),
        "conv1_b": scale * jax.random.normal(ks[1], (10,), jnp.float32),
        # conv2: P4 -> P4, 10 -> 10
        "conv2_w": scale * jax.random.normal(ks[2], (10, 10, 4, 3, 3), jnp.float32),
        "conv2_b": scale * jax.random.normal(ks[3], (10,), jnp.float32),
        # conv3: P4 -> P4, 10 -> 20
        "conv3_w": scale * jax.random.normal(ks[4], (20, 10, 4, 3, 3), jnp.float32),
        "conv3_b": scale * jax.random.normal(ks[5], (20,), jnp.float32),
        # conv4: P4 -> P4, 20 -> 20
        "conv4_w": scale * jax.random.normal(ks[6], (20, 20, 4, 3, 3), jnp.float32),
        "conv4_b": scale * jax.random.normal(ks[7], (20,), jnp.float32),
        # fc1: 20 -> 50 (stored as (in, out) for x @ W)
        "fc1_w": scale * jax.random.normal(ks[8], (20, 50), jnp.float32),
        "fc1_b": scale * jax.random.normal(ks[9], (50,), jnp.float32),
        # fc2: 50 -> 10
        "fc2_w": scale * jax.random.normal(ks[10], (50, 10), jnp.float32),
        "fc2_b": scale * jax.random.normal(ks[11], (10,), jnp.float32),
    }


if __name__ == "__main__":
    key = jax.random.PRNGKey(0)
    pkey, xkey = jax.random.split(key)
    params = init_params(pkey)
    prep = prepare(params)                       # packed weights: computed once, not re-traced

    # MNIST-like input: batch=2, 1 channel, 28x28 (architecture requires 28)
    x = jax.random.normal(xkey, (2, 1, 28, 28), jnp.float32)

    out = jax.jit(forward)(prep, x)
    out = jax.block_until_ready(out)

    assert out.shape == (2, 10), out.shape
    assert bool(jnp.all(jnp.isfinite(out)))
    # log_softmax rows must exponentiate to ~1
    row_sums = jnp.sum(jnp.exp(out), axis=-1)
    assert bool(jnp.all(jnp.abs(row_sums - 1.0) < 1e-4)), row_sums
    print("KERNEL_OK")
</pallas_src>

<mosaic_0001>
module attributes {stable_mosaic.version = 11 : i64} {
  func.func @_gconv_kernel(%arg0: i32, %arg1: memref<1x28x28x128xf32, #tpu.memory_space<vmem>>, %arg2: memref<9x128x128xf32, #tpu.memory_space<vmem>>, %arg3: memref<1x128xf32, #tpu.memory_space<vmem>>, %arg4: memref<1x26x26x128xf32, #tpu.memory_space<vmem>>) attributes {dimension_semantics = [#tpu.dimension_semantics<parallel>], iteration_bounds = array<i64: 2>, scalar_prefetch = 0 : i64, scratch_operands = 0 : i64, tpu.core_type = #tpu.core_type<tc>, window_params = [{transform_indices = @transform_0, window_bounds = array<i64: 1, 28, 28, 128>}, {pipeline_mode = #tpu.pipeline_mode<synchronous>, transform_indices = @transform_1, window_bounds = array<i64: 9, 128, 128>}, {pipeline_mode = #tpu.pipeline_mode<synchronous>, transform_indices = @transform_2, window_bounds = array<i64: 1, 128>}, {transform_indices = @transform_3, window_bounds = array<i64: 1, 26, 26, 128>}]} {
    %c0 = arith.constant 0 : index
    %c0_0 = arith.constant 0 : index
    %0 = vector.load %arg3[%c0, %c0_0] : memref<1x128xf32, #tpu.memory_space<vmem>>, vector<1x128xf32>
    %c0_i32 = arith.constant 0 : i32
    %c26_i32 = arith.constant 26 : i32
    %1 = arith.addi %c0_i32, %c26_i32 : i32
    %c1_i32 = arith.constant 1 : i32
    scf.for %arg5 = %c0_i32 to %1 step %c1_i32  : i32 {
      %cst = arith.constant 0.000000e+00 : f32
      %2 = vector.broadcast %cst : f32 to vector<26x128xf32>
      %c0_i32_2 = arith.constant 0 : i32
      %3 = arith.addi %arg5, %c0_i32_2 : i32
      %c0_3 = arith.constant 0 : index
      %4 = arith.index_cast %3 : i32 to index
      %c0_4 = arith.constant 0 : index
      %c0_5 = arith.constant 0 : index
      %5 = vector.load %arg1[%c0_3, %4, %c0_4, %c0_5] : memref<1x28x28x128xf32, #tpu.memory_space<vmem>>, vector<1x1x28x128xf32>
      %6 = vector.shape_cast %5 : vector<1x1x28x128xf32> to vector<28x128xf32>
      %7 = vector.extract_strided_slice %6 {offsets = [0, 0], sizes = [26, 128], strides = [1, 1]} : vector<28x128xf32> to vector<26x128xf32>
      %c0_6 = arith.constant 0 : index
      %c0_7 = arith.constant 0 : index
      %c0_8 = arith.constant 0 : index
      %8 = vector.load %arg2[%c0_6, %c0_7, %c0_8] : memref<9x128x128xf32, #tpu.memory_space<vmem>>, vector<1x128x128xf32>
      %9 = vector.shape_cast %8 : vector<1x128x128xf32> to vector<128x128xf32>
      %cst_9 = arith.constant dense<0.000000e+00> : vector<26x128xf32>
      %10 = tpu.matmul %7, %9, %cst_9 {dimension_numbers = #tpu.dot_dimension_numbers<[1], [0], [0], [1], [0, 0, 1, 1], [], []>} : vector<26x128xf32>, vector<128x128xf32>, vector<26x128xf32> -> vector<26x128xf32>
      %11 = arith.addf %2, %10 : vector<26x128xf32>
      %12 = vector.extract_strided_slice %6 {offsets = [1, 0], sizes = [26, 128], strides = [1, 1]} : vector<28x128xf32> to vector<26x128xf32>
      %c1 = arith.constant 1 : index
      %c0_10 = arith.constant 0 : index
      %c0_11 = arith.constant 0 : index
      %13 = vector.load %arg2[%c1, %c0_10, %c0_11] : memref<9x128x128xf32, #tpu.memory_space<vmem>>, vector<1x128x128xf32>
      %14 = vector.shape_cast %13 : vector<1x128x128xf32> to vector<128x128xf32>
      %cst_12 = arith.constant dense<0.000000e+00> : vector<26x128xf32>
      %15 = tpu.matmul %12, %14, %cst_12 {dimension_numbers = #tpu.dot_dimension_numbers<[1], [0], [0], [1], [0, 0, 1, 1], [], []>} : vector<26x128xf32>, vector<128x128xf32>, vector<26x128xf32> -> vector<26x128xf32>
      %16 = arith.addf %11, %15 : vector<26x128xf32>
      %17 = vector.extract_strided_slice %6 {offsets = [2, 0], sizes = [26, 128], strides = [1, 1]} : vector<28x128xf32> to vector<26x128xf32>
      %c2 = arith.constant 2 : index
      %c0_13 = arith.constant 0 : index
      %c0_14 = arith.constant 0 : index
      %18 = vector.load %arg2[%c2, %c0_13, %c0_14] : memref<9x128x128xf32, #tpu.memory_space<vmem>>, vector<1x128x128xf32>
      %19 = vector.shape_cast %18 : vector<1x128x128xf32> to vector<128x128xf32>
      %cst_15 = arith.constant dense<0.000000e+00> : vector<26x128xf32>
      %20 = tpu.matmul %17, %19, %cst_15 {dimension_numbers = #tpu.dot_dimension_numbers<[1], [0], [0], [1], [0, 0, 1, 1], [], []>} : vector<26x128xf32>, vector<128x128xf32>, vector<26x128xf32> -> vector<26x128xf32>
      %21 = arith.addf %16, %20 : vector<26x128xf32>
      %c1_i32_16 = arith.constant 1 : i32
      %22 = arith.addi %arg5, %c1_i32_16 : i32
      %c0_17 = arith.constant 0 : index
      %23 = arith.index_cast %22 : i32 to index
      %c0_18 = arith.constant 0 : index
      %c0_19 = arith.constant 0 : index
      %24 = vector.load %arg1[%c0_17, %23, %c0_18, %c0_19] : memref<1x28x28x128xf32, #tpu.memory_space<vmem>>, vector<1x1x28x128xf32>
      %25 = vector.shape_cast %24 : vector<1x1x28x128xf32> to vector<28x128xf32>
      %26 = vector.extract_strided_slice %25 {offsets = [0, 0], sizes = [26, 128], strides = [1, 1]} : vector<28x128xf32> to vector<26x128xf32>
      %c3 = arith.constant 3 : index
      %c0_20 = arith.constant 0 : index
      %c0_21 = arith.constant 0 : index
      %27 = vector.load %arg2[%c3, %c0_20, %c0_21] : memref<9x128x128xf32, #tpu.memory_space<vmem>>, vector<1x128x128xf32>
      %28 = vector.shape_cast %27 : vector<1x128x128xf32> to vector<128x128xf32>
      %cst_22 = arith.constant dense<0.000000e+00> : vector<26x128xf32>
      %29 = tpu.matmul %26, %28, %cst_22 {dimension_numbers = #tpu.dot_dimension_numbers<[1], [0], [0], [1], [0, 0, 1, 1], [], []>} : vector<26x128xf32>, vector<128x128xf32>, vector<26x128xf32> -> vector<26x128xf32>
      %30 = arith.addf %21, %29 : vector<26x128xf32>
      %31 = vector.extract_strided_slice %25 {offsets = [1, 0], sizes = [26, 128], strides = [1, 1]} : vector<28x128xf32> to vector<26x128xf32>
      %c4 = arith.constant 4 : index
      %c0_23 = arith.constant 0 : index
      %c0_24 = arith.constant 0 : index
      %32 = vector.load %arg2[%c4, %c0_23, %c0_24] : memref<9x128x128xf32, #tpu.memory_space<vmem>>, vector<1x128x128xf32>
      %33 = vector.shape_cast %32 : vector<1x128x128xf32> to vector<128x128xf32>
      %cst_25 = arith.constant dense<0.000000e+00> : vector<26x128xf32>
      %34 = tpu.matmul %31, %33, %cst_25 {dimension_numbers = #tpu.dot_dimension_numbers<[1], [0], [0], [1], [0, 0, 1, 1], [], []>} : vector<26x128xf32>, vector<128x128xf32>, vector<26x128xf32> -> vector<26x128xf32>
      %35 = arith.addf %30, %34 : vector<26x128xf32>
      %36 = vector.extract_strided_slice %25 {offsets = [2, 0], sizes = [26, 128], strides = [1, 1]} : vector<28x128xf32> to vector<26x128xf32>
      %c5 = arith.constant 5 : index
      %c0_26 = arith.constant 0 : index
      %c0_27 = arith.constant 0 : index
      %37 = vector.load %arg2[%c5, %c0_26, %c0_27] : memref<9x128x128xf32, #tpu.memory_space<vmem>>, vector<1x128x128xf32>
      %38 = vector.shape_cast %37 : vector<1x128x128xf32> to vector<128x128xf32>
      %cst_28 = arith.constant dense<0.000000e+00> : vector<26x128xf32>
      %39 = tpu.matmul %36, %38, %cst_28 {dimension_numbers = #tpu.dot_dimension_numbers<[1], [0], [0], [1], [0, 0, 1, 1], [], []>} : vector<26x128xf32>, vector<128x128xf32>, vector<26x128xf32> -> vector<26x128xf32>
      %40 = arith.addf %35, %39 : vector<26x128xf32>
      %c2_i32 = arith.constant 2 : i32
      %41 = arith.addi %arg5, %c2_i32 : i32
      %c0_29 = arith.constant 0 : index
      %42 = arith.index_cast %41 : i32 to index
      %c0_30 = arith.constant 0 : index
      %c0_31 = arith.constant 0 : index
      %43 = vector.load %arg1[%c0_29, %42, %c0_30, %c0_31] : memref<1x28x28x128xf32, #tpu.memory_space<vmem>>, vector<1x1x28x128xf32>
      %44 = vector.shape_cast %43 : vector<1x1x28x128xf32> to vector<28x128xf32>
      %45 = vector.extract_strided_slice %44 {offsets = [0, 0], sizes = [26, 128], strides = [1, 1]} : vector<28x128xf32> to vector<26x128xf32>
      %c6 = arith.constant 6 : index
      %c0_32 = arith.constant 0 : index
      %c0_33 = arith.constant 0 : index
      %46 = vector.load %arg2[%c6, %c0_32, %c0_33] : memref<9x128x128xf32, #tpu.memory_space<vmem>>, vector<1x128x128xf32>
      %47 = vector.shape_cast %46 : vector<1x128x128xf32> to vector<128x128xf32>
      %cst_34 = arith.constant dense<0.000000e+00> : vector<26x128xf32>
      %48 = tpu.matmul %45, %47, %cst_34 {dimension_numbers = #tpu.dot_dimension_numbers<[1], [0], [0], [1], [0, 0, 1, 1], [], []>} : vector<26x128xf32>, vector<128x128xf32>, vector<26x128xf32> -> vector<26x128xf32>
      %49 = arith.addf %40, %48 : vector<26x128xf32>
      %50 = vector.extract_strided_slice %44 {offsets = [1, 0], sizes = [26, 128], strides = [1, 1]} : vector<28x128xf32> to vector<26x128xf32>
      %c7 = arith.constant 7 : index
      %c0_35 = arith.constant 0 : index
      %c0_36 = arith.constant 0 : index
      %51 = vector.load %arg2[%c7, %c0_35, %c0_36] : memref<9x128x128xf32, #tpu.memory_space<vmem>>, vector<1x128x128xf32>
      %52 = vector.shape_cast %51 : vector<1x128x128xf32> to vector<128x128xf32>
      %cst_37 = arith.constant dense<0.000000e+00> : vector<26x128xf32>
      %53 = tpu.matmul %50, %52, %cst_37 {dimension_numbers = #tpu.dot_dimension_numbers<[1], [0], [0], [1], [0, 0, 1, 1], [], []>} : vector<26x128xf32>, vector<128x128xf32>, vector<26x128xf32> -> vector<26x128xf32>
      %54 = arith.addf %49, %53 : vector<26x128xf32>
      %55 = vector.extract_strided_slice %44 {offsets = [2, 0], sizes = [26, 128], strides = [1, 1]} : vector<28x128xf32> to vector<26x128xf32>
      %c8 = arith.constant 8 : index
      %c0_38 = arith.constant 0 : index
      %c0_39 = arith.constant 0 : index
      %56 = vector.load %arg2[%c8, %c0_38, %c0_39] : memref<9x128x128xf32, #tpu.memory_space<vmem>>, vector<1x128x128xf32>
      %57 = vector.shape_cast %56 : vector<1x128x128xf32> to vector<128x128xf32>
      %cst_40 = arith.constant dense<0.000000e+00> : vector<26x128xf32>
      %58 = tpu.matmul %55, %57, %cst_40 {dimension_numbers = #tpu.dot_dimension_numbers<[1], [0], [0], [1], [0, 0, 1, 1], [], []>} : vector<26x128xf32>, vector<128x128xf32>, vector<26x128xf32> -> vector<26x128xf32>
      %59 = arith.addf %54, %58 : vector<26x128xf32>
      %60 = vector.broadcast %0 : vector<1x128xf32> to vector<26x128xf32>
      %61 = arith.addf %59, %60 : vector<26x128xf32>
      %cst_41 = arith.constant 0.000000e+00 : f32
      %62 = vector.broadcast %cst_41 : f32 to vector<26x128xf32>
      %63 = arith.maximumf %61, %62 : vector<26x128xf32>
      %c0_42 = arith.constant 0 : index
      %64 = arith.index_cast %arg5 : i32 to index
      %c0_43 = arith.constant 0 : index
      %c0_44 = arith.constant 0 : index
      %65 = vector.load %arg4[%c0_42, %64, %c0_43, %c0_44] : memref<1x26x26x128xf32, #tpu.memory_space<vmem>>, vector<1x1x26x128xf32>
      %66 = vector.shape_cast %65 : vector<1x1x26x128xf32> to vector<26x128xf32>
      %67 = vector.shape_cast %63 : vector<26x128xf32> to vector<1x1x26x128xf32>
      tpu.vector_store %arg4[%c0_42, %64, %c0_43, %c0_44], %67 {strides = array<i32>} : memref<1x26x26x128xf32, #tpu.memory_space<vmem>>, vector<1x1x26x128xf32>,
    }
    %c26_i32_1 = arith.constant 26 : i32
    return
  }
  func.func @transform_0(%arg0: i32) -> (i32, i32, i32, i32) {
    %c0_i32 = arith.constant 0 : i32
    %c0_i32_0 = arith.constant 0 : i32
    %c0_i32_1 = arith.constant 0 : i32
    %c0_i32_2 = arith.constant 0 : i32
    return %arg0, %c0_i32, %c0_i32_0, %c0_i32_1 : i32, i32, i32, i32
  }
  func.func @transform_1(%arg0: i32) -> (i32, i32, i32) {
    %c0_i32 = arith.constant 0 : i32
    %c0_i32_0 = arith.constant 0 : i32
    %c0_i32_1 = arith.constant 0 : i32
    %c0_i32_2 = arith.constant 0 : i32
    return %c0_i32, %c0_i32_0, %c0_i32_1 : i32, i32, i32
  }
  func.func @transform_2(%arg0: i32) -> (i32, i32) {
    %c0_i32 = arith.constant 0 : i32
    %c0_i32_0 = arith.constant 0 : i32
    %c0_i32_1 = arith.constant 0 : i32
    return %c0_i32, %c0_i32_0 : i32, i32
  }
  func.func @transform_3(%arg0: i32) -> (i32, i32, i32, i32) {
    %c0_i32 = arith.constant 0 : i32
    %c0_i32_0 = arith.constant 0 : i32
    %c0_i32_1 = arith.constant 0 : i32
    %c0_i32_2 = arith.constant 0 : i32
    return %arg0, %c0_i32, %c0_i32_0, %c0_i32_1 : i32, i32, i32, i32
  }
}

module attributes {stable_mosaic.version = 11 : i64} {
  func.func @_gconv_kernel(%arg0: i32, %arg1: memref<1x26x26x128xf32, #tpu.memory_space<vmem>>, %arg2: memref<9x128x128xf32, #tpu.memory_space<vmem>>, %arg3: memref<1x128xf32, #tpu.memory_space<vmem>>, %arg4: memref<1x24x24x128xf32, #tpu.memory_space<vmem>>) attributes {dimension_semantics = [#tpu.dimension_semantics<parallel>], iteration_bounds = array<i64: 2>, scalar_prefetch = 0 : i64, scratch_operands = 0 : i64, tpu.core_type = #tpu.core_type<tc>, window_params = [{transform_indices = @transform_0, window_bounds = array<i64: 1, 26, 26, 128>}, {pipeline_mode = #tpu.pipeline_mode<synchronous>, transform_indices = @transform_1, window_bounds = array<i64: 9, 128, 128>}, {pipeline_mode = #tpu.pipeline_mode<synchronous>, transform_indices = @transform_2, window_bounds = array<i64: 1, 128>}, {transform_indices = @transform_3, window_bounds = array<i64: 1, 24, 24, 128>}]} {
    %c0 = arith.constant 0 : index
    %c0_0 = arith.constant 0 : index
    %0 = vector.load %arg3[%c0, %c0_0] : memref<1x128xf32, #tpu.memory_space<vmem>>, vector<1x128xf32>
    %c0_i32 = arith.constant 0 : i32
    %c24_i32 = arith.constant 24 : i32
    %1 = arith.addi %c0_i32, %c24_i32 : i32
    %c1_i32 = arith.constant 1 : i32
    scf.for %arg5 = %c0_i32 to %1 step %c1_i32  : i32 {
      %cst = arith.constant 0.000000e+00 : f32
      %2 = vector.broadcast %cst : f32 to vector<24x128xf32>
      %c0_i32_2 = arith.constant 0 : i32
      %3 = arith.addi %arg5, %c0_i32_2 : i32
      %c0_3 = arith.constant 0 : index
      %4 = arith.index_cast %3 : i32 to index
      %c0_4 = arith.constant 0 : index
      %c0_5 = arith.constant 0 : index
      %5 = vector.load %arg1[%c0_3, %4, %c0_4, %c0_5] : memref<1x26x26x128xf32, #tpu.memory_space<vmem>>, vector<1x1x26x128xf32>
      %6 = vector.shape_cast %5 : vector<1x1x26x128xf32> to vector<26x128xf32>
      %7 = vector.extract_strided_slice %6 {offsets = [0, 0], sizes = [24, 128], strides = [1, 1]} : vector<26x128xf32> to vector<24x128xf32>
      %c0_6 = arith.constant 0 : index
      %c0_7 = arith.constant 0 : index
      %c0_8 = arith.constant 0 : index
      %8 = vector.load %arg2[%c0_6, %c0_7, %c0_8] : memref<9x128x128xf32, #tpu.memory_space<vmem>>, vector<1x128x128xf32>
      %9 = vector.shape_cast %8 : vector<1x128x128xf32> to vector<128x128xf32>
      %cst_9 = arith.constant dense<0.000000e+00> : vector<24x128xf32>
      %10 = tpu.matmul %7, %9, %cst_9 {dimension_numbers = #tpu.dot_dimension_numbers<[1], [0], [0], [1], [0, 0, 1, 1], [], []>} : vector<24x128xf32>, vector<128x128xf32>, vector<24x128xf32> -> vector<24x128xf32>
      %11 = arith.addf %2, %10 : vector<24x128xf32>
      %12 = vector.extract_strided_slice %6 {offsets = [1, 0], sizes = [24, 128], strides = [1, 1]} : vector<26x128xf32> to vector<24x128xf32>
      %c1 = arith.constant 1 : index
      %c0_10 = arith.constant 0 : index
      %c0_11 = arith.constant 0 : index
      %13 = vector.load %arg2[%c1, %c0_10, %c0_11] : memref<9x128x128xf32, #tpu.memory_space<vmem>>, vector<1x128x128xf32>
      %14 = vector.shape_cast %13 : vector<1x128x128xf32> to vector<128x128xf32>
      %cst_12 = arith.constant dense<0.000000e+00> : vector<24x128xf32>
      %15 = tpu.matmul %12, %14, %cst_12 {dimension_numbers = #tpu.dot_dimension_numbers<[1], [0], [0], [1], [0, 0, 1, 1], [], []>} : vector<24x128xf32>, vector<128x128xf32>, vector<24x128xf32> -> vector<24x128xf32>
      %16 = arith.addf %11, %15 : vector<24x128xf32>
      %17 = vector.extract_strided_slice %6 {offsets = [2, 0], sizes = [24, 128], strides = [1, 1]} : vector<26x128xf32> to vector<24x128xf32>
      %c2 = arith.constant 2 : index
      %c0_13 = arith.constant 0 : index
      %c0_14 = arith.constant 0 : index
      %18 = vector.load %arg2[%c2, %c0_13, %c0_14] : memref<9x128x128xf32, #tpu.memory_space<vmem>>, vector<1x128x128xf32>
      %19 = vector.shape_cast %18 : vector<1x128x128xf32> to vector<128x128xf32>
      %cst_15 = arith.constant dense<0.000000e+00> : vector<24x128xf32>
      %20 = tpu.matmul %17, %19, %cst_15 {dimension_numbers = #tpu.dot_dimension_numbers<[1], [0], [0], [1], [0, 0, 1, 1], [], []>} : vector<24x128xf32>, vector<128x128xf32>, vector<24x128xf32> -> vector<24x128xf32>
      %21 = arith.addf %16, %20 : vector<24x128xf32>
      %c1_i32_16 = arith.constant 1 : i32
      %22 = arith.addi %arg5, %c1_i32_16 : i32
      %c0_17 = arith.constant 0 : index
      %23 = arith.index_cast %22 : i32 to index
      %c0_18 = arith.constant 0 : index
      %c0_19 = arith.constant 0 : index
      %24 = vector.load %arg1[%c0_17, %23, %c0_18, %c0_19] : memref<1x26x26x128xf32, #tpu.memory_space<vmem>>, vector<1x1x26x128xf32>
      %25 = vector.shape_cast %24 : vector<1x1x26x128xf32> to vector<26x128xf32>
      %26 = vector.extract_strided_slice %25 {offsets = [0, 0], sizes = [24, 128], strides = [1, 1]} : vector<26x128xf32> to vector<24x128xf32>
      %c3 = arith.constant 3 : index
      %c0_20 = arith.constant 0 : index
      %c0_21 = arith.constant 0 : index
      %27 = vector.load %arg2[%c3, %c0_20, %c0_21] : memref<9x128x128xf32, #tpu.memory_space<vmem>>, vector<1x128x128xf32>
      %28 = vector.shape_cast %27 : vector<1x128x128xf32> to vector<128x128xf32>
      %cst_22 = arith.constant dense<0.000000e+00> : vector<24x128xf32>
      %29 = tpu.matmul %26, %28, %cst_22 {dimension_numbers = #tpu.dot_dimension_numbers<[1], [0], [0], [1], [0, 0, 1, 1], [], []>} : vector<24x128xf32>, vector<128x128xf32>, vector<24x128xf32> -> vector<24x128xf32>
      %30 = arith.addf %21, %29 : vector<24x128xf32>
      %31 = vector.extract_strided_slice %25 {offsets = [1, 0], sizes = [24, 128], strides = [1, 1]} : vector<26x128xf32> to vector<24x128xf32>
      %c4 = arith.constant 4 : index
      %c0_23 = arith.constant 0 : index
      %c0_24 = arith.constant 0 : index
      %32 = vector.load %arg2[%c4, %c0_23, %c0_24] : memref<9x128x128xf32, #tpu.memory_space<vmem>>, vector<1x128x128xf32>
      %33 = vector.shape_cast %32 : vector<1x128x128xf32> to vector<128x128xf32>
      %cst_25 = arith.constant dense<0.000000e+00> : vector<24x128xf32>
      %34 = tpu.matmul %31, %33, %cst_25 {dimension_numbers = #tpu.dot_dimension_numbers<[1], [0], [0], [1], [0, 0, 1, 1], [], []>} : vector<24x128xf32>, vector<128x128xf32>, vector<24x128xf32> -> vector<24x128xf32>
      %35 = arith.addf %30, %34 : vector<24x128xf32>
      %36 = vector.extract_strided_slice %25 {offsets = [2, 0], sizes = [24, 128], strides = [1, 1]} : vector<26x128xf32> to vector<24x128xf32>
      %c5 = arith.constant 5 : index
      %c0_26 = arith.constant 0 : index
      %c0_27 = arith.constant 0 : index
      %37 = vector.load %arg2[%c5, %c0_26, %c0_27] : memref<9x128x128xf32, #tpu.memory_space<vmem>>, vector<1x128x128xf32>
      %38 = vector.shape_cast %37 : vector<1x128x128xf32> to vector<128x128xf32>
      %cst_28 = arith.constant dense<0.000000e+00> : vector<24x128xf32>
      %39 = tpu.matmul %36, %38, %cst_28 {dimension_numbers = #tpu.dot_dimension_numbers<[1], [0], [0], [1], [0, 0, 1, 1], [], []>} : vector<24x128xf32>, vector<128x128xf32>, vector<24x128xf32> -> vector<24x128xf32>
      %40 = arith.addf %35, %39 : vector<24x128xf32>
      %c2_i32 = arith.constant 2 : i32
      %41 = arith.addi %arg5, %c2_i32 : i32
      %c0_29 = arith.constant 0 : index
      %42 = arith.index_cast %41 : i32 to index
      %c0_30 = arith.constant 0 : index
      %c0_31 = arith.constant 0 : index
      %43 = vector.load %arg1[%c0_29, %42, %c0_30, %c0_31] : memref<1x26x26x128xf32, #tpu.memory_space<vmem>>, vector<1x1x26x128xf32>
      %44 = vector.shape_cast %43 : vector<1x1x26x128xf32> to vector<26x128xf32>
      %45 = vector.extract_strided_slice %44 {offsets = [0, 0], sizes = [24, 128], strides = [1, 1]} : vector<26x128xf32> to vector<24x128xf32>
      %c6 = arith.constant 6 : index
      %c0_32 = arith.constant 0 : index
      %c0_33 = arith.constant 0 : index
      %46 = vector.load %arg2[%c6, %c0_32, %c0_33] : memref<9x128x128xf32, #tpu.memory_space<vmem>>, vector<1x128x128xf32>
      %47 = vector.shape_cast %46 : vector<1x128x128xf32> to vector<128x128xf32>
      %cst_34 = arith.constant dense<0.000000e+00> : vector<24x128xf32>
      %48 = tpu.matmul %45, %47, %cst_34 {dimension_numbers = #tpu.dot_dimension_numbers<[1], [0], [0], [1], [0, 0, 1, 1], [], []>} : vector<24x128xf32>, vector<128x128xf32>, vector<24x128xf32> -> vector<24x128xf32>
      %49 = arith.addf %40, %48 : vector<24x128xf32>
      %50 = vector.extract_strided_slice %44 {offsets = [1, 0], sizes = [24, 128], strides = [1, 1]} : vector<26x128xf32> to vector<24x128xf32>
      %c7 = arith.constant 7 : index
      %c0_35 = arith.constant 0 : index
      %c0_36 = arith.constant 0 : index
      %51 = vector.load %arg2[%c7, %c0_35, %c0_36] : memref<9x128x128xf32, #tpu.memory_space<vmem>>, vector<1x128x128xf32>
      %52 = vector.shape_cast %51 : vector<1x128x128xf32> to vector<128x128xf32>
      %cst_37 = arith.constant dense<0.000000e+00> : vector<24x128xf32>
      %53 = tpu.matmul %50, %52, %cst_37 {dimension_numbers = #tpu.dot_dimension_numbers<[1], [0], [0], [1], [0, 0, 1, 1], [], []>} : vector<24x128xf32>, vector<128x128xf32>, vector<24x128xf32> -> vector<24x128xf32>
      %54 = arith.addf %49, %53 : vector<24x128xf32>
      %55 = vector.extract_strided_slice %44 {offsets = [2, 0], sizes = [24, 128], strides = [1, 1]} : vector<26x128xf32> to vector<24x128xf32>
      %c8 = arith.constant 8 : index
      %c0_38 = arith.constant 0 : index
      %c0_39 = arith.constant 0 : index
      %56 = vector.load %arg2[%c8, %c0_38, %c0_39] : memref<9x128x128xf32, #tpu.memory_space<vmem>>, vector<1x128x128xf32>
      %57 = vector.shape_cast %56 : vector<1x128x128xf32> to vector<128x128xf32>
      %cst_40 = arith.constant dense<0.000000e+00> : vector<24x128xf32>
      %58 = tpu.matmul %55, %57, %cst_40 {dimension_numbers = #tpu.dot_dimension_numbers<[1], [0], [0], [1], [0, 0, 1, 1], [], []>} : vector<24x128xf32>, vector<128x128xf32>, vector<24x128xf32> -> vector<24x128xf32>
      %59 = arith.addf %54, %58 : vector<24x128xf32>
      %60 = vector.broadcast %0 : vector<1x128xf32> to vector<24x128xf32>
      %61 = arith.addf %59, %60 : vector<24x128xf32>
      %cst_41 = arith.constant 0.000000e+00 : f32
      %62 = vector.broadcast %cst_41 : f32 to vector<24x128xf32>
      %63 = arith.maximumf %61, %62 : vector<24x128xf32>
      %c0_42 = arith.constant 0 : index
      %64 = arith.index_cast %arg5 : i32 to index
      %c0_43 = arith.constant 0 : index
      %c0_44 = arith.constant 0 : index
      %65 = vector.load %arg4[%c0_42, %64, %c0_43, %c0_44] : memref<1x24x24x128xf32, #tpu.memory_space<vmem>>, vector<1x1x24x128xf32>
      %66 = vector.shape_cast %65 : vector<1x1x24x128xf32> to vector<24x128xf32>
      %67 = vector.shape_cast %63 : vector<24x128xf32> to vector<1x1x24x128xf32>
      tpu.vector_store %arg4[%c0_42, %64, %c0_43, %c0_44], %67 {strides = array<i32>} : memref<1x24x24x128xf32, #tpu.memory_space<vmem>>, vector<1x1x24x128xf32>,
    }
    %c24_i32_1 = arith.constant 24 : i32
    return
  }
  func.func @transform_0(%arg0: i32) -> (i32, i32, i32, i32) {
    %c0_i32 = arith.constant 0 : i32
    %c0_i32_0 = arith.constant 0 : i32
    %c0_i32_1 = arith.constant 0 : i32
    %c0_i32_2 = arith.constant 0 : i32
    return %arg0, %c0_i32, %c0_i32_0, %c0_i32_1 : i32, i32, i32, i32
  }
  func.func @transform_1(%arg0: i32) -> (i32, i32, i32) {
    %c0_i32 = arith.constant 0 : i32
    %c0_i32_0 = arith.constant 0 : i32
    %c0_i32_1 = arith.constant 0 : i32
    %c0_i32_2 = arith.constant 0 : i32
    return %c0_i32, %c0_i32_0, %c0_i32_1 : i32, i32, i32
  }
  func.func @transform_2(%arg0: i32) -> (i32, i32) {
    %c0_i32 = arith.constant 0 : i32
    %c0_i32_0 = arith.constant 0 : i32
    %c0_i32_1 = arith.constant 0 : i32
    return %c0_i32, %c0_i32_0 : i32, i32
  }
  func.func @transform_3(%arg0: i32) -> (i32, i32, i32, i32) {
    %c0_i32 = arith.constant 0 : i32
    %c0_i32_0 = arith.constant 0 : i32
    %c0_i32_1 = arith.constant 0 : i32
    %c0_i32_2 = arith.constant 0 : i32
    return %arg0, %c0_i32, %c0_i32_0, %c0_i32_1 : i32, i32, i32, i32
  }
}

module attributes {stable_mosaic.version = 11 : i64} {
  func.func @_pool2x2_kernel(%arg0: i32, %arg1: memref<1x24x12x2x128xf32, #tpu.memory_space<vmem>>, %arg2: memref<1x12x12x128xf32, #tpu.memory_space<vmem>>) attributes {dimension_semantics = [#tpu.dimension_semantics<parallel>], iteration_bounds = array<i64: 2>, scalar_prefetch = 0 : i64, scratch_operands = 0 : i64, tpu.core_type = #tpu.core_type<tc>, window_params = [{transform_indices = @transform_0, window_bounds = array<i64: 1, 24, 12, 2, 128>}, {transform_indices = @transform_1, window_bounds = array<i64: 1, 12, 12, 128>}]} {
    %c0_i32 = arith.constant 0 : i32
    %c12_i32 = arith.constant 12 : i32
    %0 = arith.addi %c0_i32, %c12_i32 : i32
    %c1_i32 = arith.constant 1 : i32
    scf.for %arg3 = %c0_i32 to %0 step %c1_i32  : i32 {
      %c2_i32 = arith.constant 2 : i32
      %1 = arith.muli %c2_i32, %arg3 : i32
      %c0 = arith.constant 0 : index
      %2 = arith.index_cast %1 : i32 to index
      %c0_1 = arith.constant 0 : index
      %c0_2 = arith.constant 0 : index
      %c0_3 = arith.constant 0 : index
      %3 = vector.load %arg1[%c0, %2, %c0_1, %c0_2, %c0_3] : memref<1x24x12x2x128xf32, #tpu.memory_space<vmem>>, vector<1x1x12x2x128xf32>
      %4 = vector.shape_cast %3 : vector<1x1x12x2x128xf32> to vector<12x2x128xf32>
      %c2_i32_4 = arith.constant 2 : i32
      %5 = arith.muli %c2_i32_4, %arg3 : i32
      %c1_i32_5 = arith.constant 1 : i32
      %6 = arith.addi %5, %c1_i32_5 : i32
      %c0_6 = arith.constant 0 : index
      %7 = arith.index_cast %6 : i32 to index
      %c0_7 = arith.constant 0 : index
      %c0_8 = arith.constant 0 : index
      %c0_9 = arith.constant 0 : index
      %8 = vector.load %arg1[%c0_6, %7, %c0_7, %c0_8, %c0_9] : memref<1x24x12x2x128xf32, #tpu.memory_space<vmem>>, vector<1x1x12x2x128xf32>
      %9 = vector.shape_cast %8 : vector<1x1x12x2x128xf32> to vector<12x2x128xf32>
      %10 = arith.maximumf %4, %9 : vector<12x2x128xf32>
      %cst = arith.constant dense<0xFF800000> : vector<12x128xf32>
      %11 = vector.multi_reduction <maximumf>, %10, %cst [1] : vector<12x2x128xf32> to vector<12x128xf32>
      %c0_10 = arith.constant 0 : index
      %12 = arith.index_cast %arg3 : i32 to index
      %c0_11 = arith.constant 0 : index
      %c0_12 = arith.constant 0 : index
      %13 = vector.load %arg2[%c0_10, %12, %c0_11, %c0_12] : memref<1x12x12x128xf32, #tpu.memory_space<vmem>>, vector<1x1x12x128xf32>
      %14 = vector.shape_cast %13 : vector<1x1x12x128xf32> to vector<12x128xf32>
      %15 = vector.shape_cast %11 : vector<12x128xf32> to vector<1x1x12x128xf32>
      tpu.vector_store %arg2[%c0_10, %12, %c0_11, %c0_12], %15 {strides = array<i32>} : memref<1x12x12x128xf32, #tpu.memory_space<vmem>>, vector<1x1x12x128xf32>,
    }
    %c12_i32_0 = arith.constant 12 : i32
    return
  }
  func.func @transform_0(%arg0: i32) -> (i32, i32, i32, i32, i32) {
    %c0_i32 = arith.constant 0 : i32
    %c0_i32_0 = arith.constant 0 : i32
    %c0_i32_1 = arith.constant 0 : i32
    %c0_i32_2 = arith.constant 0 : i32
    %c0_i32_3 = arith.constant 0 : i32
    return %arg0, %c0_i32, %c0_i32_0, %c0_i32_1, %c0_i32_2 : i32, i32, i32, i32, i32
  }
  func.func @transform_1(%arg0: i32) -> (i32, i32, i32, i32) {
    %c0_i32 = arith.constant 0 : i32
    %c0_i32_0 = arith.constant 0 : i32
    %c0_i32_1 = arith.constant 0 : i32
    %c0_i32_2 = arith.constant 0 : i32
    return %arg0, %c0_i32, %c0_i32_0, %c0_i32_1 : i32, i32, i32, i32
  }
}

module attributes {stable_mosaic.version = 11 : i64} {
  func.func @_gconv_kernel(%arg0: i32, %arg1: memref<1x12x12x128xf32, #tpu.memory_space<vmem>>, %arg2: memref<9x128x128xf32, #tpu.memory_space<vmem>>, %arg3: memref<1x128xf32, #tpu.memory_space<vmem>>, %arg4: memref<1x10x10x128xf32, #tpu.memory_space<vmem>>) attributes {dimension_semantics = [#tpu.dimension_semantics<parallel>], iteration_bounds = array<i64: 2>, scalar_prefetch = 0 : i64, scratch_operands = 0 : i64, tpu.core_type = #tpu.core_type<tc>, window_params = [{transform_indices = @transform_0, window_bounds = array<i64: 1, 12, 12, 128>}, {pipeline_mode = #tpu.pipeline_mode<synchronous>, transform_indices = @transform_1, window_bounds = array<i64: 9, 128, 128>}, {pipeline_mode = #tpu.pipeline_mode<synchronous>, transform_indices = @transform_2, window_bounds = array<i64: 1, 128>}, {transform_indices = @transform_3, window_bounds = array<i64: 1, 10, 10, 128>}]} {
    %c0 = arith.constant 0 : index
    %c0_0 = arith.constant 0 : index
    %0 = vector.load %arg3[%c0, %c0_0] : memref<1x128xf32, #tpu.memory_space<vmem>>, vector<1x128xf32>
    %c0_i32 = arith.constant 0 : i32
    %c10_i32 = arith.constant 10 : i32
    %1 = arith.addi %c0_i32, %c10_i32 : i32
    %c1_i32 = arith.constant 1 : i32
    scf.for %arg5 = %c0_i32 to %1 step %c1_i32  : i32 {
      %cst = arith.constant 0.000000e+00 : f32
      %2 = vector.broadcast %cst : f32 to vector<10x128xf32>
      %c0_i32_2 = arith.constant 0 : i32
      %3 = arith.addi %arg5, %c0_i32_2 : i32
      %c0_3 = arith.constant 0 : index
      %4 = arith.index_cast %3 : i32 to index
      %c0_4 = arith.constant 0 : index
      %c0_5 = arith.constant 0 : index
      %5 = vector.load %arg1[%c0_3, %4, %c0_4, %c0_5] : memref<1x12x12x128xf32, #tpu.memory_space<vmem>>, vector<1x1x12x128xf32>
      %6 = vector.shape_cast %5 : vector<1x1x12x128xf32> to vector<12x128xf32>
      %7 = vector.extract_strided_slice %6 {offsets = [0, 0], sizes = [10, 128], strides = [1, 1]} : vector<12x128xf32> to vector<10x128xf32>
      %c0_6 = arith.constant 0 : index
      %c0_7 = arith.constant 0 : index
      %c0_8 = arith.constant 0 : index
      %8 = vector.load %arg2[%c0_6, %c0_7, %c0_8] : memref<9x128x128xf32, #tpu.memory_space<vmem>>, vector<1x128x128xf32>
      %9 = vector.shape_cast %8 : vector<1x128x128xf32> to vector<128x128xf32>
      %cst_9 = arith.constant dense<0.000000e+00> : vector<10x128xf32>
      %10 = tpu.matmul %7, %9, %cst_9 {dimension_numbers = #tpu.dot_dimension_numbers<[1], [0], [0], [1], [0, 0, 1, 1], [], []>} : vector<10x128xf32>, vector<128x128xf32>, vector<10x128xf32> -> vector<10x128xf32>
      %11 = arith.addf %2, %10 : vector<10x128xf32>
      %12 = vector.extract_strided_slice %6 {offsets = [1, 0], sizes = [10, 128], strides = [1, 1]} : vector<12x128xf32> to vector<10x128xf32>
      %c1 = arith.constant 1 : index
      %c0_10 = arith.constant 0 : index
      %c0_11 = arith.constant 0 : index
      %13 = vector.load %arg2[%c1, %c0_10, %c0_11] : memref<9x128x128xf32, #tpu.memory_space<vmem>>, vector<1x128x128xf32>
      %14 = vector.shape_cast %13 : vector<1x128x128xf32> to vector<128x128xf32>
      %cst_12 = arith.constant dense<0.000000e+00> : vector<10x128xf32>
      %15 = tpu.matmul %12, %14, %cst_12 {dimension_numbers = #tpu.dot_dimension_numbers<[1], [0], [0], [1], [0, 0, 1, 1], [], []>} : vector<10x128xf32>, vector<128x128xf32>, vector<10x128xf32> -> vector<10x128xf32>
      %16 = arith.addf %11, %15 : vector<10x128xf32>
      %17 = vector.extract_strided_slice %6 {offsets = [2, 0], sizes = [10, 128], strides = [1, 1]} : vector<12x128xf32> to vector<10x128xf32>
      %c2 = arith.constant 2 : index
      %c0_13 = arith.constant 0 : index
      %c0_14 = arith.constant 0 : index
      %18 = vector.load %arg2[%c2, %c0_13, %c0_14] : memref<9x128x128xf32, #tpu.memory_space<vmem>>, vector<1x128x128xf32>
      %19 = vector.shape_cast %18 : vector<1x128x128xf32> to vector<128x128xf32>
      %cst_15 = arith.constant dense<0.000000e+00> : vector<10x128xf32>
      %20 = tpu.matmul %17, %19, %cst_15 {dimension_numbers = #tpu.dot_dimension_numbers<[1], [0], [0], [1], [0, 0, 1, 1], [], []>} : vector<10x128xf32>, vector<128x128xf32>, vector<10x128xf32> -> vector<10x128xf32>
      %21 = arith.addf %16, %20 : vector<10x128xf32>
      %c1_i32_16 = arith.constant 1 : i32
      %22 = arith.addi %arg5, %c1_i32_16 : i32
      %c0_17 = arith.constant 0 : index
      %23 = arith.index_cast %22 : i32 to index
      %c0_18 = arith.constant 0 : index
      %c0_19 = arith.constant 0 : index
      %24 = vector.load %arg1[%c0_17, %23, %c0_18, %c0_19] : memref<1x12x12x128xf32, #tpu.memory_space<vmem>>, vector<1x1x12x128xf32>
      %25 = vector.shape_cast %24 : vector<1x1x12x128xf32> to vector<12x128xf32>
      %26 = vector.extract_strided_slice %25 {offsets = [0, 0], sizes = [10, 128], strides = [1, 1]} : vector<12x128xf32> to vector<10x128xf32>
      %c3 = arith.constant 3 : index
      %c0_20 = arith.constant 0 : index
      %c0_21 = arith.constant 0 : index
      %27 = vector.load %arg2[%c3, %c0_20, %c0_21] : memref<9x128x128xf32, #tpu.memory_space<vmem>>, vector<1x128x128xf32>
      %28 = vector.shape_cast %27 : vector<1x128x128xf32> to vector<128x128xf32>
      %cst_22 = arith.constant dense<0.000000e+00> : vector<10x128xf32>
      %29 = tpu.matmul %26, %28, %cst_22 {dimension_numbers = #tpu.dot_dimension_numbers<[1], [0], [0], [1], [0, 0, 1, 1], [], []>} : vector<10x128xf32>, vector<128x128xf32>, vector<10x128xf32> -> vector<10x128xf32>
      %30 = arith.addf %21, %29 : vector<10x128xf32>
      %31 = vector.extract_strided_slice %25 {offsets = [1, 0], sizes = [10, 128], strides = [1, 1]} : vector<12x128xf32> to vector<10x128xf32>
      %c4 = arith.constant 4 : index
      %c0_23 = arith.constant 0 : index
      %c0_24 = arith.constant 0 : index
      %32 = vector.load %arg2[%c4, %c0_23, %c0_24] : memref<9x128x128xf32, #tpu.memory_space<vmem>>, vector<1x128x128xf32>
      %33 = vector.shape_cast %32 : vector<1x128x128xf32> to vector<128x128xf32>
      %cst_25 = arith.constant dense<0.000000e+00> : vector<10x128xf32>
      %34 = tpu.matmul %31, %33, %cst_25 {dimension_numbers = #tpu.dot_dimension_numbers<[1], [0], [0], [1], [0, 0, 1, 1], [], []>} : vector<10x128xf32>, vector<128x128xf32>, vector<10x128xf32> -> vector<10x128xf32>
      %35 = arith.addf %30, %34 : vector<10x128xf32>
      %36 = vector.extract_strided_slice %25 {offsets = [2, 0], sizes = [10, 128], strides = [1, 1]} : vector<12x128xf32> to vector<10x128xf32>
      %c5 = arith.constant 5 : index
      %c0_26 = arith.constant 0 : index
      %c0_27 = arith.constant 0 : index
      %37 = vector.load %arg2[%c5, %c0_26, %c0_27] : memref<9x128x128xf32, #tpu.memory_space<vmem>>, vector<1x128x128xf32>
      %38 = vector.shape_cast %37 : vector<1x128x128xf32> to vector<128x128xf32>
      %cst_28 = arith.constant dense<0.000000e+00> : vector<10x128xf32>
      %39 = tpu.matmul %36, %38, %cst_28 {dimension_numbers = #tpu.dot_dimension_numbers<[1], [0], [0], [1], [0, 0, 1, 1], [], []>} : vector<10x128xf32>, vector<128x128xf32>, vector<10x128xf32> -> vector<10x128xf32>
      %40 = arith.addf %35, %39 : vector<10x128xf32>
      %c2_i32 = arith.constant 2 : i32
      %41 = arith.addi %arg5, %c2_i32 : i32
      %c0_29 = arith.constant 0 : index
      %42 = arith.index_cast %41 : i32 to index
      %c0_30 = arith.constant 0 : index
      %c0_31 = arith.constant 0 : index
      %43 = vector.load %arg1[%c0_29, %42, %c0_30, %c0_31] : memref<1x12x12x128xf32, #tpu.memory_space<vmem>>, vector<1x1x12x128xf32>
      %44 = vector.shape_cast %43 : vector<1x1x12x128xf32> to vector<12x128xf32>
      %45 = vector.extract_strided_slice %44 {offsets = [0, 0], sizes = [10, 128], strides = [1, 1]} : vector<12x128xf32> to vector<10x128xf32>
      %c6 = arith.constant 6 : index
      %c0_32 = arith.constant 0 : index
      %c0_33 = arith.constant 0 : index
      %46 = vector.load %arg2[%c6, %c0_32, %c0_33] : memref<9x128x128xf32, #tpu.memory_space<vmem>>, vector<1x128x128xf32>
      %47 = vector.shape_cast %46 : vector<1x128x128xf32> to vector<128x128xf32>
      %cst_34 = arith.constant dense<0.000000e+00> : vector<10x128xf32>
      %48 = tpu.matmul %45, %47, %cst_34 {dimension_numbers = #tpu.dot_dimension_numbers<[1], [0], [0], [1], [0, 0, 1, 1], [], []>} : vector<10x128xf32>, vector<128x128xf32>, vector<10x128xf32> -> vector<10x128xf32>
      %49 = arith.addf %40, %48 : vector<10x128xf32>
      %50 = vector.extract_strided_slice %44 {offsets = [1, 0], sizes = [10, 128], strides = [1, 1]} : vector<12x128xf32> to vector<10x128xf32>
      %c7 = arith.constant 7 : index
      %c0_35 = arith.constant 0 : index
      %c0_36 = arith.constant 0 : index
      %51 = vector.load %arg2[%c7, %c0_35, %c0_36] : memref<9x128x128xf32, #tpu.memory_space<vmem>>, vector<1x128x128xf32>
      %52 = vector.shape_cast %51 : vector<1x128x128xf32> to vector<128x128xf32>
      %cst_37 = arith.constant dense<0.000000e+00> : vector<10x128xf32>
      %53 = tpu.matmul %50, %52, %cst_37 {dimension_numbers = #tpu.dot_dimension_numbers<[1], [0], [0], [1], [0, 0, 1, 1], [], []>} : vector<10x128xf32>, vector<128x128xf32>, vector<10x128xf32> -> vector<10x128xf32>
      %54 = arith.addf %49, %53 : vector<10x128xf32>
      %55 = vector.extract_strided_slice %44 {offsets = [2, 0], sizes = [10, 128], strides = [1, 1]} : vector<12x128xf32> to vector<10x128xf32>
      %c8 = arith.constant 8 : index
      %c0_38 = arith.constant 0 : index
      %c0_39 = arith.constant 0 : index
      %56 = vector.load %arg2[%c8, %c0_38, %c0_39] : memref<9x128x128xf32, #tpu.memory_space<vmem>>, vector<1x128x128xf32>
      %57 = vector.shape_cast %56 : vector<1x128x128xf32> to vector<128x128xf32>
      %cst_40 = arith.constant dense<0.000000e+00> : vector<10x128xf32>
      %58 = tpu.matmul %55, %57, %cst_40 {dimension_numbers = #tpu.dot_dimension_numbers<[1], [0], [0], [1], [0, 0, 1, 1], [], []>} : vector<10x128xf32>, vector<128x128xf32>, vector<10x128xf32> -> vector<10x128xf32>
      %59 = arith.addf %54, %58 : vector<10x128xf32>
      %60 = vector.broadcast %0 : vector<1x128xf32> to vector<10x128xf32>
      %61 = arith.addf %59, %60 : vector<10x128xf32>
      %cst_41 = arith.constant 0.000000e+00 : f32
      %62 = vector.broadcast %cst_41 : f32 to vector<10x128xf32>
      %63 = arith.maximumf %61, %62 : vector<10x128xf32>
      %c0_42 = arith.constant 0 : index
      %64 = arith.index_cast %arg5 : i32 to index
      %c0_43 = arith.constant 0 : index
      %c0_44 = arith.constant 0 : index
      %65 = vector.load %arg4[%c0_42, %64, %c0_43, %c0_44] : memref<1x10x10x128xf32, #tpu.memory_space<vmem>>, vector<1x1x10x128xf32>
      %66 = vector.shape_cast %65 : vector<1x1x10x128xf32> to vector<10x128xf32>
      %67 = vector.shape_cast %63 : vector<10x128xf32> to vector<1x1x10x128xf32>
      tpu.vector_store %arg4[%c0_42, %64, %c0_43, %c0_44], %67 {strides = array<i32>} : memref<1x10x10x128xf32, #tpu.memory_space<vmem>>, vector<1x1x10x128xf32>,
    }
    %c10_i32_1 = arith.constant 10 : i32
    return
  }
  func.func @transform_0(%arg0: i32) -> (i32, i32, i32, i32) {
    %c0_i32 = arith.constant 0 : i32
    %c0_i32_0 = arith.constant 0 : i32
    %c0_i32_1 = arith.constant 0 : i32
    %c0_i32_2 = arith.constant 0 : i32
    return %arg0, %c0_i32, %c0_i32_0, %c0_i32_1 : i32, i32, i32, i32
  }
  func.func @transform_1(%arg0: i32) -> (i32, i32, i32) {
    %c0_i32 = arith.constant 0 : i32
    %c0_i32_0 = arith.constant 0 : i32
    %c0_i32_1 = arith.constant 0 : i32
    %c0_i32_2 = arith.constant 0 : i32
    return %c0_i32, %c0_i32_0, %c0_i32_1 : i32, i32, i32
  }
  func.func @transform_2(%arg0: i32) -> (i32, i32) {
    %c0_i32 = arith.constant 0 : i32
    %c0_i32_0 = arith.constant 0 : i32
    %c0_i32_1 = arith.constant 0 : i32
    return %c0_i32, %c0_i32_0 : i32, i32
  }
  func.func @transform_3(%arg0: i32) -> (i32, i32, i32, i32) {
    %c0_i32 = arith.constant 0 : i32
    %c0_i32_0 = arith.constant 0 : i32
    %c0_i32_1 = arith.constant 0 : i32
    %c0_i32_2 = arith.constant 0 : i32
    return %arg0, %c0_i32, %c0_i32_0, %c0_i32_1 : i32, i32, i32, i32
  }
}

module attributes {stable_mosaic.version = 11 : i64} {
  func.func @_gconv_kernel(%arg0: i32, %arg1: memref<1x10x10x128xf32, #tpu.memory_space<vmem>>, %arg2: memref<9x128x128xf32, #tpu.memory_space<vmem>>, %arg3: memref<1x128xf32, #tpu.memory_space<vmem>>, %arg4: memref<1x8x8x128xf32, #tpu.memory_space<vmem>>) attributes {dimension_semantics = [#tpu.dimension_semantics<parallel>], iteration_bounds = array<i64: 2>, scalar_prefetch = 0 : i64, scratch_operands = 0 : i64, tpu.core_type = #tpu.core_type<tc>, window_params = [{transform_indices = @transform_0, window_bounds = array<i64: 1, 10, 10, 128>}, {pipeline_mode = #tpu.pipeline_mode<synchronous>, transform_indices = @transform_1, window_bounds = array<i64: 9, 128, 128>}, {pipeline_mode = #tpu.pipeline_mode<synchronous>, transform_indices = @transform_2, window_bounds = array<i64: 1, 128>}, {transform_indices = @transform_3, window_bounds = array<i64: 1, 8, 8, 128>}]} {
    %c0 = arith.constant 0 : index
    %c0_0 = arith.constant 0 : index
    %0 = vector.load %arg3[%c0, %c0_0] : memref<1x128xf32, #tpu.memory_space<vmem>>, vector<1x128xf32>
    %c0_i32 = arith.constant 0 : i32
    %c8_i32 = arith.constant 8 : i32
    %1 = arith.addi %c0_i32, %c8_i32 : i32
    %c1_i32 = arith.constant 1 : i32
    scf.for %arg5 = %c0_i32 to %1 step %c1_i32  : i32 {
      %cst = arith.constant 0.000000e+00 : f32
      %2 = vector.broadcast %cst : f32 to vector<8x128xf32>
      %c0_i32_2 = arith.constant 0 : i32
      %3 = arith.addi %arg5, %c0_i32_2 : i32
      %c0_3 = arith.constant 0 : index
      %4 = arith.index_cast %3 : i32 to index
      %c0_4 = arith.constant 0 : index
      %c0_5 = arith.constant 0 : index
      %5 = vector.load %arg1[%c0_3, %4, %c0_4, %c0_5] : memref<1x10x10x128xf32, #tpu.memory_space<vmem>>, vector<1x1x10x128xf32>
      %6 = vector.shape_cast %5 : vector<1x1x10x128xf32> to vector<10x128xf32>
      %7 = vector.extract_strided_slice %6 {offsets = [0, 0], sizes = [8, 128], strides = [1, 1]} : vector<10x128xf32> to vector<8x128xf32>
      %c0_6 = arith.constant 0 : index
      %c0_7 = arith.constant 0 : index
      %c0_8 = arith.constant 0 : index
      %8 = vector.load %arg2[%c0_6, %c0_7, %c0_8] : memref<9x128x128xf32, #tpu.memory_space<vmem>>, vector<1x128x128xf32>
      %9 = vector.shape_cast %8 : vector<1x128x128xf32> to vector<128x128xf32>
      %cst_9 = arith.constant dense<0.000000e+00> : vector<8x128xf32>
      %10 = tpu.matmul %7, %9, %cst_9 {dimension_numbers = #tpu.dot_dimension_numbers<[1], [0], [0], [1], [0, 0, 1, 1], [], []>} : vector<8x128xf32>, vector<128x128xf32>, vector<8x128xf32> -> vector<8x128xf32>
      %11 = arith.addf %2, %10 : vector<8x128xf32>
      %12 = vector.extract_strided_slice %6 {offsets = [1, 0], sizes = [8, 128], strides = [1, 1]} : vector<10x128xf32> to vector<8x128xf32>
      %c1 = arith.constant 1 : index
      %c0_10 = arith.constant 0 : index
      %c0_11 = arith.constant 0 : index
      %13 = vector.load %arg2[%c1, %c0_10, %c0_11] : memref<9x128x128xf32, #tpu.memory_space<vmem>>, vector<1x128x128xf32>
      %14 = vector.shape_cast %13 : vector<1x128x128xf32> to vector<128x128xf32>
      %cst_12 = arith.constant dense<0.000000e+00> : vector<8x128xf32>
      %15 = tpu.matmul %12, %14, %cst_12 {dimension_numbers = #tpu.dot_dimension_numbers<[1], [0], [0], [1], [0, 0, 1, 1], [], []>} : vector<8x128xf32>, vector<128x128xf32>, vector<8x128xf32> -> vector<8x128xf32>
      %16 = arith.addf %11, %15 : vector<8x128xf32>
      %17 = vector.extract_strided_slice %6 {offsets = [2, 0], sizes = [8, 128], strides = [1, 1]} : vector<10x128xf32> to vector<8x128xf32>
      %c2 = arith.constant 2 : index
      %c0_13 = arith.constant 0 : index
      %c0_14 = arith.constant 0 : index
      %18 = vector.load %arg2[%c2, %c0_13, %c0_14] : memref<9x128x128xf32, #tpu.memory_space<vmem>>, vector<1x128x128xf32>
      %19 = vector.shape_cast %18 : vector<1x128x128xf32> to vector<128x128xf32>
      %cst_15 = arith.constant dense<0.000000e+00> : vector<8x128xf32>
      %20 = tpu.matmul %17, %19, %cst_15 {dimension_numbers = #tpu.dot_dimension_numbers<[1], [0], [0], [1], [0, 0, 1, 1], [], []>} : vector<8x128xf32>, vector<128x128xf32>, vector<8x128xf32> -> vector<8x128xf32>
      %21 = arith.addf %16, %20 : vector<8x128xf32>
      %c1_i32_16 = arith.constant 1 : i32
      %22 = arith.addi %arg5, %c1_i32_16 : i32
      %c0_17 = arith.constant 0 : index
      %23 = arith.index_cast %22 : i32 to index
      %c0_18 = arith.constant 0 : index
      %c0_19 = arith.constant 0 : index
      %24 = vector.load %arg1[%c0_17, %23, %c0_18, %c0_19] : memref<1x10x10x128xf32, #tpu.memory_space<vmem>>, vector<1x1x10x128xf32>
      %25 = vector.shape_cast %24 : vector<1x1x10x128xf32> to vector<10x128xf32>
      %26 = vector.extract_strided_slice %25 {offsets = [0, 0], sizes = [8, 128], strides = [1, 1]} : vector<10x128xf32> to vector<8x128xf32>
      %c3 = arith.constant 3 : index
      %c0_20 = arith.constant 0 : index
      %c0_21 = arith.constant 0 : index
      %27 = vector.load %arg2[%c3, %c0_20, %c0_21] : memref<9x128x128xf32, #tpu.memory_space<vmem>>, vector<1x128x128xf32>
      %28 = vector.shape_cast %27 : vector<1x128x128xf32> to vector<128x128xf32>
      %cst_22 = arith.constant dense<0.000000e+00> : vector<8x128xf32>
      %29 = tpu.matmul %26, %28, %cst_22 {dimension_numbers = #tpu.dot_dimension_numbers<[1], [0], [0], [1], [0, 0, 1, 1], [], []>} : vector<8x128xf32>, vector<128x128xf32>, vector<8x128xf32> -> vector<8x128xf32>
      %30 = arith.addf %21, %29 : vector<8x128xf32>
      %31 = vector.extract_strided_slice %25 {offsets = [1, 0], sizes = [8, 128], strides = [1, 1]} : vector<10x128xf32> to vector<8x128xf32>
      %c4 = arith.constant 4 : index
      %c0_23 = arith.constant 0 : index
      %c0_24 = arith.constant 0 : index
      %32 = vector.load %arg2[%c4, %c0_23, %c0_24] : memref<9x128x128xf32, #tpu.memory_space<vmem>>, vector<1x128x128xf32>
      %33 = vector.shape_cast %32 : vector<1x128x128xf32> to vector<128x128xf32>
      %cst_25 = arith.constant dense<0.000000e+00> : vector<8x128xf32>
      %34 = tpu.matmul %31, %33, %cst_25 {dimension_numbers = #tpu.dot_dimension_numbers<[1], [0], [0], [1], [0, 0, 1, 1], [], []>} : vector<8x128xf32>, vector<128x128xf32>, vector<8x128xf32> -> vector<8x128xf32>
      %35 = arith.addf %30, %34 : vector<8x128xf32>
      %36 = vector.extract_strided_slice %25 {offsets = [2, 0], sizes = [8, 128], strides = [1, 1]} : vector<10x128xf32> to vector<8x128xf32>
      %c5 = arith.constant 5 : index
      %c0_26 = arith.constant 0 : index
      %c0_27 = arith.constant 0 : index
      %37 = vector.load %arg2[%c5, %c0_26, %c0_27] : memref<9x128x128xf32, #tpu.memory_space<vmem>>, vector<1x128x128xf32>
      %38 = vector.shape_cast %37 : vector<1x128x128xf32> to vector<128x128xf32>
      %cst_28 = arith.constant dense<0.000000e+00> : vector<8x128xf32>
      %39 = tpu.matmul %36, %38, %cst_28 {dimension_numbers = #tpu.dot_dimension_numbers<[1], [0], [0], [1], [0, 0, 1, 1], [], []>} : vector<8x128xf32>, vector<128x128xf32>, vector<8x128xf32> -> vector<8x128xf32>
      %40 = arith.addf %35, %39 : vector<8x128xf32>
      %c2_i32 = arith.constant 2 : i32
      %41 = arith.addi %arg5, %c2_i32 : i32
      %c0_29 = arith.constant 0 : index
      %42 = arith.index_cast %41 : i32 to index
      %c0_30 = arith.constant 0 : index
      %c0_31 = arith.constant 0 : index
      %43 = vector.load %arg1[%c0_29, %42, %c0_30, %c0_31] : memref<1x10x10x128xf32, #tpu.memory_space<vmem>>, vector<1x1x10x128xf32>
      %44 = vector.shape_cast %43 : vector<1x1x10x128xf32> to vector<10x128xf32>
      %45 = vector.extract_strided_slice %44 {offsets = [0, 0], sizes = [8, 128], strides = [1, 1]} : vector<10x128xf32> to vector<8x128xf32>
      %c6 = arith.constant 6 : index
      %c0_32 = arith.constant 0 : index
      %c0_33 = arith.constant 0 : index
      %46 = vector.load %arg2[%c6, %c0_32, %c0_33] : memref<9x128x128xf32, #tpu.memory_space<vmem>>, vector<1x128x128xf32>
      %47 = vector.shape_cast %46 : vector<1x128x128xf32> to vector<128x128xf32>
      %cst_34 = arith.constant dense<0.000000e+00> : vector<8x128xf32>
      %48 = tpu.matmul %45, %47, %cst_34 {dimension_numbers = #tpu.dot_dimension_numbers<[1], [0], [0], [1], [0, 0, 1, 1], [], []>} : vector<8x128xf32>, vector<128x128xf32>, vector<8x128xf32> -> vector<8x128xf32>
      %49 = arith.addf %40, %48 : vector<8x128xf32>
      %50 = vector.extract_strided_slice %44 {offsets = [1, 0], sizes = [8, 128], strides = [1, 1]} : vector<10x128xf32> to vector<8x128xf32>
      %c7 = arith.constant 7 : index
      %c0_35 = arith.constant 0 : index
      %c0_36 = arith.constant 0 : index
      %51 = vector.load %arg2[%c7, %c0_35, %c0_36] : memref<9x128x128xf32, #tpu.memory_space<vmem>>, vector<1x128x128xf32>
      %52 = vector.shape_cast %51 : vector<1x128x128xf32> to vector<128x128xf32>
      %cst_37 = arith.constant dense<0.000000e+00> : vector<8x128xf32>
      %53 = tpu.matmul %50, %52, %cst_37 {dimension_numbers = #tpu.dot_dimension_numbers<[1], [0], [0], [1], [0, 0, 1, 1], [], []>} : vector<8x128xf32>, vector<128x128xf32>, vector<8x128xf32> -> vector<8x128xf32>
      %54 = arith.addf %49, %53 : vector<8x128xf32>
      %55 = vector.extract_strided_slice %44 {offsets = [2, 0], sizes = [8, 128], strides = [1, 1]} : vector<10x128xf32> to vector<8x128xf32>
      %c8 = arith.constant 8 : index
      %c0_38 = arith.constant 0 : index
      %c0_39 = arith.constant 0 : index
      %56 = vector.load %arg2[%c8, %c0_38, %c0_39] : memref<9x128x128xf32, #tpu.memory_space<vmem>>, vector<1x128x128xf32>
      %57 = vector.shape_cast %56 : vector<1x128x128xf32> to vector<128x128xf32>
      %cst_40 = arith.constant dense<0.000000e+00> : vector<8x128xf32>
      %58 = tpu.matmul %55, %57, %cst_40 {dimension_numbers = #tpu.dot_dimension_numbers<[1], [0], [0], [1], [0, 0, 1, 1], [], []>} : vector<8x128xf32>, vector<128x128xf32>, vector<8x128xf32> -> vector<8x128xf32>
      %59 = arith.addf %54, %58 : vector<8x128xf32>
      %60 = vector.broadcast %0 : vector<1x128xf32> to vector<8x128xf32>
      %61 = arith.addf %59, %60 : vector<8x128xf32>
      %cst_41 = arith.constant 0.000000e+00 : f32
      %62 = vector.broadcast %cst_41 : f32 to vector<8x128xf32>
      %63 = arith.maximumf %61, %62 : vector<8x128xf32>
      %c0_42 = arith.constant 0 : index
      %64 = arith.index_cast %arg5 : i32 to index
      %c0_43 = arith.constant 0 : index
      %c0_44 = arith.constant 0 : index
      %65 = vector.load %arg4[%c0_42, %64, %c0_43, %c0_44] : memref<1x8x8x128xf32, #tpu.memory_space<vmem>>, vector<1x1x8x128xf32>
      %66 = vector.shape_cast %65 : vector<1x1x8x128xf32> to vector<8x128xf32>
      %67 = vector.shape_cast %63 : vector<8x128xf32> to vector<1x1x8x128xf32>
      tpu.vector_store %arg4[%c0_42, %64, %c0_43, %c0_44], %67 {strides = array<i32>} : memref<1x8x8x128xf32, #tpu.memory_space<vmem>>, vector<1x1x8x128xf32>,
    }
    %c8_i32_1 = arith.constant 8 : i32
    return
  }
  func.func @transform_0(%arg0: i32) -> (i32, i32, i32, i32) {
    %c0_i32 = arith.constant 0 : i32
    %c0_i32_0 = arith.constant 0 : i32
    %c0_i32_1 = arith.constant 0 : i32
    %c0_i32_2 = arith.constant 0 : i32
    return %arg0, %c0_i32, %c0_i32_0, %c0_i32_1 : i32, i32, i32, i32
  }
  func.func @transform_1(%arg0: i32) -> (i32, i32, i32) {
    %c0_i32 = arith.constant 0 : i32
    %c0_i32_0 = arith.constant 0 : i32
    %c0_i32_1 = arith.constant 0 : i32
    %c0_i32_2 = arith.constant 0 : i32
    return %c0_i32, %c0_i32_0, %c0_i32_1 : i32, i32, i32
  }
  func.func @transform_2(%arg0: i32) -> (i32, i32) {
    %c0_i32 = arith.constant 0 : i32
    %c0_i32_0 = arith.constant 0 : i32
    %c0_i32_1 = arith.constant 0 : i32
    return %c0_i32, %c0_i32_0 : i32, i32
  }
  func.func @transform_3(%arg0: i32) -> (i32, i32, i32, i32) {
    %c0_i32 = arith.constant 0 : i32
    %c0_i32_0 = arith.constant 0 : i32
    %c0_i32_1 = arith.constant 0 : i32
    %c0_i32_2 = arith.constant 0 : i32
    return %arg0, %c0_i32, %c0_i32_0, %c0_i32_1 : i32, i32, i32, i32
  }
}

module attributes {stable_mosaic.version = 11 : i64} {
  func.func @_pool2x2_kernel(%arg0: i32, %arg1: memref<1x8x4x2x128xf32, #tpu.memory_space<vmem>>, %arg2: memref<1x4x4x128xf32, #tpu.memory_space<vmem>>) attributes {dimension_semantics = [#tpu.dimension_semantics<parallel>], iteration_bounds = array<i64: 2>, scalar_prefetch = 0 : i64, scratch_operands = 0 : i64, tpu.core_type = #tpu.core_type<tc>, window_params = [{transform_indices = @transform_0, window_bounds = array<i64: 1, 8, 4, 2, 128>}, {transform_indices = @transform_1, window_bounds = array<i64: 1, 4, 4, 128>}]} {
    %c0_i32 = arith.constant 0 : i32
    %c4_i32 = arith.constant 4 : i32
    %0 = arith.addi %c0_i32, %c4_i32 : i32
    %c1_i32 = arith.constant 1 : i32
    scf.for %arg3 = %c0_i32 to %0 step %c1_i32  : i32 {
      %c2_i32 = arith.constant 2 : i32
      %1 = arith.muli %c2_i32, %arg3 : i32
      %c0 = arith.constant 0 : index
      %2 = arith.index_cast %1 : i32 to index
      %c0_1 = arith.constant 0 : index
      %c0_2 = arith.constant 0 : index
      %c0_3 = arith.constant 0 : index
      %3 = vector.load %arg1[%c0, %2, %c0_1, %c0_2, %c0_3] : memref<1x8x4x2x128xf32, #tpu.memory_space<vmem>>, vector<1x1x4x2x128xf32>
      %4 = vector.shape_cast %3 : vector<1x1x4x2x128xf32> to vector<4x2x128xf32>
      %c2_i32_4 = arith.constant 2 : i32
      %5 = arith.muli %c2_i32_4, %arg3 : i32
      %c1_i32_5 = arith.constant 1 : i32
      %6 = arith.addi %5, %c1_i32_5 : i32
      %c0_6 = arith.constant 0 : index
      %7 = arith.index_cast %6 : i32 to index
      %c0_7 = arith.constant 0 : index
      %c0_8 = arith.constant 0 : index
      %c0_9 = arith.constant 0 : index
      %8 = vector.load %arg1[%c0_6, %7, %c0_7, %c0_8, %c0_9] : memref<1x8x4x2x128xf32, #tpu.memory_space<vmem>>, vector<1x1x4x2x128xf32>
      %9 = vector.shape_cast %8 : vector<1x1x4x2x128xf32> to vector<4x2x128xf32>
      %10 = arith.maximumf %4, %9 : vector<4x2x128xf32>
      %cst = arith.constant dense<0xFF800000> : vector<4x128xf32>
      %11 = vector.multi_reduction <maximumf>, %10, %cst [1] : vector<4x2x128xf32> to vector<4x128xf32>
      %c0_10 = arith.constant 0 : index
      %12 = arith.index_cast %arg3 : i32 to index
      %c0_11 = arith.constant 0 : index
      %c0_12 = arith.constant 0 : index
      %13 = vector.load %arg2[%c0_10, %12, %c0_11, %c0_12] : memref<1x4x4x128xf32, #tpu.memory_space<vmem>>, vector<1x1x4x128xf32>
      %14 = vector.shape_cast %13 : vector<1x1x4x128xf32> to vector<4x128xf32>
      %15 = vector.shape_cast %11 : vector<4x128xf32> to vector<1x1x4x128xf32>
      tpu.vector_store %arg2[%c0_10, %12, %c0_11, %c0_12], %15 {strides = array<i32>} : memref<1x4x4x128xf32, #tpu.memory_space<vmem>>, vector<1x1x4x128xf32>,
    }
    %c4_i32_0 = arith.constant 4 : i32
    return
  }
  func.func @transform_0(%arg0: i32) -> (i32, i32, i32, i32, i32) {
    %c0_i32 = arith.constant 0 : i32
    %c0_i32_0 = arith.constant 0 : i32
    %c0_i32_1 = arith.constant 0 : i32
    %c0_i32_2 = arith.constant 0 : i32
    %c0_i32_3 = arith.constant 0 : i32
    return %arg0, %c0_i32, %c0_i32_0, %c0_i32_1, %c0_i32_2 : i32, i32, i32, i32, i32
  }
  func.func @transform_1(%arg0: i32) -> (i32, i32, i32, i32) {
    %c0_i32 = arith.constant 0 : i32
    %c0_i32_0 = arith.constant 0 : i32
    %c0_i32_1 = arith.constant 0 : i32
    %c0_i32_2 = arith.constant 0 : i32
    return %arg0, %c0_i32, %c0_i32_0, %c0_i32_1 : i32, i32, i32, i32
  }
}

module attributes {stable_mosaic.version = 11 : i64} {
  func.func @_head_kernel(%arg0: i32, %arg1: memref<2x2048xf32, #tpu.memory_space<vmem>>, %arg2: memref<2048x128xf32, #tpu.memory_space<vmem>>, %arg3: memref<1x128xf32, #tpu.memory_space<vmem>>, %arg4: memref<128x128xf32, #tpu.memory_space<vmem>>, %arg5: memref<1x128xf32, #tpu.memory_space<vmem>>, %arg6: memref<2x128xf32, #tpu.memory_space<vmem>>) attributes {dimension_semantics = [#tpu.dimension_semantics<arbitrary>], iteration_bounds = array<i64: 1>, scalar_prefetch = 0 : i64, scratch_operands = 0 : i64, tpu.core_type = #tpu.core_type<tc>, window_params = [{pipeline_mode = #tpu.pipeline_mode<synchronous>, transform_indices = @transform_0, window_bounds = array<i64: 2, 2048>}, {pipeline_mode = #tpu.pipeline_mode<synchronous>, transform_indices = @transform_1, window_bounds = array<i64: 2048, 128>}, {pipeline_mode = #tpu.pipeline_mode<synchronous>, transform_indices = @transform_2, window_bounds = array<i64: 1, 128>}, {pipeline_mode = #tpu.pipeline_mode<synchronous>, transform_indices = @transform_3, window_bounds = array<i64: 128, 128>}, {pipeline_mode = #tpu.pipeline_mode<synchronous>, transform_indices = @transform_4, window_bounds = array<i64: 1, 128>}, {pipeline_mode = #tpu.pipeline_mode<synchronous>, transform_indices = @transform_5, window_bounds = array<i64: 2, 128>}]} {
    %c0 = arith.constant 0 : index
    %c0_0 = arith.constant 0 : index
    %0 = vector.load %arg1[%c0, %c0_0] : memref<2x2048xf32, #tpu.memory_space<vmem>>, vector<2x2048xf32>
    %c0_1 = arith.constant 0 : index
    %c0_2 = arith.constant 0 : index
    %1 = vector.load %arg2[%c0_1, %c0_2] : memref<2048x128xf32, #tpu.memory_space<vmem>>, vector<2048x128xf32>
    %cst = arith.constant dense<0.000000e+00> : vector<2x128xf32>
    %2 = tpu.matmul %0, %1, %cst {dimension_numbers = #tpu.dot_dimension_numbers<[1], [0], [0], [1], [0, 0, 1, 1], [], []>} : vector<2x2048xf32>, vector<2048x128xf32>, vector<2x128xf32> -> vector<2x128xf32>
    %c0_3 = arith.constant 0 : index
    %c0_4 = arith.constant 0 : index
    %3 = vector.load %arg3[%c0_3, %c0_4] : memref<1x128xf32, #tpu.memory_space<vmem>>, vector<1x128xf32>
    %4 = vector.broadcast %3 : vector<1x128xf32> to vector<2x128xf32>
    %5 = arith.addf %2, %4 : vector<2x128xf32>
    %cst_5 = arith.constant 0.000000e+00 : f32
    %6 = vector.broadcast %cst_5 : f32 to vector<2x128xf32>
    %7 = arith.maximumf %5, %6 : vector<2x128xf32>
    %c0_6 = arith.constant 0 : index
    %c0_7 = arith.constant 0 : index
    %8 = vector.load %arg4[%c0_6, %c0_7] : memref<128x128xf32, #tpu.memory_space<vmem>>, vector<128x128xf32>
    %cst_8 = arith.constant dense<0.000000e+00> : vector<2x128xf32>
    %9 = tpu.matmul %7, %8, %cst_8 {dimension_numbers = #tpu.dot_dimension_numbers<[1], [0], [0], [1], [0, 0, 1, 1], [], []>} : vector<2x128xf32>, vector<128x128xf32>, vector<2x128xf32> -> vector<2x128xf32>
    %c0_9 = arith.constant 0 : index
    %c0_10 = arith.constant 0 : index
    %10 = vector.load %arg5[%c0_9, %c0_10] : memref<1x128xf32, #tpu.memory_space<vmem>>, vector<1x128xf32>
    %11 = vector.broadcast %10 : vector<1x128xf32> to vector<2x128xf32>
    %12 = arith.addf %9, %11 : vector<2x128xf32>
    %13 = tpu.iota {dimensions = array<i32: 1>} : vector<2x128xi32>
    %c10_i32 = arith.constant 10 : i32
    %14 = vector.broadcast %c10_i32 : i32 to vector<2x128xi32>
    %15 = arith.cmpi slt, %13, %14 : vector<2x128xi32>
    %cst_11 = arith.constant -1.000000e+30 : f32
    %16 = vector.broadcast %cst_11 : f32 to vector<2x128xf32>
    %17 = arith.select %15, %12, %16 : vector<2x128xi1>, vector<2x128xf32>
    %cst_12 = arith.constant dense<0xFF800000> : vector<2xf32>
    %18 = vector.multi_reduction <maximumf>, %17, %cst_12 [1] : vector<2x128xf32> to vector<2xf32>
    %19 = vector.shape_cast %18 : vector<2xf32> to vector<2x1xf32>
    %20 = vector.broadcast %19 : vector<2x1xf32> to vector<2x128xf32>
    %21 = arith.subf %17, %20 : vector<2x128xf32>
    %22 = math.exp %21 : vector<2x128xf32>
    %cst_13 = arith.constant dense<0.000000e+00> : vector<2xf32>
    %23 = vector.multi_reduction <add>, %22, %cst_13 [1] : vector<2x128xf32> to vector<2xf32>
    %24 = vector.shape_cast %23 : vector<2xf32> to vector<2x1xf32>
    %25 = math.log %24 : vector<2x1xf32>
    %26 = arith.addf %19, %25 : vector<2x1xf32>
    %27 = vector.broadcast %26 : vector<2x1xf32> to vector<2x128xf32>
    %28 = arith.subf %17, %27 : vector<2x128xf32>
    %c0_14 = arith.constant 0 : index
    %c0_15 = arith.constant 0 : index
    %29 = vector.load %arg6[%c0_14, %c0_15] : memref<2x128xf32, #tpu.memory_space<vmem>>, vector<2x128xf32>
    tpu.vector_store %arg6[%c0_14, %c0_15], %28 {strides = array<i32>} : memref<2x128xf32, #tpu.memory_space<vmem>>, vector<2x128xf32>,
    return
  }
  func.func @transform_0(%arg0: i32) -> (i32, i32) {
    %c0_i32 = arith.constant 0 : i32
    %c0_i32_0 = arith.constant 0 : i32
    %c0_i32_1 = arith.constant 0 : i32
    return %c0_i32, %c0_i32_0 : i32, i32
  }
  func.func @transform_1(%arg0: i32) -> (i32, i32) {
    %c0_i32 = arith.constant 0 : i32
    %c0_i32_0 = arith.constant 0 : i32
    %c0_i32_1 = arith.constant 0 : i32
    return %c0_i32, %c0_i32_0 : i32, i32
  }
  func.func @transform_2(%arg0: i32) -> (i32, i32) {
    %c0_i32 = arith.constant 0 : i32
    %c0_i32_0 = arith.constant 0 : i32
    %c0_i32_1 = arith.constant 0 : i32
    return %c0_i32, %c0_i32_0 : i32, i32
  }
  func.func @transform_3(%arg0: i32) -> (i32, i32) {
    %c0_i32 = arith.constant 0 : i32
    %c0_i32_0 = arith.constant 0 : i32
    %c0_i32_1 = arith.constant 0 : i32
    return %c0_i32, %c0_i32_0 : i32, i32
  }
  func.func @transform_4(%arg0: i32) -> (i32, i32) {
    %c0_i32 = arith.constant 0 : i32
    %c0_i32_0 = arith.constant 0 : i32
    %c0_i32_1 = arith.constant 0 : i32
    return %c0_i32, %c0_i32_0 : i32, i32
  }
  func.func @transform_5(%arg0: i32) -> (i32, i32) {
    %c0_i32 = arith.constant 0 : i32
    %c0_i32_0 = arith.constant 0 : i32
    %c0_i32_1 = arith.constant 0 : i32
    return %c0_i32, %c0_i32_0 : i32, i32
  }
}

</mosaic_0001>

<llo_original>
// kernel: forward.7
$region0: #{forward.7}
  #allocation0 [shape = 'u32[]', space=smem, size = 0x4, offset = 0x4, fixed_abs, tag = 'smem constant byte address 0x4 - core index']
  #allocation1 [shape = 'u32[144,128]{1,0:T(1,128)}', space=vmem, size = 0x12000, scoped, tag = 'internal scratch']
  %s0 = inlined_call_operand.vmem [shape: f32[2,28,28,128], index: 0, kind: input, shape index: {}]
  %s1 = inlined_call_operand.vmem [shape: f32[9,128,128], index: 1, kind: input, shape index: {}]
  %s2 = inlined_call_operand.vmem [shape: f32[1,128], index: 2, kind: input, shape index: {}]
  %s3 = inlined_call_operand.vmem [shape: f32[2,26,26,128], index: 3, kind: output, shape index: {}]
  %s4 = sld [smem:[#allocation0]]
  $region52: #{forward.7} parent=0
    _
  %s6 = ssub.s32 1, %s4
  %s7 = scalar_select 0, %s6, %s4
  loop: start=0, step=1, limit=4
  $region2: #{forward.7} parent=0 // loop_pre_header
    _
  $region3: #{forward.7} parent=0 // loop_header
    %s9 = sphi 0, %s13
    %p10 = scmp.ge.s32.totalorder %s9, 4
    %s19 = sphi 0, %s21
    %s22 = sphi 0, %s19
    %s23 = sphi 0, %s22
    %s39 = sphi 0, %s23
    %s43 = sphi 0, %s43
    %s45 = sphi 0, %s43
    %s46 = sphi 0, %s45
    %s60 = sphi 0, %s46
    %s64 = sphi 0, %s64
    %s66 = sphi 0, %s64
    %s67 = sphi 0, %s66
    %s81 = sphi 0, %s67
    %s87 = sphi 0, %s89
    %s90 = sphi 0, %s87
    %s91 = sphi 0, %s90
    %s107 = sphi 0, %s91
  $region4: #{forward.7} parent=0 // loop_header_branch
    %12 = sbr.rel (%p10) target = $region8
  $region5: #{forward.7} parent=0 // loop_body
    %s14 = ssub.s32 %s9, 1
    %s15 = ssub.s32 %s9, 2
    %s16 = sadd.s32 %s9, 1
    %s17 = ssub.s32 %s9, %s16
    %p18 = scmp.eq.s32.totalorder %s17, 0
    %s20 = sadd.s32 %s19, 1
    %s21 = scalar_select %p18, %s19, %s20
    %p24 = pneg %p18
    %p25 = scmp.eq.s32.totalorder %s9, 1
    %p26 = por %p24, %p25
    %p27 = scmp.ne.s32.totalorder %s19, %s22
    %p28 = scmp.eq.s32.totalorder %s9, 0
    %p29 = por %p27, %p28
    %p30 = scmp.ne.s32.totalorder %s19, %s22
    %p31 = scmp.eq.s32.totalorder %s14, 1
    %p32 = por %p30, %p31
    %p33 = scmp.ne.s32.totalorder %s22, %s23
    %p34 = scmp.eq.s32.totalorder %s14, 0
    %p35 = por %p33, %p34
    %p36 = scmp.ne.s32.totalorder %s22, %s23
    %p37 = scmp.eq.s32.totalorder %s15, 1
    %p38 = por %p36, %p37
    %p40 = scmp.ne.s32.totalorder %s23, %s39
    %p41 = scmp.eq.s32.totalorder %s15, 0
    %p42 = por %p40, %p41
    %s44 = sadd.s32 %s43, 1
    %p47 = scmp.eq.s32.totalorder %s9, 1
    %p48 = scmp.ne.s32.totalorder %s43, %s45
    %p49 = scmp.eq.s32.totalorder %s9, 0
    %p50 = por %p48, %p49
    %p51 = scmp.ne.s32.totalorder %s43, %s45
    %p52 = scmp.eq.s32.totalorder %s14, 1
    %p53 = por %p51, %p52
    %p54 = scmp.ne.s32.totalorder %s45, %s46
    %p55 = scmp.eq.s32.totalorder %s14, 0
    %p56 = por %p54, %p55
    %p57 = scmp.ne.s32.totalorder %s45, %s46
    %p58 = scmp.eq.s32.totalorder %s15, 1
    %p59 = por %p57, %p58
    %p61 = scmp.ne.s32.totalorder %s46, %s60
    %p62 = scmp.eq.s32.totalorder %s15, 0
    %p63 = por %p61, %p62
    %s65 = sadd.s32 %s64, 1
    %p68 = scmp.eq.s32.totalorder %s9, 1
    %p69 = scmp.ne.s32.totalorder %s64, %s66
    %p70 = scmp.eq.s32.totalorder %s9, 0
    %p71 = por %p69, %p70
    %p72 = scmp.ne.s32.totalorder %s64, %s66
    %p73 = scmp.eq.s32.totalorder %s14, 1
    %p74 = por %p72, %p73
    %p75 = scmp.ne.s32.totalorder %s66, %s67
    %p76 = scmp.eq.s32.totalorder %s14, 0
    %p77 = por %p75, %p76
    %p78 = scmp.ne.s32.totalorder %s66, %s67
    %p79 = scmp.eq.s32.totalorder %s15, 1
    %p80 = por %p78, %p79
    %p82 = scmp.ne.s32.totalorder %s67, %s81
    %p83 = scmp.eq.s32.totalorder %s15, 0
    %p84 = por %p82, %p83
    %s85 = ssub.s32 %s9, %s16
    %p86 = scmp.eq.s32.totalorder %s85, 0
    %s88 = sadd.s32 %s87, 1
    %s89 = scalar_select %p86, %s87, %s88
    %p92 = pneg %p86
    %p93 = scmp.eq.s32.totalorder %s9, 1
    %p94 = por %p92, %p93
    %p95 = scmp.ne.s32.totalorder %s87, %s90
    %p96 = scmp.eq.s32.totalorder %s9, 0
    %p97 = por %p95, %p96
    %p98 = scmp.ne.s32.totalorder %s87, %s90
    %p99 = scmp.eq.s32.totalorder %s14, 1
    %p100 = por %p98, %p99
    %p101 = scmp.ne.s32.totalorder %s90, %s91
    %p102 = scmp.eq.s32.totalorder %s14, 0
    %p103 = por %p101, %p102
    %p104 = scmp.ne.s32.totalorder %s90, %s91
    %p105 = scmp.eq.s32.totalorder %s15, 1
    %p106 = por %p104, %p105
    %p108 = scmp.ne.s32.totalorder %s91, %s107
    %p109 = scmp.eq.s32.totalorder %s15, 0
    %p110 = por %p108, %p109
    %p111 = scmp.le.s32.totalorder 1, %s9
    %p112 = scmp.lt.s32.totalorder %s9, 3
    %p113 = pnand %p111, %p112
    %p114 = pneg %p113
    // Predicated region
    $region9: #{forward.7} parent=5 // pred_check
      _
    $region10: #{forward.7} parent=5 // pred_check_branch
      %116 = sbr.rel (%p113) target = $region12
    $region11: #{forward.7} parent=5 // pred_region
      %s117 = ssub.s32 %s9, 1
      // Predicated region
      $region13: #{forward.7} parent=11 // pred_check
        %p118 = pneg %p56
      $region14: #{forward.7} parent=11 // pred_check_branch
        %120 = sbr.rel (%p118) target = $region16
      $region15: #{forward.7} parent=11 // pred_region
        _
      $region16: #{forward.7} parent=11 // pred_fallthru
        _
      // Predicated region
      $region17: #{forward.7} parent=11 // pred_check
        %p121 = pneg %p77
      $region18: #{forward.7} parent=11 // pred_check_branch
        %123 = sbr.rel (%p121) target = $region20
      $region19: #{forward.7} parent=11 // pred_region
        _
      $region20: #{forward.7} parent=11 // pred_fallthru
        _
    $region12: #{forward.7} parent=5 // pred_fallthru
      _
    %p124 = scmp.lt.s32.totalorder %s9, 2
    // Predicated region
    $region21: #{forward.7} parent=5 // pred_check
      %p125 = pneg %p124
    $region22: #{forward.7} parent=5 // pred_check_branch
      %127 = sbr.rel (%p125) target = $region24
    $region23: #{forward.7} parent=5 // pred_region
      // Predicated region
      $region25: #{forward.7} parent=23 // pred_check
        %p128 = pneg %p29
      $region26: #{forward.7} parent=23 // pred_check_branch
        %130 = sbr.rel (%p128) target = $region28
      $region27: #{forward.7} parent=23 // pred_region
        %p131 = scmp.lt.s32.totalorder %s9, 1
        %s132 = scalar_select %p131, %s9, 1
        %s133 = smul.addr %s132, 112
        %s134 = smul.addr %s133, 8
        %s135 = scalar_lea.vmem %s0, %s134
      $region28: #{forward.7} parent=23 // pred_fallthru
        _
    $region24: #{forward.7} parent=5 // pred_fallthru
      _
    %p136 = scmp.le.s32.totalorder 1, %s9
    %p137 = scmp.lt.s32.totalorder %s9, 3
    %p138 = pnand %p136, %p137
    %p139 = pneg %p138
    // Predicated region
    $region29: #{forward.7} parent=5 // pred_check
      _
    $region30: #{forward.7} parent=5 // pred_check_branch
      %141 = sbr.rel (%p138) target = $region32
    $region31: #{forward.7} parent=5 // pred_region
      %s142 = ssub.s32 %s9, 1
      %p143 = scmp.lt.s32.totalorder %s14, 1
      %s144 = scalar_select %p143, %s14, 1
      %s145 = smul.addr %s144, 112
      %s146 = smul.addr %s145, 8
      %s147 = scalar_lea.vmem %s0, %s146
      %p148 = pneg %p35
      %p149 = pneg %p32
      %p150 = pneg %p56
      %p151 = pneg %p53
      %p152 = pneg %p77
      %p153 = pneg %p74
      %p154 = pneg %p103
      %p155 = pneg %p100
      %p156 = scmp.lt.s32.totalorder %s14, 1
      %s157 = scalar_select %p156, %s14, 1
      %s158 = smul.addr %s157, 104
      %s159 = smul.addr %s158, 8
      %s160 = scalar_lea.vmem %s3, %s159
      %p161 = scmp.lt.s32.totalorder %s14, 1
      %s162 = scalar_select %p161, %s14, 1
      %s163 = smul.addr %s162, 112
      %s164 = smul.addr %s163, 8
      %s165 = scalar_lea.vmem %s0, %s164
      %p166 = scmp.lt.s32.totalorder %s14, 1
      %s167 = scalar_select %p166, %s14, 1
      %s168 = smul.addr %s167, 104
      %s169 = smul.addr %s168, 8
      %s170 = scalar_lea.vmem %s3, %s169
      %v171 = vld [vmem:[%s2] sm:$0x1]
      loop: start=0, step=1, limit=26
      $region33: #{forward.7} parent=31 // loop_pre_header
        _
      $region34: #{forward.7} parent=31 // loop_header
        %s173 = sphi 0, %s177
        %p174 = scmp.ge.s32.totalorder %s173, 26
      $region35: #{forward.7} parent=31 // loop_header_branch
        %176 = sbr.rel (%p174) target = $region39
      $region36: #{forward.7} parent=31 // loop_body
        %s178 = smul.u32 %s173, 32
        %s179 = scalar_lea.vmem %s165, %s178
        %v180 = vld [vmem:[%s179] sm:$0xff]
        %v181 = vld [vmem:[%s179 + $0x8] sm:$0xff]
        %v182 = vld [vmem:[%s179 + $0x10] sm:$0xff]
        %v183 = vld [vmem:[%s179 + $0x18] sm:$0xf]
        %v184 = vld [vmem:[%s1] sm:$0xff]
        %v185 = vld [vmem:[%s1 + $0x8] sm:$0xff]
        %v186 = vld [vmem:[%s1 + $0x10] sm:$0xff]
        %v187 = vld [vmem:[%s1 + $0x18] sm:$0xff]
        %v188 = vld [vmem:[%s1 + $0x20] sm:$0xff]
        %v189 = vld [vmem:[%s1 + $0x28] sm:$0xff]
        %v190 = vld [vmem:[%s1 + $0x30] sm:$0xff]
        %v191 = vld [vmem:[%s1 + $0x38] sm:$0xff]
        %v192 = vld [vmem:[%s1 + $0x40] sm:$0xff]
        %v193 = vld [vmem:[%s1 + $0x48] sm:$0xff]
        %v194 = vld [vmem:[%s1 + $0x50] sm:$0xff]
        %v195 = vld [vmem:[%s1 + $0x58] sm:$0xff]
        %v196 = vld [vmem:[%s1 + $0x60] sm:$0xff]
        %v197 = vld [vmem:[%s1 + $0x68] sm:$0xff]
        %v198 = vld [vmem:[%s1 + $0x70] sm:$0xff]
        %v199 = vld [vmem:[%s1 + $0x78] sm:$0xff]
        %s200 = scalar_lea.vmem %s1, 128
        %v201 = vld [vmem:[%s200] sm:$0xff]
        %v202 = vld [vmem:[%s200 + $0x8] sm:$0xff]
        %v203 = vld [vmem:[%s200 + $0x10] sm:$0xff]
        %v204 = vld [vmem:[%s200 + $0x18] sm:$0xff]
        %v205 = vld [vmem:[%s200 + $0x20] sm:$0xff]
        %v206 = vld [vmem:[%s200 + $0x28] sm:$0xff]
        %v207 = vld [vmem:[%s200 + $0x30] sm:$0xff]
        %v208 = vld [vmem:[%s200 + $0x38] sm:$0xff]
        %v209 = vld [vmem:[%s200 + $0x40] sm:$0xff]
        %v210 = vld [vmem:[%s200 + $0x48] sm:$0xff]
        %v211 = vld [vmem:[%s200 + $0x50] sm:$0xff]
        %v212 = vld [vmem:[%s200 + $0x58] sm:$0xff]
        %v213 = vld [vmem:[%s200 + $0x60] sm:$0xff]
        %v214 = vld [vmem:[%s200 + $0x68] sm:$0xff]
        %v215 = vld [vmem:[%s200 + $0x70] sm:$0xff]
        %v216 = vld [vmem:[%s200 + $0x78] sm:$0xff]
        %vm221 = vcmask 1046528
        %v222 = vrot.slane %v180, 1
        %v223 = vrot.slane %v181, 1
        %v224 = vsel %vm221, %v222, %v223
        %v225 = vrot.slane %v182, 1
        %v226 = vsel %vm221, %v223, %v225
        %v227 = vrot.slane %v183, 1
        %v228 = vsel %vm221, %v225, %v227
        %233 = vmatprep.subr.mxu0 0.0
        %234 = vmatpush1.msra.mxu0 %v216
        %235 = vmatprep.subr.mxu0 0.0
        %236 = vmatpush1.msra.mxu0 %v215
        %237 = vmatprep.subr.mxu0 0.0
        %238 = vmatpush1.msra.mxu0 %v214
        %239 = vmatprep.subr.mxu0 0.0
        %240 = vmatpush1.msra.mxu0 %v213
        %241 = vmatprep.subr.mxu0 0.0
        %242 = vmatpush1.msra.mxu0 %v212
        %243 = vmatprep.subr.mxu0 0.0
        %244 = vmatpush1.msra.mxu0 %v211
        %245 = vmatprep.subr.mxu0 0.0
        %246 = vmatpush1.msra.mxu0 %v210
        %247 = vmatprep.subr.mxu0 0.0
        %248 = vmatpush1.msra.mxu0 %v209
        %249 = vmatprep.subr.mxu0 0.0
        %250 = vmatpush1.msra.mxu0 %v208
        %251 = vmatprep.subr.mxu0 0.0
        %252 = vmatpush1.msra.mxu0 %v207
        %253 = vmatprep.subr.mxu0 0.0
        %254 = vmatpush1.msra.mxu0 %v206
        %255 = vmatprep.subr.mxu0 0.0
        %256 = vmatpush1.msra.mxu0 %v205
        %257 = vmatprep.subr.mxu0 0.0
        %258 = vmatpush1.msra.mxu0 %v204
        %259 = vmatprep.subr.mxu0 0.0
        %260 = vmatpush1.msra.mxu0 %v203
        %261 = vmatprep.subr.mxu0 0.0
        %262 = vmatpush1.msra.mxu0 %v202
        %263 = vmatprep.subr.mxu0 0.0
        %264 = vmatpush1.msra.mxu0 %v201
        %265 = vmatprep.subr.mxu0 0.0
        %266 = vmatpush2.msra.mxu0 0.0
        %267 = vmatprep.subr.mxu0 0.0
        %268 = vmatpush2.msra.mxu0 0.0
        %269 = vmatprep.subr.mxu0 0.0
        %270 = vmatpush2.msra.mxu0 0.0
        %271 = vmatprep.subr.mxu0 0.0
        %272 = vmatpush2.msra.mxu0 0.0
        %273 = vmatprep.subr.mxu0 0.0
        %274 = vmatpush2.msra.mxu0 0.0
        %275 = vmatprep.subr.mxu0 0.0
        %276 = vmatpush2.msra.mxu0 0.0
        %277 = vmatprep.subr.mxu0 0.0
        %278 = vmatpush2.msra.mxu0 0.0
        %279 = vmatprep.subr.mxu0 0.0
        %280 = vmatpush2.msra.mxu0 0.0
        %281 = vmatprep.subr.mxu0 0.0
        %282 = vmatpush2.msra.mxu0 0.0
        %283 = vmatprep.subr.mxu0 0.0
        %284 = vmatpush2.msra.mxu0 0.0
        %285 = vmatprep.subr.mxu0 0.0
        %286 = vmatpush2.msra.mxu0 0.0
        %287 = vmatprep.subr.mxu0 0.0
        %288 = vmatpush2.msra.mxu0 0.0
        %289 = vmatprep.subr.mxu0 0.0
        %290 = vmatpush2.msra.mxu0 0.0
        %291 = vmatprep.subr.mxu0 0.0
        %292 = vmatpush2.msra.mxu0 0.0
        %293 = vmatprep.subr.mxu0 0.0
        %294 = vmatpush2.msra.mxu0 0.0
        %295 = vmatprep.subr.mxu0 0.0
        %296 = vmatpush2.msra.mxu0 0.0
        %297 = vmatprep.mubr.f32.mxu0 0.0
        %298 = vmatmul.mubr.f32.gmra.mxu0 %v224
        %v299 = vpop.f32.mrf.mxu0
        %v300 = vadd.f32 0.0, %v299
        %v301 = vpop.f32.mrf.mxu0
        %302 = vmatprep.mubr.f32.mxu0 0.0
        %303 = vmatmul.mubr.f32.gmra.mxu0 %v226
        %v304 = vpop.f32.mrf.mxu0
        %v305 = vadd.f32 0.0, %v304
        %v306 = vpop.f32.mrf.mxu0
        %307 = vmatprep.mubr.f32.mxu0 0.0
        %308 = vmatmul.mubr.f32.gmra.mxu0 %v228
        %v309 = vpop.f32.mrf.mxu0
        %v310 = vadd.f32 0.0, %v309
        %v311 = vpop.f32.mrf.mxu0
        %312 = vmatprep.mubr.f32.mxu0 0.0
        %313 = vmatmul.mubr.f32.gmra.mxu0 %v227
        %v314 = vpop.f32.mrf.mxu0
        %v315 = vadd.f32 0.0, %v314
        %v316 = vpop.f32.mrf.mxu0
        %317 = vdwg.mxu0
        %318 = vmatprep.subr.mxu0 0.0
        %319 = vmatpush1.msra.mxu0 %v199
        %320 = vmatprep.subr.mxu0 0.0
        %321 = vmatpush1.msra.mxu0 %v198
        %322 = vmatprep.subr.mxu0 0.0
        %323 = vmatpush1.msra.mxu0 %v197
        %324 = vmatprep.subr.mxu0 0.0
        %325 = vmatpush1.msra.mxu0 %v196
        %326 = vmatprep.subr.mxu0 0.0
        %327 = vmatpush1.msra.mxu0 %v195
        %328 = vmatprep.subr.mxu0 0.0
        %329 = vmatpush1.msra.mxu0 %v194
        %330 = vmatprep.subr.mxu0 0.0
        %331 = vmatpush1.msra.mxu0 %v193
        %332 = vmatprep.subr.mxu0 0.0
        %333 = vmatpush1.msra.mxu0 %v192
        %334 = vmatprep.subr.mxu0 0.0
        %335 = vmatpush1.msra.mxu0 %v191
        %336 = vmatprep.subr.mxu0 0.0
        %337 = vmatpush1.msra.mxu0 %v190
        %338 = vmatprep.subr.mxu0 0.0
        %339 = vmatpush1.msra.mxu0 %v189
        %340 = vmatprep.subr.mxu0 0.0
        %341 = vmatpush1.msra.mxu0 %v188
        %342 = vmatprep.subr.mxu0 0.0
        %343 = vmatpush1.msra.mxu0 %v187
        %344 = vmatprep.subr.mxu0 0.0
        %345 = vmatpush1.msra.mxu0 %v186
        %346 = vmatprep.subr.mxu0 0.0
        %347 = vmatpush1.msra.mxu0 %v185
        %348 = vmatprep.subr.mxu0 0.0
        %349 = vmatpush1.msra.mxu0 %v184
        %350 = vmatprep.subr.mxu0 0.0
        %351 = vmatpush2.msra.mxu0 0.0
        %352 = vmatprep.subr.mxu0 0.0
        %353 = vmatpush2.msra.mxu0 0.0
        %354 = vmatprep.subr.mxu0 0.0
        %355 = vmatpush2.msra.mxu0 0.0
        %356 = vmatprep.subr.mxu0 0.0
        %357 = vmatpush2.msra.mxu0 0.0
        %358 = vmatprep.subr.mxu0 0.0
        %359 = vmatpush2.msra.mxu0 0.0
        %360 = vmatprep.subr.mxu0 0.0
        %361 = vmatpush2.msra.mxu0 0.0
        %362 = vmatprep.subr.mxu0 0.0
        %363 = vmatpush2.msra.mxu0 0.0
        %364 = vmatprep.subr.mxu0 0.0
        %365 = vmatpush2.msra.mxu0 0.0
        %366 = vmatprep.subr.mxu0 0.0
        %367 = vmatpush2.msra.mxu0 0.0
        %368 = vmatprep.subr.mxu0 0.0
        %369 = vmatpush2.msra.mxu0 0.0
        %370 = vmatprep.subr.mxu0 0.0
        %371 = vmatpush2.msra.mxu0 0.0
        %372 = vmatprep.subr.mxu0 0.0
        %373 = vmatpush2.msra.mxu0 0.0
        %374 = vmatprep.subr.mxu0 0.0
        %375 = vmatpush2.msra.mxu0 0.0
        %376 = vmatprep.subr.mxu0 0.0
        %377 = vmatpush2.msra.mxu0 0.0
        %378 = vmatprep.subr.mxu0 0.0
        %379 = vmatpush2.msra.mxu0 0.0
        %380 = vmatprep.subr.mxu0 0.0
        %381 = vmatpush2.msra.mxu0 0.0
        %382 = vmatprep.mubr.f32.mxu0 0.0
        %383 = vmatmul.mubr.f32.gmra.mxu0 %v180
        %v384 = vpop.f32.mrf.mxu0
        %v385 = vadd.f32 %v300, %v384
        %v386 = vpop.f32.mrf.mxu0
        %387 = vmatprep.mubr.f32.mxu0 0.0
        %388 = vmatmul.mubr.f32.gmra.mxu0 %v181
        %v389 = vpop.f32.mrf.mxu0
        %v390 = vadd.f32 %v305, %v389
        %v391 = vpop.f32.mrf.mxu0
        %392 = vmatprep.mubr.f32.mxu0 0.0
        %393 = vmatmul.mubr.f32.gmra.mxu0 %v182
        %v394 = vpop.f32.mrf.mxu0
        %v395 = vadd.f32 %v310, %v394
        %v396 = vpop.f32.mrf.mxu0
        %397 = vmatprep.mubr.f32.mxu0 0.0
        %398 = vmatmul.mubr.f32.gmra.mxu0 %v183
        %v399 = vpop.f32.mrf.mxu0
        %v400 = vadd.f32 %v315, %v399
        %v401 = vpop.f32.mrf.mxu0
        %402 = vdwg.mxu0
        %s403 = scalar_lea.vmem %s1, 256
        %v404 = vld [vmem:[%s403] sm:$0xff]
        %v405 = vld [vmem:[%s403 + $0x8] sm:$0xff]
        %v406 = vld [vmem:[%s403 + $0x10] sm:$0xff]
        %v407 = vld [vmem:[%s403 + $0x18] sm:$0xff]
        %v408 = vld [vmem:[%s403 + $0x20] sm:$0xff]
        %v409 = vld [vmem:[%s403 + $0x28] sm:$0xff]
        %v410 = vld [vmem:[%s403 + $0x30] sm:$0xff]
        %v411 = vld [vmem:[%s403 + $0x38] sm:$0xff]
        %v412 = vld [vmem:[%s403 + $0x40] sm:$0xff]
        %v413 = vld [vmem:[%s403 + $0x48] sm:$0xff]
        %v414 = vld [vmem:[%s403 + $0x50] sm:$0xff]
        %v415 = vld [vmem:[%s403 + $0x58] sm:$0xff]
        %v416 = vld [vmem:[%s403 + $0x60] sm:$0xff]
        %v417 = vld [vmem:[%s403 + $0x68] sm:$0xff]
        %v418 = vld [vmem:[%s403 + $0x70] sm:$0xff]
        %v419 = vld [vmem:[%s403 + $0x78] sm:$0xff]
        %vm420 = vcmask 1045504
        %v421 = vrot.slane %v180, 2
        %v422 = vrot.slane %v181, 2
        %v423 = vsel %vm420, %v421, %v422
        %v424 = vrot.slane %v182, 2
        %v425 = vsel %vm420, %v422, %v424
        %v426 = vrot.slane %v183, 2
        %v427 = vsel %vm420, %v424, %v426
        %432 = vmatprep.subr.mxu0 0.0
        %433 = vmatpush1.msra.mxu0 %v419
        %434 = vmatprep.subr.mxu0 0.0
        %435 = vmatpush1.msra.mxu0 %v418
        %436 = vmatprep.subr.mxu0 0.0
        %437 = vmatpush1.msra.mxu0 %v417
        %438 = vmatprep.subr.mxu0 0.0
        %439 = vmatpush1.msra.mxu0 %v416
        %440 = vmatprep.subr.mxu0 0.0
        %441 = vmatpush1.msra.mxu0 %v415
        %442 = vmatprep.subr.mxu0 0.0
        %443 = vmatpush1.msra.mxu0 %v414
        %444 = vmatprep.subr.mxu0 0.0
        %445 = vmatpush1.msra.mxu0 %v413
        %446 = vmatprep.subr.mxu0 0.0
        %447 = vmatpush1.msra.mxu0 %v412
        %448 = vmatprep.subr.mxu0 0.0
        %449 = vmatpush1.msra.mxu0 %v411
        %450 = vmatprep.subr.mxu0 0.0
        %451 = vmatpush1.msra.mxu0 %v410
        %452 = vmatprep.subr.mxu0 0.0
        %453 = vmatpush1.msra.mxu0 %v409
        %454 = vmatprep.subr.mxu0 0.0
        %455 = vmatpush1.msra.mxu0 %v408
        %456 = vmatprep.subr.mxu0 0.0
        %457 = vmatpush1.msra.mxu0 %v407
        %458 = vmatprep.subr.mxu0 0.0
        %459 = vmatpush1.msra.mxu0 %v406
        %460 = vmatprep.subr.mxu0 0.0
        %461 = vmatpush1.msra.mxu0 %v405
        %462 = vmatprep.subr.mxu0 0.0
        %463 = vmatpush1.msra.mxu0 %v404
        %464 = vmatprep.subr.mxu0 0.0
        %465 = vmatpush2.msra.mxu0 0.0
        %466 = vmatprep.subr.mxu0 0.0
        %467 = vmatpush2.msra.mxu0 0.0
        %468 = vmatprep.subr.mxu0 0.0
        %469 = vmatpush2.msra.mxu0 0.0
        %470 = vmatprep.subr.mxu0 0.0
        %471 = vmatpush2.msra.mxu0 0.0
        %472 = vmatprep.subr.mxu0 0.0
        %473 = vmatpush2.msra.mxu0 0.0
        %474 = vmatprep.subr.mxu0 0.0
        %475 = vmatpush2.msra.mxu0 0.0
        %476 = vmatprep.subr.mxu0 0.0
        %477 = vmatpush2.msra.mxu0 0.0
        %478 = vmatprep.subr.mxu0 0.0
        %479 = vmatpush2.msra.mxu0 0.0
        %480 = vmatprep.subr.mxu0 0.0
        %481 = vmatpush2.msra.mxu0 0.0
        %482 = vmatprep.subr.mxu0 0.0
        %483 = vmatpush2.msra.mxu0 0.0
        %484 = vmatprep.subr.mxu0 0.0
        %485 = vmatpush2.msra.mxu0 0.0
        %486 = vmatprep.subr.mxu0 0.0
        %487 = vmatpush2.msra.mxu0 0.0
        %488 = vmatprep.subr.mxu0 0.0
        %489 = vmatpush2.msra.mxu0 0.0
        %490 = vmatprep.subr.mxu0 0.0
        %491 = vmatpush2.msra.mxu0 0.0
        %492 = vmatprep.subr.mxu0 0.0
        %493 = vmatpush2.msra.mxu0 0.0
        %494 = vmatprep.subr.mxu0 0.0
        %495 = vmatpush2.msra.mxu0 0.0
        %496 = vmatprep.mubr.f32.mxu0 0.0
        %497 = vmatmul.mubr.f32.gmra.mxu0 %v423
        %v498 = vpop.f32.mrf.mxu0
        %v499 = vadd.f32 0.0, %v498
        %v500 = vpop.f32.mrf.mxu0
        %501 = vmatprep.mubr.f32.mxu0 0.0
        %502 = vmatmul.mubr.f32.gmra.mxu0 %v425
        %v503 = vpop.f32.mrf.mxu0
        %v504 = vadd.f32 0.0, %v503
        %v505 = vpop.f32.mrf.mxu0
        %506 = vmatprep.mubr.f32.mxu0 0.0
        %507 = vmatmul.mubr.f32.gmra.mxu0 %v427
        %v508 = vpop.f32.mrf.mxu0
        %v509 = vadd.f32 0.0, %v508
        %v510 = vpop.f32.mrf.mxu0
        %511 = vmatprep.mubr.f32.mxu0 0.0
        %512 = vmatmul.mubr.f32.gmra.mxu0 %v426
        %v513 = vpop.f32.mrf.mxu0
        %v514 = vadd.f32 0.0, %v513
        %v515 = vpop.f32.mrf.mxu0
        %516 = vdwg.mxu0
        %v517 = vadd.f32 %v385, %v499
        %v518 = vadd.f32 %v390, %v504
        %v519 = vadd.f32 %v395, %v509
        %v520 = vadd.f32 %v400, %v514
        %s521 = sadd.s32 %s173, 1
        %s522 = smul.u32 %s521, 32
        %s523 = scalar_lea.vmem %s165, %s522
        %v524 = vld [vmem:[%s523] sm:$0xff]
        %v525 = vld [vmem:[%s523 + $0x8] sm:$0xff]
        %v526 = vld [vmem:[%s523 + $0x10] sm:$0xff]
        %v527 = vld [vmem:[%s523 + $0x18] sm:$0xf]
        %s528 = scalar_lea.vmem %s1, 384
        %v529 = vld [vmem:[%s528] sm:$0xff]
        %v530 = vld [vmem:[%s528 + $0x8] sm:$0xff]
        %v531 = vld [vmem:[%s528 + $0x10] sm:$0xff]
        %v532 = vld [vmem:[%s528 + $0x18] sm:$0xff]
        %v533 = vld [vmem:[%s528 + $0x20] sm:$0xff]
        %v534 = vld [vmem:[%s528 + $0x28] sm:$0xff]
        %v535 = vld [vmem:[%s528 + $0x30] sm:$0xff]
        %v536 = vld [vmem:[%s528 + $0x38] sm:$0xff]
        %v537 = vld [vmem:[%s528 + $0x40] sm:$0xff]
        %v538 = vld [vmem:[%s528 + $0x48] sm:$0xff]
        %v539 = vld [vmem:[%s528 + $0x50] sm:$0xff]
        %v540 = vld [vmem:[%s528 + $0x58] sm:$0xff]
        %v541 = vld [vmem:[%s528 + $0x60] sm:$0xff]
        %v542 = vld [vmem:[%s528 + $0x68] sm:$0xff]
        %v543 = vld [vmem:[%s528 + $0x70] sm:$0xff]
        %v544 = vld [vmem:[%s528 + $0x78] sm:$0xff]
        %545 = vmatprep.subr.mxu0 0.0
        %546 = vmatpush1.msra.mxu0 %v544
        %547 = vmatprep.subr.mxu0 0.0
        %548 = vmatpush1.msra.mxu0 %v543
        %549 = vmatprep.subr.mxu0 0.0
        %550 = vmatpush1.msra.mxu0 %v542
        %551 = vmatprep.subr.mxu0 0.0
        %552 = vmatpush1.msra.mxu0 %v541
        %553 = vmatprep.subr.mxu0 0.0
        %554 = vmatpush1.msra.mxu0 %v540
        %555 = vmatprep.subr.mxu0 0.0
        %556 = vmatpush1.msra.mxu0 %v539
        %557 = vmatprep.subr.mxu0 0.0
        %558 = vmatpush1.msra.mxu0 %v538
        %559 = vmatprep.subr.mxu0 0.0
        %560 = vmatpush1.msra.mxu0 %v537
        %561 = vmatprep.subr.mxu0 0.0
        %562 = vmatpush1.msra.mxu0 %v536
        %563 = vmatprep.subr.mxu0 0.0
        %564 = vmatpush1.msra.mxu0 %v535
        %565 = vmatprep.subr.mxu0 0.0
        %566 = vmatpush1.msra.mxu0 %v534
        %567 = vmatprep.subr.mxu0 0.0
        %568 = vmatpush1.msra.mxu0 %v533
        %569 = vmatprep.subr.mxu0 0.0
        %570 = vmatpush1.msra.mxu0 %v532
        %571 = vmatprep.subr.mxu0 0.0
        %572 = vmatpush1.msra.mxu0 %v531
        %573 = vmatprep.subr.mxu0 0.0
        %574 = vmatpush1.msra.mxu0 %v530
        %575 = vmatprep.subr.mxu0 0.0
        %576 = vmatpush1.msra.mxu0 %v529
        %577 = vmatprep.subr.mxu0 0.0
        %578 = vmatpush2.msra.mxu0 0.0
        %579 = vmatprep.subr.mxu0 0.0
        %580 = vmatpush2.msra.mxu0 0.0
        %581 = vmatprep.subr.mxu0 0.0
        %582 = vmatpush2.msra.mxu0 0.0
        %583 = vmatprep.subr.mxu0 0.0
        %584 = vmatpush2.msra.mxu0 0.0
        %585 = vmatprep.subr.mxu0 0.0
        %586 = vmatpush2.msra.mxu0 0.0
        %587 = vmatprep.subr.mxu0 0.0
        %588 = vmatpush2.msra.mxu0 0.0
        %589 = vmatprep.subr.mxu0 0.0
        %590 = vmatpush2.msra.mxu0 0.0
        %591 = vmatprep.subr.mxu0 0.0
        %592 = vmatpush2.msra.mxu0 0.0
        %593 = vmatprep.subr.mxu0 0.0
        %594 = vmatpush2.msra.mxu0 0.0
        %595 = vmatprep.subr.mxu0 0.0
        %596 = vmatpush2.msra.mxu0 0.0
        %597 = vmatprep.subr.mxu0 0.0
        %598 = vmatpush2.msra.mxu0 0.0
        %599 = vmatprep.subr.mxu0 0.0
        %600 = vmatpush2.msra.mxu0 0.0
        %601 = vmatprep.subr.mxu0 0.0
        %602 = vmatpush2.msra.mxu0 0.0
        %603 = vmatprep.subr.mxu0 0.0
        %604 = vmatpush2.msra.mxu0 0.0
        %605 = vmatprep.subr.mxu0 0.0
        %606 = vmatpush2.msra.mxu0 0.0
        %607 = vmatprep.subr.mxu0 0.0
        %608 = vmatpush2.msra.mxu0 0.0
        %609 = vmatprep.mubr.f32.mxu0 0.0
        %610 = vmatmul.mubr.f32.gmra.mxu0 %v524
        %v611 = vpop.f32.mrf.mxu0
        %v612 = vadd.f32 0.0, %v611
        %v613 = vpop.f32.mrf.mxu0
        %614 = vmatprep.mubr.f32.mxu0 0.0
        %615 = vmatmul.mubr.f32.gmra.mxu0 %v525
        %v616 = vpop.f32.mrf.mxu0
        %v617 = vadd.f32 0.0, %v616
        %v618 = vpop.f32.mrf.mxu0
        %619 = vmatprep.mubr.f32.mxu0 0.0
        %620 = vmatmul.mubr.f32.gmra.mxu0 %v526
        %v621 = vpop.f32.mrf.mxu0
        %v622 = vadd.f32 0.0, %v621
        %v623 = vpop.f32.mrf.mxu0
        %624 = vmatprep.mubr.f32.mxu0 0.0
        %625 = vmatmul.mubr.f32.gmra.mxu0 %v527
        %v626 = vpop.f32.mrf.mxu0
        %v627 = vadd.f32 0.0, %v626
        %v628 = vpop.f32.mrf.mxu0
        %629 = vdwg.mxu0
        %v630 = vadd.f32 %v517, %v612
        %v631 = vadd.f32 %v518, %v617
        %v632 = vadd.f32 %v519, %v622
        %v633 = vadd.f32 %v520, %v627
        %s634 = scalar_lea.vmem %s1, 512
        %v635 = vld [vmem:[%s634] sm:$0xff]
        %v636 = vld [vmem:[%s634 + $0x8] sm:$0xff]
        %v637 = vld [vmem:[%s634 + $0x10] sm:$0xff]
        %v638 = vld [vmem:[%s634 + $0x18] sm:$0xff]
        %v639 = vld [vmem:[%s634 + $0x20] sm:$0xff]
        %v640 = vld [vmem:[%s634 + $0x28] sm:$0xff]
        %v641 = vld [vmem:[%s634 + $0x30] sm:$0xff]
        %v642 = vld [vmem:[%s634 + $0x38] sm:$0xff]
        %v643 = vld [vmem:[%s634 + $0x40] sm:$0xff]
        %v644 = vld [vmem:[%s634 + $0x48] sm:$0xff]
        %v645 = vld [vmem:[%s634 + $0x50] sm:$0xff]
        %v646 = vld [vmem:[%s634 + $0x58] sm:$0xff]
        %v647 = vld [vmem:[%s634 + $0x60] sm:$0xff]
        %v648 = vld [vmem:[%s634 + $0x68] sm:$0xff]
        %v649 = vld [vmem:[%s634 + $0x70] sm:$0xff]
        %v650 = vld [vmem:[%s634 + $0x78] sm:$0xff]
        %v655 = vrot.slane %v524, 1
        %v656 = vrot.slane %v525, 1
        %v657 = vsel %vm221, %v655, %v656
        %v658 = vrot.slane %v526, 1
        %v659 = vsel %vm221, %v656, %v658
        %v660 = vrot.slane %v527, 1
        %v661 = vsel %vm221, %v658, %v660
        %666 = vmatprep.subr.mxu0 0.0
        %667 = vmatpush1.msra.mxu0 %v650
        %668 = vmatprep.subr.mxu0 0.0
        %669 = vmatpush1.msra.mxu0 %v649
        %670 = vmatprep.subr.mxu0 0.0
        %671 = vmatpush1.msra.mxu0 %v648
        %672 = vmatprep.subr.mxu0 0.0
        %673 = vmatpush1.msra.mxu0 %v647
        %674 = vmatprep.subr.mxu0 0.0
        %675 = vmatpush1.msra.mxu0 %v646
        %676 = vmatprep.subr.mxu0 0.0
        %677 = vmatpush1.msra.mxu0 %v645
        %678 = vmatprep.subr.mxu0 0.0
        %679 = vmatpush1.msra.mxu0 %v644
        %680 = vmatprep.subr.mxu0 0.0
        %681 = vmatpush1.msra.mxu0 %v643
        %682 = vmatprep.subr.mxu0 0.0
        %683 = vmatpush1.msra.mxu0 %v642
        %684 = vmatprep.subr.mxu0 0.0
        %685 = vmatpush1.msra.mxu0 %v641
        %686 = vmatprep.subr.mxu0 0.0
        %687 = vmatpush1.msra.mxu0 %v640
        %688 = vmatprep.subr.mxu0 0.0
        %689 = vmatpush1.msra.mxu0 %v639
        %690 = vmatprep.subr.mxu0 0.0
        %691 = vmatpush1.msra.mxu0 %v638
        %692 = vmatprep.subr.mxu0 0.0
        %693 = vmatpush1.msra.mxu0 %v637
        %694 = vmatprep.subr.mxu0 0.0
        %695 = vmatpush1.msra.mxu0 %v636
        %696 = vmatprep.subr.mxu0 0.0
        %697 = vmatpush1.msra.mxu0 %v635
        %698 = vmatprep.subr.mxu0 0.0
        %699 = vmatpush2.msra.mxu0 0.0
        %700 = vmatprep.subr.mxu0 0.0
        %701 = vmatpush2.msra.mxu0 0.0
        %702 = vmatprep.subr.mxu0 0.0
        %703 = vmatpush2.msra.mxu0 0.0
        %704 = vmatprep.subr.mxu0 0.0
        %705 = vmatpush2.msra.mxu0 0.0
        %706 = vmatprep.subr.mxu0 0.0
        %707 = vmatpush2.msra.mxu0 0.0
        %708 = vmatprep.subr.mxu0 0.0
        %709 = vmatpush2.msra.mxu0 0.0
        %710 = vmatprep.subr.mxu0 0.0
        %711 = vmatpush2.msra.mxu0 0.0
        %712 = vmatprep.subr.mxu0 0.0
        %713 = vmatpush2.msra.mxu0 0.0
        %714 = vmatprep.subr.mxu0 0.0
        %715 = vmatpush2.msra.mxu0 0.0
        %716 = vmatprep.subr.mxu0 0.0
        %717 = vmatpush2.msra.mxu0 0.0
        %718 = vmatprep.subr.mxu0 0.0
        %719 = vmatpush2.msra.mxu0 0.0
        %720 = vmatprep.subr.mxu0 0.0
        %721 = vmatpush2.msra.mxu0 0.0
        %722 = vmatprep.subr.mxu0 0.0
        %723 = vmatpush2.msra.mxu0 0.0
        %724 = vmatprep.subr.mxu0 0.0
        %725 = vmatpush2.msra.mxu0 0.0
        %726 = vmatprep.subr.mxu0 0.0
        %727 = vmatpush2.msra.mxu0 0.0
        %728 = vmatprep.subr.mxu0 0.0
        %729 = vmatpush2.msra.mxu0 0.0
        %730 = vmatprep.mubr.f32.mxu0 0.0
        %731 = vmatmul.mubr.f32.gmra.mxu0 %v657
        %v732 = vpop.f32.mrf.mxu0
        %v733 = vadd.f32 0.0, %v732
        %v734 = vpop.f32.mrf.mxu0
        %735 = vmatprep.mubr.f32.mxu0 0.0
        %736 = vmatmul.mubr.f32.gmra.mxu0 %v659
        %v737 = vpop.f32.mrf.mxu0
        %v738 = vadd.f32 0.0, %v737
        %v739 = vpop.f32.mrf.mxu0
        %740 = vmatprep.mubr.f32.mxu0 0.0
        %741 = vmatmul.mubr.f32.gmra.mxu0 %v661
        %v742 = vpop.f32.mrf.mxu0
        %v743 = vadd.f32 0.0, %v742
        %v744 = vpop.f32.mrf.mxu0
        %745 = vmatprep.mubr.f32.mxu0 0.0
        %746 = vmatmul.mubr.f32.gmra.mxu0 %v660
        %v747 = vpop.f32.mrf.mxu0
        %v748 = vadd.f32 0.0, %v747
        %v749 = vpop.f32.mrf.mxu0
        %750 = vdwg.mxu0
        %v751 = vadd.f32 %v630, %v733
        %v752 = vadd.f32 %v631, %v738
        %v753 = vadd.f32 %v632, %v743
        %v754 = vadd.f32 %v633, %v748
        %s755 = scalar_lea.vmem %s1, 640
        %v756 = vld [vmem:[%s755] sm:$0xff]
        %v757 = vld [vmem:[%s755 + $0x8] sm:$0xff]
        %v758 = vld [vmem:[%s755 + $0x10] sm:$0xff]
        %v759 = vld [vmem:[%s755 + $0x18] sm:$0xff]
        %v760 = vld [vmem:[%s755 + $0x20] sm:$0xff]
        %v761 = vld [vmem:[%s755 + $0x28] sm:$0xff]
        %v762 = vld [vmem:[%s755 + $0x30] sm:$0xff]
        %v763 = vld [vmem:[%s755 + $0x38] sm:$0xff]
        %v764 = vld [vmem:[%s755 + $0x40] sm:$0xff]
        %v765 = vld [vmem:[%s755 + $0x48] sm:$0xff]
        %v766 = vld [vmem:[%s755 + $0x50] sm:$0xff]
        %v767 = vld [vmem:[%s755 + $0x58] sm:$0xff]
        %v768 = vld [vmem:[%s755 + $0x60] sm:$0xff]
        %v769 = vld [vmem:[%s755 + $0x68] sm:$0xff]
        %v770 = vld [vmem:[%s755 + $0x70] sm:$0xff]
        %v771 = vld [vmem:[%s755 + $0x78] sm:$0xff]
        %v772 = vrot.slane %v524, 2
        %v773 = vrot.slane %v525, 2
        %v774 = vsel %vm420, %v772, %v773
        %v775 = vrot.slane %v526, 2
        %v776 = vsel %vm420, %v773, %v775
        %v777 = vrot.slane %v527, 2
        %v778 = vsel %vm420, %v775, %v777
        %783 = vmatprep.subr.mxu0 0.0
        %784 = vmatpush1.msra.mxu0 %v771
        %785 = vmatprep.subr.mxu0 0.0
        %786 = vmatpush1.msra.mxu0 %v770
        %787 = vmatprep.subr.mxu0 0.0
        %788 = vmatpush1.msra.mxu0 %v769
        %789 = vmatprep.subr.mxu0 0.0
        %790 = vmatpush1.msra.mxu0 %v768
        %791 = vmatprep.subr.mxu0 0.0
        %792 = vmatpush1.msra.mxu0 %v767
        %793 = vmatprep.subr.mxu0 0.0
        %794 = vmatpush1.msra.mxu0 %v766
        %795 = vmatprep.subr.mxu0 0.0
        %796 = vmatpush1.msra.mxu0 %v765
        %797 = vmatprep.subr.mxu0 0.0
        %798 = vmatpush1.msra.mxu0 %v764
        %799 = vmatprep.subr.mxu0 0.0
        %800 = vmatpush1.msra.mxu0 %v763
        %801 = vmatprep.subr.mxu0 0.0
        %802 = vmatpush1.msra.mxu0 %v762
        %803 = vmatprep.subr.mxu0 0.0
        %804 = vmatpush1.msra.mxu0 %v761
        %805 = vmatprep.subr.mxu0 0.0
        %806 = vmatpush1.msra.mxu0 %v760
        %807 = vmatprep.subr.mxu0 0.0
        %808 = vmatpush1.msra.mxu0 %v759
        %809 = vmatprep.subr.mxu0 0.0
        %810 = vmatpush1.msra.mxu0 %v758
        %811 = vmatprep.subr.mxu0 0.0
        %812 = vmatpush1.msra.mxu0 %v757
        %813 = vmatprep.subr.mxu0 0.0
        %814 = vmatpush1.msra.mxu0 %v756
        %815 = vmatprep.subr.mxu0 0.0
        %816 = vmatpush2.msra.mxu0 0.0
        %817 = vmatprep.subr.mxu0 0.0
        %818 = vmatpush2.msra.mxu0 0.0
        %819 = vmatprep.subr.mxu0 0.0
        %820 = vmatpush2.msra.mxu0 0.0
        %821 = vmatprep.subr.mxu0 0.0
        %822 = vmatpush2.msra.mxu0 0.0
        %823 = vmatprep.subr.mxu0 0.0
        %824 = vmatpush2.msra.mxu0 0.0
        %825 = vmatprep.subr.mxu0 0.0
        %826 = vmatpush2.msra.mxu0 0.0
        %827 = vmatprep.subr.mxu0 0.0
        %828 = vmatpush2.msra.mxu0 0.0
        %829 = vmatprep.subr.mxu0 0.0
        %830 = vmatpush2.msra.mxu0 0.0
        %831 = vmatprep.subr.mxu0 0.0
        %832 = vmatpush2.msra.mxu0 0.0
        %833 = vmatprep.subr.mxu0 0.0
        %834 = vmatpush2.msra.mxu0 0.0
        %835 = vmatprep.subr.mxu0 0.0
        %836 = vmatpush2.msra.mxu0 0.0
        %837 = vmatprep.subr.mxu0 0.0
        %838 = vmatpush2.msra.mxu0 0.0
        %839 = vmatprep.subr.mxu0 0.0
        %840 = vmatpush2.msra.mxu0 0.0
        %841 = vmatprep.subr.mxu0 0.0
        %842 = vmatpush2.msra.mxu0 0.0
        %843 = vmatprep.subr.mxu0 0.0
        %844 = vmatpush2.msra.mxu0 0.0
        %845 = vmatprep.subr.mxu0 0.0
        %846 = vmatpush2.msra.mxu0 0.0
        %847 = vmatprep.mubr.f32.mxu0 0.0
        %848 = vmatmul.mubr.f32.gmra.mxu0 %v774
        %v849 = vpop.f32.mrf.mxu0
        %v850 = vadd.f32 0.0, %v849
        %v851 = vpop.f32.mrf.mxu0
        %852 = vmatprep.mubr.f32.mxu0 0.0
        %853 = vmatmul.mubr.f32.gmra.mxu0 %v776
        %v854 = vpop.f32.mrf.mxu0
        %v855 = vadd.f32 0.0, %v854
        %v856 = vpop.f32.mrf.mxu0
        %857 = vmatprep.mubr.f32.mxu0 0.0
        %858 = vmatmul.mubr.f32.gmra.mxu0 %v778
        %v859 = vpop.f32.mrf.mxu0
        %v860 = vadd.f32 0.0, %v859
        %v861 = vpop.f32.mrf.mxu0
        %862 = vmatprep.mubr.f32.mxu0 0.0
        %863 = vmatmul.mubr.f32.gmra.mxu0 %v777
        %v864 = vpop.f32.mrf.mxu0
        %v865 = vadd.f32 0.0, %v864
        %v866 = vpop.f32.mrf.mxu0
        %867 = vdwg.mxu0
        %v868 = vadd.f32 %v751, %v850
        %v869 = vadd.f32 %v752, %v855
        %v870 = vadd.f32 %v753, %v860
        %v871 = vadd.f32 %v754, %v865
        %s872 = sadd.s32 %s173, 2
        %s873 = smul.u32 %s872, 32
        %s874 = scalar_lea.vmem %s165, %s873
        %v875 = vld [vmem:[%s874] sm:$0xff]
        %v876 = vld [vmem:[%s874 + $0x8] sm:$0xff]
        %v877 = vld [vmem:[%s874 + $0x10] sm:$0xff]
        %v878 = vld [vmem:[%s874 + $0x18] sm:$0xf]
        %s879 = scalar_lea.vmem %s1, 768
        %v880 = vld [vmem:[%s879] sm:$0xff]
        %v881 = vld [vmem:[%s879 + $0x8] sm:$0xff]
        %v882 = vld [vmem:[%s879 + $0x10] sm:$0xff]
        %v883 = vld [vmem:[%s879 + $0x18] sm:$0xff]
        %v884 = vld [vmem:[%s879 + $0x20] sm:$0xff]
        %v885 = vld [vmem:[%s879 + $0x28] sm:$0xff]
        %v886 = vld [vmem:[%s879 + $0x30] sm:$0xff]
        %v887 = vld [vmem:[%s879 + $0x38] sm:$0xff]
        %v888 = vld [vmem:[%s879 + $0x40] sm:$0xff]
        %v889 = vld [vmem:[%s879 + $0x48] sm:$0xff]
        %v890 = vld [vmem:[%s879 + $0x50] sm:$0xff]
        %v891 = vld [vmem:[%s879 + $0x58] sm:$0xff]
        %v892 = vld [vmem:[%s879 + $0x60] sm:$0xff]
        %v893 = vld [vmem:[%s879 + $0x68] sm:$0xff]
        %v894 = vld [vmem:[%s879 + $0x70] sm:$0xff]
        %v895 = vld [vmem:[%s879 + $0x78] sm:$0xff]
        %896 = vmatprep.subr.mxu0 0.0
        %897 = vmatpush1.msra.mxu0 %v895
        %898 = vmatprep.subr.mxu0 0.0
        %899 = vmatpush1.msra.mxu0 %v894
        %900 = vmatprep.subr.mxu0 0.0
        %901 = vmatpush1.msra.mxu0 %v893
        %902 = vmatprep.subr.mxu0 0.0
        %903 = vmatpush1.msra.mxu0 %v892
        %904 = vmatprep.subr.mxu0 0.0
        %905 = vmatpush1.msra.mxu0 %v891
        %906 = vmatprep.subr.mxu0 0.0
        %907 = vmatpush1.msra.mxu0 %v890
        %908 = vmatprep.subr.mxu0 0.0
        %909 = vmatpush1.msra.mxu0 %v889
        %910 = vmatprep.subr.mxu0 0.0
        %911 = vmatpush1.msra.mxu0 %v888
        %912 = vmatprep.subr.mxu0 0.0
        %913 = vmatpush1.msra.mxu0 %v887
        %914 = vmatprep.subr.mxu0 0.0
        %915 = vmatpush1.msra.mxu0 %v886
        %916 = vmatprep.subr.mxu0 0.0
        %917 = vmatpush1.msra.mxu0 %v885
        %918 = vmatprep.subr.mxu0 0.0
        %919 = vmatpush1.msra.mxu0 %v884
        %920 = vmatprep.subr.mxu0 0.0
        %921 = vmatpush1.msra.mxu0 %v883
        %922 = vmatprep.subr.mxu0 0.0
        %923 = vmatpush1.msra.mxu0 %v882
        %924 = vmatprep.subr.mxu0 0.0
        %925 = vmatpush1.msra.mxu0 %v881
        %926 = vmatprep.subr.mxu0 0.0
        %927 = vmatpush1.msra.mxu0 %v880
        %928 = vmatprep.subr.mxu0 0.0
        %929 = vmatpush2.msra.mxu0 0.0
        %930 = vmatprep.subr.mxu0 0.0
        %931 = vmatpush2.msra.mxu0 0.0
        %932 = vmatprep.subr.mxu0 0.0
        %933 = vmatpush2.msra.mxu0 0.0
        %934 = vmatprep.subr.mxu0 0.0
        %935 = vmatpush2.msra.mxu0 0.0
        %936 = vmatprep.subr.mxu0 0.0
        %937 = vmatpush2.msra.mxu0 0.0
        %938 = vmatprep.subr.mxu0 0.0
        %939 = vmatpush2.msra.mxu0 0.0
        %940 = vmatprep.subr.mxu0 0.0
        %941 = vmatpush2.msra.mxu0 0.0
        %942 = vmatprep.subr.mxu0 0.0
        %943 = vmatpush2.msra.mxu0 0.0
        %944 = vmatprep.subr.mxu0 0.0
        %945 = vmatpush2.msra.mxu0 0.0
        %946 = vmatprep.subr.mxu0 0.0
        %947 = vmatpush2.msra.mxu0 0.0
        %948 = vmatprep.subr.mxu0 0.0
        %949 = vmatpush2.msra.mxu0 0.0
        %950 = vmatprep.subr.mxu0 0.0
        %951 = vmatpush2.msra.mxu0 0.0
        %952 = vmatprep.subr.mxu0 0.0
        %953 = vmatpush2.msra.mxu0 0.0
        %954 = vmatprep.subr.mxu0 0.0
        %955 = vmatpush2.msra.mxu0 0.0
        %956 = vmatprep.subr.mxu0 0.0
        %957 = vmatpush2.msra.mxu0 0.0
        %958 = vmatprep.subr.mxu0 0.0
        %959 = vmatpush2.msra.mxu0 0.0
        %960 = vmatprep.mubr.f32.mxu0 0.0
        %961 = vmatmul.mubr.f32.gmra.mxu0 %v875
        %v962 = vpop.f32.mrf.mxu0
        %v963 = vadd.f32 0.0, %v962
        %v964 = vpop.f32.mrf.mxu0
        %965 = vmatprep.mubr.f32.mxu0 0.0
        %966 = vmatmul.mubr.f32.gmra.mxu0 %v876
        %v967 = vpop.f32.mrf.mxu0
        %v968 = vadd.f32 0.0, %v967
        %v969 = vpop.f32.mrf.mxu0
        %970 = vmatprep.mubr.f32.mxu0 0.0
        %971 = vmatmul.mubr.f32.gmra.mxu0 %v877
        %v972 = vpop.f32.mrf.mxu0
        %v973 = vadd.f32 0.0, %v972
        %v974 = vpop.f32.mrf.mxu0
        %975 = vmatprep.mubr.f32.mxu0 0.0
        %976 = vmatmul.mubr.f32.gmra.mxu0 %v878
        %v977 = vpop.f32.mrf.mxu0
        %v978 = vadd.f32 0.0, %v977
        %v979 = vpop.f32.mrf.mxu0
        %980 = vdwg.mxu0
        %v981 = vadd.f32 %v868, %v963
        %v982 = vadd.f32 %v869, %v968
        %v983 = vadd.f32 %v870, %v973
        %v984 = vadd.f32 %v871, %v978
        %s985 = scalar_lea.vmem %s1, 896
        %v986 = vld [vmem:[%s985] sm:$0xff]
        %v987 = vld [vmem:[%s985 + $0x8] sm:$0xff]
        %v988 = vld [vmem:[%s985 + $0x10] sm:$0xff]
        %v989 = vld [vmem:[%s985 + $0x18] sm:$0xff]
        %v990 = vld [vmem:[%s985 + $0x20] sm:$0xff]
        %v991 = vld [vmem:[%s985 + $0x28] sm:$0xff]
        %v992 = vld [vmem:[%s985 + $0x30] sm:$0xff]
        %v993 = vld [vmem:[%s985 + $0x38] sm:$0xff]
        %v994 = vld [vmem:[%s985 + $0x40] sm:$0xff]
        %v995 = vld [vmem:[%s985 + $0x48] sm:$0xff]
        %v996 = vld [vmem:[%s985 + $0x50] sm:$0xff]
        %v997 = vld [vmem:[%s985 + $0x58] sm:$0xff]
        %v998 = vld [vmem:[%s985 + $0x60] sm:$0xff]
        %v999 = vld [vmem:[%s985 + $0x68] sm:$0xff]
        %v1000 = vld [vmem:[%s985 + $0x70] sm:$0xff]
        %v1001 = vld [vmem:[%s985 + $0x78] sm:$0xff]
        %v1006 = vrot.slane %v875, 1
        %v1007 = vrot.slane %v876, 1
        %v1008 = vsel %vm221, %v1006, %v1007
        %v1009 = vrot.slane %v877, 1
        %v1010 = vsel %vm221, %v1007, %v1009
        %v1011 = vrot.slane %v878, 1
        %v1012 = vsel %vm221, %v1009, %v1011
        %1017 = vmatprep.subr.mxu0 0.0
        %1018 = vmatpush1.msra.mxu0 %v1001
        %1019 = vmatprep.subr.mxu0 0.0
        %1020 = vmatpush1.msra.mxu0 %v1000
        %1021 = vmatprep.subr.mxu0 0.0
        %1022 = vmatpush1.msra.mxu0 %v999
        %1023 = vmatprep.subr.mxu0 0.0
        %1024 = vmatpush1.msra.mxu0 %v998
        %1025 = vmatprep.subr.mxu0 0.0
        %1026 = vmatpush1.msra.mxu0 %v997
        %1027 = vmatprep.subr.mxu0 0.0
        %1028 = vmatpush1.msra.mxu0 %v996
        %1029 = vmatprep.subr.mxu0 0.0
        %1030 = vmatpush1.msra.mxu0 %v995
        %1031 = vmatprep.subr.mxu0 0.0
        %1032 = vmatpush1.msra.mxu0 %v994
        %1033 = vmatprep.subr.mxu0 0.0
        %1034 = vmatpush1.msra.mxu0 %v993
        %1035 = vmatprep.subr.mxu0 0.0
        %1036 = vmatpush1.msra.mxu0 %v992
        %1037 = vmatprep.subr.mxu0 0.0
        %1038 = vmatpush1.msra.mxu0 %v991
        %1039 = vmatprep.subr.mxu0 0.0
        %1040 = vmatpush1.msra.mxu0 %v990
        %1041 = vmatprep.subr.mxu0 0.0
        %1042 = vmatpush1.msra.mxu0 %v989
        %1043 = vmatprep.subr.mxu0 0.0
        %1044 = vmatpush1.msra.mxu0 %v988
        %1045 = vmatprep.subr.mxu0 0.0
        %1046 = vmatpush1.msra.mxu0 %v987
        %1047 = vmatprep.subr.mxu0 0.0
        %1048 = vmatpush1.msra.mxu0 %v986
        %1049 = vmatprep.subr.mxu0 0.0
        %1050 = vmatpush2.msra.mxu0 0.0
        %1051 = vmatprep.subr.mxu0 0.0
        %1052 = vmatpush2.msra.mxu0 0.0
        %1053 = vmatprep.subr.mxu0 0.0
        %1054 = vmatpush2.msra.mxu0 0.0
        %1055 = vmatprep.subr.mxu0 0.0
        %1056 = vmatpush2.msra.mxu0 0.0
        %1057 = vmatprep.subr.mxu0 0.0
        %1058 = vmatpush2.msra.mxu0 0.0
        %1059 = vmatprep.subr.mxu0 0.0
        %1060 = vmatpush2.msra.mxu0 0.0
        %1061 = vmatprep.subr.mxu0 0.0
        %1062 = vmatpush2.msra.mxu0 0.0
        %1063 = vmatprep.subr.mxu0 0.0
        %1064 = vmatpush2.msra.mxu0 0.0
        %1065 = vmatprep.subr.mxu0 0.0
        %1066 = vmatpush2.msra.mxu0 0.0
        %1067 = vmatprep.subr.mxu0 0.0
        %1068 = vmatpush2.msra.mxu0 0.0
        %1069 = vmatprep.subr.mxu0 0.0
        %1070 = vmatpush2.msra.mxu0 0.0
        %1071 = vmatprep.subr.mxu0 0.0
        %1072 = vmatpush2.msra.mxu0 0.0
        %1073 = vmatprep.subr.mxu0 0.0
        %1074 = vmatpush2.msra.mxu0 0.0
        %1075 = vmatprep.subr.mxu0 0.0
        %1076 = vmatpush2.msra.mxu0 0.0
        %1077 = vmatprep.subr.mxu0 0.0
        %1078 = vmatpush2.msra.mxu0 0.0
        %1079 = vmatprep.subr.mxu0 0.0
        %1080 = vmatpush2.msra.mxu0 0.0
        %1081 = vmatprep.mubr.f32.mxu0 0.0
        %1082 = vmatmul.mubr.f32.gmra.mxu0 %v1008
        %v1083 = vpop.f32.mrf.mxu0
        %v1084 = vadd.f32 0.0, %v1083
        %v1085 = vpop.f32.mrf.mxu0
        %1086 = vmatprep.mubr.f32.mxu0 0.0
        %1087 = vmatmul.mubr.f32.gmra.mxu0 %v1010
        %v1088 = vpop.f32.mrf.mxu0
        %v1089 = vadd.f32 0.0, %v1088
        %v1090 = vpop.f32.mrf.mxu0
        %1091 = vmatprep.mubr.f32.mxu0 0.0
        %1092 = vmatmul.mubr.f32.gmra.mxu0 %v1012
        %v1093 = vpop.f32.mrf.mxu0
        %v1094 = vadd.f32 0.0, %v1093
        %v1095 = vpop.f32.mrf.mxu0
        %1096 = vmatprep.mubr.f32.mxu0 0.0
        %1097 = vmatmul.mubr.f32.gmra.mxu0 %v1011
        %v1098 = vpop.f32.mrf.mxu0
        %v1099 = vadd.f32 0.0, %v1098
        %v1100 = vpop.f32.mrf.mxu0
        %1101 = vdwg.mxu0
        %v1102 = vadd.f32 %v981, %v1084
        %v1103 = vadd.f32 %v982, %v1089
        %v1104 = vadd.f32 %v983, %v1094
        %v1105 = vadd.f32 %v984, %v1099
        %s1106 = scalar_lea.vmem %s1, 1024
        %v1107 = vld [vmem:[%s1106] sm:$0xff]
        %v1108 = vld [vmem:[%s1106 + $0x8] sm:$0xff]
        %v1109 = vld [vmem:[%s1106 + $0x10] sm:$0xff]
        %v1110 = vld [vmem:[%s1106 + $0x18] sm:$0xff]
        %v1111 = vld [vmem:[%s1106 + $0x20] sm:$0xff]
        %v1112 = vld [vmem:[%s1106 + $0x28] sm:$0xff]
        %v1113 = vld [vmem:[%s1106 + $0x30] sm:$0xff]
        %v1114 = vld [vmem:[%s1106 + $0x38] sm:$0xff]
        %v1115 = vld [vmem:[%s1106 + $0x40] sm:$0xff]
        %v1116 = vld [vmem:[%s1106 + $0x48] sm:$0xff]
        %v1117 = vld [vmem:[%s1106 + $0x50] sm:$0xff]
        %v1118 = vld [vmem:[%s1106 + $0x58] sm:$0xff]
        %v1119 = vld [vmem:[%s1106 + $0x60] sm:$0xff]
        %v1120 = vld [vmem:[%s1106 + $0x68] sm:$0xff]
        %v1121 = vld [vmem:[%s1106 + $0x70] sm:$0xff]
        %v1122 = vld [vmem:[%s1106 + $0x78] sm:$0xff]
        %v1123 = vrot.slane %v875, 2
        %v1124 = vrot.slane %v876, 2
        %v1125 = vsel %vm420, %v1123, %v1124
        %v1126 = vrot.slane %v877, 2
        %v1127 = vsel %vm420, %v1124, %v1126
        %v1128 = vrot.slane %v878, 2
        %v1129 = vsel %vm420, %v1126, %v1128
        %1134 = vmatprep.subr.mxu0 0.0
        %1135 = vmatpush1.msra.mxu0 %v1122
        %1136 = vmatprep.subr.mxu0 0.0
        %1137 = vmatpush1.msra.mxu0 %v1121
        %1138 = vmatprep.subr.mxu0 0.0
        %1139 = vmatpush1.msra.mxu0 %v1120
        %1140 = vmatprep.subr.mxu0 0.0
        %1141 = vmatpush1.msra.mxu0 %v1119
        %1142 = vmatprep.subr.mxu0 0.0
        %1143 = vmatpush1.msra.mxu0 %v1118
        %1144 = vmatprep.subr.mxu0 0.0
        %1145 = vmatpush1.msra.mxu0 %v1117
        %1146 = vmatprep.subr.mxu0 0.0
        %1147 = vmatpush1.msra.mxu0 %v1116
        %1148 = vmatprep.subr.mxu0 0.0
        %1149 = vmatpush1.msra.mxu0 %v1115
        %1150 = vmatprep.subr.mxu0 0.0
        %1151 = vmatpush1.msra.mxu0 %v1114
        %1152 = vmatprep.subr.mxu0 0.0
        %1153 = vmatpush1.msra.mxu0 %v1113
        %1154 = vmatprep.subr.mxu0 0.0
        %1155 = vmatpush1.msra.mxu0 %v1112
        %1156 = vmatprep.subr.mxu0 0.0
        %1157 = vmatpush1.msra.mxu0 %v1111
        %1158 = vmatprep.subr.mxu0 0.0
        %1159 = vmatpush1.msra.mxu0 %v1110
        %1160 = vmatprep.subr.mxu0 0.0
        %1161 = vmatpush1.msra.mxu0 %v1109
        %1162 = vmatprep.subr.mxu0 0.0
        %1163 = vmatpush1.msra.mxu0 %v1108
        %1164 = vmatprep.subr.mxu0 0.0
        %1165 = vmatpush1.msra.mxu0 %v1107
        %1166 = vmatprep.subr.mxu0 0.0
        %1167 = vmatpush2.msra.mxu0 0.0
        %1168 = vmatprep.subr.mxu0 0.0
        %1169 = vmatpush2.msra.mxu0 0.0
        %1170 = vmatprep.subr.mxu0 0.0
        %1171 = vmatpush2.msra.mxu0 0.0
        %1172 = vmatprep.subr.mxu0 0.0
        %1173 = vmatpush2.msra.mxu0 0.0
        %1174 = vmatprep.subr.mxu0 0.0
        %1175 = vmatpush2.msra.mxu0 0.0
        %1176 = vmatprep.subr.mxu0 0.0
        %1177 = vmatpush2.msra.mxu0 0.0
        %1178 = vmatprep.subr.mxu0 0.0
        %1179 = vmatpush2.msra.mxu0 0.0
        %1180 = vmatprep.subr.mxu0 0.0
        %1181 = vmatpush2.msra.mxu0 0.0
        %1182 = vmatprep.subr.mxu0 0.0
        %1183 = vmatpush2.msra.mxu0 0.0
        %1184 = vmatprep.subr.mxu0 0.0
        %1185 = vmatpush2.msra.mxu0 0.0
        %1186 = vmatprep.subr.mxu0 0.0
        %1187 = vmatpush2.msra.mxu0 0.0
        %1188 = vmatprep.subr.mxu0 0.0
        %1189 = vmatpush2.msra.mxu0 0.0
        %1190 = vmatprep.subr.mxu0 0.0
        %1191 = vmatpush2.msra.mxu0 0.0
        %1192 = vmatprep.subr.mxu0 0.0
        %1193 = vmatpush2.msra.mxu0 0.0
        %1194 = vmatprep.subr.mxu0 0.0
        %1195 = vmatpush2.msra.mxu0 0.0
        %1196 = vmatprep.subr.mxu0 0.0
        %1197 = vmatpush2.msra.mxu0 0.0
        %1198 = vmatprep.mubr.f32.mxu0 0.0
        %1199 = vmatmul.mubr.f32.gmra.mxu0 %v1125
        %v1200 = vpop.f32.mrf.mxu0
        %v1201 = vadd.f32 0.0, %v1200
        %v1202 = vpop.f32.mrf.mxu0
        %1203 = vmatprep.mubr.f32.mxu0 0.0
        %1204 = vmatmul.mubr.f32.gmra.mxu0 %v1127
        %v1205 = vpop.f32.mrf.mxu0
        %v1206 = vadd.f32 0.0, %v1205
        %v1207 = vpop.f32.mrf.mxu0
        %1208 = vmatprep.mubr.f32.mxu0 0.0
        %1209 = vmatmul.mubr.f32.gmra.mxu0 %v1129
        %v1210 = vpop.f32.mrf.mxu0
        %v1211 = vadd.f32 0.0, %v1210
        %v1212 = vpop.f32.mrf.mxu0
        %1213 = vmatprep.mubr.f32.mxu0 0.0
        %1214 = vmatmul.mubr.f32.gmra.mxu0 %v1128
        %v1215 = vpop.f32.mrf.mxu0
        %v1216 = vadd.f32 0.0, %v1215
        %v1217 = vpop.f32.mrf.mxu0
        %1218 = vdwg.mxu0
        %v1219 = vadd.f32 %v1102, %v1201
        %v1220 = vadd.f32 %v1103, %v1206
        %v1221 = vadd.f32 %v1104, %v1211
        %v1222 = vadd.f32 %v1105, %v1216
        %v1224 = vlaneseq
        %v1225 = vshrl.u32 %v1224, 7
        %v1226 = vsub.s32 0, %v1225
        %v1227 = vrot.slane %v171, %v1226
        %v1229 = vadd.f32 %v1219, %v1227
        %v1230 = vadd.f32 %v1220, %v1227
        %v1231 = vadd.f32 %v1221, %v1227
        %v1232 = vadd.f32 %v1222, %v1227
        %v1233 = vmax.f32 %v1229, 0.0
        %v1234 = vmax.f32 %v1230, 0.0
        %v1235 = vmax.f32 %v1231, 0.0
        %v1236 = vmax.f32 %v1232, 0.0
        %s1237 = scalar_lea.vmem %s170, %s178
        %1238 = vst [vmem:[%s1237] sm:$0xff] %v1233
        %1239 = vst [vmem:[%s1237 + $0x8] sm:$0xff] %v1234
        %1240 = vst [vmem:[%s1237 + $0x10] sm:$0xff] %v1235
        %1241 = vst [vmem:[%s1237 + $0x18] sm:$0x3] %v1236
      $region37: #{forward.7} parent=31 // loop_footer
        %s177 = sadd.s32 1, %s173
      $region38: #{forward.7} parent=31 // loop_footer_branch
        %172 = sbr.rel target = $region34
      $region39: #{forward.7} parent=31 // loop_exit
        _
      %p1242 = scmp.lt.s32.totalorder %s14, 1
      %s1243 = scalar_select %p1242, %s14, 1
      %s1244 = smul.addr %s1243, 104
      %s1245 = smul.addr %s1244, 8
      %s1246 = scalar_lea.vmem %s3, %s1245
      // Predicated region
      $region40: #{forward.7} parent=31 // pred_check
        %p1247 = pneg %p100
      $region41: #{forward.7} parent=31 // pred_check_branch
        %1249 = sbr.rel (%p1247) target = $region43
      $region42: #{forward.7} parent=31 // pred_region
        _
      $region43: #{forward.7} parent=31 // pred_fallthru
        _
    $region32: #{forward.7} parent=5 // pred_fallthru
      _
    %p1250 = scmp.le.s32.totalorder 2, %s9
    // Predicated region
    $region44: #{forward.7} parent=5 // pred_check
      %p1251 = pneg %p1250
    $region45: #{forward.7} parent=5 // pred_check_branch
      %1253 = sbr.rel (%p1251) target = $region47
    $region46: #{forward.7} parent=5 // pred_region
      %s1254 = ssub.s32 %s9, 2
      // Predicated region
      $region48: #{forward.7} parent=46 // pred_check
        %p1255 = pneg %p106
      $region49: #{forward.7} parent=46 // pred_check_branch
        %1257 = sbr.rel (%p1255) target = $region51
      $region50: #{forward.7} parent=46 // pred_region
        %p1258 = scmp.lt.s32.totalorder %s15, 1
        %s1259 = scalar_select %p1258, %s15, 1
        %s1260 = smul.addr %s1259, 104
        %s1261 = smul.addr %s1260, 8
        %s1262 = scalar_lea.vmem %s3, %s1261
      $region51: #{forward.7} parent=46 // pred_fallthru
        _
    $region47: #{forward.7} parent=5 // pred_fallthru
      _
  $region6: #{forward.7} parent=0 // loop_footer
    %s13 = sadd.s32 1, %s9
  $region7: #{forward.7} parent=0 // loop_footer_branch
    %8 = sbr.rel target = $region3
  $region8: #{forward.7} parent=0 // loop_exit
    _

// kernel: forward.8
$region0: #{forward.8}
  #allocation0 [shape = 'u32[]', space=smem, size = 0x4, offset = 0x4, fixed_abs, tag = 'smem constant byte address 0x4 - core index']
  #allocation1 [shape = 'u32[144,128]{1,0:T(1,128)}', space=vmem, size = 0x12000, scoped, tag = 'internal scratch']
  %s0 = inlined_call_operand.vmem [shape: f32[2,26,26,128], index: 0, kind: input, shape index: {}]
  %s1 = inlined_call_operand.vmem [shape: f32[9,128,128], index: 1, kind: input, shape index: {}]
  %s2 = inlined_call_operand.vmem [shape: f32[1,128], index: 2, kind: input, shape index: {}]
  %s3 = inlined_call_operand.vmem [shape: f32[2,24,24,128], index: 3, kind: output, shape index: {}]
  %s4 = sld [smem:[#allocation0]]
  $region52: #{forward.8} parent=0
    _
  %s6 = ssub.s32 1, %s4
  %s7 = scalar_select 0, %s6, %s4
  loop: start=0, step=1, limit=4
  $region2: #{forward.8} parent=0 // loop_pre_header
    _
  $region3: #{forward.8} parent=0 // loop_header
    %s9 = sphi 0, %s13
    %p10 = scmp.ge.s32.totalorder %s9, 4
    %s19 = sphi 0, %s21
    %s22 = sphi 0, %s19
    %s23 = sphi 0, %s22
    %s39 = sphi 0, %s23
    %s43 = sphi 0, %s43
    %s45 = sphi 0, %s43
    %s46 = sphi 0, %s45
    %s60 = sphi 0, %s46
    %s64 = sphi 0, %s64
    %s66 = sphi 0, %s64
    %s67 = sphi 0, %s66
    %s81 = sphi 0, %s67
    %s87 = sphi 0, %s89
    %s90 = sphi 0, %s87
    %s91 = sphi 0, %s90
    %s107 = sphi 0, %s91
  $region4: #{forward.8} parent=0 // loop_header_branch
    %12 = sbr.rel (%p10) target = $region8
  $region5: #{forward.8} parent=0 // loop_body
    %s14 = ssub.s32 %s9, 1
    %s15 = ssub.s32 %s9, 2
    %s16 = sadd.s32 %s9, 1
    %s17 = ssub.s32 %s9, %s16
    %p18 = scmp.eq.s32.totalorder %s17, 0
    %s20 = sadd.s32 %s19, 1
    %s21 = scalar_select %p18, %s19, %s20
    %p24 = pneg %p18
    %p25 = scmp.eq.s32.totalorder %s9, 1
    %p26 = por %p24, %p25
    %p27 = scmp.ne.s32.totalorder %s19, %s22
    %p28 = scmp.eq.s32.totalorder %s9, 0
    %p29 = por %p27, %p28
    %p30 = scmp.ne.s32.totalorder %s19, %s22
    %p31 = scmp.eq.s32.totalorder %s14, 1
    %p32 = por %p30, %p31
    %p33 = scmp.ne.s32.totalorder %s22, %s23
    %p34 = scmp.eq.s32.totalorder %s14, 0
    %p35 = por %p33, %p34
    %p36 = scmp.ne.s32.totalorder %s22, %s23
    %p37 = scmp.eq.s32.totalorder %s15, 1
    %p38 = por %p36, %p37
    %p40 = scmp.ne.s32.totalorder %s23, %s39
    %p41 = scmp.eq.s32.totalorder %s15, 0
    %p42 = por %p40, %p41
    %s44 = sadd.s32 %s43, 1
    %p47 = scmp.eq.s32.totalorder %s9, 1
    %p48 = scmp.ne.s32.totalorder %s43, %s45
    %p49 = scmp.eq.s32.totalorder %s9, 0
    %p50 = por %p48, %p49
    %p51 = scmp.ne.s32.totalorder %s43, %s45
    %p52 = scmp.eq.s32.totalorder %s14, 1
    %p53 = por %p51, %p52
    %p54 = scmp.ne.s32.totalorder %s45, %s46
    %p55 = scmp.eq.s32.totalorder %s14, 0
    %p56 = por %p54, %p55
    %p57 = scmp.ne.s32.totalorder %s45, %s46
    %p58 = scmp.eq.s32.totalorder %s15, 1
    %p59 = por %p57, %p58
    %p61 = scmp.ne.s32.totalorder %s46, %s60
    %p62 = scmp.eq.s32.totalorder %s15, 0
    %p63 = por %p61, %p62
    %s65 = sadd.s32 %s64, 1
    %p68 = scmp.eq.s32.totalorder %s9, 1
    %p69 = scmp.ne.s32.totalorder %s64, %s66
    %p70 = scmp.eq.s32.totalorder %s9, 0
    %p71 = por %p69, %p70
    %p72 = scmp.ne.s32.totalorder %s64, %s66
    %p73 = scmp.eq.s32.totalorder %s14, 1
    %p74 = por %p72, %p73
    %p75 = scmp.ne.s32.totalorder %s66, %s67
    %p76 = scmp.eq.s32.totalorder %s14, 0
    %p77 = por %p75, %p76
    %p78 = scmp.ne.s32.totalorder %s66, %s67
    %p79 = scmp.eq.s32.totalorder %s15, 1
    %p80 = por %p78, %p79
    %p82 = scmp.ne.s32.totalorder %s67, %s81
    %p83 = scmp.eq.s32.totalorder %s15, 0
    %p84 = por %p82, %p83
    %s85 = ssub.s32 %s9, %s16
    %p86 = scmp.eq.s32.totalorder %s85, 0
    %s88 = sadd.s32 %s87, 1
    %s89 = scalar_select %p86, %s87, %s88
    %p92 = pneg %p86
    %p93 = scmp.eq.s32.totalorder %s9, 1
    %p94 = por %p92, %p93
    %p95 = scmp.ne.s32.totalorder %s87, %s90
    %p96 = scmp.eq.s32.totalorder %s9, 0
    %p97 = por %p95, %p96
    %p98 = scmp.ne.s32.totalorder %s87, %s90
    %p99 = scmp.eq.s32.totalorder %s14, 1
    %p100 = por %p98, %p99
    %p101 = scmp.ne.s32.totalorder %s90, %s91
    %p102 = scmp.eq.s32.totalorder %s14, 0
    %p103 = por %p101, %p102
    %p104 = scmp.ne.s32.totalorder %s90, %s91
    %p105 = scmp.eq.s32.totalorder %s15, 1
    %p106 = por %p104, %p105
    %p108 = scmp.ne.s32.totalorder %s91, %s107
    %p109 = scmp.eq.s32.totalorder %s15, 0
    %p110 = por %p108, %p109
    %p111 = scmp.le.s32.totalorder 1, %s9
    %p112 = scmp.lt.s32.totalorder %s9, 3
    %p113 = pnand %p111, %p112
    %p114 = pneg %p113
    // Predicated region
    $region9: #{forward.8} parent=5 // pred_check
      _
    $region10: #{forward.8} parent=5 // pred_check_branch
      %116 = sbr.rel (%p113) target = $region12
    $region11: #{forward.8} parent=5 // pred_region
      %s117 = ssub.s32 %s9, 1
      // Predicated region
      $region13: #{forward.8} parent=11 // pred_check
        %p118 = pneg %p56
      $region14: #{forward.8} parent=11 // pred_check_branch
        %120 = sbr.rel (%p118) target = $region16
      $region15: #{forward.8} parent=11 // pred_region
        _
      $region16: #{forward.8} parent=11 // pred_fallthru
        _
      // Predicated region
      $region17: #{forward.8} parent=11 // pred_check
        %p121 = pneg %p77
      $region18: #{forward.8} parent=11 // pred_check_branch
        %123 = sbr.rel (%p121) target = $region20
      $region19: #{forward.8} parent=11 // pred_region
        _
      $region20: #{forward.8} parent=11 // pred_fallthru
        _
    $region12: #{forward.8} parent=5 // pred_fallthru
      _
    %p124 = scmp.lt.s32.totalorder %s9, 2
    // Predicated region
    $region21: #{forward.8} parent=5 // pred_check
      %p125 = pneg %p124
    $region22: #{forward.8} parent=5 // pred_check_branch
      %127 = sbr.rel (%p125) target = $region24
    $region23: #{forward.8} parent=5 // pred_region
      // Predicated region
      $region25: #{forward.8} parent=23 // pred_check
        %p128 = pneg %p29
      $region26: #{forward.8} parent=23 // pred_check_branch
        %130 = sbr.rel (%p128) target = $region28
      $region27: #{forward.8} parent=23 // pred_region
        %p131 = scmp.lt.s32.totalorder %s9, 1
        %s132 = scalar_select %p131, %s9, 1
        %s133 = smul.addr %s132, 104
        %s134 = smul.addr %s133, 8
        %s135 = scalar_lea.vmem %s0, %s134
      $region28: #{forward.8} parent=23 // pred_fallthru
        _
    $region24: #{forward.8} parent=5 // pred_fallthru
      _
    %p136 = scmp.le.s32.totalorder 1, %s9
    %p137 = scmp.lt.s32.totalorder %s9, 3
    %p138 = pnand %p136, %p137
    %p139 = pneg %p138
    // Predicated region
    $region29: #{forward.8} parent=5 // pred_check
      _
    $region30: #{forward.8} parent=5 // pred_check_branch
      %141 = sbr.rel (%p138) target = $region32
    $region31: #{forward.8} parent=5 // pred_region
      %s142 = ssub.s32 %s9, 1
      %p143 = scmp.lt.s32.totalorder %s14, 1
      %s144 = scalar_select %p143, %s14, 1
      %s145 = smul.addr %s144, 104
      %s146 = smul.addr %s145, 8
      %s147 = scalar_lea.vmem %s0, %s146
      %p148 = pneg %p35
      %p149 = pneg %p32
      %p150 = pneg %p56
      %p151 = pneg %p53
      %p152 = pneg %p77
      %p153 = pneg %p74
      %p154 = pneg %p103
      %p155 = pneg %p100
      %p156 = scmp.lt.s32.totalorder %s14, 1
      %s157 = scalar_select %p156, %s14, 1
      %s158 = smul.addr %s157, 72
      %s159 = smul.addr %s158, 8
      %s160 = scalar_lea.vmem %s3, %s159
      %p161 = scmp.lt.s32.totalorder %s14, 1
      %s162 = scalar_select %p161, %s14, 1
      %s163 = smul.addr %s162, 104
      %s164 = smul.addr %s163, 8
      %s165 = scalar_lea.vmem %s0, %s164
      %p166 = scmp.lt.s32.totalorder %s14, 1
      %s167 = scalar_select %p166, %s14, 1
      %s168 = smul.addr %s167, 72
      %s169 = smul.addr %s168, 8
      %s170 = scalar_lea.vmem %s3, %s169
      %v171 = vld [vmem:[%s2] sm:$0x1]
      loop: start=0, step=1, limit=24
      $region33: #{forward.8} parent=31 // loop_pre_header
        _
      $region34: #{forward.8} parent=31 // loop_header
        %s173 = sphi 0, %s177
        %p174 = scmp.ge.s32.totalorder %s173, 24
      $region35: #{forward.8} parent=31 // loop_header_branch
        %176 = sbr.rel (%p174) target = $region39
      $region36: #{forward.8} parent=31 // loop_body
        %s178 = smul.u32 %s173, 32
        %s179 = scalar_lea.vmem %s165, %s178
        %v180 = vld [vmem:[%s179] sm:$0xff]
        %v181 = vld [vmem:[%s179 + $0x8] sm:$0xff]
        %v182 = vld [vmem:[%s179 + $0x10] sm:$0xff]
        %v183 = vld [vmem:[%s179 + $0x18] sm:$0x3]
        %v184 = vld [vmem:[%s1] sm:$0xff]
        %v185 = vld [vmem:[%s1 + $0x8] sm:$0xff]
        %v186 = vld [vmem:[%s1 + $0x10] sm:$0xff]
        %v187 = vld [vmem:[%s1 + $0x18] sm:$0xff]
        %v188 = vld [vmem:[%s1 + $0x20] sm:$0xff]
        %v189 = vld [vmem:[%s1 + $0x28] sm:$0xff]
        %v190 = vld [vmem:[%s1 + $0x30] sm:$0xff]
        %v191 = vld [vmem:[%s1 + $0x38] sm:$0xff]
        %v192 = vld [vmem:[%s1 + $0x40] sm:$0xff]
        %v193 = vld [vmem:[%s1 + $0x48] sm:$0xff]
        %v194 = vld [vmem:[%s1 + $0x50] sm:$0xff]
        %v195 = vld [vmem:[%s1 + $0x58] sm:$0xff]
        %v196 = vld [vmem:[%s1 + $0x60] sm:$0xff]
        %v197 = vld [vmem:[%s1 + $0x68] sm:$0xff]
        %v198 = vld [vmem:[%s1 + $0x70] sm:$0xff]
        %v199 = vld [vmem:[%s1 + $0x78] sm:$0xff]
        %s200 = scalar_lea.vmem %s1, 128
        %v201 = vld [vmem:[%s200] sm:$0xff]
        %v202 = vld [vmem:[%s200 + $0x8] sm:$0xff]
        %v203 = vld [vmem:[%s200 + $0x10] sm:$0xff]
        %v204 = vld [vmem:[%s200 + $0x18] sm:$0xff]
        %v205 = vld [vmem:[%s200 + $0x20] sm:$0xff]
        %v206 = vld [vmem:[%s200 + $0x28] sm:$0xff]
        %v207 = vld [vmem:[%s200 + $0x30] sm:$0xff]
        %v208 = vld [vmem:[%s200 + $0x38] sm:$0xff]
        %v209 = vld [vmem:[%s200 + $0x40] sm:$0xff]
        %v210 = vld [vmem:[%s200 + $0x48] sm:$0xff]
        %v211 = vld [vmem:[%s200 + $0x50] sm:$0xff]
        %v212 = vld [vmem:[%s200 + $0x58] sm:$0xff]
        %v213 = vld [vmem:[%s200 + $0x60] sm:$0xff]
        %v214 = vld [vmem:[%s200 + $0x68] sm:$0xff]
        %v215 = vld [vmem:[%s200 + $0x70] sm:$0xff]
        %v216 = vld [vmem:[%s200 + $0x78] sm:$0xff]
        %vm221 = vcmask 1046528
        %v222 = vrot.slane %v180, 1
        %v223 = vrot.slane %v181, 1
        %v224 = vsel %vm221, %v222, %v223
        %v225 = vrot.slane %v182, 1
        %v226 = vsel %vm221, %v223, %v225
        %v227 = vrot.slane %v183, 1
        %v228 = vsel %vm221, %v225, %v227
        %232 = vmatprep.subr.mxu0 0.0
        %233 = vmatpush1.msra.mxu0 %v216
        %234 = vmatprep.subr.mxu0 0.0
        %235 = vmatpush1.msra.mxu0 %v215
        %236 = vmatprep.subr.mxu0 0.0
        %237 = vmatpush1.msra.mxu0 %v214
        %238 = vmatprep.subr.mxu0 0.0
        %239 = vmatpush1.msra.mxu0 %v213
        %240 = vmatprep.subr.mxu0 0.0
        %241 = vmatpush1.msra.mxu0 %v212
        %242 = vmatprep.subr.mxu0 0.0
        %243 = vmatpush1.msra.mxu0 %v211
        %244 = vmatprep.subr.mxu0 0.0
        %245 = vmatpush1.msra.mxu0 %v210
        %246 = vmatprep.subr.mxu0 0.0
        %247 = vmatpush1.msra.mxu0 %v209
        %248 = vmatprep.subr.mxu0 0.0
        %249 = vmatpush1.msra.mxu0 %v208
        %250 = vmatprep.subr.mxu0 0.0
        %251 = vmatpush1.msra.mxu0 %v207
        %252 = vmatprep.subr.mxu0 0.0
        %253 = vmatpush1.msra.mxu0 %v206
        %254 = vmatprep.subr.mxu0 0.0
        %255 = vmatpush1.msra.mxu0 %v205
        %256 = vmatprep.subr.mxu0 0.0
        %257 = vmatpush1.msra.mxu0 %v204
        %258 = vmatprep.subr.mxu0 0.0
        %259 = vmatpush1.msra.mxu0 %v203
        %260 = vmatprep.subr.mxu0 0.0
        %261 = vmatpush1.msra.mxu0 %v202
        %262 = vmatprep.subr.mxu0 0.0
        %263 = vmatpush1.msra.mxu0 %v201
        %264 = vmatprep.subr.mxu0 0.0
        %265 = vmatpush2.msra.mxu0 0.0
        %266 = vmatprep.subr.mxu0 0.0
        %267 = vmatpush2.msra.mxu0 0.0
        %268 = vmatprep.subr.mxu0 0.0
        %269 = vmatpush2.msra.mxu0 0.0
        %270 = vmatprep.subr.mxu0 0.0
        %271 = vmatpush2.msra.mxu0 0.0
        %272 = vmatprep.subr.mxu0 0.0
        %273 = vmatpush2.msra.mxu0 0.0
        %274 = vmatprep.subr.mxu0 0.0
        %275 = vmatpush2.msra.mxu0 0.0
        %276 = vmatprep.subr.mxu0 0.0
        %277 = vmatpush2.msra.mxu0 0.0
        %278 = vmatprep.subr.mxu0 0.0
        %279 = vmatpush2.msra.mxu0 0.0
        %280 = vmatprep.subr.mxu0 0.0
        %281 = vmatpush2.msra.mxu0 0.0
        %282 = vmatprep.subr.mxu0 0.0
        %283 = vmatpush2.msra.mxu0 0.0
        %284 = vmatprep.subr.mxu0 0.0
        %285 = vmatpush2.msra.mxu0 0.0
        %286 = vmatprep.subr.mxu0 0.0
        %287 = vmatpush2.msra.mxu0 0.0
        %288 = vmatprep.subr.mxu0 0.0
        %289 = vmatpush2.msra.mxu0 0.0
        %290 = vmatprep.subr.mxu0 0.0
        %291 = vmatpush2.msra.mxu0 0.0
        %292 = vmatprep.subr.mxu0 0.0
        %293 = vmatpush2.msra.mxu0 0.0
        %294 = vmatprep.subr.mxu0 0.0
        %295 = vmatpush2.msra.mxu0 0.0
        %296 = vmatprep.mubr.f32.mxu0 0.0
        %297 = vmatmul.mubr.f32.gmra.mxu0 %v224
        %v298 = vpop.f32.mrf.mxu0
        %v299 = vadd.f32 0.0, %v298
        %v300 = vpop.f32.mrf.mxu0
        %301 = vmatprep.mubr.f32.mxu0 0.0
        %302 = vmatmul.mubr.f32.gmra.mxu0 %v226
        %v303 = vpop.f32.mrf.mxu0
        %v304 = vadd.f32 0.0, %v303
        %v305 = vpop.f32.mrf.mxu0
        %306 = vmatprep.mubr.f32.mxu0 0.0
        %307 = vmatmul.mubr.f32.gmra.mxu0 %v228
        %v308 = vpop.f32.mrf.mxu0
        %v309 = vadd.f32 0.0, %v308
        %v310 = vpop.f32.mrf.mxu0
        %311 = vdwg.mxu0
        %312 = vmatprep.subr.mxu0 0.0
        %313 = vmatpush1.msra.mxu0 %v199
        %314 = vmatprep.subr.mxu0 0.0
        %315 = vmatpush1.msra.mxu0 %v198
        %316 = vmatprep.subr.mxu0 0.0
        %317 = vmatpush1.msra.mxu0 %v197
        %318 = vmatprep.subr.mxu0 0.0
        %319 = vmatpush1.msra.mxu0 %v196
        %320 = vmatprep.subr.mxu0 0.0
        %321 = vmatpush1.msra.mxu0 %v195
        %322 = vmatprep.subr.mxu0 0.0
        %323 = vmatpush1.msra.mxu0 %v194
        %324 = vmatprep.subr.mxu0 0.0
        %325 = vmatpush1.msra.mxu0 %v193
        %326 = vmatprep.subr.mxu0 0.0
        %327 = vmatpush1.msra.mxu0 %v192
        %328 = vmatprep.subr.mxu0 0.0
        %329 = vmatpush1.msra.mxu0 %v191
        %330 = vmatprep.subr.mxu0 0.0
        %331 = vmatpush1.msra.mxu0 %v190
        %332 = vmatprep.subr.mxu0 0.0
        %333 = vmatpush1.msra.mxu0 %v189
        %334 = vmatprep.subr.mxu0 0.0
        %335 = vmatpush1.msra.mxu0 %v188
        %336 = vmatprep.subr.mxu0 0.0
        %337 = vmatpush1.msra.mxu0 %v187
        %338 = vmatprep.subr.mxu0 0.0
        %339 = vmatpush1.msra.mxu0 %v186
        %340 = vmatprep.subr.mxu0 0.0
        %341 = vmatpush1.msra.mxu0 %v185
        %342 = vmatprep.subr.mxu0 0.0
        %343 = vmatpush1.msra.mxu0 %v184
        %344 = vmatprep.subr.mxu0 0.0
        %345 = vmatpush2.msra.mxu0 0.0
        %346 = vmatprep.subr.mxu0 0.0
        %347 = vmatpush2.msra.mxu0 0.0
        %348 = vmatprep.subr.mxu0 0.0
        %349 = vmatpush2.msra.mxu0 0.0
        %350 = vmatprep.subr.mxu0 0.0
        %351 = vmatpush2.msra.mxu0 0.0
        %352 = vmatprep.subr.mxu0 0.0
        %353 = vmatpush2.msra.mxu0 0.0
        %354 = vmatprep.subr.mxu0 0.0
        %355 = vmatpush2.msra.mxu0 0.0
        %356 = vmatprep.subr.mxu0 0.0
        %357 = vmatpush2.msra.mxu0 0.0
        %358 = vmatprep.subr.mxu0 0.0
        %359 = vmatpush2.msra.mxu0 0.0
        %360 = vmatprep.subr.mxu0 0.0
        %361 = vmatpush2.msra.mxu0 0.0
        %362 = vmatprep.subr.mxu0 0.0
        %363 = vmatpush2.msra.mxu0 0.0
        %364 = vmatprep.subr.mxu0 0.0
        %365 = vmatpush2.msra.mxu0 0.0
        %366 = vmatprep.subr.mxu0 0.0
        %367 = vmatpush2.msra.mxu0 0.0
        %368 = vmatprep.subr.mxu0 0.0
        %369 = vmatpush2.msra.mxu0 0.0
        %370 = vmatprep.subr.mxu0 0.0
        %371 = vmatpush2.msra.mxu0 0.0
        %372 = vmatprep.subr.mxu0 0.0
        %373 = vmatpush2.msra.mxu0 0.0
        %374 = vmatprep.subr.mxu0 0.0
        %375 = vmatpush2.msra.mxu0 0.0
        %376 = vmatprep.mubr.f32.mxu0 0.0
        %377 = vmatmul.mubr.f32.gmra.mxu0 %v180
        %v378 = vpop.f32.mrf.mxu0
        %v379 = vadd.f32 %v299, %v378
        %v380 = vpop.f32.mrf.mxu0
        %381 = vmatprep.mubr.f32.mxu0 0.0
        %382 = vmatmul.mubr.f32.gmra.mxu0 %v181
        %v383 = vpop.f32.mrf.mxu0
        %v384 = vadd.f32 %v304, %v383
        %v385 = vpop.f32.mrf.mxu0
        %386 = vmatprep.mubr.f32.mxu0 0.0
        %387 = vmatmul.mubr.f32.gmra.mxu0 %v182
        %v388 = vpop.f32.mrf.mxu0
        %v389 = vadd.f32 %v309, %v388
        %v390 = vpop.f32.mrf.mxu0
        %391 = vdwg.mxu0
        %s392 = scalar_lea.vmem %s1, 256
        %v393 = vld [vmem:[%s392] sm:$0xff]
        %v394 = vld [vmem:[%s392 + $0x8] sm:$0xff]
        %v395 = vld [vmem:[%s392 + $0x10] sm:$0xff]
        %v396 = vld [vmem:[%s392 + $0x18] sm:$0xff]
        %v397 = vld [vmem:[%s392 + $0x20] sm:$0xff]
        %v398 = vld [vmem:[%s392 + $0x28] sm:$0xff]
        %v399 = vld [vmem:[%s392 + $0x30] sm:$0xff]
        %v400 = vld [vmem:[%s392 + $0x38] sm:$0xff]
        %v401 = vld [vmem:[%s392 + $0x40] sm:$0xff]
        %v402 = vld [vmem:[%s392 + $0x48] sm:$0xff]
        %v403 = vld [vmem:[%s392 + $0x50] sm:$0xff]
        %v404 = vld [vmem:[%s392 + $0x58] sm:$0xff]
        %v405 = vld [vmem:[%s392 + $0x60] sm:$0xff]
        %v406 = vld [vmem:[%s392 + $0x68] sm:$0xff]
        %v407 = vld [vmem:[%s392 + $0x70] sm:$0xff]
        %v408 = vld [vmem:[%s392 + $0x78] sm:$0xff]
        %vm409 = vcmask 1045504
        %v410 = vrot.slane %v180, 2
        %v411 = vrot.slane %v181, 2
        %v412 = vsel %vm409, %v410, %v411
        %v413 = vrot.slane %v182, 2
        %v414 = vsel %vm409, %v411, %v413
        %v415 = vrot.slane %v183, 2
        %v416 = vsel %vm409, %v413, %v415
        %420 = vmatprep.subr.mxu0 0.0
        %421 = vmatpush1.msra.mxu0 %v408
        %422 = vmatprep.subr.mxu0 0.0
        %423 = vmatpush1.msra.mxu0 %v407
        %424 = vmatprep.subr.mxu0 0.0
        %425 = vmatpush1.msra.mxu0 %v406
        %426 = vmatprep.subr.mxu0 0.0
        %427 = vmatpush1.msra.mxu0 %v405
        %428 = vmatprep.subr.mxu0 0.0
        %429 = vmatpush1.msra.mxu0 %v404
        %430 = vmatprep.subr.mxu0 0.0
        %431 = vmatpush1.msra.mxu0 %v403
        %432 = vmatprep.subr.mxu0 0.0
        %433 = vmatpush1.msra.mxu0 %v402
        %434 = vmatprep.subr.mxu0 0.0
        %435 = vmatpush1.msra.mxu0 %v401
        %436 = vmatprep.subr.mxu0 0.0
        %437 = vmatpush1.msra.mxu0 %v400
        %438 = vmatprep.subr.mxu0 0.0
        %439 = vmatpush1.msra.mxu0 %v399
        %440 = vmatprep.subr.mxu0 0.0
        %441 = vmatpush1.msra.mxu0 %v398
        %442 = vmatprep.subr.mxu0 0.0
        %443 = vmatpush1.msra.mxu0 %v397
        %444 = vmatprep.subr.mxu0 0.0
        %445 = vmatpush1.msra.mxu0 %v396
        %446 = vmatprep.subr.mxu0 0.0
        %447 = vmatpush1.msra.mxu0 %v395
        %448 = vmatprep.subr.mxu0 0.0
        %449 = vmatpush1.msra.mxu0 %v394
        %450 = vmatprep.subr.mxu0 0.0
        %451 = vmatpush1.msra.mxu0 %v393
        %452 = vmatprep.subr.mxu0 0.0
        %453 = vmatpush2.msra.mxu0 0.0
        %454 = vmatprep.subr.mxu0 0.0
        %455 = vmatpush2.msra.mxu0 0.0
        %456 = vmatprep.subr.mxu0 0.0
        %457 = vmatpush2.msra.mxu0 0.0
        %458 = vmatprep.subr.mxu0 0.0
        %459 = vmatpush2.msra.mxu0 0.0
        %460 = vmatprep.subr.mxu0 0.0
        %461 = vmatpush2.msra.mxu0 0.0
        %462 = vmatprep.subr.mxu0 0.0
        %463 = vmatpush2.msra.mxu0 0.0
        %464 = vmatprep.subr.mxu0 0.0
        %465 = vmatpush2.msra.mxu0 0.0
        %466 = vmatprep.subr.mxu0 0.0
        %467 = vmatpush2.msra.mxu0 0.0
        %468 = vmatprep.subr.mxu0 0.0
        %469 = vmatpush2.msra.mxu0 0.0
        %470 = vmatprep.subr.mxu0 0.0
        %471 = vmatpush2.msra.mxu0 0.0
        %472 = vmatprep.subr.mxu0 0.0
        %473 = vmatpush2.msra.mxu0 0.0
        %474 = vmatprep.subr.mxu0 0.0
        %475 = vmatpush2.msra.mxu0 0.0
        %476 = vmatprep.subr.mxu0 0.0
        %477 = vmatpush2.msra.mxu0 0.0
        %478 = vmatprep.subr.mxu0 0.0
        %479 = vmatpush2.msra.mxu0 0.0
        %480 = vmatprep.subr.mxu0 0.0
        %481 = vmatpush2.msra.mxu0 0.0
        %482 = vmatprep.subr.mxu0 0.0
        %483 = vmatpush2.msra.mxu0 0.0
        %484 = vmatprep.mubr.f32.mxu0 0.0
        %485 = vmatmul.mubr.f32.gmra.mxu0 %v412
        %v486 = vpop.f32.mrf.mxu0
        %v487 = vadd.f32 0.0, %v486
        %v488 = vpop.f32.mrf.mxu0
        %489 = vmatprep.mubr.f32.mxu0 0.0
        %490 = vmatmul.mubr.f32.gmra.mxu0 %v414
        %v491 = vpop.f32.mrf.mxu0
        %v492 = vadd.f32 0.0, %v491
        %v493 = vpop.f32.mrf.mxu0
        %494 = vmatprep.mubr.f32.mxu0 0.0
        %495 = vmatmul.mubr.f32.gmra.mxu0 %v416
        %v496 = vpop.f32.mrf.mxu0
        %v497 = vadd.f32 0.0, %v496
        %v498 = vpop.f32.mrf.mxu0
        %499 = vdwg.mxu0
        %v500 = vadd.f32 %v379, %v487
        %v501 = vadd.f32 %v384, %v492
        %v502 = vadd.f32 %v389, %v497
        %s503 = sadd.s32 %s173, 1
        %s504 = smul.u32 %s503, 32
        %s505 = scalar_lea.vmem %s165, %s504
        %v506 = vld [vmem:[%s505] sm:$0xff]
        %v507 = vld [vmem:[%s505 + $0x8] sm:$0xff]
        %v508 = vld [vmem:[%s505 + $0x10] sm:$0xff]
        %v509 = vld [vmem:[%s505 + $0x18] sm:$0x3]
        %s510 = scalar_lea.vmem %s1, 384
        %v511 = vld [vmem:[%s510] sm:$0xff]
        %v512 = vld [vmem:[%s510 + $0x8] sm:$0xff]
        %v513 = vld [vmem:[%s510 + $0x10] sm:$0xff]
        %v514 = vld [vmem:[%s510 + $0x18] sm:$0xff]
        %v515 = vld [vmem:[%s510 + $0x20] sm:$0xff]
        %v516 = vld [vmem:[%s510 + $0x28] sm:$0xff]
        %v517 = vld [vmem:[%s510 + $0x30] sm:$0xff]
        %v518 = vld [vmem:[%s510 + $0x38] sm:$0xff]
        %v519 = vld [vmem:[%s510 + $0x40] sm:$0xff]
        %v520 = vld [vmem:[%s510 + $0x48] sm:$0xff]
        %v521 = vld [vmem:[%s510 + $0x50] sm:$0xff]
        %v522 = vld [vmem:[%s510 + $0x58] sm:$0xff]
        %v523 = vld [vmem:[%s510 + $0x60] sm:$0xff]
        %v524 = vld [vmem:[%s510 + $0x68] sm:$0xff]
        %v525 = vld [vmem:[%s510 + $0x70] sm:$0xff]
        %v526 = vld [vmem:[%s510 + $0x78] sm:$0xff]
        %527 = vmatprep.subr.mxu0 0.0
        %528 = vmatpush1.msra.mxu0 %v526
        %529 = vmatprep.subr.mxu0 0.0
        %530 = vmatpush1.msra.mxu0 %v525
        %531 = vmatprep.subr.mxu0 0.0
        %532 = vmatpush1.msra.mxu0 %v524
        %533 = vmatprep.subr.mxu0 0.0
        %534 = vmatpush1.msra.mxu0 %v523
        %535 = vmatprep.subr.mxu0 0.0
        %536 = vmatpush1.msra.mxu0 %v522
        %537 = vmatprep.subr.mxu0 0.0
        %538 = vmatpush1.msra.mxu0 %v521
        %539 = vmatprep.subr.mxu0 0.0
        %540 = vmatpush1.msra.mxu0 %v520
        %541 = vmatprep.subr.mxu0 0.0
        %542 = vmatpush1.msra.mxu0 %v519
        %543 = vmatprep.subr.mxu0 0.0
        %544 = vmatpush1.msra.mxu0 %v518
        %545 = vmatprep.subr.mxu0 0.0
        %546 = vmatpush1.msra.mxu0 %v517
        %547 = vmatprep.subr.mxu0 0.0
        %548 = vmatpush1.msra.mxu0 %v516
        %549 = vmatprep.subr.mxu0 0.0
        %550 = vmatpush1.msra.mxu0 %v515
        %551 = vmatprep.subr.mxu0 0.0
        %552 = vmatpush1.msra.mxu0 %v514
        %553 = vmatprep.subr.mxu0 0.0
        %554 = vmatpush1.msra.mxu0 %v513
        %555 = vmatprep.subr.mxu0 0.0
        %556 = vmatpush1.msra.mxu0 %v512
        %557 = vmatprep.subr.mxu0 0.0
        %558 = vmatpush1.msra.mxu0 %v511
        %559 = vmatprep.subr.mxu0 0.0
        %560 = vmatpush2.msra.mxu0 0.0
        %561 = vmatprep.subr.mxu0 0.0
        %562 = vmatpush2.msra.mxu0 0.0
        %563 = vmatprep.subr.mxu0 0.0
        %564 = vmatpush2.msra.mxu0 0.0
        %565 = vmatprep.subr.mxu0 0.0
        %566 = vmatpush2.msra.mxu0 0.0
        %567 = vmatprep.subr.mxu0 0.0
        %568 = vmatpush2.msra.mxu0 0.0
        %569 = vmatprep.subr.mxu0 0.0
        %570 = vmatpush2.msra.mxu0 0.0
        %571 = vmatprep.subr.mxu0 0.0
        %572 = vmatpush2.msra.mxu0 0.0
        %573 = vmatprep.subr.mxu0 0.0
        %574 = vmatpush2.msra.mxu0 0.0
        %575 = vmatprep.subr.mxu0 0.0
        %576 = vmatpush2.msra.mxu0 0.0
        %577 = vmatprep.subr.mxu0 0.0
        %578 = vmatpush2.msra.mxu0 0.0
        %579 = vmatprep.subr.mxu0 0.0
        %580 = vmatpush2.msra.mxu0 0.0
        %581 = vmatprep.subr.mxu0 0.0
        %582 = vmatpush2.msra.mxu0 0.0
        %583 = vmatprep.subr.mxu0 0.0
        %584 = vmatpush2.msra.mxu0 0.0
        %585 = vmatprep.subr.mxu0 0.0
        %586 = vmatpush2.msra.mxu0 0.0
        %587 = vmatprep.subr.mxu0 0.0
        %588 = vmatpush2.msra.mxu0 0.0
        %589 = vmatprep.subr.mxu0 0.0
        %590 = vmatpush2.msra.mxu0 0.0
        %591 = vmatprep.mubr.f32.mxu0 0.0
        %592 = vmatmul.mubr.f32.gmra.mxu0 %v506
        %v593 = vpop.f32.mrf.mxu0
        %v594 = vadd.f32 0.0, %v593
        %v595 = vpop.f32.mrf.mxu0
        %596 = vmatprep.mubr.f32.mxu0 0.0
        %597 = vmatmul.mubr.f32.gmra.mxu0 %v507
        %v598 = vpop.f32.mrf.mxu0
        %v599 = vadd.f32 0.0, %v598
        %v600 = vpop.f32.mrf.mxu0
        %601 = vmatprep.mubr.f32.mxu0 0.0
        %602 = vmatmul.mubr.f32.gmra.mxu0 %v508
        %v603 = vpop.f32.mrf.mxu0
        %v604 = vadd.f32 0.0, %v603
        %v605 = vpop.f32.mrf.mxu0
        %606 = vdwg.mxu0
        %v607 = vadd.f32 %v500, %v594
        %v608 = vadd.f32 %v501, %v599
        %v609 = vadd.f32 %v502, %v604
        %s610 = scalar_lea.vmem %s1, 512
        %v611 = vld [vmem:[%s610] sm:$0xff]
        %v612 = vld [vmem:[%s610 + $0x8] sm:$0xff]
        %v613 = vld [vmem:[%s610 + $0x10] sm:$0xff]
        %v614 = vld [vmem:[%s610 + $0x18] sm:$0xff]
        %v615 = vld [vmem:[%s610 + $0x20] sm:$0xff]
        %v616 = vld [vmem:[%s610 + $0x28] sm:$0xff]
        %v617 = vld [vmem:[%s610 + $0x30] sm:$0xff]
        %v618 = vld [vmem:[%s610 + $0x38] sm:$0xff]
        %v619 = vld [vmem:[%s610 + $0x40] sm:$0xff]
        %v620 = vld [vmem:[%s610 + $0x48] sm:$0xff]
        %v621 = vld [vmem:[%s610 + $0x50] sm:$0xff]
        %v622 = vld [vmem:[%s610 + $0x58] sm:$0xff]
        %v623 = vld [vmem:[%s610 + $0x60] sm:$0xff]
        %v624 = vld [vmem:[%s610 + $0x68] sm:$0xff]
        %v625 = vld [vmem:[%s610 + $0x70] sm:$0xff]
        %v626 = vld [vmem:[%s610 + $0x78] sm:$0xff]
        %v631 = vrot.slane %v506, 1
        %v632 = vrot.slane %v507, 1
        %v633 = vsel %vm221, %v631, %v632
        %v634 = vrot.slane %v508, 1
        %v635 = vsel %vm221, %v632, %v634
        %v636 = vrot.slane %v509, 1
        %v637 = vsel %vm221, %v634, %v636
        %641 = vmatprep.subr.mxu0 0.0
        %642 = vmatpush1.msra.mxu0 %v626
        %643 = vmatprep.subr.mxu0 0.0
        %644 = vmatpush1.msra.mxu0 %v625
        %645 = vmatprep.subr.mxu0 0.0
        %646 = vmatpush1.msra.mxu0 %v624
        %647 = vmatprep.subr.mxu0 0.0
        %648 = vmatpush1.msra.mxu0 %v623
        %649 = vmatprep.subr.mxu0 0.0
        %650 = vmatpush1.msra.mxu0 %v622
        %651 = vmatprep.subr.mxu0 0.0
        %652 = vmatpush1.msra.mxu0 %v621
        %653 = vmatprep.subr.mxu0 0.0
        %654 = vmatpush1.msra.mxu0 %v620
        %655 = vmatprep.subr.mxu0 0.0
        %656 = vmatpush1.msra.mxu0 %v619
        %657 = vmatprep.subr.mxu0 0.0
        %658 = vmatpush1.msra.mxu0 %v618
        %659 = vmatprep.subr.mxu0 0.0
        %660 = vmatpush1.msra.mxu0 %v617
        %661 = vmatprep.subr.mxu0 0.0
        %662 = vmatpush1.msra.mxu0 %v616
        %663 = vmatprep.subr.mxu0 0.0
        %664 = vmatpush1.msra.mxu0 %v615
        %665 = vmatprep.subr.mxu0 0.0
        %666 = vmatpush1.msra.mxu0 %v614
        %667 = vmatprep.subr.mxu0 0.0
        %668 = vmatpush1.msra.mxu0 %v613
        %669 = vmatprep.subr.mxu0 0.0
        %670 = vmatpush1.msra.mxu0 %v612
        %671 = vmatprep.subr.mxu0 0.0
        %672 = vmatpush1.msra.mxu0 %v611
        %673 = vmatprep.subr.mxu0 0.0
        %674 = vmatpush2.msra.mxu0 0.0
        %675 = vmatprep.subr.mxu0 0.0
        %676 = vmatpush2.msra.mxu0 0.0
        %677 = vmatprep.subr.mxu0 0.0
        %678 = vmatpush2.msra.mxu0 0.0
        %679 = vmatprep.subr.mxu0 0.0
        %680 = vmatpush2.msra.mxu0 0.0
        %681 = vmatprep.subr.mxu0 0.0
        %682 = vmatpush2.msra.mxu0 0.0
        %683 = vmatprep.subr.mxu0 0.0
        %684 = vmatpush2.msra.mxu0 0.0
        %685 = vmatprep.subr.mxu0 0.0
        %686 = vmatpush2.msra.mxu0 0.0
        %687 = vmatprep.subr.mxu0 0.0
        %688 = vmatpush2.msra.mxu0 0.0
        %689 = vmatprep.subr.mxu0 0.0
        %690 = vmatpush2.msra.mxu0 0.0
        %691 = vmatprep.subr.mxu0 0.0
        %692 = vmatpush2.msra.mxu0 0.0
        %693 = vmatprep.subr.mxu0 0.0
        %694 = vmatpush2.msra.mxu0 0.0
        %695 = vmatprep.subr.mxu0 0.0
        %696 = vmatpush2.msra.mxu0 0.0
        %697 = vmatprep.subr.mxu0 0.0
        %698 = vmatpush2.msra.mxu0 0.0
        %699 = vmatprep.subr.mxu0 0.0
        %700 = vmatpush2.msra.mxu0 0.0
        %701 = vmatprep.subr.mxu0 0.0
        %702 = vmatpush2.msra.mxu0 0.0
        %703 = vmatprep.subr.mxu0 0.0
        %704 = vmatpush2.msra.mxu0 0.0
        %705 = vmatprep.mubr.f32.mxu0 0.0
        %706 = vmatmul.mubr.f32.gmra.mxu0 %v633
        %v707 = vpop.f32.mrf.mxu0
        %v708 = vadd.f32 0.0, %v707
        %v709 = vpop.f32.mrf.mxu0
        %710 = vmatprep.mubr.f32.mxu0 0.0
        %711 = vmatmul.mubr.f32.gmra.mxu0 %v635
        %v712 = vpop.f32.mrf.mxu0
        %v713 = vadd.f32 0.0, %v712
        %v714 = vpop.f32.mrf.mxu0
        %715 = vmatprep.mubr.f32.mxu0 0.0
        %716 = vmatmul.mubr.f32.gmra.mxu0 %v637
        %v717 = vpop.f32.mrf.mxu0
        %v718 = vadd.f32 0.0, %v717
        %v719 = vpop.f32.mrf.mxu0
        %720 = vdwg.mxu0
        %v721 = vadd.f32 %v607, %v708
        %v722 = vadd.f32 %v608, %v713
        %v723 = vadd.f32 %v609, %v718
        %s724 = scalar_lea.vmem %s1, 640
        %v725 = vld [vmem:[%s724] sm:$0xff]
        %v726 = vld [vmem:[%s724 + $0x8] sm:$0xff]
        %v727 = vld [vmem:[%s724 + $0x10] sm:$0xff]
        %v728 = vld [vmem:[%s724 + $0x18] sm:$0xff]
        %v729 = vld [vmem:[%s724 + $0x20] sm:$0xff]
        %v730 = vld [vmem:[%s724 + $0x28] sm:$0xff]
        %v731 = vld [vmem:[%s724 + $0x30] sm:$0xff]
        %v732 = vld [vmem:[%s724 + $0x38] sm:$0xff]
        %v733 = vld [vmem:[%s724 + $0x40] sm:$0xff]
        %v734 = vld [vmem:[%s724 + $0x48] sm:$0xff]
        %v735 = vld [vmem:[%s724 + $0x50] sm:$0xff]
        %v736 = vld [vmem:[%s724 + $0x58] sm:$0xff]
        %v737 = vld [vmem:[%s724 + $0x60] sm:$0xff]
        %v738 = vld [vmem:[%s724 + $0x68] sm:$0xff]
        %v739 = vld [vmem:[%s724 + $0x70] sm:$0xff]
        %v740 = vld [vmem:[%s724 + $0x78] sm:$0xff]
        %v741 = vrot.slane %v506, 2
        %v742 = vrot.slane %v507, 2
        %v743 = vsel %vm409, %v741, %v742
        %v744 = vrot.slane %v508, 2
        %v745 = vsel %vm409, %v742, %v744
        %v746 = vrot.slane %v509, 2
        %v747 = vsel %vm409, %v744, %v746
        %751 = vmatprep.subr.mxu0 0.0
        %752 = vmatpush1.msra.mxu0 %v740
        %753 = vmatprep.subr.mxu0 0.0
        %754 = vmatpush1.msra.mxu0 %v739
        %755 = vmatprep.subr.mxu0 0.0
        %756 = vmatpush1.msra.mxu0 %v738
        %757 = vmatprep.subr.mxu0 0.0
        %758 = vmatpush1.msra.mxu0 %v737
        %759 = vmatprep.subr.mxu0 0.0
        %760 = vmatpush1.msra.mxu0 %v736
        %761 = vmatprep.subr.mxu0 0.0
        %762 = vmatpush1.msra.mxu0 %v735
        %763 = vmatprep.subr.mxu0 0.0
        %764 = vmatpush1.msra.mxu0 %v734
        %765 = vmatprep.subr.mxu0 0.0
        %766 = vmatpush1.msra.mxu0 %v733
        %767 = vmatprep.subr.mxu0 0.0
        %768 = vmatpush1.msra.mxu0 %v732
        %769 = vmatprep.subr.mxu0 0.0
        %770 = vmatpush1.msra.mxu0 %v731
        %771 = vmatprep.subr.mxu0 0.0
        %772 = vmatpush1.msra.mxu0 %v730
        %773 = vmatprep.subr.mxu0 0.0
        %774 = vmatpush1.msra.mxu0 %v729
        %775 = vmatprep.subr.mxu0 0.0
        %776 = vmatpush1.msra.mxu0 %v728
        %777 = vmatprep.subr.mxu0 0.0
        %778 = vmatpush1.msra.mxu0 %v727
        %779 = vmatprep.subr.mxu0 0.0
        %780 = vmatpush1.msra.mxu0 %v726
        %781 = vmatprep.subr.mxu0 0.0
        %782 = vmatpush1.msra.mxu0 %v725
        %783 = vmatprep.subr.mxu0 0.0
        %784 = vmatpush2.msra.mxu0 0.0
        %785 = vmatprep.subr.mxu0 0.0
        %786 = vmatpush2.msra.mxu0 0.0
        %787 = vmatprep.subr.mxu0 0.0
        %788 = vmatpush2.msra.mxu0 0.0
        %789 = vmatprep.subr.mxu0 0.0
        %790 = vmatpush2.msra.mxu0 0.0
        %791 = vmatprep.subr.mxu0 0.0
        %792 = vmatpush2.msra.mxu0 0.0
        %793 = vmatprep.subr.mxu0 0.0
        %794 = vmatpush2.msra.mxu0 0.0
        %795 = vmatprep.subr.mxu0 0.0
        %796 = vmatpush2.msra.mxu0 0.0
        %797 = vmatprep.subr.mxu0 0.0
        %798 = vmatpush2.msra.mxu0 0.0
        %799 = vmatprep.subr.mxu0 0.0
        %800 = vmatpush2.msra.mxu0 0.0
        %801 = vmatprep.subr.mxu0 0.0
        %802 = vmatpush2.msra.mxu0 0.0
        %803 = vmatprep.subr.mxu0 0.0
        %804 = vmatpush2.msra.mxu0 0.0
        %805 = vmatprep.subr.mxu0 0.0
        %806 = vmatpush2.msra.mxu0 0.0
        %807 = vmatprep.subr.mxu0 0.0
        %808 = vmatpush2.msra.mxu0 0.0
        %809 = vmatprep.subr.mxu0 0.0
        %810 = vmatpush2.msra.mxu0 0.0
        %811 = vmatprep.subr.mxu0 0.0
        %812 = vmatpush2.msra.mxu0 0.0
        %813 = vmatprep.subr.mxu0 0.0
        %814 = vmatpush2.msra.mxu0 0.0
        %815 = vmatprep.mubr.f32.mxu0 0.0
        %816 = vmatmul.mubr.f32.gmra.mxu0 %v743
        %v817 = vpop.f32.mrf.mxu0
        %v818 = vadd.f32 0.0, %v817
        %v819 = vpop.f32.mrf.mxu0
        %820 = vmatprep.mubr.f32.mxu0 0.0
        %821 = vmatmul.mubr.f32.gmra.mxu0 %v745
        %v822 = vpop.f32.mrf.mxu0
        %v823 = vadd.f32 0.0, %v822
        %v824 = vpop.f32.mrf.mxu0
        %825 = vmatprep.mubr.f32.mxu0 0.0
        %826 = vmatmul.mubr.f32.gmra.mxu0 %v747
        %v827 = vpop.f32.mrf.mxu0
        %v828 = vadd.f32 0.0, %v827
        %v829 = vpop.f32.mrf.mxu0
        %830 = vdwg.mxu0
        %v831 = vadd.f32 %v721, %v818
        %v832 = vadd.f32 %v722, %v823
        %v833 = vadd.f32 %v723, %v828
        %s834 = sadd.s32 %s173, 2
        %s835 = smul.u32 %s834, 32
        %s836 = scalar_lea.vmem %s165, %s835
        %v837 = vld [vmem:[%s836] sm:$0xff]
        %v838 = vld [vmem:[%s836 + $0x8] sm:$0xff]
        %v839 = vld [vmem:[%s836 + $0x10] sm:$0xff]
        %v840 = vld [vmem:[%s836 + $0x18] sm:$0x3]
        %s841 = scalar_lea.vmem %s1, 768
        %v842 = vld [vmem:[%s841] sm:$0xff]
        %v843 = vld [vmem:[%s841 + $0x8] sm:$0xff]
        %v844 = vld [vmem:[%s841 + $0x10] sm:$0xff]
        %v845 = vld [vmem:[%s841 + $0x18] sm:$0xff]
        %v846 = vld [vmem:[%s841 + $0x20] sm:$0xff]
        %v847 = vld [vmem:[%s841 + $0x28] sm:$0xff]
        %v848 = vld [vmem:[%s841 + $0x30] sm:$0xff]
        %v849 = vld [vmem:[%s841 + $0x38] sm:$0xff]
        %v850 = vld [vmem:[%s841 + $0x40] sm:$0xff]
        %v851 = vld [vmem:[%s841 + $0x48] sm:$0xff]
        %v852 = vld [vmem:[%s841 + $0x50] sm:$0xff]
        %v853 = vld [vmem:[%s841 + $0x58] sm:$0xff]
        %v854 = vld [vmem:[%s841 + $0x60] sm:$0xff]
        %v855 = vld [vmem:[%s841 + $0x68] sm:$0xff]
        %v856 = vld [vmem:[%s841 + $0x70] sm:$0xff]
        %v857 = vld [vmem:[%s841 + $0x78] sm:$0xff]
        %858 = vmatprep.subr.mxu0 0.0
        %859 = vmatpush1.msra.mxu0 %v857
        %860 = vmatprep.subr.mxu0 0.0
        %861 = vmatpush1.msra.mxu0 %v856
        %862 = vmatprep.subr.mxu0 0.0
        %863 = vmatpush1.msra.mxu0 %v855
        %864 = vmatprep.subr.mxu0 0.0
        %865 = vmatpush1.msra.mxu0 %v854
        %866 = vmatprep.subr.mxu0 0.0
        %867 = vmatpush1.msra.mxu0 %v853
        %868 = vmatprep.subr.mxu0 0.0
        %869 = vmatpush1.msra.mxu0 %v852
        %870 = vmatprep.subr.mxu0 0.0
        %871 = vmatpush1.msra.mxu0 %v851
        %872 = vmatprep.subr.mxu0 0.0
        %873 = vmatpush1.msra.mxu0 %v850
        %874 = vmatprep.subr.mxu0 0.0
        %875 = vmatpush1.msra.mxu0 %v849
        %876 = vmatprep.subr.mxu0 0.0
        %877 = vmatpush1.msra.mxu0 %v848
        %878 = vmatprep.subr.mxu0 0.0
        %879 = vmatpush1.msra.mxu0 %v847
        %880 = vmatprep.subr.mxu0 0.0
        %881 = vmatpush1.msra.mxu0 %v846
        %882 = vmatprep.subr.mxu0 0.0
        %883 = vmatpush1.msra.mxu0 %v845
        %884 = vmatprep.subr.mxu0 0.0
        %885 = vmatpush1.msra.mxu0 %v844
        %886 = vmatprep.subr.mxu0 0.0
        %887 = vmatpush1.msra.mxu0 %v843
        %888 = vmatprep.subr.mxu0 0.0
        %889 = vmatpush1.msra.mxu0 %v842
        %890 = vmatprep.subr.mxu0 0.0
        %891 = vmatpush2.msra.mxu0 0.0
        %892 = vmatprep.subr.mxu0 0.0
        %893 = vmatpush2.msra.mxu0 0.0
        %894 = vmatprep.subr.mxu0 0.0
        %895 = vmatpush2.msra.mxu0 0.0
        %896 = vmatprep.subr.mxu0 0.0
        %897 = vmatpush2.msra.mxu0 0.0
        %898 = vmatprep.subr.mxu0 0.0
        %899 = vmatpush2.msra.mxu0 0.0
        %900 = vmatprep.subr.mxu0 0.0
        %901 = vmatpush2.msra.mxu0 0.0
        %902 = vmatprep.subr.mxu0 0.0
        %903 = vmatpush2.msra.mxu0 0.0
        %904 = vmatprep.subr.mxu0 0.0
        %905 = vmatpush2.msra.mxu0 0.0
        %906 = vmatprep.subr.mxu0 0.0
        %907 = vmatpush2.msra.mxu0 0.0
        %908 = vmatprep.subr.mxu0 0.0
        %909 = vmatpush2.msra.mxu0 0.0
        %910 = vmatprep.subr.mxu0 0.0
        %911 = vmatpush2.msra.mxu0 0.0
        %912 = vmatprep.subr.mxu0 0.0
        %913 = vmatpush2.msra.mxu0 0.0
        %914 = vmatprep.subr.mxu0 0.0
        %915 = vmatpush2.msra.mxu0 0.0
        %916 = vmatprep.subr.mxu0 0.0
        %917 = vmatpush2.msra.mxu0 0.0
        %918 = vmatprep.subr.mxu0 0.0
        %919 = vmatpush2.msra.mxu0 0.0
        %920 = vmatprep.subr.mxu0 0.0
        %921 = vmatpush2.msra.mxu0 0.0
        %922 = vmatprep.mubr.f32.mxu0 0.0
        %923 = vmatmul.mubr.f32.gmra.mxu0 %v837
        %v924 = vpop.f32.mrf.mxu0
        %v925 = vadd.f32 0.0, %v924
        %v926 = vpop.f32.mrf.mxu0
        %927 = vmatprep.mubr.f32.mxu0 0.0
        %928 = vmatmul.mubr.f32.gmra.mxu0 %v838
        %v929 = vpop.f32.mrf.mxu0
        %v930 = vadd.f32 0.0, %v929
        %v931 = vpop.f32.mrf.mxu0
        %932 = vmatprep.mubr.f32.mxu0 0.0
        %933 = vmatmul.mubr.f32.gmra.mxu0 %v839
        %v934 = vpop.f32.mrf.mxu0
        %v935 = vadd.f32 0.0, %v934
        %v936 = vpop.f32.mrf.mxu0
        %937 = vdwg.mxu0
        %v938 = vadd.f32 %v831, %v925
        %v939 = vadd.f32 %v832, %v930
        %v940 = vadd.f32 %v833, %v935
        %s941 = scalar_lea.vmem %s1, 896
        %v942 = vld [vmem:[%s941] sm:$0xff]
        %v943 = vld [vmem:[%s941 + $0x8] sm:$0xff]
        %v944 = vld [vmem:[%s941 + $0x10] sm:$0xff]
        %v945 = vld [vmem:[%s941 + $0x18] sm:$0xff]
        %v946 = vld [vmem:[%s941 + $0x20] sm:$0xff]
        %v947 = vld [vmem:[%s941 + $0x28] sm:$0xff]
        %v948 = vld [vmem:[%s941 + $0x30] sm:$0xff]
        %v949 = vld [vmem:[%s941 + $0x38] sm:$0xff]
        %v950 = vld [vmem:[%s941 + $0x40] sm:$0xff]
        %v951 = vld [vmem:[%s941 + $0x48] sm:$0xff]
        %v952 = vld [vmem:[%s941 + $0x50] sm:$0xff]
        %v953 = vld [vmem:[%s941 + $0x58] sm:$0xff]
        %v954 = vld [vmem:[%s941 + $0x60] sm:$0xff]
        %v955 = vld [vmem:[%s941 + $0x68] sm:$0xff]
        %v956 = vld [vmem:[%s941 + $0x70] sm:$0xff]
        %v957 = vld [vmem:[%s941 + $0x78] sm:$0xff]
        %v962 = vrot.slane %v837, 1
        %v963 = vrot.slane %v838, 1
        %v964 = vsel %vm221, %v962, %v963
        %v965 = vrot.slane %v839, 1
        %v966 = vsel %vm221, %v963, %v965
        %v967 = vrot.slane %v840, 1
        %v968 = vsel %vm221, %v965, %v967
        %972 = vmatprep.subr.mxu0 0.0
        %973 = vmatpush1.msra.mxu0 %v957
        %974 = vmatprep.subr.mxu0 0.0
        %975 = vmatpush1.msra.mxu0 %v956
        %976 = vmatprep.subr.mxu0 0.0
        %977 = vmatpush1.msra.mxu0 %v955
        %978 = vmatprep.subr.mxu0 0.0
        %979 = vmatpush1.msra.mxu0 %v954
        %980 = vmatprep.subr.mxu0 0.0
        %981 = vmatpush1.msra.mxu0 %v953
        %982 = vmatprep.subr.mxu0 0.0
        %983 = vmatpush1.msra.mxu0 %v952
        %984 = vmatprep.subr.mxu0 0.0
        %985 = vmatpush1.msra.mxu0 %v951
        %986 = vmatprep.subr.mxu0 0.0
        %987 = vmatpush1.msra.mxu0 %v950
        %988 = vmatprep.subr.mxu0 0.0
        %989 = vmatpush1.msra.mxu0 %v949
        %990 = vmatprep.subr.mxu0 0.0
        %991 = vmatpush1.msra.mxu0 %v948
        %992 = vmatprep.subr.mxu0 0.0
        %993 = vmatpush1.msra.mxu0 %v947
        %994 = vmatprep.subr.mxu0 0.0
        %995 = vmatpush1.msra.mxu0 %v946
        %996 = vmatprep.subr.mxu0 0.0
        %997 = vmatpush1.msra.mxu0 %v945
        %998 = vmatprep.subr.mxu0 0.0
        %999 = vmatpush1.msra.mxu0 %v944
        %1000 = vmatprep.subr.mxu0 0.0
        %1001 = vmatpush1.msra.mxu0 %v943
        %1002 = vmatprep.subr.mxu0 0.0
        %1003 = vmatpush1.msra.mxu0 %v942
        %1004 = vmatprep.subr.mxu0 0.0
        %1005 = vmatpush2.msra.mxu0 0.0
        %1006 = vmatprep.subr.mxu0 0.0
        %1007 = vmatpush2.msra.mxu0 0.0
        %1008 = vmatprep.subr.mxu0 0.0
        %1009 = vmatpush2.msra.mxu0 0.0
        %1010 = vmatprep.subr.mxu0 0.0
        %1011 = vmatpush2.msra.mxu0 0.0
        %1012 = vmatprep.subr.mxu0 0.0
        %1013 = vmatpush2.msra.mxu0 0.0
        %1014 = vmatprep.subr.mxu0 0.0
        %1015 = vmatpush2.msra.mxu0 0.0
        %1016 = vmatprep.subr.mxu0 0.0
        %1017 = vmatpush2.msra.mxu0 0.0
        %1018 = vmatprep.subr.mxu0 0.0
        %1019 = vmatpush2.msra.mxu0 0.0
        %1020 = vmatprep.subr.mxu0 0.0
        %1021 = vmatpush2.msra.mxu0 0.0
        %1022 = vmatprep.subr.mxu0 0.0
        %1023 = vmatpush2.msra.mxu0 0.0
        %1024 = vmatprep.subr.mxu0 0.0
        %1025 = vmatpush2.msra.mxu0 0.0
        %1026 = vmatprep.subr.mxu0 0.0
        %1027 = vmatpush2.msra.mxu0 0.0
        %1028 = vmatprep.subr.mxu0 0.0
        %1029 = vmatpush2.msra.mxu0 0.0
        %1030 = vmatprep.subr.mxu0 0.0
        %1031 = vmatpush2.msra.mxu0 0.0
        %1032 = vmatprep.subr.mxu0 0.0
        %1033 = vmatpush2.msra.mxu0 0.0
        %1034 = vmatprep.subr.mxu0 0.0
        %1035 = vmatpush2.msra.mxu0 0.0
        %1036 = vmatprep.mubr.f32.mxu0 0.0
        %1037 = vmatmul.mubr.f32.gmra.mxu0 %v964
        %v1038 = vpop.f32.mrf.mxu0
        %v1039 = vadd.f32 0.0, %v1038
        %v1040 = vpop.f32.mrf.mxu0
        %1041 = vmatprep.mubr.f32.mxu0 0.0
        %1042 = vmatmul.mubr.f32.gmra.mxu0 %v966
        %v1043 = vpop.f32.mrf.mxu0
        %v1044 = vadd.f32 0.0, %v1043
        %v1045 = vpop.f32.mrf.mxu0
        %1046 = vmatprep.mubr.f32.mxu0 0.0
        %1047 = vmatmul.mubr.f32.gmra.mxu0 %v968
        %v1048 = vpop.f32.mrf.mxu0
        %v1049 = vadd.f32 0.0, %v1048
        %v1050 = vpop.f32.mrf.mxu0
        %1051 = vdwg.mxu0
        %v1052 = vadd.f32 %v938, %v1039
        %v1053 = vadd.f32 %v939, %v1044
        %v1054 = vadd.f32 %v940, %v1049
        %s1055 = scalar_lea.vmem %s1, 1024
        %v1056 = vld [vmem:[%s1055] sm:$0xff]
        %v1057 = vld [vmem:[%s1055 + $0x8] sm:$0xff]
        %v1058 = vld [vmem:[%s1055 + $0x10] sm:$0xff]
        %v1059 = vld [vmem:[%s1055 + $0x18] sm:$0xff]
        %v1060 = vld [vmem:[%s1055 + $0x20] sm:$0xff]
        %v1061 = vld [vmem:[%s1055 + $0x28] sm:$0xff]
        %v1062 = vld [vmem:[%s1055 + $0x30] sm:$0xff]
        %v1063 = vld [vmem:[%s1055 + $0x38] sm:$0xff]
        %v1064 = vld [vmem:[%s1055 + $0x40] sm:$0xff]
        %v1065 = vld [vmem:[%s1055 + $0x48] sm:$0xff]
        %v1066 = vld [vmem:[%s1055 + $0x50] sm:$0xff]
        %v1067 = vld [vmem:[%s1055 + $0x58] sm:$0xff]
        %v1068 = vld [vmem:[%s1055 + $0x60] sm:$0xff]
        %v1069 = vld [vmem:[%s1055 + $0x68] sm:$0xff]
        %v1070 = vld [vmem:[%s1055 + $0x70] sm:$0xff]
        %v1071 = vld [vmem:[%s1055 + $0x78] sm:$0xff]
        %v1072 = vrot.slane %v837, 2
        %v1073 = vrot.slane %v838, 2
        %v1074 = vsel %vm409, %v1072, %v1073
        %v1075 = vrot.slane %v839, 2
        %v1076 = vsel %vm409, %v1073, %v1075
        %v1077 = vrot.slane %v840, 2
        %v1078 = vsel %vm409, %v1075, %v1077
        %1082 = vmatprep.subr.mxu0 0.0
        %1083 = vmatpush1.msra.mxu0 %v1071
        %1084 = vmatprep.subr.mxu0 0.0
        %1085 = vmatpush1.msra.mxu0 %v1070
        %1086 = vmatprep.subr.mxu0 0.0
        %1087 = vmatpush1.msra.mxu0 %v1069
        %1088 = vmatprep.subr.mxu0 0.0
        %1089 = vmatpush1.msra.mxu0 %v1068
        %1090 = vmatprep.subr.mxu0 0.0
        %1091 = vmatpush1.msra.mxu0 %v1067
        %1092 = vmatprep.subr.mxu0 0.0
        %1093 = vmatpush1.msra.mxu0 %v1066
        %1094 = vmatprep.subr.mxu0 0.0
        %1095 = vmatpush1.msra.mxu0 %v1065
        %1096 = vmatprep.subr.mxu0 0.0
        %1097 = vmatpush1.msra.mxu0 %v1064
        %1098 = vmatprep.subr.mxu0 0.0
        %1099 = vmatpush1.msra.mxu0 %v1063
        %1100 = vmatprep.subr.mxu0 0.0
        %1101 = vmatpush1.msra.mxu0 %v1062
        %1102 = vmatprep.subr.mxu0 0.0
        %1103 = vmatpush1.msra.mxu0 %v1061
        %1104 = vmatprep.subr.mxu0 0.0
        %1105 = vmatpush1.msra.mxu0 %v1060
        %1106 = vmatprep.subr.mxu0 0.0
        %1107 = vmatpush1.msra.mxu0 %v1059
        %1108 = vmatprep.subr.mxu0 0.0
        %1109 = vmatpush1.msra.mxu0 %v1058
        %1110 = vmatprep.subr.mxu0 0.0
        %1111 = vmatpush1.msra.mxu0 %v1057
        %1112 = vmatprep.subr.mxu0 0.0
        %1113 = vmatpush1.msra.mxu0 %v1056
        %1114 = vmatprep.subr.mxu0 0.0
        %1115 = vmatpush2.msra.mxu0 0.0
        %1116 = vmatprep.subr.mxu0 0.0
        %1117 = vmatpush2.msra.mxu0 0.0
        %1118 = vmatprep.subr.mxu0 0.0
        %1119 = vmatpush2.msra.mxu0 0.0
        %1120 = vmatprep.subr.mxu0 0.0
        %1121 = vmatpush2.msra.mxu0 0.0
        %1122 = vmatprep.subr.mxu0 0.0
        %1123 = vmatpush2.msra.mxu0 0.0
        %1124 = vmatprep.subr.mxu0 0.0
        %1125 = vmatpush2.msra.mxu0 0.0
        %1126 = vmatprep.subr.mxu0 0.0
        %1127 = vmatpush2.msra.mxu0 0.0
        %1128 = vmatprep.subr.mxu0 0.0
        %1129 = vmatpush2.msra.mxu0 0.0
        %1130 = vmatprep.subr.mxu0 0.0
        %1131 = vmatpush2.msra.mxu0 0.0
        %1132 = vmatprep.subr.mxu0 0.0
        %1133 = vmatpush2.msra.mxu0 0.0
        %1134 = vmatprep.subr.mxu0 0.0
        %1135 = vmatpush2.msra.mxu0 0.0
        %1136 = vmatprep.subr.mxu0 0.0
        %1137 = vmatpush2.msra.mxu0 0.0
        %1138 = vmatprep.subr.mxu0 0.0
        %1139 = vmatpush2.msra.mxu0 0.0
        %1140 = vmatprep.subr.mxu0 0.0
        %1141 = vmatpush2.msra.mxu0 0.0
        %1142 = vmatprep.subr.mxu0 0.0
        %1143 = vmatpush2.msra.mxu0 0.0
        %1144 = vmatprep.subr.mxu0 0.0
        %1145 = vmatpush2.msra.mxu0 0.0
        %1146 = vmatprep.mubr.f32.mxu0 0.0
        %1147 = vmatmul.mubr.f32.gmra.mxu0 %v1074
        %v1148 = vpop.f32.mrf.mxu0
        %v1149 = vadd.f32 0.0, %v1148
        %v1150 = vpop.f32.mrf.mxu0
        %1151 = vmatprep.mubr.f32.mxu0 0.0
        %1152 = vmatmul.mubr.f32.gmra.mxu0 %v1076
        %v1153 = vpop.f32.mrf.mxu0
        %v1154 = vadd.f32 0.0, %v1153
        %v1155 = vpop.f32.mrf.mxu0
        %1156 = vmatprep.mubr.f32.mxu0 0.0
        %1157 = vmatmul.mubr.f32.gmra.mxu0 %v1078
        %v1158 = vpop.f32.mrf.mxu0
        %v1159 = vadd.f32 0.0, %v1158
        %v1160 = vpop.f32.mrf.mxu0
        %1161 = vdwg.mxu0
        %v1162 = vadd.f32 %v1052, %v1149
        %v1163 = vadd.f32 %v1053, %v1154
        %v1164 = vadd.f32 %v1054, %v1159
        %v1166 = vlaneseq
        %v1167 = vshrl.u32 %v1166, 7
        %v1168 = vsub.s32 0, %v1167
        %v1169 = vrot.slane %v171, %v1168
        %v1171 = vadd.f32 %v1162, %v1169
        %v1172 = vadd.f32 %v1163, %v1169
        %v1173 = vadd.f32 %v1164, %v1169
        %v1174 = vmax.f32 %v1171, 0.0
        %v1175 = vmax.f32 %v1172, 0.0
        %v1176 = vmax.f32 %v1173, 0.0
        %s1177 = smul.u32 %s173, 24
        %s1178 = scalar_lea.vmem %s170, %s1177
        %1179 = vst [vmem:[%s1178] sm:$0xff] %v1174
        %1180 = vst [vmem:[%s1178 + $0x8] sm:$0xff] %v1175
        %1181 = vst [vmem:[%s1178 + $0x10] sm:$0xff] %v1176
      $region37: #{forward.8} parent=31 // loop_footer
        %s177 = sadd.s32 1, %s173
      $region38: #{forward.8} parent=31 // loop_footer_branch
        %172 = sbr.rel target = $region34
      $region39: #{forward.8} parent=31 // loop_exit
        _
      %p1182 = scmp.lt.s32.totalorder %s14, 1
      %s1183 = scalar_select %p1182, %s14, 1
      %s1184 = smul.addr %s1183, 72
      %s1185 = smul.addr %s1184, 8
      %s1186 = scalar_lea.vmem %s3, %s1185
      // Predicated region
      $region40: #{forward.8} parent=31 // pred_check
        %p1187 = pneg %p100
      $region41: #{forward.8} parent=31 // pred_check_branch
        %1189 = sbr.rel (%p1187) target = $region43
      $region42: #{forward.8} parent=31 // pred_region
        _
      $region43: #{forward.8} parent=31 // pred_fallthru
        _
    $region32: #{forward.8} parent=5 // pred_fallthru
      _
    %p1190 = scmp.le.s32.totalorder 2, %s9
    // Predicated region
    $region44: #{forward.8} parent=5 // pred_check
      %p1191 = pneg %p1190
    $region45: #{forward.8} parent=5 // pred_check_branch
      %1193 = sbr.rel (%p1191) target = $region47
    $region46: #{forward.8} parent=5 // pred_region
      %s1194 = ssub.s32 %s9, 2
      // Predicated region
      $region48: #{forward.8} parent=46 // pred_check
        %p1195 = pneg %p106
      $region49: #{forward.8} parent=46 // pred_check_branch
        %1197 = sbr.rel (%p1195) target = $region51
      $region50: #{forward.8} parent=46 // pred_region
        %p1198 = scmp.lt.s32.totalorder %s15, 1
        %s1199 = scalar_select %p1198, %s15, 1
        %s1200 = smul.addr %s1199, 72
        %s1201 = smul.addr %s1200, 8
        %s1202 = scalar_lea.vmem %s3, %s1201
      $region51: #{forward.8} parent=46 // pred_fallthru
        _
    $region47: #{forward.8} parent=5 // pred_fallthru
      _
  $region6: #{forward.8} parent=0 // loop_footer
    %s13 = sadd.s32 1, %s9
  $region7: #{forward.8} parent=0 // loop_footer_branch
    %8 = sbr.rel target = $region3
  $region8: #{forward.8} parent=0 // loop_exit
    _

// kernel: forward.9
$region0: #{forward.9}
  #allocation0 [shape = 'u32[]', space=smem, size = 0x4, offset = 0x4, fixed_abs, tag = 'smem constant byte address 0x4 - core index']
  #allocation1 [shape = 'u32[144,128]{1,0:T(1,128)}', space=vmem, size = 0x12000, scoped, tag = 'internal scratch']
  %s0 = inlined_call_operand.vmem [shape: f32[2,24,12,2,128], index: 0, kind: input, shape index: {}]
  %s1 = inlined_call_operand.vmem [shape: f32[2,12,12,128], index: 1, kind: output, shape index: {}]
  %s2 = sld [smem:[#allocation0]]
  $region44: #{forward.9} parent=0
    _
  %s4 = ssub.s32 1, %s2
  %s5 = scalar_select 0, %s4, %s2
  loop: start=0, step=1, limit=4
  $region2: #{forward.9} parent=0 // loop_pre_header
    _
  $region3: #{forward.9} parent=0 // loop_header
    %s7 = sphi 0, %s11
    %p8 = scmp.ge.s32.totalorder %s7, 4
    %s17 = sphi 0, %s19
    %s20 = sphi 0, %s17
    %s21 = sphi 0, %s20
    %s37 = sphi 0, %s21
    %s43 = sphi 0, %s45
    %s46 = sphi 0, %s43
    %s47 = sphi 0, %s46
    %s63 = sphi 0, %s47
  $region4: #{forward.9} parent=0 // loop_header_branch
    %10 = sbr.rel (%p8) target = $region8
  $region5: #{forward.9} parent=0 // loop_body
    %s12 = ssub.s32 %s7, 1
    %s13 = ssub.s32 %s7, 2
    %s14 = sadd.s32 %s7, 1
    %s15 = ssub.s32 %s7, %s14
    %p16 = scmp.eq.s32.totalorder %s15, 0
    %s18 = sadd.s32 %s17, 1
    %s19 = scalar_select %p16, %s17, %s18
    %p22 = pneg %p16
    %p23 = scmp.eq.s32.totalorder %s7, 1
    %p24 = por %p22, %p23
    %p25 = scmp.ne.s32.totalorder %s17, %s20
    %p26 = scmp.eq.s32.totalorder %s7, 0
    %p27 = por %p25, %p26
    %p28 = scmp.ne.s32.totalorder %s17, %s20
    %p29 = scmp.eq.s32.totalorder %s12, 1
    %p30 = por %p28, %p29
    %p31 = scmp.ne.s32.totalorder %s20, %s21
    %p32 = scmp.eq.s32.totalorder %s12, 0
    %p33 = por %p31, %p32
    %p34 = scmp.ne.s32.totalorder %s20, %s21
    %p35 = scmp.eq.s32.totalorder %s13, 1
    %p36 = por %p34, %p35
    %p38 = scmp.ne.s32.totalorder %s21, %s37
    %p39 = scmp.eq.s32.totalorder %s13, 0
    %p40 = por %p38, %p39
    %s41 = ssub.s32 %s7, %s14
    %p42 = scmp.eq.s32.totalorder %s41, 0
    %s44 = sadd.s32 %s43, 1
    %s45 = scalar_select %p42, %s43, %s44
    %p48 = pneg %p42
    %p49 = scmp.eq.s32.totalorder %s7, 1
    %p50 = por %p48, %p49
    %p51 = scmp.ne.s32.totalorder %s43, %s46
    %p52 = scmp.eq.s32.totalorder %s7, 0
    %p53 = por %p51, %p52
    %p54 = scmp.ne.s32.totalorder %s43, %s46
    %p55 = scmp.eq.s32.totalorder %s12, 1
    %p56 = por %p54, %p55
    %p57 = scmp.ne.s32.totalorder %s46, %s47
    %p58 = scmp.eq.s32.totalorder %s12, 0
    %p59 = por %p57, %p58
    %p60 = scmp.ne.s32.totalorder %s46, %s47
    %p61 = scmp.eq.s32.totalorder %s13, 1
    %p62 = por %p60, %p61
    %p64 = scmp.ne.s32.totalorder %s47, %s63
    %p65 = scmp.eq.s32.totalorder %s13, 0
    %p66 = por %p64, %p65
    %p67 = scmp.le.s32.totalorder 1, %s7
    %p68 = scmp.lt.s32.totalorder %s7, 3
    %p69 = pnand %p67, %p68
    %p70 = pneg %p69
    // Predicated region
    $region9: #{forward.9} parent=5 // pred_check
      _
    $region10: #{forward.9} parent=5 // pred_check_branch
      %72 = sbr.rel (%p69) target = $region12
    $region11: #{forward.9} parent=5 // pred_region
      %s73 = ssub.s32 %s7, 1
    $region12: #{forward.9} parent=5 // pred_fallthru
      _
    %p74 = scmp.lt.s32.totalorder %s7, 2
    // Predicated region
    $region13: #{forward.9} parent=5 // pred_check
      %p75 = pneg %p74
    $region14: #{forward.9} parent=5 // pred_check_branch
      %77 = sbr.rel (%p75) target = $region16
    $region15: #{forward.9} parent=5 // pred_region
      // Predicated region
      $region17: #{forward.9} parent=15 // pred_check
        %p78 = pneg %p27
      $region18: #{forward.9} parent=15 // pred_check_branch
        %80 = sbr.rel (%p78) target = $region20
      $region19: #{forward.9} parent=15 // pred_region
        %p81 = scmp.lt.s32.totalorder %s7, 1
        %s82 = scalar_select %p81, %s7, 1
        %s83 = smul.addr %s82, 288
        %s84 = smul.addr %s83, 2
        %s85 = scalar_lea.vmem %s0, %s84
      $region20: #{forward.9} parent=15 // pred_fallthru
        _
    $region16: #{forward.9} parent=5 // pred_fallthru
      _
    %p86 = scmp.le.s32.totalorder 1, %s7
    %p87 = scmp.lt.s32.totalorder %s7, 3
    %p88 = pnand %p86, %p87
    %p89 = pneg %p88
    // Predicated region
    $region21: #{forward.9} parent=5 // pred_check
      _
    $region22: #{forward.9} parent=5 // pred_check_branch
      %91 = sbr.rel (%p88) target = $region24
    $region23: #{forward.9} parent=5 // pred_region
      %s92 = ssub.s32 %s7, 1
      %p93 = scmp.lt.s32.totalorder %s12, 1
      %s94 = scalar_select %p93, %s12, 1
      %s95 = smul.addr %s94, 288
      %s96 = smul.addr %s95, 2
      %s97 = scalar_lea.vmem %s0, %s96
      %p98 = pneg %p33
      %p99 = pneg %p30
      %p100 = pneg %p59
      %p101 = pneg %p56
      %p102 = scmp.lt.s32.totalorder %s12, 1
      %s103 = scalar_select %p102, %s12, 1
      %s104 = smul.addr %s103, 24
      %s105 = smul.addr %s104, 8
      %s106 = scalar_lea.vmem %s1, %s105
      %p107 = scmp.lt.s32.totalorder %s12, 1
      %s108 = scalar_select %p107, %s12, 1
      %s109 = smul.addr %s108, 288
      %s110 = smul.addr %s109, 2
      %s111 = scalar_lea.vmem %s0, %s110
      %p112 = scmp.lt.s32.totalorder %s12, 1
      %s113 = scalar_select %p112, %s12, 1
      %s114 = smul.addr %s113, 24
      %s115 = smul.addr %s114, 8
      %s116 = scalar_lea.vmem %s1, %s115
      loop: start=0, step=1, limit=12
      $region25: #{forward.9} parent=23 // loop_pre_header
        _
      $region26: #{forward.9} parent=23 // loop_header
        %s118 = sphi 0, %s122
        %p119 = scmp.ge.s32.totalorder %s118, 12
      $region27: #{forward.9} parent=23 // loop_header_branch
        %121 = sbr.rel (%p119) target = $region31
      $region28: #{forward.9} parent=23 // loop_body
        %s123 = smul.u32 %s118, 2
        %s124 = smul.u32 %s123, 24
        %s125 = scalar_lea.vmem %s111, %s124
        %v126 = vld [vmem:[%s125] sm:$0x3]
        %v127 = vld [vmem:[%s125 + $0x2] sm:$0x3]
        %v128 = vld [vmem:[%s125 + $0x4] sm:$0x3]
        %v129 = vld [vmem:[%s125 + $0x6] sm:$0x3]
        %v130 = vld [vmem:[%s125 + $0x8] sm:$0x3]
        %v131 = vld [vmem:[%s125 + $0xa] sm:$0x3]
        %v132 = vld [vmem:[%s125 + $0xc] sm:$0x3]
        %v133 = vld [vmem:[%s125 + $0xe] sm:$0x3]
        %v134 = vld [vmem:[%s125 + $0x10] sm:$0x3]
        %v135 = vld [vmem:[%s125 + $0x12] sm:$0x3]
        %v136 = vld [vmem:[%s125 + $0x14] sm:$0x3]
        %v137 = vld [vmem:[%s125 + $0x16] sm:$0x3]
        %s138 = sadd.s32 %s123, 1
        %s139 = smul.u32 %s138, 24
        %s140 = scalar_lea.vmem %s111, %s139
        %v141 = vld [vmem:[%s140] sm:$0x3]
        %v142 = vld [vmem:[%s140 + $0x2] sm:$0x3]
        %v143 = vld [vmem:[%s140 + $0x4] sm:$0x3]
        %v144 = vld [vmem:[%s140 + $0x6] sm:$0x3]
        %v145 = vld [vmem:[%s140 + $0x8] sm:$0x3]
        %v146 = vld [vmem:[%s140 + $0xa] sm:$0x3]
        %v147 = vld [vmem:[%s140 + $0xc] sm:$0x3]
        %v148 = vld [vmem:[%s140 + $0xe] sm:$0x3]
        %v149 = vld [vmem:[%s140 + $0x10] sm:$0x3]
        %v150 = vld [vmem:[%s140 + $0x12] sm:$0x3]
        %v151 = vld [vmem:[%s140 + $0x14] sm:$0x3]
        %v152 = vld [vmem:[%s140 + $0x16] sm:$0x3]
        %v153 = vmax.f32 %v126, %v141
        %v154 = vmax.f32 %v127, %v142
        %v155 = vmax.f32 %v128, %v143
        %v156 = vmax.f32 %v129, %v144
        %v157 = vmax.f32 %v130, %v145
        %v158 = vmax.f32 %v131, %v146
        %v159 = vmax.f32 %v132, %v147
        %v160 = vmax.f32 %v133, %v148
        %v161 = vmax.f32 %v134, %v149
        %v162 = vmax.f32 %v135, %v150
        %v163 = vmax.f32 %v136, %v151
        %v164 = vmax.f32 %v137, %v152
        %vm165 = vcmask 1041408
        %v166 = vsel %vm165, %v153, -inf
        %v167 = vrot.slane %v166, 4
        %v168 = vmax.f32 %v166, %v167
        %v169 = vrot.slane %v168, 2
        %v170 = vmax.f32 %v168, %v169
        %v171 = vrot.slane %v170, 1
        %v172 = vmax.f32 %v170, %v171
        %v173 = vsel %vm165, %v154, -inf
        %v174 = vrot.slane %v173, 4
        %v175 = vmax.f32 %v173, %v174
        %v176 = vrot.slane %v175, 2
        %v177 = vmax.f32 %v175, %v176
        %v178 = vrot.slane %v177, 1
        %v179 = vmax.f32 %v177, %v178
        %v180 = vsel %vm165, %v155, -inf
        %v181 = vrot.slane %v180, 4
        %v182 = vmax.f32 %v180, %v181
        %v183 = vrot.slane %v182, 2
        %v184 = vmax.f32 %v182, %v183
        %v185 = vrot.slane %v184, 1
        %v186 = vmax.f32 %v184, %v185
        %v187 = vsel %vm165, %v156, -inf
        %v188 = vrot.slane %v187, 4
        %v189 = vmax.f32 %v187, %v188
        %v190 = vrot.slane %v189, 2
        %v191 = vmax.f32 %v189, %v190
        %v192 = vrot.slane %v191, 1
        %v193 = vmax.f32 %v191, %v192
        %v194 = vsel %vm165, %v157, -inf
        %v195 = vrot.slane %v194, 4
        %v196 = vmax.f32 %v194, %v195
        %v197 = vrot.slane %v196, 2
        %v198 = vmax.f32 %v196, %v197
        %v199 = vrot.slane %v198, 1
        %v200 = vmax.f32 %v198, %v199
        %v201 = vsel %vm165, %v158, -inf
        %v202 = vrot.slane %v201, 4
        %v203 = vmax.f32 %v201, %v202
        %v204 = vrot.slane %v203, 2
        %v205 = vmax.f32 %v203, %v204
        %v206 = vrot.slane %v205, 1
        %v207 = vmax.f32 %v205, %v206
        %v208 = vsel %vm165, %v159, -inf
        %v209 = vrot.slane %v208, 4
        %v210 = vmax.f32 %v208, %v209
        %v211 = vrot.slane %v210, 2
        %v212 = vmax.f32 %v210, %v211
        %v213 = vrot.slane %v212, 1
        %v214 = vmax.f32 %v212, %v213
        %v215 = vsel %vm165, %v160, -inf
        %v216 = vrot.slane %v215, 4
        %v217 = vmax.f32 %v215, %v216
        %v218 = vrot.slane %v217, 2
        %v219 = vmax.f32 %v217, %v218
        %v220 = vrot.slane %v219, 1
        %v221 = vmax.f32 %v219, %v220
        %v222 = vsel %vm165, %v161, -inf
        %v223 = vrot.slane %v222, 4
        %v224 = vmax.f32 %v222, %v223
        %v225 = vrot.slane %v224, 2
        %v226 = vmax.f32 %v224, %v225
        %v227 = vrot.slane %v226, 1
        %v228 = vmax.f32 %v226, %v227
        %v229 = vsel %vm165, %v162, -inf
        %v230 = vrot.slane %v229, 4
        %v231 = vmax.f32 %v229, %v230
        %v232 = vrot.slane %v231, 2
        %v233 = vmax.f32 %v231, %v232
        %v234 = vrot.slane %v233, 1
        %v235 = vmax.f32 %v233, %v234
        %v236 = vsel %vm165, %v163, -inf
        %v237 = vrot.slane %v236, 4
        %v238 = vmax.f32 %v236, %v237
        %v239 = vrot.slane %v238, 2
        %v240 = vmax.f32 %v238, %v239
        %v241 = vrot.slane %v240, 1
        %v242 = vmax.f32 %v240, %v241
        %v243 = vsel %vm165, %v164, -inf
        %v244 = vrot.slane %v243, 4
        %v245 = vmax.f32 %v243, %v244
        %v246 = vrot.slane %v245, 2
        %v247 = vmax.f32 %v245, %v246
        %v248 = vrot.slane %v247, 1
        %v249 = vmax.f32 %v247, %v248
        %vm262 = vcmask 1041409
        %v263 = vsel %vm262, %v179, %v172
        %vm264 = vcmask 1042434
        %v265 = vsel %vm264, %v186, %v263
        %vm266 = vcmask 1043459
        %v267 = vsel %vm266, %v193, %v265
        %vm268 = vcmask 1044484
        %v269 = vsel %vm268, %v200, %v267
        %vm270 = vcmask 1045509
        %v271 = vsel %vm270, %v207, %v269
        %vm272 = vcmask 1046534
        %v273 = vsel %vm272, %v214, %v271
        %vm274 = vcmask 1047559
        %v275 = vsel %vm274, %v221, %v273
        %v276 = vsel %vm262, %v235, %v228
        %v277 = vsel %vm264, %v242, %v276
        %v278 = vsel %vm266, %v249, %v277
        %s281 = smul.u32 %s118, 16
        %s282 = scalar_lea.vmem %s116, %s281
        %283 = vst [vmem:[%s282] sm:$0xff] %v275
        %284 = vst [vmem:[%s282 + $0x8] sm:$0xf] %v278
      $region29: #{forward.9} parent=23 // loop_footer
        %s122 = sadd.s32 1, %s118
      $region30: #{forward.9} parent=23 // loop_footer_branch
        %117 = sbr.rel target = $region26
      $region31: #{forward.9} parent=23 // loop_exit
        _
      %p285 = scmp.lt.s32.totalorder %s12, 1
      %s286 = scalar_select %p285, %s12, 1
      %s287 = smul.addr %s286, 24
      %s288 = smul.addr %s287, 8
      %s289 = scalar_lea.vmem %s1, %s288
      // Predicated region
      $region32: #{forward.9} parent=23 // pred_check
        %p290 = pneg %p56
      $region33: #{forward.9} parent=23 // pred_check_branch
        %292 = sbr.rel (%p290) target = $region35
      $region34: #{forward.9} parent=23 // pred_region
        _
      $region35: #{forward.9} parent=23 // pred_fallthru
        _
    $region24: #{forward.9} parent=5 // pred_fallthru
      _
    %p293 = scmp.le.s32.totalorder 2, %s7
    // Predicated region
    $region36: #{forward.9} parent=5 // pred_check
      %p294 = pneg %p293
    $region37: #{forward.9} parent=5 // pred_check_branch
      %296 = sbr.rel (%p294) target = $region39
    $region38: #{forward.9} parent=5 // pred_region
      %s297 = ssub.s32 %s7, 2
      // Predicated region
      $region40: #{forward.9} parent=38 // pred_check
        %p298 = pneg %p62
      $region41: #{forward.9} parent=38 // pred_check_branch
        %300 = sbr.rel (%p298) target = $region43
      $region42: #{forward.9} parent=38 // pred_region
        %p301 = scmp.lt.s32.totalorder %s13, 1
        %s302 = scalar_select %p301, %s13, 1
        %s303 = smul.addr %s302, 24
        %s304 = smul.addr %s303, 8
        %s305 = scalar_lea.vmem %s1, %s304
      $region43: #{forward.9} parent=38 // pred_fallthru
        _
    $region39: #{forward.9} parent=5 // pred_fallthru
      _
  $region6: #{forward.9} parent=0 // loop_footer
    %s11 = sadd.s32 1, %s7
  $region7: #{forward.9} parent=0 // loop_footer_branch
    %6 = sbr.rel target = $region3
  $region8: #{forward.9} parent=0 // loop_exit
    _

// kernel: forward.10
$region0: #{forward.10}
  #allocation0 [shape = 'u32[]', space=smem, size = 0x4, offset = 0x4, fixed_abs, tag = 'smem constant byte address 0x4 - core index']
  #allocation1 [shape = 'u32[144,128]{1,0:T(1,128)}', space=vmem, size = 0x12000, scoped, tag = 'internal scratch']
  %s0 = inlined_call_operand.vmem [shape: f32[2,12,12,128], index: 0, kind: input, shape index: {}]
  %s1 = inlined_call_operand.vmem [shape: f32[9,128,128], index: 1, kind: input, shape index: {}]
  %s2 = inlined_call_operand.vmem [shape: f32[1,128], index: 2, kind: input, shape index: {}]
  %s3 = inlined_call_operand.vmem [shape: f32[2,10,10,128], index: 3, kind: output, shape index: {}]
  %s4 = sld [smem:[#allocation0]]
  $region52: #{forward.10} parent=0
    _
  %s6 = ssub.s32 1, %s4
  %s7 = scalar_select 0, %s6, %s4
  loop: start=0, step=1, limit=4
  $region2: #{forward.10} parent=0 // loop_pre_header
    _
  $region3: #{forward.10} parent=0 // loop_header
    %s9 = sphi 0, %s13
    %p10 = scmp.ge.s32.totalorder %s9, 4
    %s19 = sphi 0, %s21
    %s22 = sphi 0, %s19
    %s23 = sphi 0, %s22
    %s39 = sphi 0, %s23
    %s43 = sphi 0, %s43
    %s45 = sphi 0, %s43
    %s46 = sphi 0, %s45
    %s60 = sphi 0, %s46
    %s64 = sphi 0, %s64
    %s66 = sphi 0, %s64
    %s67 = sphi 0, %s66
    %s81 = sphi 0, %s67
    %s87 = sphi 0, %s89
    %s90 = sphi 0, %s87
    %s91 = sphi 0, %s90
    %s107 = sphi 0, %s91
  $region4: #{forward.10} parent=0 // loop_header_branch
    %12 = sbr.rel (%p10) target = $region8
  $region5: #{forward.10} parent=0 // loop_body
    %s14 = ssub.s32 %s9, 1
    %s15 = ssub.s32 %s9, 2
    %s16 = sadd.s32 %s9, 1
    %s17 = ssub.s32 %s9, %s16
    %p18 = scmp.eq.s32.totalorder %s17, 0
    %s20 = sadd.s32 %s19, 1
    %s21 = scalar_select %p18, %s19, %s20
    %p24 = pneg %p18
    %p25 = scmp.eq.s32.totalorder %s9, 1
    %p26 = por %p24, %p25
    %p27 = scmp.ne.s32.totalorder %s19, %s22
    %p28 = scmp.eq.s32.totalorder %s9, 0
    %p29 = por %p27, %p28
    %p30 = scmp.ne.s32.totalorder %s19, %s22
    %p31 = scmp.eq.s32.totalorder %s14, 1
    %p32 = por %p30, %p31
    %p33 = scmp.ne.s32.totalorder %s22, %s23
    %p34 = scmp.eq.s32.totalorder %s14, 0
    %p35 = por %p33, %p34
    %p36 = scmp.ne.s32.totalorder %s22, %s23
    %p37 = scmp.eq.s32.totalorder %s15, 1
    %p38 = por %p36, %p37
    %p40 = scmp.ne.s32.totalorder %s23, %s39
    %p41 = scmp.eq.s32.totalorder %s15, 0
    %p42 = por %p40, %p41
    %s44 = sadd.s32 %s43, 1
    %p47 = scmp.eq.s32.totalorder %s9, 1
    %p48 = scmp.ne.s32.totalorder %s43, %s45
    %p49 = scmp.eq.s32.totalorder %s9, 0
    %p50 = por %p48, %p49
    %p51 = scmp.ne.s32.totalorder %s43, %s45
    %p52 = scmp.eq.s32.totalorder %s14, 1
    %p53 = por %p51, %p52
    %p54 = scmp.ne.s32.totalorder %s45, %s46
    %p55 = scmp.eq.s32.totalorder %s14, 0
    %p56 = por %p54, %p55
    %p57 = scmp.ne.s32.totalorder %s45, %s46
    %p58 = scmp.eq.s32.totalorder %s15, 1
    %p59 = por %p57, %p58
    %p61 = scmp.ne.s32.totalorder %s46, %s60
    %p62 = scmp.eq.s32.totalorder %s15, 0
    %p63 = por %p61, %p62
    %s65 = sadd.s32 %s64, 1
    %p68 = scmp.eq.s32.totalorder %s9, 1
    %p69 = scmp.ne.s32.totalorder %s64, %s66
    %p70 = scmp.eq.s32.totalorder %s9, 0
    %p71 = por %p69, %p70
    %p72 = scmp.ne.s32.totalorder %s64, %s66
    %p73 = scmp.eq.s32.totalorder %s14, 1
    %p74 = por %p72, %p73
    %p75 = scmp.ne.s32.totalorder %s66, %s67
    %p76 = scmp.eq.s32.totalorder %s14, 0
    %p77 = por %p75, %p76
    %p78 = scmp.ne.s32.totalorder %s66, %s67
    %p79 = scmp.eq.s32.totalorder %s15, 1
    %p80 = por %p78, %p79
    %p82 = scmp.ne.s32.totalorder %s67, %s81
    %p83 = scmp.eq.s32.totalorder %s15, 0
    %p84 = por %p82, %p83
    %s85 = ssub.s32 %s9, %s16
    %p86 = scmp.eq.s32.totalorder %s85, 0
    %s88 = sadd.s32 %s87, 1
    %s89 = scalar_select %p86, %s87, %s88
    %p92 = pneg %p86
    %p93 = scmp.eq.s32.totalorder %s9, 1
    %p94 = por %p92, %p93
    %p95 = scmp.ne.s32.totalorder %s87, %s90
    %p96 = scmp.eq.s32.totalorder %s9, 0
    %p97 = por %p95, %p96
    %p98 = scmp.ne.s32.totalorder %s87, %s90
    %p99 = scmp.eq.s32.totalorder %s14, 1
    %p100 = por %p98, %p99
    %p101 = scmp.ne.s32.totalorder %s90, %s91
    %p102 = scmp.eq.s32.totalorder %s14, 0
    %p103 = por %p101, %p102
    %p104 = scmp.ne.s32.totalorder %s90, %s91
    %p105 = scmp.eq.s32.totalorder %s15, 1
    %p106 = por %p104, %p105
    %p108 = scmp.ne.s32.totalorder %s91, %s107
    %p109 = scmp.eq.s32.totalorder %s15, 0
    %p110 = por %p108, %p109
    %p111 = scmp.le.s32.totalorder 1, %s9
    %p112 = scmp.lt.s32.totalorder %s9, 3
    %p113 = pnand %p111, %p112
    %p114 = pneg %p113
    // Predicated region
    $region9: #{forward.10} parent=5 // pred_check
      _
    $region10: #{forward.10} parent=5 // pred_check_branch
      %116 = sbr.rel (%p113) target = $region12
    $region11: #{forward.10} parent=5 // pred_region
      %s117 = ssub.s32 %s9, 1
      // Predicated region
      $region13: #{forward.10} parent=11 // pred_check
        %p118 = pneg %p56
      $region14: #{forward.10} parent=11 // pred_check_branch
        %120 = sbr.rel (%p118) target = $region16
      $region15: #{forward.10} parent=11 // pred_region
        _
      $region16: #{forward.10} parent=11 // pred_fallthru
        _
      // Predicated region
      $region17: #{forward.10} parent=11 // pred_check
        %p121 = pneg %p77
      $region18: #{forward.10} parent=11 // pred_check_branch
        %123 = sbr.rel (%p121) target = $region20
      $region19: #{forward.10} parent=11 // pred_region
        _
      $region20: #{forward.10} parent=11 // pred_fallthru
        _
    $region12: #{forward.10} parent=5 // pred_fallthru
      _
    %p124 = scmp.lt.s32.totalorder %s9, 2
    // Predicated region
    $region21: #{forward.10} parent=5 // pred_check
      %p125 = pneg %p124
    $region22: #{forward.10} parent=5 // pred_check_branch
      %127 = sbr.rel (%p125) target = $region24
    $region23: #{forward.10} parent=5 // pred_region
      // Predicated region
      $region25: #{forward.10} parent=23 // pred_check
        %p128 = pneg %p29
      $region26: #{forward.10} parent=23 // pred_check_branch
        %130 = sbr.rel (%p128) target = $region28
      $region27: #{forward.10} parent=23 // pred_region
        %p131 = scmp.lt.s32.totalorder %s9, 1
        %s132 = scalar_select %p131, %s9, 1
        %s133 = smul.addr %s132, 24
        %s134 = smul.addr %s133, 8
        %s135 = scalar_lea.vmem %s0, %s134
      $region28: #{forward.10} parent=23 // pred_fallthru
        _
    $region24: #{forward.10} parent=5 // pred_fallthru
      _
    %p136 = scmp.le.s32.totalorder 1, %s9
    %p137 = scmp.lt.s32.totalorder %s9, 3
    %p138 = pnand %p136, %p137
    %p139 = pneg %p138
    // Predicated region
    $region29: #{forward.10} parent=5 // pred_check
      _
    $region30: #{forward.10} parent=5 // pred_check_branch
      %141 = sbr.rel (%p138) target = $region32
    $region31: #{forward.10} parent=5 // pred_region
      %s142 = ssub.s32 %s9, 1
      %p143 = scmp.lt.s32.totalorder %s14, 1
      %s144 = scalar_select %p143, %s14, 1
      %s145 = smul.addr %s144, 24
      %s146 = smul.addr %s145, 8
      %s147 = scalar_lea.vmem %s0, %s146
      %p148 = pneg %p35
      %p149 = pneg %p32
      %p150 = pneg %p56
      %p151 = pneg %p53
      %p152 = pneg %p77
      %p153 = pneg %p74
      %p154 = pneg %p103
      %p155 = pneg %p100
      %p156 = scmp.lt.s32.totalorder %s14, 1
      %s157 = scalar_select %p156, %s14, 1
      %s158 = smul.addr %s157, 20
      %s159 = smul.addr %s158, 8
      %s160 = scalar_lea.vmem %s3, %s159
      %p161 = scmp.lt.s32.totalorder %s14, 1
      %s162 = scalar_select %p161, %s14, 1
      %s163 = smul.addr %s162, 24
      %s164 = smul.addr %s163, 8
      %s165 = scalar_lea.vmem %s0, %s164
      %p166 = scmp.lt.s32.totalorder %s14, 1
      %s167 = scalar_select %p166, %s14, 1
      %s168 = smul.addr %s167, 20
      %s169 = smul.addr %s168, 8
      %s170 = scalar_lea.vmem %s3, %s169
      %v171 = vld [vmem:[%s2] sm:$0x1]
      loop: start=0, step=1, limit=10
      $region33: #{forward.10} parent=31 // loop_pre_header
        _
      $region34: #{forward.10} parent=31 // loop_header
        %s173 = sphi 0, %s177
        %p174 = scmp.ge.s32.totalorder %s173, 10
      $region35: #{forward.10} parent=31 // loop_header_branch
        %176 = sbr.rel (%p174) target = $region39
      $region36: #{forward.10} parent=31 // loop_body
        %s178 = smul.u32 %s173, 16
        %s179 = scalar_lea.vmem %s165, %s178
        %v180 = vld [vmem:[%s179] sm:$0xff]
        %v181 = vld [vmem:[%s179 + $0x8] sm:$0xf]
        %v182 = vld [vmem:[%s1] sm:$0xff]
        %v183 = vld [vmem:[%s1 + $0x8] sm:$0xff]
        %v184 = vld [vmem:[%s1 + $0x10] sm:$0xff]
        %v185 = vld [vmem:[%s1 + $0x18] sm:$0xff]
        %v186 = vld [vmem:[%s1 + $0x20] sm:$0xff]
        %v187 = vld [vmem:[%s1 + $0x28] sm:$0xff]
        %v188 = vld [vmem:[%s1 + $0x30] sm:$0xff]
        %v189 = vld [vmem:[%s1 + $0x38] sm:$0xff]
        %v190 = vld [vmem:[%s1 + $0x40] sm:$0xff]
        %v191 = vld [vmem:[%s1 + $0x48] sm:$0xff]
        %v192 = vld [vmem:[%s1 + $0x50] sm:$0xff]
        %v193 = vld [vmem:[%s1 + $0x58] sm:$0xff]
        %v194 = vld [vmem:[%s1 + $0x60] sm:$0xff]
        %v195 = vld [vmem:[%s1 + $0x68] sm:$0xff]
        %v196 = vld [vmem:[%s1 + $0x70] sm:$0xff]
        %v197 = vld [vmem:[%s1 + $0x78] sm:$0xff]
        %s198 = scalar_lea.vmem %s1, 128
        %v199 = vld [vmem:[%s198] sm:$0xff]
        %v200 = vld [vmem:[%s198 + $0x8] sm:$0xff]
        %v201 = vld [vmem:[%s198 + $0x10] sm:$0xff]
        %v202 = vld [vmem:[%s198 + $0x18] sm:$0xff]
        %v203 = vld [vmem:[%s198 + $0x20] sm:$0xff]
        %v204 = vld [vmem:[%s198 + $0x28] sm:$0xff]
        %v205 = vld [vmem:[%s198 + $0x30] sm:$0xff]
        %v206 = vld [vmem:[%s198 + $0x38] sm:$0xff]
        %v207 = vld [vmem:[%s198 + $0x40] sm:$0xff]
        %v208 = vld [vmem:[%s198 + $0x48] sm:$0xff]
        %v209 = vld [vmem:[%s198 + $0x50] sm:$0xff]
        %v210 = vld [vmem:[%s198 + $0x58] sm:$0xff]
        %v211 = vld [vmem:[%s198 + $0x60] sm:$0xff]
        %v212 = vld [vmem:[%s198 + $0x68] sm:$0xff]
        %v213 = vld [vmem:[%s198 + $0x70] sm:$0xff]
        %v214 = vld [vmem:[%s198 + $0x78] sm:$0xff]
        %vm217 = vcmask 1046528
        %v218 = vrot.slane %v180, 1
        %v219 = vrot.slane %v181, 1
        %v220 = vsel %vm217, %v218, %v219
        %223 = vmatprep.subr.mxu0 0.0
        %224 = vmatpush1.msra.mxu0 %v214
        %225 = vmatprep.subr.mxu0 0.0
        %226 = vmatpush1.msra.mxu0 %v213
        %227 = vmatprep.subr.mxu0 0.0
        %228 = vmatpush1.msra.mxu0 %v212
        %229 = vmatprep.subr.mxu0 0.0
        %230 = vmatpush1.msra.mxu0 %v211
        %231 = vmatprep.subr.mxu0 0.0
        %232 = vmatpush1.msra.mxu0 %v210
        %233 = vmatprep.subr.mxu0 0.0
        %234 = vmatpush1.msra.mxu0 %v209
        %235 = vmatprep.subr.mxu0 0.0
        %236 = vmatpush1.msra.mxu0 %v208
        %237 = vmatprep.subr.mxu0 0.0
        %238 = vmatpush1.msra.mxu0 %v207
        %239 = vmatprep.subr.mxu0 0.0
        %240 = vmatpush1.msra.mxu0 %v206
        %241 = vmatprep.subr.mxu0 0.0
        %242 = vmatpush1.msra.mxu0 %v205
        %243 = vmatprep.subr.mxu0 0.0
        %244 = vmatpush1.msra.mxu0 %v204
        %245 = vmatprep.subr.mxu0 0.0
        %246 = vmatpush1.msra.mxu0 %v203
        %247 = vmatprep.subr.mxu0 0.0
        %248 = vmatpush1.msra.mxu0 %v202
        %249 = vmatprep.subr.mxu0 0.0
        %250 = vmatpush1.msra.mxu0 %v201
        %251 = vmatprep.subr.mxu0 0.0
        %252 = vmatpush1.msra.mxu0 %v200
        %253 = vmatprep.subr.mxu0 0.0
        %254 = vmatpush1.msra.mxu0 %v199
        %255 = vmatprep.subr.mxu0 0.0
        %256 = vmatpush2.msra.mxu0 0.0
        %257 = vmatprep.subr.mxu0 0.0
        %258 = vmatpush2.msra.mxu0 0.0
        %259 = vmatprep.subr.mxu0 0.0
        %260 = vmatpush2.msra.mxu0 0.0
        %261 = vmatprep.subr.mxu0 0.0
        %262 = vmatpush2.msra.mxu0 0.0
        %263 = vmatprep.subr.mxu0 0.0
        %264 = vmatpush2.msra.mxu0 0.0
        %265 = vmatprep.subr.mxu0 0.0
        %266 = vmatpush2.msra.mxu0 0.0
        %267 = vmatprep.subr.mxu0 0.0
        %268 = vmatpush2.msra.mxu0 0.0
        %269 = vmatprep.subr.mxu0 0.0
        %270 = vmatpush2.msra.mxu0 0.0
        %271 = vmatprep.subr.mxu0 0.0
        %272 = vmatpush2.msra.mxu0 0.0
        %273 = vmatprep.subr.mxu0 0.0
        %274 = vmatpush2.msra.mxu0 0.0
        %275 = vmatprep.subr.mxu0 0.0
        %276 = vmatpush2.msra.mxu0 0.0
        %277 = vmatprep.subr.mxu0 0.0
        %278 = vmatpush2.msra.mxu0 0.0
        %279 = vmatprep.subr.mxu0 0.0
        %280 = vmatpush2.msra.mxu0 0.0
        %281 = vmatprep.subr.mxu0 0.0
        %282 = vmatpush2.msra.mxu0 0.0
        %283 = vmatprep.subr.mxu0 0.0
        %284 = vmatpush2.msra.mxu0 0.0
        %285 = vmatprep.subr.mxu0 0.0
        %286 = vmatpush2.msra.mxu0 0.0
        %287 = vmatprep.mubr.f32.mxu0 0.0
        %288 = vmatmul.mubr.f32.gmra.mxu0 %v220
        %v289 = vpop.f32.mrf.mxu0
        %v290 = vadd.f32 0.0, %v289
        %v291 = vpop.f32.mrf.mxu0
        %292 = vmatprep.mubr.f32.mxu0 0.0
        %293 = vmatmul.mubr.f32.gmra.mxu0 %v219
        %v294 = vpop.f32.mrf.mxu0
        %v295 = vadd.f32 0.0, %v294
        %v296 = vpop.f32.mrf.mxu0
        %297 = vdwg.mxu0
        %298 = vmatprep.subr.mxu0 0.0
        %299 = vmatpush1.msra.mxu0 %v197
        %300 = vmatprep.subr.mxu0 0.0
        %301 = vmatpush1.msra.mxu0 %v196
        %302 = vmatprep.subr.mxu0 0.0
        %303 = vmatpush1.msra.mxu0 %v195
        %304 = vmatprep.subr.mxu0 0.0
        %305 = vmatpush1.msra.mxu0 %v194
        %306 = vmatprep.subr.mxu0 0.0
        %307 = vmatpush1.msra.mxu0 %v193
        %308 = vmatprep.subr.mxu0 0.0
        %309 = vmatpush1.msra.mxu0 %v192
        %310 = vmatprep.subr.mxu0 0.0
        %311 = vmatpush1.msra.mxu0 %v191
        %312 = vmatprep.subr.mxu0 0.0
        %313 = vmatpush1.msra.mxu0 %v190
        %314 = vmatprep.subr.mxu0 0.0
        %315 = vmatpush1.msra.mxu0 %v189
        %316 = vmatprep.subr.mxu0 0.0
        %317 = vmatpush1.msra.mxu0 %v188
        %318 = vmatprep.subr.mxu0 0.0
        %319 = vmatpush1.msra.mxu0 %v187
        %320 = vmatprep.subr.mxu0 0.0
        %321 = vmatpush1.msra.mxu0 %v186
        %322 = vmatprep.subr.mxu0 0.0
        %323 = vmatpush1.msra.mxu0 %v185
        %324 = vmatprep.subr.mxu0 0.0
        %325 = vmatpush1.msra.mxu0 %v184
        %326 = vmatprep.subr.mxu0 0.0
        %327 = vmatpush1.msra.mxu0 %v183
        %328 = vmatprep.subr.mxu0 0.0
        %329 = vmatpush1.msra.mxu0 %v182
        %330 = vmatprep.subr.mxu0 0.0
        %331 = vmatpush2.msra.mxu0 0.0
        %332 = vmatprep.subr.mxu0 0.0
        %333 = vmatpush2.msra.mxu0 0.0
        %334 = vmatprep.subr.mxu0 0.0
        %335 = vmatpush2.msra.mxu0 0.0
        %336 = vmatprep.subr.mxu0 0.0
        %337 = vmatpush2.msra.mxu0 0.0
        %338 = vmatprep.subr.mxu0 0.0
        %339 = vmatpush2.msra.mxu0 0.0
        %340 = vmatprep.subr.mxu0 0.0
        %341 = vmatpush2.msra.mxu0 0.0
        %342 = vmatprep.subr.mxu0 0.0
        %343 = vmatpush2.msra.mxu0 0.0
        %344 = vmatprep.subr.mxu0 0.0
        %345 = vmatpush2.msra.mxu0 0.0
        %346 = vmatprep.subr.mxu0 0.0
        %347 = vmatpush2.msra.mxu0 0.0
        %348 = vmatprep.subr.mxu0 0.0
        %349 = vmatpush2.msra.mxu0 0.0
        %350 = vmatprep.subr.mxu0 0.0
        %351 = vmatpush2.msra.mxu0 0.0
        %352 = vmatprep.subr.mxu0 0.0
        %353 = vmatpush2.msra.mxu0 0.0
        %354 = vmatprep.subr.mxu0 0.0
        %355 = vmatpush2.msra.mxu0 0.0
        %356 = vmatprep.subr.mxu0 0.0
        %357 = vmatpush2.msra.mxu0 0.0
        %358 = vmatprep.subr.mxu0 0.0
        %359 = vmatpush2.msra.mxu0 0.0
        %360 = vmatprep.subr.mxu0 0.0
        %361 = vmatpush2.msra.mxu0 0.0
        %362 = vmatprep.mubr.f32.mxu0 0.0
        %363 = vmatmul.mubr.f32.gmra.mxu0 %v180
        %v364 = vpop.f32.mrf.mxu0
        %v365 = vadd.f32 %v290, %v364
        %v366 = vpop.f32.mrf.mxu0
        %367 = vmatprep.mubr.f32.mxu0 0.0
        %368 = vmatmul.mubr.f32.gmra.mxu0 %v181
        %v369 = vpop.f32.mrf.mxu0
        %v370 = vadd.f32 %v295, %v369
        %v371 = vpop.f32.mrf.mxu0
        %372 = vdwg.mxu0
        %s373 = scalar_lea.vmem %s1, 256
        %v374 = vld [vmem:[%s373] sm:$0xff]
        %v375 = vld [vmem:[%s373 + $0x8] sm:$0xff]
        %v376 = vld [vmem:[%s373 + $0x10] sm:$0xff]
        %v377 = vld [vmem:[%s373 + $0x18] sm:$0xff]
        %v378 = vld [vmem:[%s373 + $0x20] sm:$0xff]
        %v379 = vld [vmem:[%s373 + $0x28] sm:$0xff]
        %v380 = vld [vmem:[%s373 + $0x30] sm:$0xff]
        %v381 = vld [vmem:[%s373 + $0x38] sm:$0xff]
        %v382 = vld [vmem:[%s373 + $0x40] sm:$0xff]
        %v383 = vld [vmem:[%s373 + $0x48] sm:$0xff]
        %v384 = vld [vmem:[%s373 + $0x50] sm:$0xff]
        %v385 = vld [vmem:[%s373 + $0x58] sm:$0xff]
        %v386 = vld [vmem:[%s373 + $0x60] sm:$0xff]
        %v387 = vld [vmem:[%s373 + $0x68] sm:$0xff]
        %v388 = vld [vmem:[%s373 + $0x70] sm:$0xff]
        %v389 = vld [vmem:[%s373 + $0x78] sm:$0xff]
        %vm390 = vcmask 1045504
        %v391 = vrot.slane %v180, 2
        %v392 = vrot.slane %v181, 2
        %v393 = vsel %vm390, %v391, %v392
        %396 = vmatprep.subr.mxu0 0.0
        %397 = vmatpush1.msra.mxu0 %v389
        %398 = vmatprep.subr.mxu0 0.0
        %399 = vmatpush1.msra.mxu0 %v388
        %400 = vmatprep.subr.mxu0 0.0
        %401 = vmatpush1.msra.mxu0 %v387
        %402 = vmatprep.subr.mxu0 0.0
        %403 = vmatpush1.msra.mxu0 %v386
        %404 = vmatprep.subr.mxu0 0.0
        %405 = vmatpush1.msra.mxu0 %v385
        %406 = vmatprep.subr.mxu0 0.0
        %407 = vmatpush1.msra.mxu0 %v384
        %408 = vmatprep.subr.mxu0 0.0
        %409 = vmatpush1.msra.mxu0 %v383
        %410 = vmatprep.subr.mxu0 0.0
        %411 = vmatpush1.msra.mxu0 %v382
        %412 = vmatprep.subr.mxu0 0.0
        %413 = vmatpush1.msra.mxu0 %v381
        %414 = vmatprep.subr.mxu0 0.0
        %415 = vmatpush1.msra.mxu0 %v380
        %416 = vmatprep.subr.mxu0 0.0
        %417 = vmatpush1.msra.mxu0 %v379
        %418 = vmatprep.subr.mxu0 0.0
        %419 = vmatpush1.msra.mxu0 %v378
        %420 = vmatprep.subr.mxu0 0.0
        %421 = vmatpush1.msra.mxu0 %v377
        %422 = vmatprep.subr.mxu0 0.0
        %423 = vmatpush1.msra.mxu0 %v376
        %424 = vmatprep.subr.mxu0 0.0
        %425 = vmatpush1.msra.mxu0 %v375
        %426 = vmatprep.subr.mxu0 0.0
        %427 = vmatpush1.msra.mxu0 %v374
        %428 = vmatprep.subr.mxu0 0.0
        %429 = vmatpush2.msra.mxu0 0.0
        %430 = vmatprep.subr.mxu0 0.0
        %431 = vmatpush2.msra.mxu0 0.0
        %432 = vmatprep.subr.mxu0 0.0
        %433 = vmatpush2.msra.mxu0 0.0
        %434 = vmatprep.subr.mxu0 0.0
        %435 = vmatpush2.msra.mxu0 0.0
        %436 = vmatprep.subr.mxu0 0.0
        %437 = vmatpush2.msra.mxu0 0.0
        %438 = vmatprep.subr.mxu0 0.0
        %439 = vmatpush2.msra.mxu0 0.0
        %440 = vmatprep.subr.mxu0 0.0
        %441 = vmatpush2.msra.mxu0 0.0
        %442 = vmatprep.subr.mxu0 0.0
        %443 = vmatpush2.msra.mxu0 0.0
        %444 = vmatprep.subr.mxu0 0.0
        %445 = vmatpush2.msra.mxu0 0.0
        %446 = vmatprep.subr.mxu0 0.0
        %447 = vmatpush2.msra.mxu0 0.0
        %448 = vmatprep.subr.mxu0 0.0
        %449 = vmatpush2.msra.mxu0 0.0
        %450 = vmatprep.subr.mxu0 0.0
        %451 = vmatpush2.msra.mxu0 0.0
        %452 = vmatprep.subr.mxu0 0.0
        %453 = vmatpush2.msra.mxu0 0.0
        %454 = vmatprep.subr.mxu0 0.0
        %455 = vmatpush2.msra.mxu0 0.0
        %456 = vmatprep.subr.mxu0 0.0
        %457 = vmatpush2.msra.mxu0 0.0
        %458 = vmatprep.subr.mxu0 0.0
        %459 = vmatpush2.msra.mxu0 0.0
        %460 = vmatprep.mubr.f32.mxu0 0.0
        %461 = vmatmul.mubr.f32.gmra.mxu0 %v393
        %v462 = vpop.f32.mrf.mxu0
        %v463 = vadd.f32 0.0, %v462
        %v464 = vpop.f32.mrf.mxu0
        %465 = vmatprep.mubr.f32.mxu0 0.0
        %466 = vmatmul.mubr.f32.gmra.mxu0 %v392
        %v467 = vpop.f32.mrf.mxu0
        %v468 = vadd.f32 0.0, %v467
        %v469 = vpop.f32.mrf.mxu0
        %470 = vdwg.mxu0
        %v471 = vadd.f32 %v365, %v463
        %v472 = vadd.f32 %v370, %v468
        %s473 = sadd.s32 %s173, 1
        %s474 = smul.u32 %s473, 16
        %s475 = scalar_lea.vmem %s165, %s474
        %v476 = vld [vmem:[%s475] sm:$0xff]
        %v477 = vld [vmem:[%s475 + $0x8] sm:$0xf]
        %s478 = scalar_lea.vmem %s1, 384
        %v479 = vld [vmem:[%s478] sm:$0xff]
        %v480 = vld [vmem:[%s478 + $0x8] sm:$0xff]
        %v481 = vld [vmem:[%s478 + $0x10] sm:$0xff]
        %v482 = vld [vmem:[%s478 + $0x18] sm:$0xff]
        %v483 = vld [vmem:[%s478 + $0x20] sm:$0xff]
        %v484 = vld [vmem:[%s478 + $0x28] sm:$0xff]
        %v485 = vld [vmem:[%s478 + $0x30] sm:$0xff]
        %v486 = vld [vmem:[%s478 + $0x38] sm:$0xff]
        %v487 = vld [vmem:[%s478 + $0x40] sm:$0xff]
        %v488 = vld [vmem:[%s478 + $0x48] sm:$0xff]
        %v489 = vld [vmem:[%s478 + $0x50] sm:$0xff]
        %v490 = vld [vmem:[%s478 + $0x58] sm:$0xff]
        %v491 = vld [vmem:[%s478 + $0x60] sm:$0xff]
        %v492 = vld [vmem:[%s478 + $0x68] sm:$0xff]
        %v493 = vld [vmem:[%s478 + $0x70] sm:$0xff]
        %v494 = vld [vmem:[%s478 + $0x78] sm:$0xff]
        %495 = vmatprep.subr.mxu0 0.0
        %496 = vmatpush1.msra.mxu0 %v494
        %497 = vmatprep.subr.mxu0 0.0
        %498 = vmatpush1.msra.mxu0 %v493
        %499 = vmatprep.subr.mxu0 0.0
        %500 = vmatpush1.msra.mxu0 %v492
        %501 = vmatprep.subr.mxu0 0.0
        %502 = vmatpush1.msra.mxu0 %v491
        %503 = vmatprep.subr.mxu0 0.0
        %504 = vmatpush1.msra.mxu0 %v490
        %505 = vmatprep.subr.mxu0 0.0
        %506 = vmatpush1.msra.mxu0 %v489
        %507 = vmatprep.subr.mxu0 0.0
        %508 = vmatpush1.msra.mxu0 %v488
        %509 = vmatprep.subr.mxu0 0.0
        %510 = vmatpush1.msra.mxu0 %v487
        %511 = vmatprep.subr.mxu0 0.0
        %512 = vmatpush1.msra.mxu0 %v486
        %513 = vmatprep.subr.mxu0 0.0
        %514 = vmatpush1.msra.mxu0 %v485
        %515 = vmatprep.subr.mxu0 0.0
        %516 = vmatpush1.msra.mxu0 %v484
        %517 = vmatprep.subr.mxu0 0.0
        %518 = vmatpush1.msra.mxu0 %v483
        %519 = vmatprep.subr.mxu0 0.0
        %520 = vmatpush1.msra.mxu0 %v482
        %521 = vmatprep.subr.mxu0 0.0
        %522 = vmatpush1.msra.mxu0 %v481
        %523 = vmatprep.subr.mxu0 0.0
        %524 = vmatpush1.msra.mxu0 %v480
        %525 = vmatprep.subr.mxu0 0.0
        %526 = vmatpush1.msra.mxu0 %v479
        %527 = vmatprep.subr.mxu0 0.0
        %528 = vmatpush2.msra.mxu0 0.0
        %529 = vmatprep.subr.mxu0 0.0
        %530 = vmatpush2.msra.mxu0 0.0
        %531 = vmatprep.subr.mxu0 0.0
        %532 = vmatpush2.msra.mxu0 0.0
        %533 = vmatprep.subr.mxu0 0.0
        %534 = vmatpush2.msra.mxu0 0.0
        %535 = vmatprep.subr.mxu0 0.0
        %536 = vmatpush2.msra.mxu0 0.0
        %537 = vmatprep.subr.mxu0 0.0
        %538 = vmatpush2.msra.mxu0 0.0
        %539 = vmatprep.subr.mxu0 0.0
        %540 = vmatpush2.msra.mxu0 0.0
        %541 = vmatprep.subr.mxu0 0.0
        %542 = vmatpush2.msra.mxu0 0.0
        %543 = vmatprep.subr.mxu0 0.0
        %544 = vmatpush2.msra.mxu0 0.0
        %545 = vmatprep.subr.mxu0 0.0
        %546 = vmatpush2.msra.mxu0 0.0
        %547 = vmatprep.subr.mxu0 0.0
        %548 = vmatpush2.msra.mxu0 0.0
        %549 = vmatprep.subr.mxu0 0.0
        %550 = vmatpush2.msra.mxu0 0.0
        %551 = vmatprep.subr.mxu0 0.0
        %552 = vmatpush2.msra.mxu0 0.0
        %553 = vmatprep.subr.mxu0 0.0
        %554 = vmatpush2.msra.mxu0 0.0
        %555 = vmatprep.subr.mxu0 0.0
        %556 = vmatpush2.msra.mxu0 0.0
        %557 = vmatprep.subr.mxu0 0.0
        %558 = vmatpush2.msra.mxu0 0.0
        %559 = vmatprep.mubr.f32.mxu0 0.0
        %560 = vmatmul.mubr.f32.gmra.mxu0 %v476
        %v561 = vpop.f32.mrf.mxu0
        %v562 = vadd.f32 0.0, %v561
        %v563 = vpop.f32.mrf.mxu0
        %564 = vmatprep.mubr.f32.mxu0 0.0
        %565 = vmatmul.mubr.f32.gmra.mxu0 %v477
        %v566 = vpop.f32.mrf.mxu0
        %v567 = vadd.f32 0.0, %v566
        %v568 = vpop.f32.mrf.mxu0
        %569 = vdwg.mxu0
        %v570 = vadd.f32 %v471, %v562
        %v571 = vadd.f32 %v472, %v567
        %s572 = scalar_lea.vmem %s1, 512
        %v573 = vld [vmem:[%s572] sm:$0xff]
        %v574 = vld [vmem:[%s572 + $0x8] sm:$0xff]
        %v575 = vld [vmem:[%s572 + $0x10] sm:$0xff]
        %v576 = vld [vmem:[%s572 + $0x18] sm:$0xff]
        %v577 = vld [vmem:[%s572 + $0x20] sm:$0xff]
        %v578 = vld [vmem:[%s572 + $0x28] sm:$0xff]
        %v579 = vld [vmem:[%s572 + $0x30] sm:$0xff]
        %v580 = vld [vmem:[%s572 + $0x38] sm:$0xff]
        %v581 = vld [vmem:[%s572 + $0x40] sm:$0xff]
        %v582 = vld [vmem:[%s572 + $0x48] sm:$0xff]
        %v583 = vld [vmem:[%s572 + $0x50] sm:$0xff]
        %v584 = vld [vmem:[%s572 + $0x58] sm:$0xff]
        %v585 = vld [vmem:[%s572 + $0x60] sm:$0xff]
        %v586 = vld [vmem:[%s572 + $0x68] sm:$0xff]
        %v587 = vld [vmem:[%s572 + $0x70] sm:$0xff]
        %v588 = vld [vmem:[%s572 + $0x78] sm:$0xff]
        %v591 = vrot.slane %v476, 1
        %v592 = vrot.slane %v477, 1
        %v593 = vsel %vm217, %v591, %v592
        %596 = vmatprep.subr.mxu0 0.0
        %597 = vmatpush1.msra.mxu0 %v588
        %598 = vmatprep.subr.mxu0 0.0
        %599 = vmatpush1.msra.mxu0 %v587
        %600 = vmatprep.subr.mxu0 0.0
        %601 = vmatpush1.msra.mxu0 %v586
        %602 = vmatprep.subr.mxu0 0.0
        %603 = vmatpush1.msra.mxu0 %v585
        %604 = vmatprep.subr.mxu0 0.0
        %605 = vmatpush1.msra.mxu0 %v584
        %606 = vmatprep.subr.mxu0 0.0
        %607 = vmatpush1.msra.mxu0 %v583
        %608 = vmatprep.subr.mxu0 0.0
        %609 = vmatpush1.msra.mxu0 %v582
        %610 = vmatprep.subr.mxu0 0.0
        %611 = vmatpush1.msra.mxu0 %v581
        %612 = vmatprep.subr.mxu0 0.0
        %613 = vmatpush1.msra.mxu0 %v580
        %614 = vmatprep.subr.mxu0 0.0
        %615 = vmatpush1.msra.mxu0 %v579
        %616 = vmatprep.subr.mxu0 0.0
        %617 = vmatpush1.msra.mxu0 %v578
        %618 = vmatprep.subr.mxu0 0.0
        %619 = vmatpush1.msra.mxu0 %v577
        %620 = vmatprep.subr.mxu0 0.0
        %621 = vmatpush1.msra.mxu0 %v576
        %622 = vmatprep.subr.mxu0 0.0
        %623 = vmatpush1.msra.mxu0 %v575
        %624 = vmatprep.subr.mxu0 0.0
        %625 = vmatpush1.msra.mxu0 %v574
        %626 = vmatprep.subr.mxu0 0.0
        %627 = vmatpush1.msra.mxu0 %v573
        %628 = vmatprep.subr.mxu0 0.0
        %629 = vmatpush2.msra.mxu0 0.0
        %630 = vmatprep.subr.mxu0 0.0
        %631 = vmatpush2.msra.mxu0 0.0
        %632 = vmatprep.subr.mxu0 0.0
        %633 = vmatpush2.msra.mxu0 0.0
        %634 = vmatprep.subr.mxu0 0.0
        %635 = vmatpush2.msra.mxu0 0.0
        %636 = vmatprep.subr.mxu0 0.0
        %637 = vmatpush2.msra.mxu0 0.0
        %638 = vmatprep.subr.mxu0 0.0
        %639 = vmatpush2.msra.mxu0 0.0
        %640 = vmatprep.subr.mxu0 0.0
        %641 = vmatpush2.msra.mxu0 0.0
        %642 = vmatprep.subr.mxu0 0.0
        %643 = vmatpush2.msra.mxu0 0.0
        %644 = vmatprep.subr.mxu0 0.0
        %645 = vmatpush2.msra.mxu0 0.0
        %646 = vmatprep.subr.mxu0 0.0
        %647 = vmatpush2.msra.mxu0 0.0
        %648 = vmatprep.subr.mxu0 0.0
        %649 = vmatpush2.msra.mxu0 0.0
        %650 = vmatprep.subr.mxu0 0.0
        %651 = vmatpush2.msra.mxu0 0.0
        %652 = vmatprep.subr.mxu0 0.0
        %653 = vmatpush2.msra.mxu0 0.0
        %654 = vmatprep.subr.mxu0 0.0
        %655 = vmatpush2.msra.mxu0 0.0
        %656 = vmatprep.subr.mxu0 0.0
        %657 = vmatpush2.msra.mxu0 0.0
        %658 = vmatprep.subr.mxu0 0.0
        %659 = vmatpush2.msra.mxu0 0.0
        %660 = vmatprep.mubr.f32.mxu0 0.0
        %661 = vmatmul.mubr.f32.gmra.mxu0 %v593
        %v662 = vpop.f32.mrf.mxu0
        %v663 = vadd.f32 0.0, %v662
        %v664 = vpop.f32.mrf.mxu0
        %665 = vmatprep.mubr.f32.mxu0 0.0
        %666 = vmatmul.mubr.f32.gmra.mxu0 %v592
        %v667 = vpop.f32.mrf.mxu0
        %v668 = vadd.f32 0.0, %v667
        %v669 = vpop.f32.mrf.mxu0
        %670 = vdwg.mxu0
        %v671 = vadd.f32 %v570, %v663
        %v672 = vadd.f32 %v571, %v668
        %s673 = scalar_lea.vmem %s1, 640
        %v674 = vld [vmem:[%s673] sm:$0xff]
        %v675 = vld [vmem:[%s673 + $0x8] sm:$0xff]
        %v676 = vld [vmem:[%s673 + $0x10] sm:$0xff]
        %v677 = vld [vmem:[%s673 + $0x18] sm:$0xff]
        %v678 = vld [vmem:[%s673 + $0x20] sm:$0xff]
        %v679 = vld [vmem:[%s673 + $0x28] sm:$0xff]
        %v680 = vld [vmem:[%s673 + $0x30] sm:$0xff]
        %v681 = vld [vmem:[%s673 + $0x38] sm:$0xff]
        %v682 = vld [vmem:[%s673 + $0x40] sm:$0xff]
        %v683 = vld [vmem:[%s673 + $0x48] sm:$0xff]
        %v684 = vld [vmem:[%s673 + $0x50] sm:$0xff]
        %v685 = vld [vmem:[%s673 + $0x58] sm:$0xff]
        %v686 = vld [vmem:[%s673 + $0x60] sm:$0xff]
        %v687 = vld [vmem:[%s673 + $0x68] sm:$0xff]
        %v688 = vld [vmem:[%s673 + $0x70] sm:$0xff]
        %v689 = vld [vmem:[%s673 + $0x78] sm:$0xff]
        %v690 = vrot.slane %v476, 2
        %v691 = vrot.slane %v477, 2
        %v692 = vsel %vm390, %v690, %v691
        %695 = vmatprep.subr.mxu0 0.0
        %696 = vmatpush1.msra.mxu0 %v689
        %697 = vmatprep.subr.mxu0 0.0
        %698 = vmatpush1.msra.mxu0 %v688
        %699 = vmatprep.subr.mxu0 0.0
        %700 = vmatpush1.msra.mxu0 %v687
        %701 = vmatprep.subr.mxu0 0.0
        %702 = vmatpush1.msra.mxu0 %v686
        %703 = vmatprep.subr.mxu0 0.0
        %704 = vmatpush1.msra.mxu0 %v685
        %705 = vmatprep.subr.mxu0 0.0
        %706 = vmatpush1.msra.mxu0 %v684
        %707 = vmatprep.subr.mxu0 0.0
        %708 = vmatpush1.msra.mxu0 %v683
        %709 = vmatprep.subr.mxu0 0.0
        %710 = vmatpush1.msra.mxu0 %v682
        %711 = vmatprep.subr.mxu0 0.0
        %712 = vmatpush1.msra.mxu0 %v681
        %713 = vmatprep.subr.mxu0 0.0
        %714 = vmatpush1.msra.mxu0 %v680
        %715 = vmatprep.subr.mxu0 0.0
        %716 = vmatpush1.msra.mxu0 %v679
        %717 = vmatprep.subr.mxu0 0.0
        %718 = vmatpush1.msra.mxu0 %v678
        %719 = vmatprep.subr.mxu0 0.0
        %720 = vmatpush1.msra.mxu0 %v677
        %721 = vmatprep.subr.mxu0 0.0
        %722 = vmatpush1.msra.mxu0 %v676
        %723 = vmatprep.subr.mxu0 0.0
        %724 = vmatpush1.msra.mxu0 %v675
        %725 = vmatprep.subr.mxu0 0.0
        %726 = vmatpush1.msra.mxu0 %v674
        %727 = vmatprep.subr.mxu0 0.0
        %728 = vmatpush2.msra.mxu0 0.0
        %729 = vmatprep.subr.mxu0 0.0
        %730 = vmatpush2.msra.mxu0 0.0
        %731 = vmatprep.subr.mxu0 0.0
        %732 = vmatpush2.msra.mxu0 0.0
        %733 = vmatprep.subr.mxu0 0.0
        %734 = vmatpush2.msra.mxu0 0.0
        %735 = vmatprep.subr.mxu0 0.0
        %736 = vmatpush2.msra.mxu0 0.0
        %737 = vmatprep.subr.mxu0 0.0
        %738 = vmatpush2.msra.mxu0 0.0
        %739 = vmatprep.subr.mxu0 0.0
        %740 = vmatpush2.msra.mxu0 0.0
        %741 = vmatprep.subr.mxu0 0.0
        %742 = vmatpush2.msra.mxu0 0.0
        %743 = vmatprep.subr.mxu0 0.0
        %744 = vmatpush2.msra.mxu0 0.0
        %745 = vmatprep.subr.mxu0 0.0
        %746 = vmatpush2.msra.mxu0 0.0
        %747 = vmatprep.subr.mxu0 0.0
        %748 = vmatpush2.msra.mxu0 0.0
        %749 = vmatprep.subr.mxu0 0.0
        %750 = vmatpush2.msra.mxu0 0.0
        %751 = vmatprep.subr.mxu0 0.0
        %752 = vmatpush2.msra.mxu0 0.0
        %753 = vmatprep.subr.mxu0 0.0
        %754 = vmatpush2.msra.mxu0 0.0
        %755 = vmatprep.subr.mxu0 0.0
        %756 = vmatpush2.msra.mxu0 0.0
        %757 = vmatprep.subr.mxu0 0.0
        %758 = vmatpush2.msra.mxu0 0.0
        %759 = vmatprep.mubr.f32.mxu0 0.0
        %760 = vmatmul.mubr.f32.gmra.mxu0 %v692
        %v761 = vpop.f32.mrf.mxu0
        %v762 = vadd.f32 0.0, %v761
        %v763 = vpop.f32.mrf.mxu0
        %764 = vmatprep.mubr.f32.mxu0 0.0
        %765 = vmatmul.mubr.f32.gmra.mxu0 %v691
        %v766 = vpop.f32.mrf.mxu0
        %v767 = vadd.f32 0.0, %v766
        %v768 = vpop.f32.mrf.mxu0
        %769 = vdwg.mxu0
        %v770 = vadd.f32 %v671, %v762
        %v771 = vadd.f32 %v672, %v767
        %s772 = sadd.s32 %s173, 2
        %s773 = smul.u32 %s772, 16
        %s774 = scalar_lea.vmem %s165, %s773
        %v775 = vld [vmem:[%s774] sm:$0xff]
        %v776 = vld [vmem:[%s774 + $0x8] sm:$0xf]
        %s777 = scalar_lea.vmem %s1, 768
        %v778 = vld [vmem:[%s777] sm:$0xff]
        %v779 = vld [vmem:[%s777 + $0x8] sm:$0xff]
        %v780 = vld [vmem:[%s777 + $0x10] sm:$0xff]
        %v781 = vld [vmem:[%s777 + $0x18] sm:$0xff]
        %v782 = vld [vmem:[%s777 + $0x20] sm:$0xff]
        %v783 = vld [vmem:[%s777 + $0x28] sm:$0xff]
        %v784 = vld [vmem:[%s777 + $0x30] sm:$0xff]
        %v785 = vld [vmem:[%s777 + $0x38] sm:$0xff]
        %v786 = vld [vmem:[%s777 + $0x40] sm:$0xff]
        %v787 = vld [vmem:[%s777 + $0x48] sm:$0xff]
        %v788 = vld [vmem:[%s777 + $0x50] sm:$0xff]
        %v789 = vld [vmem:[%s777 + $0x58] sm:$0xff]
        %v790 = vld [vmem:[%s777 + $0x60] sm:$0xff]
        %v791 = vld [vmem:[%s777 + $0x68] sm:$0xff]
        %v792 = vld [vmem:[%s777 + $0x70] sm:$0xff]
        %v793 = vld [vmem:[%s777 + $0x78] sm:$0xff]
        %794 = vmatprep.subr.mxu0 0.0
        %795 = vmatpush1.msra.mxu0 %v793
        %796 = vmatprep.subr.mxu0 0.0
        %797 = vmatpush1.msra.mxu0 %v792
        %798 = vmatprep.subr.mxu0 0.0
        %799 = vmatpush1.msra.mxu0 %v791
        %800 = vmatprep.subr.mxu0 0.0
        %801 = vmatpush1.msra.mxu0 %v790
        %802 = vmatprep.subr.mxu0 0.0
        %803 = vmatpush1.msra.mxu0 %v789
        %804 = vmatprep.subr.mxu0 0.0
        %805 = vmatpush1.msra.mxu0 %v788
        %806 = vmatprep.subr.mxu0 0.0
        %807 = vmatpush1.msra.mxu0 %v787
        %808 = vmatprep.subr.mxu0 0.0
        %809 = vmatpush1.msra.mxu0 %v786
        %810 = vmatprep.subr.mxu0 0.0
        %811 = vmatpush1.msra.mxu0 %v785
        %812 = vmatprep.subr.mxu0 0.0
        %813 = vmatpush1.msra.mxu0 %v784
        %814 = vmatprep.subr.mxu0 0.0
        %815 = vmatpush1.msra.mxu0 %v783
        %816 = vmatprep.subr.mxu0 0.0
        %817 = vmatpush1.msra.mxu0 %v782
        %818 = vmatprep.subr.mxu0 0.0
        %819 = vmatpush1.msra.mxu0 %v781
        %820 = vmatprep.subr.mxu0 0.0
        %821 = vmatpush1.msra.mxu0 %v780
        %822 = vmatprep.subr.mxu0 0.0
        %823 = vmatpush1.msra.mxu0 %v779
        %824 = vmatprep.subr.mxu0 0.0
        %825 = vmatpush1.msra.mxu0 %v778
        %826 = vmatprep.subr.mxu0 0.0
        %827 = vmatpush2.msra.mxu0 0.0
        %828 = vmatprep.subr.mxu0 0.0
        %829 = vmatpush2.msra.mxu0 0.0
        %830 = vmatprep.subr.mxu0 0.0
        %831 = vmatpush2.msra.mxu0 0.0
        %832 = vmatprep.subr.mxu0 0.0
        %833 = vmatpush2.msra.mxu0 0.0
        %834 = vmatprep.subr.mxu0 0.0
        %835 = vmatpush2.msra.mxu0 0.0
        %836 = vmatprep.subr.mxu0 0.0
        %837 = vmatpush2.msra.mxu0 0.0
        %838 = vmatprep.subr.mxu0 0.0
        %839 = vmatpush2.msra.mxu0 0.0
        %840 = vmatprep.subr.mxu0 0.0
        %841 = vmatpush2.msra.mxu0 0.0
        %842 = vmatprep.subr.mxu0 0.0
        %843 = vmatpush2.msra.mxu0 0.0
        %844 = vmatprep.subr.mxu0 0.0
        %845 = vmatpush2.msra.mxu0 0.0
        %846 = vmatprep.subr.mxu0 0.0
        %847 = vmatpush2.msra.mxu0 0.0
        %848 = vmatprep.subr.mxu0 0.0
        %849 = vmatpush2.msra.mxu0 0.0
        %850 = vmatprep.subr.mxu0 0.0
        %851 = vmatpush2.msra.mxu0 0.0
        %852 = vmatprep.subr.mxu0 0.0
        %853 = vmatpush2.msra.mxu0 0.0
        %854 = vmatprep.subr.mxu0 0.0
        %855 = vmatpush2.msra.mxu0 0.0
        %856 = vmatprep.subr.mxu0 0.0
        %857 = vmatpush2.msra.mxu0 0.0
        %858 = vmatprep.mubr.f32.mxu0 0.0
        %859 = vmatmul.mubr.f32.gmra.mxu0 %v775
        %v860 = vpop.f32.mrf.mxu0
        %v861 = vadd.f32 0.0, %v860
        %v862 = vpop.f32.mrf.mxu0
        %863 = vmatprep.mubr.f32.mxu0 0.0
        %864 = vmatmul.mubr.f32.gmra.mxu0 %v776
        %v865 = vpop.f32.mrf.mxu0
        %v866 = vadd.f32 0.0, %v865
        %v867 = vpop.f32.mrf.mxu0
        %868 = vdwg.mxu0
        %v869 = vadd.f32 %v770, %v861
        %v870 = vadd.f32 %v771, %v866
        %s871 = scalar_lea.vmem %s1, 896
        %v872 = vld [vmem:[%s871] sm:$0xff]
        %v873 = vld [vmem:[%s871 + $0x8] sm:$0xff]
        %v874 = vld [vmem:[%s871 + $0x10] sm:$0xff]
        %v875 = vld [vmem:[%s871 + $0x18] sm:$0xff]
        %v876 = vld [vmem:[%s871 + $0x20] sm:$0xff]
        %v877 = vld [vmem:[%s871 + $0x28] sm:$0xff]
        %v878 = vld [vmem:[%s871 + $0x30] sm:$0xff]
        %v879 = vld [vmem:[%s871 + $0x38] sm:$0xff]
        %v880 = vld [vmem:[%s871 + $0x40] sm:$0xff]
        %v881 = vld [vmem:[%s871 + $0x48] sm:$0xff]
        %v882 = vld [vmem:[%s871 + $0x50] sm:$0xff]
        %v883 = vld [vmem:[%s871 + $0x58] sm:$0xff]
        %v884 = vld [vmem:[%s871 + $0x60] sm:$0xff]
        %v885 = vld [vmem:[%s871 + $0x68] sm:$0xff]
        %v886 = vld [vmem:[%s871 + $0x70] sm:$0xff]
        %v887 = vld [vmem:[%s871 + $0x78] sm:$0xff]
        %v890 = vrot.slane %v775, 1
        %v891 = vrot.slane %v776, 1
        %v892 = vsel %vm217, %v890, %v891
        %895 = vmatprep.subr.mxu0 0.0
        %896 = vmatpush1.msra.mxu0 %v887
        %897 = vmatprep.subr.mxu0 0.0
        %898 = vmatpush1.msra.mxu0 %v886
        %899 = vmatprep.subr.mxu0 0.0
        %900 = vmatpush1.msra.mxu0 %v885
        %901 = vmatprep.subr.mxu0 0.0
        %902 = vmatpush1.msra.mxu0 %v884
        %903 = vmatprep.subr.mxu0 0.0
        %904 = vmatpush1.msra.mxu0 %v883
        %905 = vmatprep.subr.mxu0 0.0
        %906 = vmatpush1.msra.mxu0 %v882
        %907 = vmatprep.subr.mxu0 0.0
        %908 = vmatpush1.msra.mxu0 %v881
        %909 = vmatprep.subr.mxu0 0.0
        %910 = vmatpush1.msra.mxu0 %v880
        %911 = vmatprep.subr.mxu0 0.0
        %912 = vmatpush1.msra.mxu0 %v879
        %913 = vmatprep.subr.mxu0 0.0
        %914 = vmatpush1.msra.mxu0 %v878
        %915 = vmatprep.subr.mxu0 0.0
        %916 = vmatpush1.msra.mxu0 %v877
        %917 = vmatprep.subr.mxu0 0.0
        %918 = vmatpush1.msra.mxu0 %v876
        %919 = vmatprep.subr.mxu0 0.0
        %920 = vmatpush1.msra.mxu0 %v875
        %921 = vmatprep.subr.mxu0 0.0
        %922 = vmatpush1.msra.mxu0 %v874
        %923 = vmatprep.subr.mxu0 0.0
        %924 = vmatpush1.msra.mxu0 %v873
        %925 = vmatprep.subr.mxu0 0.0
        %926 = vmatpush1.msra.mxu0 %v872
        %927 = vmatprep.subr.mxu0 0.0
        %928 = vmatpush2.msra.mxu0 0.0
        %929 = vmatprep.subr.mxu0 0.0
        %930 = vmatpush2.msra.mxu0 0.0
        %931 = vmatprep.subr.mxu0 0.0
        %932 = vmatpush2.msra.mxu0 0.0
        %933 = vmatprep.subr.mxu0 0.0
        %934 = vmatpush2.msra.mxu0 0.0
        %935 = vmatprep.subr.mxu0 0.0
        %936 = vmatpush2.msra.mxu0 0.0
        %937 = vmatprep.subr.mxu0 0.0
        %938 = vmatpush2.msra.mxu0 0.0
        %939 = vmatprep.subr.mxu0 0.0
        %940 = vmatpush2.msra.mxu0 0.0
        %941 = vmatprep.subr.mxu0 0.0
        %942 = vmatpush2.msra.mxu0 0.0
        %943 = vmatprep.subr.mxu0 0.0
        %944 = vmatpush2.msra.mxu0 0.0
        %945 = vmatprep.subr.mxu0 0.0
        %946 = vmatpush2.msra.mxu0 0.0
        %947 = vmatprep.subr.mxu0 0.0
        %948 = vmatpush2.msra.mxu0 0.0
        %949 = vmatprep.subr.mxu0 0.0
        %950 = vmatpush2.msra.mxu0 0.0
        %951 = vmatprep.subr.mxu0 0.0
        %952 = vmatpush2.msra.mxu0 0.0
        %953 = vmatprep.subr.mxu0 0.0
        %954 = vmatpush2.msra.mxu0 0.0
        %955 = vmatprep.subr.mxu0 0.0
        %956 = vmatpush2.msra.mxu0 0.0
        %957 = vmatprep.subr.mxu0 0.0
        %958 = vmatpush2.msra.mxu0 0.0
        %959 = vmatprep.mubr.f32.mxu0 0.0
        %960 = vmatmul.mubr.f32.gmra.mxu0 %v892
        %v961 = vpop.f32.mrf.mxu0
        %v962 = vadd.f32 0.0, %v961
        %v963 = vpop.f32.mrf.mxu0
        %964 = vmatprep.mubr.f32.mxu0 0.0
        %965 = vmatmul.mubr.f32.gmra.mxu0 %v891
        %v966 = vpop.f32.mrf.mxu0
        %v967 = vadd.f32 0.0, %v966
        %v968 = vpop.f32.mrf.mxu0
        %969 = vdwg.mxu0
        %v970 = vadd.f32 %v869, %v962
        %v971 = vadd.f32 %v870, %v967
        %s972 = scalar_lea.vmem %s1, 1024
        %v973 = vld [vmem:[%s972] sm:$0xff]
        %v974 = vld [vmem:[%s972 + $0x8] sm:$0xff]
        %v975 = vld [vmem:[%s972 + $0x10] sm:$0xff]
        %v976 = vld [vmem:[%s972 + $0x18] sm:$0xff]
        %v977 = vld [vmem:[%s972 + $0x20] sm:$0xff]
        %v978 = vld [vmem:[%s972 + $0x28] sm:$0xff]
        %v979 = vld [vmem:[%s972 + $0x30] sm:$0xff]
        %v980 = vld [vmem:[%s972 + $0x38] sm:$0xff]
        %v981 = vld [vmem:[%s972 + $0x40] sm:$0xff]
        %v982 = vld [vmem:[%s972 + $0x48] sm:$0xff]
        %v983 = vld [vmem:[%s972 + $0x50] sm:$0xff]
        %v984 = vld [vmem:[%s972 + $0x58] sm:$0xff]
        %v985 = vld [vmem:[%s972 + $0x60] sm:$0xff]
        %v986 = vld [vmem:[%s972 + $0x68] sm:$0xff]
        %v987 = vld [vmem:[%s972 + $0x70] sm:$0xff]
        %v988 = vld [vmem:[%s972 + $0x78] sm:$0xff]
        %v989 = vrot.slane %v775, 2
        %v990 = vrot.slane %v776, 2
        %v991 = vsel %vm390, %v989, %v990
        %994 = vmatprep.subr.mxu0 0.0
        %995 = vmatpush1.msra.mxu0 %v988
        %996 = vmatprep.subr.mxu0 0.0
        %997 = vmatpush1.msra.mxu0 %v987
        %998 = vmatprep.subr.mxu0 0.0
        %999 = vmatpush1.msra.mxu0 %v986
        %1000 = vmatprep.subr.mxu0 0.0
        %1001 = vmatpush1.msra.mxu0 %v985
        %1002 = vmatprep.subr.mxu0 0.0
        %1003 = vmatpush1.msra.mxu0 %v984
        %1004 = vmatprep.subr.mxu0 0.0
        %1005 = vmatpush1.msra.mxu0 %v983
        %1006 = vmatprep.subr.mxu0 0.0
        %1007 = vmatpush1.msra.mxu0 %v982
        %1008 = vmatprep.subr.mxu0 0.0
        %1009 = vmatpush1.msra.mxu0 %v981
        %1010 = vmatprep.subr.mxu0 0.0
        %1011 = vmatpush1.msra.mxu0 %v980
        %1012 = vmatprep.subr.mxu0 0.0
        %1013 = vmatpush1.msra.mxu0 %v979
        %1014 = vmatprep.subr.mxu0 0.0
        %1015 = vmatpush1.msra.mxu0 %v978
        %1016 = vmatprep.subr.mxu0 0.0
        %1017 = vmatpush1.msra.mxu0 %v977
        %1018 = vmatprep.subr.mxu0 0.0
        %1019 = vmatpush1.msra.mxu0 %v976
        %1020 = vmatprep.subr.mxu0 0.0
        %1021 = vmatpush1.msra.mxu0 %v975
        %1022 = vmatprep.subr.mxu0 0.0
        %1023 = vmatpush1.msra.mxu0 %v974
        %1024 = vmatprep.subr.mxu0 0.0
        %1025 = vmatpush1.msra.mxu0 %v973
        %1026 = vmatprep.subr.mxu0 0.0
        %1027 = vmatpush2.msra.mxu0 0.0
        %1028 = vmatprep.subr.mxu0 0.0
        %1029 = vmatpush2.msra.mxu0 0.0
        %1030 = vmatprep.subr.mxu0 0.0
        %1031 = vmatpush2.msra.mxu0 0.0
        %1032 = vmatprep.subr.mxu0 0.0
        %1033 = vmatpush2.msra.mxu0 0.0
        %1034 = vmatprep.subr.mxu0 0.0
        %1035 = vmatpush2.msra.mxu0 0.0
        %1036 = vmatprep.subr.mxu0 0.0
        %1037 = vmatpush2.msra.mxu0 0.0
        %1038 = vmatprep.subr.mxu0 0.0
        %1039 = vmatpush2.msra.mxu0 0.0
        %1040 = vmatprep.subr.mxu0 0.0
        %1041 = vmatpush2.msra.mxu0 0.0
        %1042 = vmatprep.subr.mxu0 0.0
        %1043 = vmatpush2.msra.mxu0 0.0
        %1044 = vmatprep.subr.mxu0 0.0
        %1045 = vmatpush2.msra.mxu0 0.0
        %1046 = vmatprep.subr.mxu0 0.0
        %1047 = vmatpush2.msra.mxu0 0.0
        %1048 = vmatprep.subr.mxu0 0.0
        %1049 = vmatpush2.msra.mxu0 0.0
        %1050 = vmatprep.subr.mxu0 0.0
        %1051 = vmatpush2.msra.mxu0 0.0
        %1052 = vmatprep.subr.mxu0 0.0
        %1053 = vmatpush2.msra.mxu0 0.0
        %1054 = vmatprep.subr.mxu0 0.0
        %1055 = vmatpush2.msra.mxu0 0.0
        %1056 = vmatprep.subr.mxu0 0.0
        %1057 = vmatpush2.msra.mxu0 0.0
        %1058 = vmatprep.mubr.f32.mxu0 0.0
        %1059 = vmatmul.mubr.f32.gmra.mxu0 %v991
        %v1060 = vpop.f32.mrf.mxu0
        %v1061 = vadd.f32 0.0, %v1060
        %v1062 = vpop.f32.mrf.mxu0
        %1063 = vmatprep.mubr.f32.mxu0 0.0
        %1064 = vmatmul.mubr.f32.gmra.mxu0 %v990
        %v1065 = vpop.f32.mrf.mxu0
        %v1066 = vadd.f32 0.0, %v1065
        %v1067 = vpop.f32.mrf.mxu0
        %1068 = vdwg.mxu0
        %v1069 = vadd.f32 %v970, %v1061
        %v1070 = vadd.f32 %v971, %v1066
        %v1072 = vlaneseq
        %v1073 = vshrl.u32 %v1072, 7
        %v1074 = vsub.s32 0, %v1073
        %v1075 = vrot.slane %v171, %v1074
        %v1077 = vadd.f32 %v1069, %v1075
        %v1078 = vadd.f32 %v1070, %v1075
        %v1079 = vmax.f32 %v1077, 0.0
        %v1080 = vmax.f32 %v1078, 0.0
        %s1081 = scalar_lea.vmem %s170, %s178
        %1082 = vst [vmem:[%s1081] sm:$0xff] %v1079
        %1083 = vst [vmem:[%s1081 + $0x8] sm:$0x3] %v1080
      $region37: #{forward.10} parent=31 // loop_footer
        %s177 = sadd.s32 1, %s173
      $region38: #{forward.10} parent=31 // loop_footer_branch
        %172 = sbr.rel target = $region34
      $region39: #{forward.10} parent=31 // loop_exit
        _
      %p1084 = scmp.lt.s32.totalorder %s14, 1
      %s1085 = scalar_select %p1084, %s14, 1
      %s1086 = smul.addr %s1085, 20
      %s1087 = smul.addr %s1086, 8
      %s1088 = scalar_lea.vmem %s3, %s1087
      // Predicated region
      $region40: #{forward.10} parent=31 // pred_check
        %p1089 = pneg %p100
      $region41: #{forward.10} parent=31 // pred_check_branch
        %1091 = sbr.rel (%p1089) target = $region43
      $region42: #{forward.10} parent=31 // pred_region
        _
      $region43: #{forward.10} parent=31 // pred_fallthru
        _
    $region32: #{forward.10} parent=5 // pred_fallthru
      _
    %p1092 = scmp.le.s32.totalorder 2, %s9
    // Predicated region
    $region44: #{forward.10} parent=5 // pred_check
      %p1093 = pneg %p1092
    $region45: #{forward.10} parent=5 // pred_check_branch
      %1095 = sbr.rel (%p1093) target = $region47
    $region46: #{forward.10} parent=5 // pred_region
      %s1096 = ssub.s32 %s9, 2
      // Predicated region
      $region48: #{forward.10} parent=46 // pred_check
        %p1097 = pneg %p106
      $region49: #{forward.10} parent=46 // pred_check_branch
        %1099 = sbr.rel (%p1097) target = $region51
      $region50: #{forward.10} parent=46 // pred_region
        %p1100 = scmp.lt.s32.totalorder %s15, 1
        %s1101 = scalar_select %p1100, %s15, 1
        %s1102 = smul.addr %s1101, 20
        %s1103 = smul.addr %s1102, 8
        %s1104 = scalar_lea.vmem %s3, %s1103
      $region51: #{forward.10} parent=46 // pred_fallthru
        _
    $region47: #{forward.10} parent=5 // pred_fallthru
      _
  $region6: #{forward.10} parent=0 // loop_footer
    %s13 = sadd.s32 1, %s9
  $region7: #{forward.10} parent=0 // loop_footer_branch
    %8 = sbr.rel target = $region3
  $region8: #{forward.10} parent=0 // loop_exit
    _

// kernel: forward.12
$region0: #{forward.12}
  #allocation0 [shape = 'u32[]', space=smem, size = 0x4, offset = 0x4, fixed_abs, tag = 'smem constant byte address 0x4 - core index']
  #allocation1 [shape = 'u32[144,128]{1,0:T(1,128)}', space=vmem, size = 0x12000, scoped, tag = 'internal scratch']
  %s0 = inlined_call_operand.vmem [shape: f32[2,8,4,2,128], index: 0, kind: input, shape index: {}]
  %s1 = inlined_call_operand.vmem [shape: f32[2,4,4,128], index: 1, kind: output, shape index: {}]
  %s2 = sld [smem:[#allocation0]]
  $region44: #{forward.12} parent=0
    _
  %s4 = ssub.s32 1, %s2
  %s5 = scalar_select 0, %s4, %s2
  loop: start=0, step=1, limit=4
  $region2: #{forward.12} parent=0 // loop_pre_header
    _
  $region3: #{forward.12} parent=0 // loop_header
    %s7 = sphi 0, %s11
    %p8 = scmp.ge.s32.totalorder %s7, 4
    %s17 = sphi 0, %s19
    %s20 = sphi 0, %s17
    %s21 = sphi 0, %s20
    %s37 = sphi 0, %s21
    %s43 = sphi 0, %s45
    %s46 = sphi 0, %s43
    %s47 = sphi 0, %s46
    %s63 = sphi 0, %s47
  $region4: #{forward.12} parent=0 // loop_header_branch
    %10 = sbr.rel (%p8) target = $region8
  $region5: #{forward.12} parent=0 // loop_body
    %s12 = ssub.s32 %s7, 1
    %s13 = ssub.s32 %s7, 2
    %s14 = sadd.s32 %s7, 1
    %s15 = ssub.s32 %s7, %s14
    %p16 = scmp.eq.s32.totalorder %s15, 0
    %s18 = sadd.s32 %s17, 1
    %s19 = scalar_select %p16, %s17, %s18
    %p22 = pneg %p16
    %p23 = scmp.eq.s32.totalorder %s7, 1
    %p24 = por %p22, %p23
    %p25 = scmp.ne.s32.totalorder %s17, %s20
    %p26 = scmp.eq.s32.totalorder %s7, 0
    %p27 = por %p25, %p26
    %p28 = scmp.ne.s32.totalorder %s17, %s20
    %p29 = scmp.eq.s32.totalorder %s12, 1
    %p30 = por %p28, %p29
    %p31 = scmp.ne.s32.totalorder %s20, %s21
    %p32 = scmp.eq.s32.totalorder %s12, 0
    %p33 = por %p31, %p32
    %p34 = scmp.ne.s32.totalorder %s20, %s21
    %p35 = scmp.eq.s32.totalorder %s13, 1
    %p36 = por %p34, %p35
    %p38 = scmp.ne.s32.totalorder %s21, %s37
    %p39 = scmp.eq.s32.totalorder %s13, 0
    %p40 = por %p38, %p39
    %s41 = ssub.s32 %s7, %s14
    %p42 = scmp.eq.s32.totalorder %s41, 0
    %s44 = sadd.s32 %s43, 1
    %s45 = scalar_select %p42, %s43, %s44
    %p48 = pneg %p42
    %p49 = scmp.eq.s32.totalorder %s7, 1
    %p50 = por %p48, %p49
    %p51 = scmp.ne.s32.totalorder %s43, %s46
    %p52 = scmp.eq.s32.totalorder %s7, 0
    %p53 = por %p51, %p52
    %p54 = scmp.ne.s32.totalorder %s43, %s46
    %p55 = scmp.eq.s32.totalorder %s12, 1
    %p56 = por %p54, %p55
    %p57 = scmp.ne.s32.totalorder %s46, %s47
    %p58 = scmp.eq.s32.totalorder %s12, 0
    %p59 = por %p57, %p58
    %p60 = scmp.ne.s32.totalorder %s46, %s47
    %p61 = scmp.eq.s32.totalorder %s13, 1
    %p62 = por %p60, %p61
    %p64 = scmp.ne.s32.totalorder %s47, %s63
    %p65 = scmp.eq.s32.totalorder %s13, 0
    %p66 = por %p64, %p65
    %p67 = scmp.le.s32.totalorder 1, %s7
    %p68 = scmp.lt.s32.totalorder %s7, 3
    %p69 = pnand %p67, %p68
    %p70 = pneg %p69
    // Predicated region
    $region9: #{forward.12} parent=5 // pred_check
      _
    $region10: #{forward.12} parent=5 // pred_check_branch
      %72 = sbr.rel (%p69) target = $region12
    $region11: #{forward.12} parent=5 // pred_region
      %s73 = ssub.s32 %s7, 1
    $region12: #{forward.12} parent=5 // pred_fallthru
      _
    %p74 = scmp.lt.s32.totalorder %s7, 2
    // Predicated region
    $region13: #{forward.12} parent=5 // pred_check
      %p75 = pneg %p74
    $region14: #{forward.12} parent=5 // pred_check_branch
      %77 = sbr.rel (%p75) target = $region16
    $region15: #{forward.12} parent=5 // pred_region
      // Predicated region
      $region17: #{forward.12} parent=15 // pred_check
        %p78 = pneg %p27
      $region18: #{forward.12} parent=15 // pred_check_branch
        %80 = sbr.rel (%p78) target = $region20
      $region19: #{forward.12} parent=15 // pred_region
        %p81 = scmp.lt.s32.totalorder %s7, 1
        %s82 = scalar_select %p81, %s7, 1
        %s83 = smul.addr %s82, 32
        %s84 = smul.addr %s83, 2
        %s85 = scalar_lea.vmem %s0, %s84
      $region20: #{forward.12} parent=15 // pred_fallthru
        _
    $region16: #{forward.12} parent=5 // pred_fallthru
      _
    %p86 = scmp.le.s32.totalorder 1, %s7
    %p87 = scmp.lt.s32.totalorder %s7, 3
    %p88 = pnand %p86, %p87
    %p89 = pneg %p88
    // Predicated region
    $region21: #{forward.12} parent=5 // pred_check
      _
    $region22: #{forward.12} parent=5 // pred_check_branch
      %91 = sbr.rel (%p88) target = $region24
    $region23: #{forward.12} parent=5 // pred_region
      %s92 = ssub.s32 %s7, 1
      %p93 = scmp.lt.s32.totalorder %s12, 1
      %s94 = scalar_select %p93, %s12, 1
      %s95 = smul.addr %s94, 32
      %s96 = smul.addr %s95, 2
      %s97 = scalar_lea.vmem %s0, %s96
      %p98 = pneg %p33
      %p99 = pneg %p30
      %p100 = pneg %p59
      %p101 = pneg %p56
      %p102 = scmp.lt.s32.totalorder %s12, 1
      %s103 = scalar_select %p102, %s12, 1
      %s104 = smul.addr %s103, 4
      %s105 = smul.addr %s104, 4
      %s106 = scalar_lea.vmem %s1, %s105
      %p107 = scmp.lt.s32.totalorder %s12, 1
      %s108 = scalar_select %p107, %s12, 1
      %s109 = smul.addr %s108, 32
      %s110 = smul.addr %s109, 2
      %s111 = scalar_lea.vmem %s0, %s110
      %p112 = scmp.lt.s32.totalorder %s12, 1
      %s113 = scalar_select %p112, %s12, 1
      %s114 = smul.addr %s113, 4
      %s115 = smul.addr %s114, 4
      %s116 = scalar_lea.vmem %s1, %s115
      loop: start=0, step=1, limit=4
      $region25: #{forward.12} parent=23 // loop_pre_header
        _
      $region26: #{forward.12} parent=23 // loop_header
        %s118 = sphi 0, %s122
        %p119 = scmp.ge.s32.totalorder %s118, 4
      $region27: #{forward.12} parent=23 // loop_header_branch
        %121 = sbr.rel (%p119) target = $region31
      $region28: #{forward.12} parent=23 // loop_body
        %s123 = smul.u32 %s118, 2
        %s124 = smul.u32 %s123, 8
        %s125 = scalar_lea.vmem %s111, %s124
        %v126 = vld [vmem:[%s125] sm:$0x3]
        %v127 = vld [vmem:[%s125 + $0x2] sm:$0x3]
        %v128 = vld [vmem:[%s125 + $0x4] sm:$0x3]
        %v129 = vld [vmem:[%s125 + $0x6] sm:$0x3]
        %s130 = sadd.s32 %s123, 1
        %s131 = smul.u32 %s130, 8
        %s132 = scalar_lea.vmem %s111, %s131
        %v133 = vld [vmem:[%s132] sm:$0x3]
        %v134 = vld [vmem:[%s132 + $0x2] sm:$0x3]
        %v135 = vld [vmem:[%s132 + $0x4] sm:$0x3]
        %v136 = vld [vmem:[%s132 + $0x6] sm:$0x3]
        %v137 = vmax.f32 %v126, %v133
        %v138 = vmax.f32 %v127, %v134
        %v139 = vmax.f32 %v128, %v135
        %v140 = vmax.f32 %v129, %v136
        %vm141 = vcmask 1041408
        %v142 = vsel %vm141, %v137, -inf
        %v143 = vrot.slane %v142, 4
        %v144 = vmax.f32 %v142, %v143
        %v145 = vrot.slane %v144, 2
        %v146 = vmax.f32 %v144, %v145
        %v147 = vrot.slane %v146, 1
        %v148 = vmax.f32 %v146, %v147
        %v149 = vsel %vm141, %v138, -inf
        %v150 = vrot.slane %v149, 4
        %v151 = vmax.f32 %v149, %v150
        %v152 = vrot.slane %v151, 2
        %v153 = vmax.f32 %v151, %v152
        %v154 = vrot.slane %v153, 1
        %v155 = vmax.f32 %v153, %v154
        %v156 = vsel %vm141, %v139, -inf
        %v157 = vrot.slane %v156, 4
        %v158 = vmax.f32 %v156, %v157
        %v159 = vrot.slane %v158, 2
        %v160 = vmax.f32 %v158, %v159
        %v161 = vrot.slane %v160, 1
        %v162 = vmax.f32 %v160, %v161
        %v163 = vsel %vm141, %v140, -inf
        %v164 = vrot.slane %v163, 4
        %v165 = vmax.f32 %v163, %v164
        %v166 = vrot.slane %v165, 2
        %v167 = vmax.f32 %v165, %v166
        %v168 = vrot.slane %v167, 1
        %v169 = vmax.f32 %v167, %v168
        %vm174 = vcmask 1041409
        %v175 = vsel %vm174, %v155, %v148
        %vm176 = vcmask 1042434
        %v177 = vsel %vm176, %v162, %v175
        %vm178 = vcmask 1043459
        %v179 = vsel %vm178, %v169, %v177
        %s181 = smul.u32 %s118, 4
        %s182 = scalar_lea.vmem %s116, %s181
        %183 = vst [vmem:[%s182] sm:$0xf] %v179
      $region29: #{forward.12} parent=23 // loop_footer
        %s122 = sadd.s32 1, %s118
      $region30: #{forward.12} parent=23 // loop_footer_branch
        %117 = sbr.rel target = $region26
      $region31: #{forward.12} parent=23 // loop_exit
        _
      %p184 = scmp.lt.s32.totalorder %s12, 1
      %s185 = scalar_select %p184, %s12, 1
      %s186 = smul.addr %s185, 4
      %s187 = smul.addr %s186, 4
      %s188 = scalar_lea.vmem %s1, %s187
      // Predicated region
      $region32: #{forward.12} parent=23 // pred_check
        %p189 = pneg %p56
      $region33: #{forward.12} parent=23 // pred_check_branch
        %191 = sbr.rel (%p189) target = $region35
      $region34: #{forward.12} parent=23 // pred_region
        _
      $region35: #{forward.12} parent=23 // pred_fallthru
        _
    $region24: #{forward.12} parent=5 // pred_fallthru
      _
    %p192 = scmp.le.s32.totalorder 2, %s7
    // Predicated region
    $region36: #{forward.12} parent=5 // pred_check
      %p193 = pneg %p192
    $region37: #{forward.12} parent=5 // pred_check_branch
      %195 = sbr.rel (%p193) target = $region39
    $region38: #{forward.12} parent=5 // pred_region
      %s196 = ssub.s32 %s7, 2
      // Predicated region
      $region40: #{forward.12} parent=38 // pred_check
        %p197 = pneg %p62
      $region41: #{forward.12} parent=38 // pred_check_branch
        %199 = sbr.rel (%p197) target = $region43
      $region42: #{forward.12} parent=38 // pred_region
        %p200 = scmp.lt.s32.totalorder %s13, 1
        %s201 = scalar_select %p200, %s13, 1
        %s202 = smul.addr %s201, 4
        %s203 = smul.addr %s202, 4
        %s204 = scalar_lea.vmem %s1, %s203
      $region43: #{forward.12} parent=38 // pred_fallthru
        _
    $region39: #{forward.12} parent=5 // pred_fallthru
      _
  $region6: #{forward.12} parent=0 // loop_footer
    %s11 = sadd.s32 1, %s7
  $region7: #{forward.12} parent=0 // loop_footer_branch
    %6 = sbr.rel target = $region3
  $region8: #{forward.12} parent=0 // loop_exit
    _

// kernel: forward.11
$region0: #{forward.11}
  #allocation0 [shape = 'u32[]', space=smem, size = 0x4, offset = 0x4, fixed_abs, tag = 'smem constant byte address 0x4 - core index']
  #allocation1 [shape = 'u32[144,128]{1,0:T(1,128)}', space=vmem, size = 0x12000, scoped, tag = 'internal scratch']
  %s0 = inlined_call_operand.vmem [shape: f32[2,10,10,128], index: 0, kind: input, shape index: {}]
  %s1 = inlined_call_operand.vmem [shape: f32[9,128,128], index: 1, kind: input, shape index: {}]
  %s2 = inlined_call_operand.vmem [shape: f32[1,128], index: 2, kind: input, shape index: {}]
  %s3 = inlined_call_operand.vmem [shape: f32[2,8,8,128], index: 3, kind: output, shape index: {}]
  %s4 = sld [smem:[#allocation0]]
  $region52: #{forward.11} parent=0
    _
  %s6 = ssub.s32 1, %s4
  %s7 = scalar_select 0, %s6, %s4
  loop: start=0, step=1, limit=4
  $region2: #{forward.11} parent=0 // loop_pre_header
    _
  $region3: #{forward.11} parent=0 // loop_header
    %s9 = sphi 0, %s13
    %p10 = scmp.ge.s32.totalorder %s9, 4
    %s19 = sphi 0, %s21
    %s22 = sphi 0, %s19
    %s23 = sphi 0, %s22
    %s39 = sphi 0, %s23
    %s43 = sphi 0, %s43
    %s45 = sphi 0, %s43
    %s46 = sphi 0, %s45
    %s60 = sphi 0, %s46
    %s64 = sphi 0, %s64
    %s66 = sphi 0, %s64
    %s67 = sphi 0, %s66
    %s81 = sphi 0, %s67
    %s87 = sphi 0, %s89
    %s90 = sphi 0, %s87
    %s91 = sphi 0, %s90
    %s107 = sphi 0, %s91
  $region4: #{forward.11} parent=0 // loop_header_branch
    %12 = sbr.rel (%p10) target = $region8
  $region5: #{forward.11} parent=0 // loop_body
    %s14 = ssub.s32 %s9, 1
    %s15 = ssub.s32 %s9, 2
    %s16 = sadd.s32 %s9, 1
    %s17 = ssub.s32 %s9, %s16
    %p18 = scmp.eq.s32.totalorder %s17, 0
    %s20 = sadd.s32 %s19, 1
    %s21 = scalar_select %p18, %s19, %s20
    %p24 = pneg %p18
    %p25 = scmp.eq.s32.totalorder %s9, 1
    %p26 = por %p24, %p25
    %p27 = scmp.ne.s32.totalorder %s19, %s22
    %p28 = scmp.eq.s32.totalorder %s9, 0
    %p29 = por %p27, %p28
    %p30 = scmp.ne.s32.totalorder %s19, %s22
    %p31 = scmp.eq.s32.totalorder %s14, 1
    %p32 = por %p30, %p31
    %p33 = scmp.ne.s32.totalorder %s22, %s23
    %p34 = scmp.eq.s32.totalorder %s14, 0
    %p35 = por %p33, %p34
    %p36 = scmp.ne.s32.totalorder %s22, %s23
    %p37 = scmp.eq.s32.totalorder %s15, 1
    %p38 = por %p36, %p37
    %p40 = scmp.ne.s32.totalorder %s23, %s39
    %p41 = scmp.eq.s32.totalorder %s15, 0
    %p42 = por %p40, %p41
    %s44 = sadd.s32 %s43, 1
    %p47 = scmp.eq.s32.totalorder %s9, 1
    %p48 = scmp.ne.s32.totalorder %s43, %s45
    %p49 = scmp.eq.s32.totalorder %s9, 0
    %p50 = por %p48, %p49
    %p51 = scmp.ne.s32.totalorder %s43, %s45
    %p52 = scmp.eq.s32.totalorder %s14, 1
    %p53 = por %p51, %p52
    %p54 = scmp.ne.s32.totalorder %s45, %s46
    %p55 = scmp.eq.s32.totalorder %s14, 0
    %p56 = por %p54, %p55
    %p57 = scmp.ne.s32.totalorder %s45, %s46
    %p58 = scmp.eq.s32.totalorder %s15, 1
    %p59 = por %p57, %p58
    %p61 = scmp.ne.s32.totalorder %s46, %s60
    %p62 = scmp.eq.s32.totalorder %s15, 0
    %p63 = por %p61, %p62
    %s65 = sadd.s32 %s64, 1
    %p68 = scmp.eq.s32.totalorder %s9, 1
    %p69 = scmp.ne.s32.totalorder %s64, %s66
    %p70 = scmp.eq.s32.totalorder %s9, 0
    %p71 = por %p69, %p70
    %p72 = scmp.ne.s32.totalorder %s64, %s66
    %p73 = scmp.eq.s32.totalorder %s14, 1
    %p74 = por %p72, %p73
    %p75 = scmp.ne.s32.totalorder %s66, %s67
    %p76 = scmp.eq.s32.totalorder %s14, 0
    %p77 = por %p75, %p76
    %p78 = scmp.ne.s32.totalorder %s66, %s67
    %p79 = scmp.eq.s32.totalorder %s15, 1
    %p80 = por %p78, %p79
    %p82 = scmp.ne.s32.totalorder %s67, %s81
    %p83 = scmp.eq.s32.totalorder %s15, 0
    %p84 = por %p82, %p83
    %s85 = ssub.s32 %s9, %s16
    %p86 = scmp.eq.s32.totalorder %s85, 0
    %s88 = sadd.s32 %s87, 1
    %s89 = scalar_select %p86, %s87, %s88
    %p92 = pneg %p86
    %p93 = scmp.eq.s32.totalorder %s9, 1
    %p94 = por %p92, %p93
    %p95 = scmp.ne.s32.totalorder %s87, %s90
    %p96 = scmp.eq.s32.totalorder %s9, 0
    %p97 = por %p95, %p96
    %p98 = scmp.ne.s32.totalorder %s87, %s90
    %p99 = scmp.eq.s32.totalorder %s14, 1
    %p100 = por %p98, %p99
    %p101 = scmp.ne.s32.totalorder %s90, %s91
    %p102 = scmp.eq.s32.totalorder %s14, 0
    %p103 = por %p101, %p102
    %p104 = scmp.ne.s32.totalorder %s90, %s91
    %p105 = scmp.eq.s32.totalorder %s15, 1
    %p106 = por %p104, %p105
    %p108 = scmp.ne.s32.totalorder %s91, %s107
    %p109 = scmp.eq.s32.totalorder %s15, 0
    %p110 = por %p108, %p109
    %p111 = scmp.le.s32.totalorder 1, %s9
    %p112 = scmp.lt.s32.totalorder %s9, 3
    %p113 = pnand %p111, %p112
    %p114 = pneg %p113
    // Predicated region
    $region9: #{forward.11} parent=5 // pred_check
      _
    $region10: #{forward.11} parent=5 // pred_check_branch
      %116 = sbr.rel (%p113) target = $region12
    $region11: #{forward.11} parent=5 // pred_region
      %s117 = ssub.s32 %s9, 1
      // Predicated region
      $region13: #{forward.11} parent=11 // pred_check
        %p118 = pneg %p56
      $region14: #{forward.11} parent=11 // pred_check_branch
        %120 = sbr.rel (%p118) target = $region16
      $region15: #{forward.11} parent=11 // pred_region
        _
      $region16: #{forward.11} parent=11 // pred_fallthru
        _
      // Predicated region
      $region17: #{forward.11} parent=11 // pred_check
        %p121 = pneg %p77
      $region18: #{forward.11} parent=11 // pred_check_branch
        %123 = sbr.rel (%p121) target = $region20
      $region19: #{forward.11} parent=11 // pred_region
        _
      $region20: #{forward.11} parent=11 // pred_fallthru
        _
    $region12: #{forward.11} parent=5 // pred_fallthru
      _
    %p124 = scmp.lt.s32.totalorder %s9, 2
    // Predicated region
    $region21: #{forward.11} parent=5 // pred_check
      %p125 = pneg %p124
    $region22: #{forward.11} parent=5 // pred_check_branch
      %127 = sbr.rel (%p125) target = $region24
    $region23: #{forward.11} parent=5 // pred_region
      // Predicated region
      $region25: #{forward.11} parent=23 // pred_check
        %p128 = pneg %p29
      $region26: #{forward.11} parent=23 // pred_check_branch
        %130 = sbr.rel (%p128) target = $region28
      $region27: #{forward.11} parent=23 // pred_region
        %p131 = scmp.lt.s32.totalorder %s9, 1
        %s132 = scalar_select %p131, %s9, 1
        %s133 = smul.addr %s132, 20
        %s134 = smul.addr %s133, 8
        %s135 = scalar_lea.vmem %s0, %s134
      $region28: #{forward.11} parent=23 // pred_fallthru
        _
    $region24: #{forward.11} parent=5 // pred_fallthru
      _
    %p136 = scmp.le.s32.totalorder 1, %s9
    %p137 = scmp.lt.s32.totalorder %s9, 3
    %p138 = pnand %p136, %p137
    %p139 = pneg %p138
    // Predicated region
    $region29: #{forward.11} parent=5 // pred_check
      _
    $region30: #{forward.11} parent=5 // pred_check_branch
      %141 = sbr.rel (%p138) target = $region32
    $region31: #{forward.11} parent=5 // pred_region
      %s142 = ssub.s32 %s9, 1
      %p143 = scmp.lt.s32.totalorder %s14, 1
      %s144 = scalar_select %p143, %s14, 1
      %s145 = smul.addr %s144, 20
      %s146 = smul.addr %s145, 8
      %s147 = scalar_lea.vmem %s0, %s146
      %p148 = pneg %p35
      %p149 = pneg %p32
      %p150 = pneg %p56
      %p151 = pneg %p53
      %p152 = pneg %p77
      %p153 = pneg %p74
      %p154 = pneg %p103
      %p155 = pneg %p100
      %p156 = scmp.lt.s32.totalorder %s14, 1
      %s157 = scalar_select %p156, %s14, 1
      %s158 = smul.addr %s157, 8
      %s159 = smul.addr %s158, 8
      %s160 = scalar_lea.vmem %s3, %s159
      %p161 = scmp.lt.s32.totalorder %s14, 1
      %s162 = scalar_select %p161, %s14, 1
      %s163 = smul.addr %s162, 20
      %s164 = smul.addr %s163, 8
      %s165 = scalar_lea.vmem %s0, %s164
      %p166 = scmp.lt.s32.totalorder %s14, 1
      %s167 = scalar_select %p166, %s14, 1
      %s168 = smul.addr %s167, 8
      %s169 = smul.addr %s168, 8
      %s170 = scalar_lea.vmem %s3, %s169
      %v171 = vld [vmem:[%s2] sm:$0x1]
      loop: start=0, step=1, limit=8
      $region33: #{forward.11} parent=31 // loop_pre_header
        _
      $region34: #{forward.11} parent=31 // loop_header
        %s173 = sphi 0, %s177
        %p174 = scmp.ge.s32.totalorder %s173, 8
      $region35: #{forward.11} parent=31 // loop_header_branch
        %176 = sbr.rel (%p174) target = $region39
      $region36: #{forward.11} parent=31 // loop_body
        %s178 = smul.u32 %s173, 16
        %s179 = scalar_lea.vmem %s165, %s178
        %v180 = vld [vmem:[%s179] sm:$0xff]
        %v181 = vld [vmem:[%s179 + $0x8] sm:$0x3]
        %v182 = vld [vmem:[%s1] sm:$0xff]
        %v183 = vld [vmem:[%s1 + $0x8] sm:$0xff]
        %v184 = vld [vmem:[%s1 + $0x10] sm:$0xff]
        %v185 = vld [vmem:[%s1 + $0x18] sm:$0xff]
        %v186 = vld [vmem:[%s1 + $0x20] sm:$0xff]
        %v187 = vld [vmem:[%s1 + $0x28] sm:$0xff]
        %v188 = vld [vmem:[%s1 + $0x30] sm:$0xff]
        %v189 = vld [vmem:[%s1 + $0x38] sm:$0xff]
        %v190 = vld [vmem:[%s1 + $0x40] sm:$0xff]
        %v191 = vld [vmem:[%s1 + $0x48] sm:$0xff]
        %v192 = vld [vmem:[%s1 + $0x50] sm:$0xff]
        %v193 = vld [vmem:[%s1 + $0x58] sm:$0xff]
        %v194 = vld [vmem:[%s1 + $0x60] sm:$0xff]
        %v195 = vld [vmem:[%s1 + $0x68] sm:$0xff]
        %v196 = vld [vmem:[%s1 + $0x70] sm:$0xff]
        %v197 = vld [vmem:[%s1 + $0x78] sm:$0xff]
        %s198 = scalar_lea.vmem %s1, 128
        %v199 = vld [vmem:[%s198] sm:$0xff]
        %v200 = vld [vmem:[%s198 + $0x8] sm:$0xff]
        %v201 = vld [vmem:[%s198 + $0x10] sm:$0xff]
        %v202 = vld [vmem:[%s198 + $0x18] sm:$0xff]
        %v203 = vld [vmem:[%s198 + $0x20] sm:$0xff]
        %v204 = vld [vmem:[%s198 + $0x28] sm:$0xff]
        %v205 = vld [vmem:[%s198 + $0x30] sm:$0xff]
        %v206 = vld [vmem:[%s198 + $0x38] sm:$0xff]
        %v207 = vld [vmem:[%s198 + $0x40] sm:$0xff]
        %v208 = vld [vmem:[%s198 + $0x48] sm:$0xff]
        %v209 = vld [vmem:[%s198 + $0x50] sm:$0xff]
        %v210 = vld [vmem:[%s198 + $0x58] sm:$0xff]
        %v211 = vld [vmem:[%s198 + $0x60] sm:$0xff]
        %v212 = vld [vmem:[%s198 + $0x68] sm:$0xff]
        %v213 = vld [vmem:[%s198 + $0x70] sm:$0xff]
        %v214 = vld [vmem:[%s198 + $0x78] sm:$0xff]
        %vm217 = vcmask 1046528
        %v218 = vrot.slane %v180, 1
        %v219 = vrot.slane %v181, 1
        %v220 = vsel %vm217, %v218, %v219
        %222 = vmatprep.subr.mxu0 0.0
        %223 = vmatpush1.msra.mxu0 %v214
        %224 = vmatprep.subr.mxu0 0.0
        %225 = vmatpush1.msra.mxu0 %v213
        %226 = vmatprep.subr.mxu0 0.0
        %227 = vmatpush1.msra.mxu0 %v212
        %228 = vmatprep.subr.mxu0 0.0
        %229 = vmatpush1.msra.mxu0 %v211
        %230 = vmatprep.subr.mxu0 0.0
        %231 = vmatpush1.msra.mxu0 %v210
        %232 = vmatprep.subr.mxu0 0.0
        %233 = vmatpush1.msra.mxu0 %v209
        %234 = vmatprep.subr.mxu0 0.0
        %235 = vmatpush1.msra.mxu0 %v208
        %236 = vmatprep.subr.mxu0 0.0
        %237 = vmatpush1.msra.mxu0 %v207
        %238 = vmatprep.subr.mxu0 0.0
        %239 = vmatpush1.msra.mxu0 %v206
        %240 = vmatprep.subr.mxu0 0.0
        %241 = vmatpush1.msra.mxu0 %v205
        %242 = vmatprep.subr.mxu0 0.0
        %243 = vmatpush1.msra.mxu0 %v204
        %244 = vmatprep.subr.mxu0 0.0
        %245 = vmatpush1.msra.mxu0 %v203
        %246 = vmatprep.subr.mxu0 0.0
        %247 = vmatpush1.msra.mxu0 %v202
        %248 = vmatprep.subr.mxu0 0.0
        %249 = vmatpush1.msra.mxu0 %v201
        %250 = vmatprep.subr.mxu0 0.0
        %251 = vmatpush1.msra.mxu0 %v200
        %252 = vmatprep.subr.mxu0 0.0
        %253 = vmatpush1.msra.mxu0 %v199
        %254 = vmatprep.subr.mxu0 0.0
        %255 = vmatpush2.msra.mxu0 0.0
        %256 = vmatprep.subr.mxu0 0.0
        %257 = vmatpush2.msra.mxu0 0.0
        %258 = vmatprep.subr.mxu0 0.0
        %259 = vmatpush2.msra.mxu0 0.0
        %260 = vmatprep.subr.mxu0 0.0
        %261 = vmatpush2.msra.mxu0 0.0
        %262 = vmatprep.subr.mxu0 0.0
        %263 = vmatpush2.msra.mxu0 0.0
        %264 = vmatprep.subr.mxu0 0.0
        %265 = vmatpush2.msra.mxu0 0.0
        %266 = vmatprep.subr.mxu0 0.0
        %267 = vmatpush2.msra.mxu0 0.0
        %268 = vmatprep.subr.mxu0 0.0
        %269 = vmatpush2.msra.mxu0 0.0
        %270 = vmatprep.subr.mxu0 0.0
        %271 = vmatpush2.msra.mxu0 0.0
        %272 = vmatprep.subr.mxu0 0.0
        %273 = vmatpush2.msra.mxu0 0.0
        %274 = vmatprep.subr.mxu0 0.0
        %275 = vmatpush2.msra.mxu0 0.0
        %276 = vmatprep.subr.mxu0 0.0
        %277 = vmatpush2.msra.mxu0 0.0
        %278 = vmatprep.subr.mxu0 0.0
        %279 = vmatpush2.msra.mxu0 0.0
        %280 = vmatprep.subr.mxu0 0.0
        %281 = vmatpush2.msra.mxu0 0.0
        %282 = vmatprep.subr.mxu0 0.0
        %283 = vmatpush2.msra.mxu0 0.0
        %284 = vmatprep.subr.mxu0 0.0
        %285 = vmatpush2.msra.mxu0 0.0
        %286 = vmatprep.mubr.f32.mxu0 0.0
        %287 = vmatmul.mubr.f32.gmra.mxu0 %v220
        %v288 = vpop.f32.mrf.mxu0
        %v289 = vadd.f32 0.0, %v288
        %v290 = vpop.f32.mrf.mxu0
        %291 = vdwg.mxu0
        %292 = vmatprep.subr.mxu0 0.0
        %293 = vmatpush1.msra.mxu0 %v197
        %294 = vmatprep.subr.mxu0 0.0
        %295 = vmatpush1.msra.mxu0 %v196
        %296 = vmatprep.subr.mxu0 0.0
        %297 = vmatpush1.msra.mxu0 %v195
        %298 = vmatprep.subr.mxu0 0.0
        %299 = vmatpush1.msra.mxu0 %v194
        %300 = vmatprep.subr.mxu0 0.0
        %301 = vmatpush1.msra.mxu0 %v193
        %302 = vmatprep.subr.mxu0 0.0
        %303 = vmatpush1.msra.mxu0 %v192
        %304 = vmatprep.subr.mxu0 0.0
        %305 = vmatpush1.msra.mxu0 %v191
        %306 = vmatprep.subr.mxu0 0.0
        %307 = vmatpush1.msra.mxu0 %v190
        %308 = vmatprep.subr.mxu0 0.0
        %309 = vmatpush1.msra.mxu0 %v189
        %310 = vmatprep.subr.mxu0 0.0
        %311 = vmatpush1.msra.mxu0 %v188
        %312 = vmatprep.subr.mxu0 0.0
        %313 = vmatpush1.msra.mxu0 %v187
        %314 = vmatprep.subr.mxu0 0.0
        %315 = vmatpush1.msra.mxu0 %v186
        %316 = vmatprep.subr.mxu0 0.0
        %317 = vmatpush1.msra.mxu0 %v185
        %318 = vmatprep.subr.mxu0 0.0
        %319 = vmatpush1.msra.mxu0 %v184
        %320 = vmatprep.subr.mxu0 0.0
        %321 = vmatpush1.msra.mxu0 %v183
        %322 = vmatprep.subr.mxu0 0.0
        %323 = vmatpush1.msra.mxu0 %v182
        %324 = vmatprep.subr.mxu0 0.0
        %325 = vmatpush2.msra.mxu0 0.0
        %326 = vmatprep.subr.mxu0 0.0
        %327 = vmatpush2.msra.mxu0 0.0
        %328 = vmatprep.subr.mxu0 0.0
        %329 = vmatpush2.msra.mxu0 0.0
        %330 = vmatprep.subr.mxu0 0.0
        %331 = vmatpush2.msra.mxu0 0.0
        %332 = vmatprep.subr.mxu0 0.0
        %333 = vmatpush2.msra.mxu0 0.0
        %334 = vmatprep.subr.mxu0 0.0
        %335 = vmatpush2.msra.mxu0 0.0
        %336 = vmatprep.subr.mxu0 0.0
        %337 = vmatpush2.msra.mxu0 0.0
        %338 = vmatprep.subr.mxu0 0.0
        %339 = vmatpush2.msra.mxu0 0.0
        %340 = vmatprep.subr.mxu0 0.0
        %341 = vmatpush2.msra.mxu0 0.0
        %342 = vmatprep.subr.mxu0 0.0
        %343 = vmatpush2.msra.mxu0 0.0
        %344 = vmatprep.subr.mxu0 0.0
        %345 = vmatpush2.msra.mxu0 0.0
        %346 = vmatprep.subr.mxu0 0.0
        %347 = vmatpush2.msra.mxu0 0.0
        %348 = vmatprep.subr.mxu0 0.0
        %349 = vmatpush2.msra.mxu0 0.0
        %350 = vmatprep.subr.mxu0 0.0
        %351 = vmatpush2.msra.mxu0 0.0
        %352 = vmatprep.subr.mxu0 0.0
        %353 = vmatpush2.msra.mxu0 0.0
        %354 = vmatprep.subr.mxu0 0.0
        %355 = vmatpush2.msra.mxu0 0.0
        %356 = vmatprep.mubr.f32.mxu0 0.0
        %357 = vmatmul.mubr.f32.gmra.mxu0 %v180
        %v358 = vpop.f32.mrf.mxu0
        %v359 = vadd.f32 %v289, %v358
        %v360 = vpop.f32.mrf.mxu0
        %361 = vdwg.mxu0
        %s362 = scalar_lea.vmem %s1, 256
        %v363 = vld [vmem:[%s362] sm:$0xff]
        %v364 = vld [vmem:[%s362 + $0x8] sm:$0xff]
        %v365 = vld [vmem:[%s362 + $0x10] sm:$0xff]
        %v366 = vld [vmem:[%s362 + $0x18] sm:$0xff]
        %v367 = vld [vmem:[%s362 + $0x20] sm:$0xff]
        %v368 = vld [vmem:[%s362 + $0x28] sm:$0xff]
        %v369 = vld [vmem:[%s362 + $0x30] sm:$0xff]
        %v370 = vld [vmem:[%s362 + $0x38] sm:$0xff]
        %v371 = vld [vmem:[%s362 + $0x40] sm:$0xff]
        %v372 = vld [vmem:[%s362 + $0x48] sm:$0xff]
        %v373 = vld [vmem:[%s362 + $0x50] sm:$0xff]
        %v374 = vld [vmem:[%s362 + $0x58] sm:$0xff]
        %v375 = vld [vmem:[%s362 + $0x60] sm:$0xff]
        %v376 = vld [vmem:[%s362 + $0x68] sm:$0xff]
        %v377 = vld [vmem:[%s362 + $0x70] sm:$0xff]
        %v378 = vld [vmem:[%s362 + $0x78] sm:$0xff]
        %vm379 = vcmask 1045504
        %v380 = vrot.slane %v180, 2
        %v381 = vrot.slane %v181, 2
        %v382 = vsel %vm379, %v380, %v381
        %384 = vmatprep.subr.mxu0 0.0
        %385 = vmatpush1.msra.mxu0 %v378
        %386 = vmatprep.subr.mxu0 0.0
        %387 = vmatpush1.msra.mxu0 %v377
        %388 = vmatprep.subr.mxu0 0.0
        %389 = vmatpush1.msra.mxu0 %v376
        %390 = vmatprep.subr.mxu0 0.0
        %391 = vmatpush1.msra.mxu0 %v375
        %392 = vmatprep.subr.mxu0 0.0
        %393 = vmatpush1.msra.mxu0 %v374
        %394 = vmatprep.subr.mxu0 0.0
        %395 = vmatpush1.msra.mxu0 %v373
        %396 = vmatprep.subr.mxu0 0.0
        %397 = vmatpush1.msra.mxu0 %v372
        %398 = vmatprep.subr.mxu0 0.0
        %399 = vmatpush1.msra.mxu0 %v371
        %400 = vmatprep.subr.mxu0 0.0
        %401 = vmatpush1.msra.mxu0 %v370
        %402 = vmatprep.subr.mxu0 0.0
        %403 = vmatpush1.msra.mxu0 %v369
        %404 = vmatprep.subr.mxu0 0.0
        %405 = vmatpush1.msra.mxu0 %v368
        %406 = vmatprep.subr.mxu0 0.0
        %407 = vmatpush1.msra.mxu0 %v367
        %408 = vmatprep.subr.mxu0 0.0
        %409 = vmatpush1.msra.mxu0 %v366
        %410 = vmatprep.subr.mxu0 0.0
        %411 = vmatpush1.msra.mxu0 %v365
        %412 = vmatprep.subr.mxu0 0.0
        %413 = vmatpush1.msra.mxu0 %v364
        %414 = vmatprep.subr.mxu0 0.0
        %415 = vmatpush1.msra.mxu0 %v363
        %416 = vmatprep.subr.mxu0 0.0
        %417 = vmatpush2.msra.mxu0 0.0
        %418 = vmatprep.subr.mxu0 0.0
        %419 = vmatpush2.msra.mxu0 0.0
        %420 = vmatprep.subr.mxu0 0.0
        %421 = vmatpush2.msra.mxu0 0.0
        %422 = vmatprep.subr.mxu0 0.0
        %423 = vmatpush2.msra.mxu0 0.0
        %424 = vmatprep.subr.mxu0 0.0
        %425 = vmatpush2.msra.mxu0 0.0
        %426 = vmatprep.subr.mxu0 0.0
        %427 = vmatpush2.msra.mxu0 0.0
        %428 = vmatprep.subr.mxu0 0.0
        %429 = vmatpush2.msra.mxu0 0.0
        %430 = vmatprep.subr.mxu0 0.0
        %431 = vmatpush2.msra.mxu0 0.0
        %432 = vmatprep.subr.mxu0 0.0
        %433 = vmatpush2.msra.mxu0 0.0
        %434 = vmatprep.subr.mxu0 0.0
        %435 = vmatpush2.msra.mxu0 0.0
        %436 = vmatprep.subr.mxu0 0.0
        %437 = vmatpush2.msra.mxu0 0.0
        %438 = vmatprep.subr.mxu0 0.0
        %439 = vmatpush2.msra.mxu0 0.0
        %440 = vmatprep.subr.mxu0 0.0
        %441 = vmatpush2.msra.mxu0 0.0
        %442 = vmatprep.subr.mxu0 0.0
        %443 = vmatpush2.msra.mxu0 0.0
        %444 = vmatprep.subr.mxu0 0.0
        %445 = vmatpush2.msra.mxu0 0.0
        %446 = vmatprep.subr.mxu0 0.0
        %447 = vmatpush2.msra.mxu0 0.0
        %448 = vmatprep.mubr.f32.mxu0 0.0
        %449 = vmatmul.mubr.f32.gmra.mxu0 %v382
        %v450 = vpop.f32.mrf.mxu0
        %v451 = vadd.f32 0.0, %v450
        %v452 = vpop.f32.mrf.mxu0
        %453 = vdwg.mxu0
        %v454 = vadd.f32 %v359, %v451
        %s455 = sadd.s32 %s173, 1
        %s456 = smul.u32 %s455, 16
        %s457 = scalar_lea.vmem %s165, %s456
        %v458 = vld [vmem:[%s457] sm:$0xff]
        %v459 = vld [vmem:[%s457 + $0x8] sm:$0x3]
        %s460 = scalar_lea.vmem %s1, 384
        %v461 = vld [vmem:[%s460] sm:$0xff]
        %v462 = vld [vmem:[%s460 + $0x8] sm:$0xff]
        %v463 = vld [vmem:[%s460 + $0x10] sm:$0xff]
        %v464 = vld [vmem:[%s460 + $0x18] sm:$0xff]
        %v465 = vld [vmem:[%s460 + $0x20] sm:$0xff]
        %v466 = vld [vmem:[%s460 + $0x28] sm:$0xff]
        %v467 = vld [vmem:[%s460 + $0x30] sm:$0xff]
        %v468 = vld [vmem:[%s460 + $0x38] sm:$0xff]
        %v469 = vld [vmem:[%s460 + $0x40] sm:$0xff]
        %v470 = vld [vmem:[%s460 + $0x48] sm:$0xff]
        %v471 = vld [vmem:[%s460 + $0x50] sm:$0xff]
        %v472 = vld [vmem:[%s460 + $0x58] sm:$0xff]
        %v473 = vld [vmem:[%s460 + $0x60] sm:$0xff]
        %v474 = vld [vmem:[%s460 + $0x68] sm:$0xff]
        %v475 = vld [vmem:[%s460 + $0x70] sm:$0xff]
        %v476 = vld [vmem:[%s460 + $0x78] sm:$0xff]
        %477 = vmatprep.subr.mxu0 0.0
        %478 = vmatpush1.msra.mxu0 %v476
        %479 = vmatprep.subr.mxu0 0.0
        %480 = vmatpush1.msra.mxu0 %v475
        %481 = vmatprep.subr.mxu0 0.0
        %482 = vmatpush1.msra.mxu0 %v474
        %483 = vmatprep.subr.mxu0 0.0
        %484 = vmatpush1.msra.mxu0 %v473
        %485 = vmatprep.subr.mxu0 0.0
        %486 = vmatpush1.msra.mxu0 %v472
        %487 = vmatprep.subr.mxu0 0.0
        %488 = vmatpush1.msra.mxu0 %v471
        %489 = vmatprep.subr.mxu0 0.0
        %490 = vmatpush1.msra.mxu0 %v470
        %491 = vmatprep.subr.mxu0 0.0
        %492 = vmatpush1.msra.mxu0 %v469
        %493 = vmatprep.subr.mxu0 0.0
        %494 = vmatpush1.msra.mxu0 %v468
        %495 = vmatprep.subr.mxu0 0.0
        %496 = vmatpush1.msra.mxu0 %v467
        %497 = vmatprep.subr.mxu0 0.0
        %498 = vmatpush1.msra.mxu0 %v466
        %499 = vmatprep.subr.mxu0 0.0
        %500 = vmatpush1.msra.mxu0 %v465
        %501 = vmatprep.subr.mxu0 0.0
        %502 = vmatpush1.msra.mxu0 %v464
        %503 = vmatprep.subr.mxu0 0.0
        %504 = vmatpush1.msra.mxu0 %v463
        %505 = vmatprep.subr.mxu0 0.0
        %506 = vmatpush1.msra.mxu0 %v462
        %507 = vmatprep.subr.mxu0 0.0
        %508 = vmatpush1.msra.mxu0 %v461
        %509 = vmatprep.subr.mxu0 0.0
        %510 = vmatpush2.msra.mxu0 0.0
        %511 = vmatprep.subr.mxu0 0.0
        %512 = vmatpush2.msra.mxu0 0.0
        %513 = vmatprep.subr.mxu0 0.0
        %514 = vmatpush2.msra.mxu0 0.0
        %515 = vmatprep.subr.mxu0 0.0
        %516 = vmatpush2.msra.mxu0 0.0
        %517 = vmatprep.subr.mxu0 0.0
        %518 = vmatpush2.msra.mxu0 0.0
        %519 = vmatprep.subr.mxu0 0.0
        %520 = vmatpush2.msra.mxu0 0.0
        %521 = vmatprep.subr.mxu0 0.0
        %522 = vmatpush2.msra.mxu0 0.0
        %523 = vmatprep.subr.mxu0 0.0
        %524 = vmatpush2.msra.mxu0 0.0
        %525 = vmatprep.subr.mxu0 0.0
        %526 = vmatpush2.msra.mxu0 0.0
        %527 = vmatprep.subr.mxu0 0.0
        %528 = vmatpush2.msra.mxu0 0.0
        %529 = vmatprep.subr.mxu0 0.0
        %530 = vmatpush2.msra.mxu0 0.0
        %531 = vmatprep.subr.mxu0 0.0
        %532 = vmatpush2.msra.mxu0 0.0
        %533 = vmatprep.subr.mxu0 0.0
        %534 = vmatpush2.msra.mxu0 0.0
        %535 = vmatprep.subr.mxu0 0.0
        %536 = vmatpush2.msra.mxu0 0.0
        %537 = vmatprep.subr.mxu0 0.0
        %538 = vmatpush2.msra.mxu0 0.0
        %539 = vmatprep.subr.mxu0 0.0
        %540 = vmatpush2.msra.mxu0 0.0
        %541 = vmatprep.mubr.f32.mxu0 0.0
        %542 = vmatmul.mubr.f32.gmra.mxu0 %v458
        %v543 = vpop.f32.mrf.mxu0
        %v544 = vadd.f32 0.0, %v543
        %v545 = vpop.f32.mrf.mxu0
        %546 = vdwg.mxu0
        %v547 = vadd.f32 %v454, %v544
        %s548 = scalar_lea.vmem %s1, 512
        %v549 = vld [vmem:[%s548] sm:$0xff]
        %v550 = vld [vmem:[%s548 + $0x8] sm:$0xff]
        %v551 = vld [vmem:[%s548 + $0x10] sm:$0xff]
        %v552 = vld [vmem:[%s548 + $0x18] sm:$0xff]
        %v553 = vld [vmem:[%s548 + $0x20] sm:$0xff]
        %v554 = vld [vmem:[%s548 + $0x28] sm:$0xff]
        %v555 = vld [vmem:[%s548 + $0x30] sm:$0xff]
        %v556 = vld [vmem:[%s548 + $0x38] sm:$0xff]
        %v557 = vld [vmem:[%s548 + $0x40] sm:$0xff]
        %v558 = vld [vmem:[%s548 + $0x48] sm:$0xff]
        %v559 = vld [vmem:[%s548 + $0x50] sm:$0xff]
        %v560 = vld [vmem:[%s548 + $0x58] sm:$0xff]
        %v561 = vld [vmem:[%s548 + $0x60] sm:$0xff]
        %v562 = vld [vmem:[%s548 + $0x68] sm:$0xff]
        %v563 = vld [vmem:[%s548 + $0x70] sm:$0xff]
        %v564 = vld [vmem:[%s548 + $0x78] sm:$0xff]
        %v567 = vrot.slane %v458, 1
        %v568 = vrot.slane %v459, 1
        %v569 = vsel %vm217, %v567, %v568
        %571 = vmatprep.subr.mxu0 0.0
        %572 = vmatpush1.msra.mxu0 %v564
        %573 = vmatprep.subr.mxu0 0.0
        %574 = vmatpush1.msra.mxu0 %v563
        %575 = vmatprep.subr.mxu0 0.0
        %576 = vmatpush1.msra.mxu0 %v562
        %577 = vmatprep.subr.mxu0 0.0
        %578 = vmatpush1.msra.mxu0 %v561
        %579 = vmatprep.subr.mxu0 0.0
        %580 = vmatpush1.msra.mxu0 %v560
        %581 = vmatprep.subr.mxu0 0.0
        %582 = vmatpush1.msra.mxu0 %v559
        %583 = vmatprep.subr.mxu0 0.0
        %584 = vmatpush1.msra.mxu0 %v558
        %585 = vmatprep.subr.mxu0 0.0
        %586 = vmatpush1.msra.mxu0 %v557
        %587 = vmatprep.subr.mxu0 0.0
        %588 = vmatpush1.msra.mxu0 %v556
        %589 = vmatprep.subr.mxu0 0.0
        %590 = vmatpush1.msra.mxu0 %v555
        %591 = vmatprep.subr.mxu0 0.0
        %592 = vmatpush1.msra.mxu0 %v554
        %593 = vmatprep.subr.mxu0 0.0
        %594 = vmatpush1.msra.mxu0 %v553
        %595 = vmatprep.subr.mxu0 0.0
        %596 = vmatpush1.msra.mxu0 %v552
        %597 = vmatprep.subr.mxu0 0.0
        %598 = vmatpush1.msra.mxu0 %v551
        %599 = vmatprep.subr.mxu0 0.0
        %600 = vmatpush1.msra.mxu0 %v550
        %601 = vmatprep.subr.mxu0 0.0
        %602 = vmatpush1.msra.mxu0 %v549
        %603 = vmatprep.subr.mxu0 0.0
        %604 = vmatpush2.msra.mxu0 0.0
        %605 = vmatprep.subr.mxu0 0.0
        %606 = vmatpush2.msra.mxu0 0.0
        %607 = vmatprep.subr.mxu0 0.0
        %608 = vmatpush2.msra.mxu0 0.0
        %609 = vmatprep.subr.mxu0 0.0
        %610 = vmatpush2.msra.mxu0 0.0
        %611 = vmatprep.subr.mxu0 0.0
        %612 = vmatpush2.msra.mxu0 0.0
        %613 = vmatprep.subr.mxu0 0.0
        %614 = vmatpush2.msra.mxu0 0.0
        %615 = vmatprep.subr.mxu0 0.0
        %616 = vmatpush2.msra.mxu0 0.0
        %617 = vmatprep.subr.mxu0 0.0
        %618 = vmatpush2.msra.mxu0 0.0
        %619 = vmatprep.subr.mxu0 0.0
        %620 = vmatpush2.msra.mxu0 0.0
        %621 = vmatprep.subr.mxu0 0.0
        %622 = vmatpush2.msra.mxu0 0.0
        %623 = vmatprep.subr.mxu0 0.0
        %624 = vmatpush2.msra.mxu0 0.0
        %625 = vmatprep.subr.mxu0 0.0
        %626 = vmatpush2.msra.mxu0 0.0
        %627 = vmatprep.subr.mxu0 0.0
        %628 = vmatpush2.msra.mxu0 0.0
        %629 = vmatprep.subr.mxu0 0.0
        %630 = vmatpush2.msra.mxu0 0.0
        %631 = vmatprep.subr.mxu0 0.0
        %632 = vmatpush2.msra.mxu0 0.0
        %633 = vmatprep.subr.mxu0 0.0
        %634 = vmatpush2.msra.mxu0 0.0
        %635 = vmatprep.mubr.f32.mxu0 0.0
        %636 = vmatmul.mubr.f32.gmra.mxu0 %v569
        %v637 = vpop.f32.mrf.mxu0
        %v638 = vadd.f32 0.0, %v637
        %v639 = vpop.f32.mrf.mxu0
        %640 = vdwg.mxu0
        %v641 = vadd.f32 %v547, %v638
        %s642 = scalar_lea.vmem %s1, 640
        %v643 = vld [vmem:[%s642] sm:$0xff]
        %v644 = vld [vmem:[%s642 + $0x8] sm:$0xff]
        %v645 = vld [vmem:[%s642 + $0x10] sm:$0xff]
        %v646 = vld [vmem:[%s642 + $0x18] sm:$0xff]
        %v647 = vld [vmem:[%s642 + $0x20] sm:$0xff]
        %v648 = vld [vmem:[%s642 + $0x28] sm:$0xff]
        %v649 = vld [vmem:[%s642 + $0x30] sm:$0xff]
        %v650 = vld [vmem:[%s642 + $0x38] sm:$0xff]
        %v651 = vld [vmem:[%s642 + $0x40] sm:$0xff]
        %v652 = vld [vmem:[%s642 + $0x48] sm:$0xff]
        %v653 = vld [vmem:[%s642 + $0x50] sm:$0xff]
        %v654 = vld [vmem:[%s642 + $0x58] sm:$0xff]
        %v655 = vld [vmem:[%s642 + $0x60] sm:$0xff]
        %v656 = vld [vmem:[%s642 + $0x68] sm:$0xff]
        %v657 = vld [vmem:[%s642 + $0x70] sm:$0xff]
        %v658 = vld [vmem:[%s642 + $0x78] sm:$0xff]
        %v659 = vrot.slane %v458, 2
        %v660 = vrot.slane %v459, 2
        %v661 = vsel %vm379, %v659, %v660
        %663 = vmatprep.subr.mxu0 0.0
        %664 = vmatpush1.msra.mxu0 %v658
        %665 = vmatprep.subr.mxu0 0.0
        %666 = vmatpush1.msra.mxu0 %v657
        %667 = vmatprep.subr.mxu0 0.0
        %668 = vmatpush1.msra.mxu0 %v656
        %669 = vmatprep.subr.mxu0 0.0
        %670 = vmatpush1.msra.mxu0 %v655
        %671 = vmatprep.subr.mxu0 0.0
        %672 = vmatpush1.msra.mxu0 %v654
        %673 = vmatprep.subr.mxu0 0.0
        %674 = vmatpush1.msra.mxu0 %v653
        %675 = vmatprep.subr.mxu0 0.0
        %676 = vmatpush1.msra.mxu0 %v652
        %677 = vmatprep.subr.mxu0 0.0
        %678 = vmatpush1.msra.mxu0 %v651
        %679 = vmatprep.subr.mxu0 0.0
        %680 = vmatpush1.msra.mxu0 %v650
        %681 = vmatprep.subr.mxu0 0.0
        %682 = vmatpush1.msra.mxu0 %v649
        %683 = vmatprep.subr.mxu0 0.0
        %684 = vmatpush1.msra.mxu0 %v648
        %685 = vmatprep.subr.mxu0 0.0
        %686 = vmatpush1.msra.mxu0 %v647
        %687 = vmatprep.subr.mxu0 0.0
        %688 = vmatpush1.msra.mxu0 %v646
        %689 = vmatprep.subr.mxu0 0.0
        %690 = vmatpush1.msra.mxu0 %v645
        %691 = vmatprep.subr.mxu0 0.0
        %692 = vmatpush1.msra.mxu0 %v644
        %693 = vmatprep.subr.mxu0 0.0
        %694 = vmatpush1.msra.mxu0 %v643
        %695 = vmatprep.subr.mxu0 0.0
        %696 = vmatpush2.msra.mxu0 0.0
        %697 = vmatprep.subr.mxu0 0.0
        %698 = vmatpush2.msra.mxu0 0.0
        %699 = vmatprep.subr.mxu0 0.0
        %700 = vmatpush2.msra.mxu0 0.0
        %701 = vmatprep.subr.mxu0 0.0
        %702 = vmatpush2.msra.mxu0 0.0
        %703 = vmatprep.subr.mxu0 0.0
        %704 = vmatpush2.msra.mxu0 0.0
        %705 = vmatprep.subr.mxu0 0.0
        %706 = vmatpush2.msra.mxu0 0.0
        %707 = vmatprep.subr.mxu0 0.0
        %708 = vmatpush2.msra.mxu0 0.0
        %709 = vmatprep.subr.mxu0 0.0
        %710 = vmatpush2.msra.mxu0 0.0
        %711 = vmatprep.subr.mxu0 0.0
        %712 = vmatpush2.msra.mxu0 0.0
        %713 = vmatprep.subr.mxu0 0.0
        %714 = vmatpush2.msra.mxu0 0.0
        %715 = vmatprep.subr.mxu0 0.0
        %716 = vmatpush2.msra.mxu0 0.0
        %717 = vmatprep.subr.mxu0 0.0
        %718 = vmatpush2.msra.mxu0 0.0
        %719 = vmatprep.subr.mxu0 0.0
        %720 = vmatpush2.msra.mxu0 0.0
        %721 = vmatprep.subr.mxu0 0.0
        %722 = vmatpush2.msra.mxu0 0.0
        %723 = vmatprep.subr.mxu0 0.0
        %724 = vmatpush2.msra.mxu0 0.0
        %725 = vmatprep.subr.mxu0 0.0
        %726 = vmatpush2.msra.mxu0 0.0
        %727 = vmatprep.mubr.f32.mxu0 0.0
        %728 = vmatmul.mubr.f32.gmra.mxu0 %v661
        %v729 = vpop.f32.mrf.mxu0
        %v730 = vadd.f32 0.0, %v729
        %v731 = vpop.f32.mrf.mxu0
        %732 = vdwg.mxu0
        %v733 = vadd.f32 %v641, %v730
        %s734 = sadd.s32 %s173, 2
        %s735 = smul.u32 %s734, 16
        %s736 = scalar_lea.vmem %s165, %s735
        %v737 = vld [vmem:[%s736] sm:$0xff]
        %v738 = vld [vmem:[%s736 + $0x8] sm:$0x3]
        %s739 = scalar_lea.vmem %s1, 768
        %v740 = vld [vmem:[%s739] sm:$0xff]
        %v741 = vld [vmem:[%s739 + $0x8] sm:$0xff]
        %v742 = vld [vmem:[%s739 + $0x10] sm:$0xff]
        %v743 = vld [vmem:[%s739 + $0x18] sm:$0xff]
        %v744 = vld [vmem:[%s739 + $0x20] sm:$0xff]
        %v745 = vld [vmem:[%s739 + $0x28] sm:$0xff]
        %v746 = vld [vmem:[%s739 + $0x30] sm:$0xff]
        %v747 = vld [vmem:[%s739 + $0x38] sm:$0xff]
        %v748 = vld [vmem:[%s739 + $0x40] sm:$0xff]
        %v749 = vld [vmem:[%s739 + $0x48] sm:$0xff]
        %v750 = vld [vmem:[%s739 + $0x50] sm:$0xff]
        %v751 = vld [vmem:[%s739 + $0x58] sm:$0xff]
        %v752 = vld [vmem:[%s739 + $0x60] sm:$0xff]
        %v753 = vld [vmem:[%s739 + $0x68] sm:$0xff]
        %v754 = vld [vmem:[%s739 + $0x70] sm:$0xff]
        %v755 = vld [vmem:[%s739 + $0x78] sm:$0xff]
        %756 = vmatprep.subr.mxu0 0.0
        %757 = vmatpush1.msra.mxu0 %v755
        %758 = vmatprep.subr.mxu0 0.0
        %759 = vmatpush1.msra.mxu0 %v754
        %760 = vmatprep.subr.mxu0 0.0
        %761 = vmatpush1.msra.mxu0 %v753
        %762 = vmatprep.subr.mxu0 0.0
        %763 = vmatpush1.msra.mxu0 %v752
        %764 = vmatprep.subr.mxu0 0.0
        %765 = vmatpush1.msra.mxu0 %v751
        %766 = vmatprep.subr.mxu0 0.0
        %767 = vmatpush1.msra.mxu0 %v750
        %768 = vmatprep.subr.mxu0 0.0
        %769 = vmatpush1.msra.mxu0 %v749
        %770 = vmatprep.subr.mxu0 0.0
        %771 = vmatpush1.msra.mxu0 %v748
        %772 = vmatprep.subr.mxu0 0.0
        %773 = vmatpush1.msra.mxu0 %v747
        %774 = vmatprep.subr.mxu0 0.0
        %775 = vmatpush1.msra.mxu0 %v746
        %776 = vmatprep.subr.mxu0 0.0
        %777 = vmatpush1.msra.mxu0 %v745
        %778 = vmatprep.subr.mxu0 0.0
        %779 = vmatpush1.msra.mxu0 %v744
        %780 = vmatprep.subr.mxu0 0.0
        %781 = vmatpush1.msra.mxu0 %v743
        %782 = vmatprep.subr.mxu0 0.0
        %783 = vmatpush1.msra.mxu0 %v742
        %784 = vmatprep.subr.mxu0 0.0
        %785 = vmatpush1.msra.mxu0 %v741
        %786 = vmatprep.subr.mxu0 0.0
        %787 = vmatpush1.msra.mxu0 %v740
        %788 = vmatprep.subr.mxu0 0.0
        %789 = vmatpush2.msra.mxu0 0.0
        %790 = vmatprep.subr.mxu0 0.0
        %791 = vmatpush2.msra.mxu0 0.0
        %792 = vmatprep.subr.mxu0 0.0
        %793 = vmatpush2.msra.mxu0 0.0
        %794 = vmatprep.subr.mxu0 0.0
        %795 = vmatpush2.msra.mxu0 0.0
        %796 = vmatprep.subr.mxu0 0.0
        %797 = vmatpush2.msra.mxu0 0.0
        %798 = vmatprep.subr.mxu0 0.0
        %799 = vmatpush2.msra.mxu0 0.0
        %800 = vmatprep.subr.mxu0 0.0
        %801 = vmatpush2.msra.mxu0 0.0
        %802 = vmatprep.subr.mxu0 0.0
        %803 = vmatpush2.msra.mxu0 0.0
        %804 = vmatprep.subr.mxu0 0.0
        %805 = vmatpush2.msra.mxu0 0.0
        %806 = vmatprep.subr.mxu0 0.0
        %807 = vmatpush2.msra.mxu0 0.0
        %808 = vmatprep.subr.mxu0 0.0
        %809 = vmatpush2.msra.mxu0 0.0
        %810 = vmatprep.subr.mxu0 0.0
        %811 = vmatpush2.msra.mxu0 0.0
        %812 = vmatprep.subr.mxu0 0.0
        %813 = vmatpush2.msra.mxu0 0.0
        %814 = vmatprep.subr.mxu0 0.0
        %815 = vmatpush2.msra.mxu0 0.0
        %816 = vmatprep.subr.mxu0 0.0
        %817 = vmatpush2.msra.mxu0 0.0
        %818 = vmatprep.subr.mxu0 0.0
        %819 = vmatpush2.msra.mxu0 0.0
        %820 = vmatprep.mubr.f32.mxu0 0.0
        %821 = vmatmul.mubr.f32.gmra.mxu0 %v737
        %v822 = vpop.f32.mrf.mxu0
        %v823 = vadd.f32 0.0, %v822
        %v824 = vpop.f32.mrf.mxu0
        %825 = vdwg.mxu0
        %v826 = vadd.f32 %v733, %v823
        %s827 = scalar_lea.vmem %s1, 896
        %v828 = vld [vmem:[%s827] sm:$0xff]
        %v829 = vld [vmem:[%s827 + $0x8] sm:$0xff]
        %v830 = vld [vmem:[%s827 + $0x10] sm:$0xff]
        %v831 = vld [vmem:[%s827 + $0x18] sm:$0xff]
        %v832 = vld [vmem:[%s827 + $0x20] sm:$0xff]
        %v833 = vld [vmem:[%s827 + $0x28] sm:$0xff]
        %v834 = vld [vmem:[%s827 + $0x30] sm:$0xff]
        %v835 = vld [vmem:[%s827 + $0x38] sm:$0xff]
        %v836 = vld [vmem:[%s827 + $0x40] sm:$0xff]
        %v837 = vld [vmem:[%s827 + $0x48] sm:$0xff]
        %v838 = vld [vmem:[%s827 + $0x50] sm:$0xff]
        %v839 = vld [vmem:[%s827 + $0x58] sm:$0xff]
        %v840 = vld [vmem:[%s827 + $0x60] sm:$0xff]
        %v841 = vld [vmem:[%s827 + $0x68] sm:$0xff]
        %v842 = vld [vmem:[%s827 + $0x70] sm:$0xff]
        %v843 = vld [vmem:[%s827 + $0x78] sm:$0xff]
        %v846 = vrot.slane %v737, 1
        %v847 = vrot.slane %v738, 1
        %v848 = vsel %vm217, %v846, %v847
        %850 = vmatprep.subr.mxu0 0.0
        %851 = vmatpush1.msra.mxu0 %v843
        %852 = vmatprep.subr.mxu0 0.0
        %853 = vmatpush1.msra.mxu0 %v842
        %854 = vmatprep.subr.mxu0 0.0
        %855 = vmatpush1.msra.mxu0 %v841
        %856 = vmatprep.subr.mxu0 0.0
        %857 = vmatpush1.msra.mxu0 %v840
        %858 = vmatprep.subr.mxu0 0.0
        %859 = vmatpush1.msra.mxu0 %v839
        %860 = vmatprep.subr.mxu0 0.0
        %861 = vmatpush1.msra.mxu0 %v838
        %862 = vmatprep.subr.mxu0 0.0
        %863 = vmatpush1.msra.mxu0 %v837
        %864 = vmatprep.subr.mxu0 0.0
        %865 = vmatpush1.msra.mxu0 %v836
        %866 = vmatprep.subr.mxu0 0.0
        %867 = vmatpush1.msra.mxu0 %v835
        %868 = vmatprep.subr.mxu0 0.0
        %869 = vmatpush1.msra.mxu0 %v834
        %870 = vmatprep.subr.mxu0 0.0
        %871 = vmatpush1.msra.mxu0 %v833
        %872 = vmatprep.subr.mxu0 0.0
        %873 = vmatpush1.msra.mxu0 %v832
        %874 = vmatprep.subr.mxu0 0.0
        %875 = vmatpush1.msra.mxu0 %v831
        %876 = vmatprep.subr.mxu0 0.0
        %877 = vmatpush1.msra.mxu0 %v830
        %878 = vmatprep.subr.mxu0 0.0
        %879 = vmatpush1.msra.mxu0 %v829
        %880 = vmatprep.subr.mxu0 0.0
        %881 = vmatpush1.msra.mxu0 %v828
        %882 = vmatprep.subr.mxu0 0.0
        %883 = vmatpush2.msra.mxu0 0.0
        %884 = vmatprep.subr.mxu0 0.0
        %885 = vmatpush2.msra.mxu0 0.0
        %886 = vmatprep.subr.mxu0 0.0
        %887 = vmatpush2.msra.mxu0 0.0
        %888 = vmatprep.subr.mxu0 0.0
        %889 = vmatpush2.msra.mxu0 0.0
        %890 = vmatprep.subr.mxu0 0.0
        %891 = vmatpush2.msra.mxu0 0.0
        %892 = vmatprep.subr.mxu0 0.0
        %893 = vmatpush2.msra.mxu0 0.0
        %894 = vmatprep.subr.mxu0 0.0
        %895 = vmatpush2.msra.mxu0 0.0
        %896 = vmatprep.subr.mxu0 0.0
        %897 = vmatpush2.msra.mxu0 0.0
        %898 = vmatprep.subr.mxu0 0.0
        %899 = vmatpush2.msra.mxu0 0.0
        %900 = vmatprep.subr.mxu0 0.0
        %901 = vmatpush2.msra.mxu0 0.0
        %902 = vmatprep.subr.mxu0 0.0
        %903 = vmatpush2.msra.mxu0 0.0
        %904 = vmatprep.subr.mxu0 0.0
        %905 = vmatpush2.msra.mxu0 0.0
        %906 = vmatprep.subr.mxu0 0.0
        %907 = vmatpush2.msra.mxu0 0.0
        %908 = vmatprep.subr.mxu0 0.0
        %909 = vmatpush2.msra.mxu0 0.0
        %910 = vmatprep.subr.mxu0 0.0
        %911 = vmatpush2.msra.mxu0 0.0
        %912 = vmatprep.subr.mxu0 0.0
        %913 = vmatpush2.msra.mxu0 0.0
        %914 = vmatprep.mubr.f32.mxu0 0.0
        %915 = vmatmul.mubr.f32.gmra.mxu0 %v848
        %v916 = vpop.f32.mrf.mxu0
        %v917 = vadd.f32 0.0, %v916
        %v918 = vpop.f32.mrf.mxu0
        %919 = vdwg.mxu0
        %v920 = vadd.f32 %v826, %v917
        %s921 = scalar_lea.vmem %s1, 1024
        %v922 = vld [vmem:[%s921] sm:$0xff]
        %v923 = vld [vmem:[%s921 + $0x8] sm:$0xff]
        %v924 = vld [vmem:[%s921 + $0x10] sm:$0xff]
        %v925 = vld [vmem:[%s921 + $0x18] sm:$0xff]
        %v926 = vld [vmem:[%s921 + $0x20] sm:$0xff]
        %v927 = vld [vmem:[%s921 + $0x28] sm:$0xff]
        %v928 = vld [vmem:[%s921 + $0x30] sm:$0xff]
        %v929 = vld [vmem:[%s921 + $0x38] sm:$0xff]
        %v930 = vld [vmem:[%s921 + $0x40] sm:$0xff]
        %v931 = vld [vmem:[%s921 + $0x48] sm:$0xff]
        %v932 = vld [vmem:[%s921 + $0x50] sm:$0xff]
        %v933 = vld [vmem:[%s921 + $0x58] sm:$0xff]
        %v934 = vld [vmem:[%s921 + $0x60] sm:$0xff]
        %v935 = vld [vmem:[%s921 + $0x68] sm:$0xff]
        %v936 = vld [vmem:[%s921 + $0x70] sm:$0xff]
        %v937 = vld [vmem:[%s921 + $0x78] sm:$0xff]
        %v938 = vrot.slane %v737, 2
        %v939 = vrot.slane %v738, 2
        %v940 = vsel %vm379, %v938, %v939
        %942 = vmatprep.subr.mxu0 0.0
        %943 = vmatpush1.msra.mxu0 %v937
        %944 = vmatprep.subr.mxu0 0.0
        %945 = vmatpush1.msra.mxu0 %v936
        %946 = vmatprep.subr.mxu0 0.0
        %947 = vmatpush1.msra.mxu0 %v935
        %948 = vmatprep.subr.mxu0 0.0
        %949 = vmatpush1.msra.mxu0 %v934
        %950 = vmatprep.subr.mxu0 0.0
        %951 = vmatpush1.msra.mxu0 %v933
        %952 = vmatprep.subr.mxu0 0.0
        %953 = vmatpush1.msra.mxu0 %v932
        %954 = vmatprep.subr.mxu0 0.0
        %955 = vmatpush1.msra.mxu0 %v931
        %956 = vmatprep.subr.mxu0 0.0
        %957 = vmatpush1.msra.mxu0 %v930
        %958 = vmatprep.subr.mxu0 0.0
        %959 = vmatpush1.msra.mxu0 %v929
        %960 = vmatprep.subr.mxu0 0.0
        %961 = vmatpush1.msra.mxu0 %v928
        %962 = vmatprep.subr.mxu0 0.0
        %963 = vmatpush1.msra.mxu0 %v927
        %964 = vmatprep.subr.mxu0 0.0
        %965 = vmatpush1.msra.mxu0 %v926
        %966 = vmatprep.subr.mxu0 0.0
        %967 = vmatpush1.msra.mxu0 %v925
        %968 = vmatprep.subr.mxu0 0.0
        %969 = vmatpush1.msra.mxu0 %v924
        %970 = vmatprep.subr.mxu0 0.0
        %971 = vmatpush1.msra.mxu0 %v923
        %972 = vmatprep.subr.mxu0 0.0
        %973 = vmatpush1.msra.mxu0 %v922
        %974 = vmatprep.subr.mxu0 0.0
        %975 = vmatpush2.msra.mxu0 0.0
        %976 = vmatprep.subr.mxu0 0.0
        %977 = vmatpush2.msra.mxu0 0.0
        %978 = vmatprep.subr.mxu0 0.0
        %979 = vmatpush2.msra.mxu0 0.0
        %980 = vmatprep.subr.mxu0 0.0
        %981 = vmatpush2.msra.mxu0 0.0
        %982 = vmatprep.subr.mxu0 0.0
        %983 = vmatpush2.msra.mxu0 0.0
        %984 = vmatprep.subr.mxu0 0.0
        %985 = vmatpush2.msra.mxu0 0.0
        %986 = vmatprep.subr.mxu0 0.0
        %987 = vmatpush2.msra.mxu0 0.0
        %988 = vmatprep.subr.mxu0 0.0
        %989 = vmatpush2.msra.mxu0 0.0
        %990 = vmatprep.subr.mxu0 0.0
        %991 = vmatpush2.msra.mxu0 0.0
        %992 = vmatprep.subr.mxu0 0.0
        %993 = vmatpush2.msra.mxu0 0.0
        %994 = vmatprep.subr.mxu0 0.0
        %995 = vmatpush2.msra.mxu0 0.0
        %996 = vmatprep.subr.mxu0 0.0
        %997 = vmatpush2.msra.mxu0 0.0
        %998 = vmatprep.subr.mxu0 0.0
        %999 = vmatpush2.msra.mxu0 0.0
        %1000 = vmatprep.subr.mxu0 0.0
        %1001 = vmatpush2.msra.mxu0 0.0
        %1002 = vmatprep.subr.mxu0 0.0
        %1003 = vmatpush2.msra.mxu0 0.0
        %1004 = vmatprep.subr.mxu0 0.0
        %1005 = vmatpush2.msra.mxu0 0.0
        %1006 = vmatprep.mubr.f32.mxu0 0.0
        %1007 = vmatmul.mubr.f32.gmra.mxu0 %v940
        %v1008 = vpop.f32.mrf.mxu0
        %v1009 = vadd.f32 0.0, %v1008
        %v1010 = vpop.f32.mrf.mxu0
        %1011 = vdwg.mxu0
        %v1012 = vadd.f32 %v920, %v1009
        %v1014 = vlaneseq
        %v1015 = vshrl.u32 %v1014, 7
        %v1016 = vsub.s32 0, %v1015
        %v1017 = vrot.slane %v171, %v1016
        %v1019 = vadd.f32 %v1012, %v1017
        %v1020 = vmax.f32 %v1019, 0.0
        %s1021 = smul.u32 %s173, 8
        %s1022 = scalar_lea.vmem %s170, %s1021
        %1023 = vst [vmem:[%s1022] sm:$0xff] %v1020
      $region37: #{forward.11} parent=31 // loop_footer
        %s177 = sadd.s32 1, %s173
      $region38: #{forward.11} parent=31 // loop_footer_branch
        %172 = sbr.rel target = $region34
      $region39: #{forward.11} parent=31 // loop_exit
        _
      %p1024 = scmp.lt.s32.totalorder %s14, 1
      %s1025 = scalar_select %p1024, %s14, 1
      %s1026 = smul.addr %s1025, 8
      %s1027 = smul.addr %s1026, 8
      %s1028 = scalar_lea.vmem %s3, %s1027
      // Predicated region
      $region40: #{forward.11} parent=31 // pred_check
        %p1029 = pneg %p100
      $region41: #{forward.11} parent=31 // pred_check_branch
        %1031 = sbr.rel (%p1029) target = $region43
      $region42: #{forward.11} parent=31 // pred_region
        _
      $region43: #{forward.11} parent=31 // pred_fallthru
        _
    $region32: #{forward.11} parent=5 // pred_fallthru
      _
    %p1032 = scmp.le.s32.totalorder 2, %s9
    // Predicated region
    $region44: #{forward.11} parent=5 // pred_check
      %p1033 = pneg %p1032
    $region45: #{forward.11} parent=5 // pred_check_branch
      %1035 = sbr.rel (%p1033) target = $region47
    $region46: #{forward.11} parent=5 // pred_region
      %s1036 = ssub.s32 %s9, 2
      // Predicated region
      $region48: #{forward.11} parent=46 // pred_check
        %p1037 = pneg %p106
      $region49: #{forward.11} parent=46 // pred_check_branch
        %1039 = sbr.rel (%p1037) target = $region51
      $region50: #{forward.11} parent=46 // pred_region
        %p1040 = scmp.lt.s32.totalorder %s15, 1
        %s1041 = scalar_select %p1040, %s15, 1
        %s1042 = smul.addr %s1041, 8
        %s1043 = smul.addr %s1042, 8
        %s1044 = scalar_lea.vmem %s3, %s1043
      $region51: #{forward.11} parent=46 // pred_fallthru
        _
    $region47: #{forward.11} parent=5 // pred_fallthru
      _
  $region6: #{forward.11} parent=0 // loop_footer
    %s13 = sadd.s32 1, %s9
  $region7: #{forward.11} parent=0 // loop_footer_branch
    %8 = sbr.rel target = $region3
  $region8: #{forward.11} parent=0 // loop_exit
    _

// kernel: forward.13
$region0: #{forward.13}
  #allocation0 [shape = 'u32[]', space=smem, size = 0x4, offset = 0x4, fixed_abs, tag = 'smem constant byte address 0x4 - core index']
  #allocation1 [shape = 'u32[144,128]{1,0:T(1,128)}', space=vmem, size = 0x12000, scoped, tag = 'internal scratch']
  %s0 = inlined_call_operand.vmem [shape: f32[2,2048], index: 0, kind: input, shape index: {}]
  %s1 = inlined_call_operand.vmem [shape: f32[2048,128], index: 1, kind: input, shape index: {}]
  %s2 = inlined_call_operand.vmem [shape: f32[1,128], index: 2, kind: input, shape index: {}]
  %s3 = inlined_call_operand.vmem [shape: f32[128,128], index: 3, kind: input, shape index: {}]
  %s4 = inlined_call_operand.vmem [shape: f32[1,128], index: 4, kind: input, shape index: {}]
  %s5 = inlined_call_operand.hbm [shape: f32[2,128], index: 5, kind: output, shape index: {}]
  %s6 = sld [smem:[#allocation0]]
  $region30: #{forward.13} parent=0
    _
  %s8 = ssub.s32 1, %s6
  %s9 = scalar_select 0, %s8, %s6
  $region1: #{forward.13} parent=0
    #allocation2 [shape = 'u8[1024]{0}', space=vmem, size = 0x400, scoped, tag = 'output window, operand 0, single buffered']
    #allocation3 [shape = 's32[1]{0}', space=sflag, size = 0x4, scoped, tag = 'scoped memory for forward.13']
    %10 = vsyncpa [#allocation3], 0
    // Predicated region
    $region2: #{forward.13} parent=1 // pred_check
      _
    $region3: #{forward.13} parent=1 // pred_check_branch
      %12 = sbr.rel (0) target = $region5
    $region4: #{forward.13} parent=1 // pred_region
      _
    $region5: #{forward.13} parent=1 // pred_fallthru
      _
    // Predicated region
    $region6: #{forward.13} parent=1 // pred_check
      _
    $region7: #{forward.13} parent=1 // pred_check_branch
      %14 = sbr.rel (0) target = $region9
    $region8: #{forward.13} parent=1 // pred_region
      _
    $region9: #{forward.13} parent=1 // pred_fallthru
      _
    // Predicated region
    $region10: #{forward.13} parent=1 // pred_check
      _
    $region11: #{forward.13} parent=1 // pred_check_branch
      %16 = sbr.rel (0) target = $region13
    $region12: #{forward.13} parent=1 // pred_region
      _
    $region13: #{forward.13} parent=1 // pred_fallthru
      _
    // Predicated region
    $region14: #{forward.13} parent=1 // pred_check
      _
    $region15: #{forward.13} parent=1 // pred_check_branch
      %18 = sbr.rel (0) target = $region17
    $region16: #{forward.13} parent=1 // pred_region
      _
    $region17: #{forward.13} parent=1 // pred_fallthru
      _
    // Predicated region
    $region18: #{forward.13} parent=1 // pred_check
      _
    $region19: #{forward.13} parent=1 // pred_check_branch
      %20 = sbr.rel (0) target = $region21
    $region20: #{forward.13} parent=1 // pred_region
      _
    $region21: #{forward.13} parent=1 // pred_fallthru
      _
    %v21 = vld [vmem:[%s0] sm:$0xff]
    %v22 = vld [vmem:[%s0 + $0x8] sm:$0xff]
    %v23 = vld [vmem:[%s0 + $0x10] sm:$0xff]
    %v24 = vld [vmem:[%s0 + $0x18] sm:$0xff]
    %v25 = vld [vmem:[%s1] sm:$0xff]
    %v26 = vld [vmem:[%s1 + $0x8] sm:$0xff]
    %v27 = vld [vmem:[%s1 + $0x10] sm:$0xff]
    %v28 = vld [vmem:[%s1 + $0x18] sm:$0xff]
    %v29 = vld [vmem:[%s1 + $0x20] sm:$0xff]
    %v30 = vld [vmem:[%s1 + $0x28] sm:$0xff]
    %v31 = vld [vmem:[%s1 + $0x30] sm:$0xff]
    %v32 = vld [vmem:[%s1 + $0x38] sm:$0xff]
    %v33 = vld [vmem:[%s1 + $0x40] sm:$0xff]
    %v34 = vld [vmem:[%s1 + $0x48] sm:$0xff]
    %v35 = vld [vmem:[%s1 + $0x50] sm:$0xff]
    %v36 = vld [vmem:[%s1 + $0x58] sm:$0xff]
    %v37 = vld [vmem:[%s1 + $0x60] sm:$0xff]
    %v38 = vld [vmem:[%s1 + $0x68] sm:$0xff]
    %v39 = vld [vmem:[%s1 + $0x70] sm:$0xff]
    %v40 = vld [vmem:[%s1 + $0x78] sm:$0xff]
    %v41 = vld [vmem:[%s1 + $0x80] sm:$0xff]
    %v42 = vld [vmem:[%s1 + $0x88] sm:$0xff]
    %v43 = vld [vmem:[%s1 + $0x90] sm:$0xff]
    %v44 = vld [vmem:[%s1 + $0x98] sm:$0xff]
    %v45 = vld [vmem:[%s1 + $0xa0] sm:$0xff]
    %v46 = vld [vmem:[%s1 + $0xa8] sm:$0xff]
    %v47 = vld [vmem:[%s1 + $0xb0] sm:$0xff]
    %v48 = vld [vmem:[%s1 + $0xb8] sm:$0xff]
    %v49 = vld [vmem:[%s1 + $0xc0] sm:$0xff]
    %v50 = vld [vmem:[%s1 + $0xc8] sm:$0xff]
    %v51 = vld [vmem:[%s1 + $0xd0] sm:$0xff]
    %v52 = vld [vmem:[%s1 + $0xd8] sm:$0xff]
    %v53 = vld [vmem:[%s1 + $0xe0] sm:$0xff]
    %v54 = vld [vmem:[%s1 + $0xe8] sm:$0xff]
    %v55 = vld [vmem:[%s1 + $0xf0] sm:$0xff]
    %v56 = vld [vmem:[%s1 + $0xf8] sm:$0xff]
    %v57 = vld [vmem:[%s1 + $0x100] sm:$0xff]
    %v58 = vld [vmem:[%s1 + $0x108] sm:$0xff]
    %v59 = vld [vmem:[%s1 + $0x110] sm:$0xff]
    %v60 = vld [vmem:[%s1 + $0x118] sm:$0xff]
    %v61 = vld [vmem:[%s1 + $0x120] sm:$0xff]
    %v62 = vld [vmem:[%s1 + $0x128] sm:$0xff]
    %v63 = vld [vmem:[%s1 + $0x130] sm:$0xff]
    %v64 = vld [vmem:[%s1 + $0x138] sm:$0xff]
    %v65 = vld [vmem:[%s1 + $0x140] sm:$0xff]
    %v66 = vld [vmem:[%s1 + $0x148] sm:$0xff]
    %v67 = vld [vmem:[%s1 + $0x150] sm:$0xff]
    %v68 = vld [vmem:[%s1 + $0x158] sm:$0xff]
    %v69 = vld [vmem:[%s1 + $0x160] sm:$0xff]
    %v70 = vld [vmem:[%s1 + $0x168] sm:$0xff]
    %v71 = vld [vmem:[%s1 + $0x170] sm:$0xff]
    %v72 = vld [vmem:[%s1 + $0x178] sm:$0xff]
    %v73 = vld [vmem:[%s1 + $0x180] sm:$0xff]
    %v74 = vld [vmem:[%s1 + $0x188] sm:$0xff]
    %v75 = vld [vmem:[%s1 + $0x190] sm:$0xff]
    %v76 = vld [vmem:[%s1 + $0x198] sm:$0xff]
    %v77 = vld [vmem:[%s1 + $0x1a0] sm:$0xff]
    %v78 = vld [vmem:[%s1 + $0x1a8] sm:$0xff]
    %v79 = vld [vmem:[%s1 + $0x1b0] sm:$0xff]
    %v80 = vld [vmem:[%s1 + $0x1b8] sm:$0xff]
    %v81 = vld [vmem:[%s1 + $0x1c0] sm:$0xff]
    %v82 = vld [vmem:[%s1 + $0x1c8] sm:$0xff]
    %v83 = vld [vmem:[%s1 + $0x1d0] sm:$0xff]
    %v84 = vld [vmem:[%s1 + $0x1d8] sm:$0xff]
    %v85 = vld [vmem:[%s1 + $0x1e0] sm:$0xff]
    %v86 = vld [vmem:[%s1 + $0x1e8] sm:$0xff]
    %v87 = vld [vmem:[%s1 + $0x1f0] sm:$0xff]
    %v88 = vld [vmem:[%s1 + $0x1f8] sm:$0xff]
    %v89 = vld [vmem:[%s1 + $0x200] sm:$0xff]
    %v90 = vld [vmem:[%s1 + $0x208] sm:$0xff]
    %v91 = vld [vmem:[%s1 + $0x210] sm:$0xff]
    %v92 = vld [vmem:[%s1 + $0x218] sm:$0xff]
    %v93 = vld [vmem:[%s1 + $0x220] sm:$0xff]
    %v94 = vld [vmem:[%s1 + $0x228] sm:$0xff]
    %v95 = vld [vmem:[%s1 + $0x230] sm:$0xff]
    %v96 = vld [vmem:[%s1 + $0x238] sm:$0xff]
    %v97 = vld [vmem:[%s1 + $0x240] sm:$0xff]
    %v98 = vld [vmem:[%s1 + $0x248] sm:$0xff]
    %v99 = vld [vmem:[%s1 + $0x250] sm:$0xff]
    %v100 = vld [vmem:[%s1 + $0x258] sm:$0xff]
    %v101 = vld [vmem:[%s1 + $0x260] sm:$0xff]
    %v102 = vld [vmem:[%s1 + $0x268] sm:$0xff]
    %v103 = vld [vmem:[%s1 + $0x270] sm:$0xff]
    %v104 = vld [vmem:[%s1 + $0x278] sm:$0xff]
    %v105 = vld [vmem:[%s1 + $0x280] sm:$0xff]
    %v106 = vld [vmem:[%s1 + $0x288] sm:$0xff]
    %v107 = vld [vmem:[%s1 + $0x290] sm:$0xff]
    %v108 = vld [vmem:[%s1 + $0x298] sm:$0xff]
    %v109 = vld [vmem:[%s1 + $0x2a0] sm:$0xff]
    %v110 = vld [vmem:[%s1 + $0x2a8] sm:$0xff]
    %v111 = vld [vmem:[%s1 + $0x2b0] sm:$0xff]
    %v112 = vld [vmem:[%s1 + $0x2b8] sm:$0xff]
    %v113 = vld [vmem:[%s1 + $0x2c0] sm:$0xff]
    %v114 = vld [vmem:[%s1 + $0x2c8] sm:$0xff]
    %v115 = vld [vmem:[%s1 + $0x2d0] sm:$0xff]
    %v116 = vld [vmem:[%s1 + $0x2d8] sm:$0xff]
    %v117 = vld [vmem:[%s1 + $0x2e0] sm:$0xff]
    %v118 = vld [vmem:[%s1 + $0x2e8] sm:$0xff]
    %v119 = vld [vmem:[%s1 + $0x2f0] sm:$0xff]
    %v120 = vld [vmem:[%s1 + $0x2f8] sm:$0xff]
    %v121 = vld [vmem:[%s1 + $0x300] sm:$0xff]
    %v122 = vld [vmem:[%s1 + $0x308] sm:$0xff]
    %v123 = vld [vmem:[%s1 + $0x310] sm:$0xff]
    %v124 = vld [vmem:[%s1 + $0x318] sm:$0xff]
    %v125 = vld [vmem:[%s1 + $0x320] sm:$0xff]
    %v126 = vld [vmem:[%s1 + $0x328] sm:$0xff]
    %v127 = vld [vmem:[%s1 + $0x330] sm:$0xff]
    %v128 = vld [vmem:[%s1 + $0x338] sm:$0xff]
    %v129 = vld [vmem:[%s1 + $0x340] sm:$0xff]
    %v130 = vld [vmem:[%s1 + $0x348] sm:$0xff]
    %v131 = vld [vmem:[%s1 + $0x350] sm:$0xff]
    %v132 = vld [vmem:[%s1 + $0x358] sm:$0xff]
    %v133 = vld [vmem:[%s1 + $0x360] sm:$0xff]
    %v134 = vld [vmem:[%s1 + $0x368] sm:$0xff]
    %v135 = vld [vmem:[%s1 + $0x370] sm:$0xff]
    %v136 = vld [vmem:[%s1 + $0x378] sm:$0xff]
    %v137 = vld [vmem:[%s1 + $0x380] sm:$0xff]
    %v138 = vld [vmem:[%s1 + $0x388] sm:$0xff]
    %v139 = vld [vmem:[%s1 + $0x390] sm:$0xff]
    %v140 = vld [vmem:[%s1 + $0x398] sm:$0xff]
    %v141 = vld [vmem:[%s1 + $0x3a0] sm:$0xff]
    %v142 = vld [vmem:[%s1 + $0x3a8] sm:$0xff]
    %v143 = vld [vmem:[%s1 + $0x3b0] sm:$0xff]
    %v144 = vld [vmem:[%s1 + $0x3b8] sm:$0xff]
    %v145 = vld [vmem:[%s1 + $0x3c0] sm:$0xff]
    %v146 = vld [vmem:[%s1 + $0x3c8] sm:$0xff]
    %v147 = vld [vmem:[%s1 + $0x3d0] sm:$0xff]
    %v148 = vld [vmem:[%s1 + $0x3d8] sm:$0xff]
    %v149 = vld [vmem:[%s1 + $0x3e0] sm:$0xff]
    %v150 = vld [vmem:[%s1 + $0x3e8] sm:$0xff]
    %v151 = vld [vmem:[%s1 + $0x3f0] sm:$0xff]
    %v152 = vld [vmem:[%s1 + $0x3f8] sm:$0xff]
    %v153 = vld [vmem:[%s1 + $0x400] sm:$0xff]
    %v154 = vld [vmem:[%s1 + $0x408] sm:$0xff]
    %v155 = vld [vmem:[%s1 + $0x410] sm:$0xff]
    %v156 = vld [vmem:[%s1 + $0x418] sm:$0xff]
    %v157 = vld [vmem:[%s1 + $0x420] sm:$0xff]
    %v158 = vld [vmem:[%s1 + $0x428] sm:$0xff]
    %v159 = vld [vmem:[%s1 + $0x430] sm:$0xff]
    %v160 = vld [vmem:[%s1 + $0x438] sm:$0xff]
    %v161 = vld [vmem:[%s1 + $0x440] sm:$0xff]
    %v162 = vld [vmem:[%s1 + $0x448] sm:$0xff]
    %v163 = vld [vmem:[%s1 + $0x450] sm:$0xff]
    %v164 = vld [vmem:[%s1 + $0x458] sm:$0xff]
    %v165 = vld [vmem:[%s1 + $0x460] sm:$0xff]
    %v166 = vld [vmem:[%s1 + $0x468] sm:$0xff]
    %v167 = vld [vmem:[%s1 + $0x470] sm:$0xff]
    %v168 = vld [vmem:[%s1 + $0x478] sm:$0xff]
    %v169 = vld [vmem:[%s1 + $0x480] sm:$0xff]
    %v170 = vld [vmem:[%s1 + $0x488] sm:$0xff]
    %v171 = vld [vmem:[%s1 + $0x490] sm:$0xff]
    %v172 = vld [vmem:[%s1 + $0x498] sm:$0xff]
    %v173 = vld [vmem:[%s1 + $0x4a0] sm:$0xff]
    %v174 = vld [vmem:[%s1 + $0x4a8] sm:$0xff]
    %v175 = vld [vmem:[%s1 + $0x4b0] sm:$0xff]
    %v176 = vld [vmem:[%s1 + $0x4b8] sm:$0xff]
    %v177 = vld [vmem:[%s1 + $0x4c0] sm:$0xff]
    %v178 = vld [vmem:[%s1 + $0x4c8] sm:$0xff]
    %v179 = vld [vmem:[%s1 + $0x4d0] sm:$0xff]
    %v180 = vld [vmem:[%s1 + $0x4d8] sm:$0xff]
    %v181 = vld [vmem:[%s1 + $0x4e0] sm:$0xff]
    %v182 = vld [vmem:[%s1 + $0x4e8] sm:$0xff]
    %v183 = vld [vmem:[%s1 + $0x4f0] sm:$0xff]
    %v184 = vld [vmem:[%s1 + $0x4f8] sm:$0xff]
    %v185 = vld [vmem:[%s1 + $0x500] sm:$0xff]
    %v186 = vld [vmem:[%s1 + $0x508] sm:$0xff]
    %v187 = vld [vmem:[%s1 + $0x510] sm:$0xff]
    %v188 = vld [vmem:[%s1 + $0x518] sm:$0xff]
    %v189 = vld [vmem:[%s1 + $0x520] sm:$0xff]
    %v190 = vld [vmem:[%s1 + $0x528] sm:$0xff]
    %v191 = vld [vmem:[%s1 + $0x530] sm:$0xff]
    %v192 = vld [vmem:[%s1 + $0x538] sm:$0xff]
    %v193 = vld [vmem:[%s1 + $0x540] sm:$0xff]
    %v194 = vld [vmem:[%s1 + $0x548] sm:$0xff]
    %v195 = vld [vmem:[%s1 + $0x550] sm:$0xff]
    %v196 = vld [vmem:[%s1 + $0x558] sm:$0xff]
    %v197 = vld [vmem:[%s1 + $0x560] sm:$0xff]
    %v198 = vld [vmem:[%s1 + $0x568] sm:$0xff]
    %v199 = vld [vmem:[%s1 + $0x570] sm:$0xff]
    %v200 = vld [vmem:[%s1 + $0x578] sm:$0xff]
    %v201 = vld [vmem:[%s1 + $0x580] sm:$0xff]
    %v202 = vld [vmem:[%s1 + $0x588] sm:$0xff]
    %v203 = vld [vmem:[%s1 + $0x590] sm:$0xff]
    %v204 = vld [vmem:[%s1 + $0x598] sm:$0xff]
    %v205 = vld [vmem:[%s1 + $0x5a0] sm:$0xff]
    %v206 = vld [vmem:[%s1 + $0x5a8] sm:$0xff]
    %v207 = vld [vmem:[%s1 + $0x5b0] sm:$0xff]
    %v208 = vld [vmem:[%s1 + $0x5b8] sm:$0xff]
    %v209 = vld [vmem:[%s1 + $0x5c0] sm:$0xff]
    %v210 = vld [vmem:[%s1 + $0x5c8] sm:$0xff]
    %v211 = vld [vmem:[%s1 + $0x5d0] sm:$0xff]
    %v212 = vld [vmem:[%s1 + $0x5d8] sm:$0xff]
    %v213 = vld [vmem:[%s1 + $0x5e0] sm:$0xff]
    %v214 = vld [vmem:[%s1 + $0x5e8] sm:$0xff]
    %v215 = vld [vmem:[%s1 + $0x5f0] sm:$0xff]
    %v216 = vld [vmem:[%s1 + $0x5f8] sm:$0xff]
    %v217 = vld [vmem:[%s1 + $0x600] sm:$0xff]
    %v218 = vld [vmem:[%s1 + $0x608] sm:$0xff]
    %v219 = vld [vmem:[%s1 + $0x610] sm:$0xff]
    %v220 = vld [vmem:[%s1 + $0x618] sm:$0xff]
    %v221 = vld [vmem:[%s1 + $0x620] sm:$0xff]
    %v222 = vld [vmem:[%s1 + $0x628] sm:$0xff]
    %v223 = vld [vmem:[%s1 + $0x630] sm:$0xff]
    %v224 = vld [vmem:[%s1 + $0x638] sm:$0xff]
    %v225 = vld [vmem:[%s1 + $0x640] sm:$0xff]
    %v226 = vld [vmem:[%s1 + $0x648] sm:$0xff]
    %v227 = vld [vmem:[%s1 + $0x650] sm:$0xff]
    %v228 = vld [vmem:[%s1 + $0x658] sm:$0xff]
    %v229 = vld [vmem:[%s1 + $0x660] sm:$0xff]
    %v230 = vld [vmem:[%s1 + $0x668] sm:$0xff]
    %v231 = vld [vmem:[%s1 + $0x670] sm:$0xff]
    %v232 = vld [vmem:[%s1 + $0x678] sm:$0xff]
    %v233 = vld [vmem:[%s1 + $0x680] sm:$0xff]
    %v234 = vld [vmem:[%s1 + $0x688] sm:$0xff]
    %v235 = vld [vmem:[%s1 + $0x690] sm:$0xff]
    %v236 = vld [vmem:[%s1 + $0x698] sm:$0xff]
    %v237 = vld [vmem:[%s1 + $0x6a0] sm:$0xff]
    %v238 = vld [vmem:[%s1 + $0x6a8] sm:$0xff]
    %v239 = vld [vmem:[%s1 + $0x6b0] sm:$0xff]
    %v240 = vld [vmem:[%s1 + $0x6b8] sm:$0xff]
    %v241 = vld [vmem:[%s1 + $0x6c0] sm:$0xff]
    %v242 = vld [vmem:[%s1 + $0x6c8] sm:$0xff]
    %v243 = vld [vmem:[%s1 + $0x6d0] sm:$0xff]
    %v244 = vld [vmem:[%s1 + $0x6d8] sm:$0xff]
    %v245 = vld [vmem:[%s1 + $0x6e0] sm:$0xff]
    %v246 = vld [vmem:[%s1 + $0x6e8] sm:$0xff]
    %v247 = vld [vmem:[%s1 + $0x6f0] sm:$0xff]
    %v248 = vld [vmem:[%s1 + $0x6f8] sm:$0xff]
    %v249 = vld [vmem:[%s1 + $0x700] sm:$0xff]
    %v250 = vld [vmem:[%s1 + $0x708] sm:$0xff]
    %v251 = vld [vmem:[%s1 + $0x710] sm:$0xff]
    %v252 = vld [vmem:[%s1 + $0x718] sm:$0xff]
    %v253 = vld [vmem:[%s1 + $0x720] sm:$0xff]
    %v254 = vld [vmem:[%s1 + $0x728] sm:$0xff]
    %v255 = vld [vmem:[%s1 + $0x730] sm:$0xff]
    %v256 = vld [vmem:[%s1 + $0x738] sm:$0xff]
    %v257 = vld [vmem:[%s1 + $0x740] sm:$0xff]
    %v258 = vld [vmem:[%s1 + $0x748] sm:$0xff]
    %v259 = vld [vmem:[%s1 + $0x750] sm:$0xff]
    %v260 = vld [vmem:[%s1 + $0x758] sm:$0xff]
    %v261 = vld [vmem:[%s1 + $0x760] sm:$0xff]
    %v262 = vld [vmem:[%s1 + $0x768] sm:$0xff]
    %v263 = vld [vmem:[%s1 + $0x770] sm:$0xff]
    %v264 = vld [vmem:[%s1 + $0x778] sm:$0xff]
    %v265 = vld [vmem:[%s1 + $0x780] sm:$0xff]
    %v266 = vld [vmem:[%s1 + $0x788] sm:$0xff]
    %v267 = vld [vmem:[%s1 + $0x790] sm:$0xff]
    %v268 = vld [vmem:[%s1 + $0x798] sm:$0xff]
    %v269 = vld [vmem:[%s1 + $0x7a0] sm:$0xff]
    %v270 = vld [vmem:[%s1 + $0x7a8] sm:$0xff]
    %v271 = vld [vmem:[%s1 + $0x7b0] sm:$0xff]
    %v272 = vld [vmem:[%s1 + $0x7b8] sm:$0xff]
    %v273 = vld [vmem:[%s1 + $0x7c0] sm:$0xff]
    %v274 = vld [vmem:[%s1 + $0x7c8] sm:$0xff]
    %v275 = vld [vmem:[%s1 + $0x7d0] sm:$0xff]
    %v276 = vld [vmem:[%s1 + $0x7d8] sm:$0xff]
    %v277 = vld [vmem:[%s1 + $0x7e0] sm:$0xff]
    %v278 = vld [vmem:[%s1 + $0x7e8] sm:$0xff]
    %v279 = vld [vmem:[%s1 + $0x7f0] sm:$0xff]
    %v280 = vld [vmem:[%s1 + $0x7f8] sm:$0xff]
    %v281 = vld [vmem:[%s2] sm:$0x1]
    %v283 = vlaneseq
    %v284 = vshrl.u32 %v283, 7
    %v285 = vsub.s32 0, %v284
    %v286 = vrot.slane %v281, %v285
    %v292 = vcombine.high %v21, %v21
    %v294 = vunpack.c.l.s4 1983009808
    %v295 = vunpack.c.0.s8 %v294
    %v296 = vlaneseq
    %v297 = vshrl.u32 %v296, 7
    %v298 = vsub.s32 %v295, %v297
    %v299 = vrot.slane %v21, %v298
    %v301 = vunpack.c.l.s4 1983009808
    %v302 = vunpack.c.0.s8 %v301
    %v303 = vlaneseq
    %v304 = vshrl.u32 %v303, 7
    %v305 = vsub.s32 %v302, %v304
    %v306 = vrot.slane %v292, %v305
    %v307 = vcombine.high %v299, %v299
    %v308 = vcombine.high %v306, %v306
    %v309 = vcombine.high %v22, %v22
    %v311 = vunpack.c.l.s4 1983009808
    %v312 = vunpack.c.0.s8 %v311
    %v313 = vlaneseq
    %v314 = vshrl.u32 %v313, 7
    %v315 = vsub.s32 %v312, %v314
    %v316 = vrot.slane %v22, %v315
    %v318 = vunpack.c.l.s4 1983009808
    %v319 = vunpack.c.0.s8 %v318
    %v320 = vlaneseq
    %v321 = vshrl.u32 %v320, 7
    %v322 = vsub.s32 %v319, %v321
    %v323 = vrot.slane %v309, %v322
    %v324 = vcombine.high %v316, %v316
    %v325 = vcombine.high %v323, %v323
    %v326 = vcombine.high %v23, %v23
    %v328 = vunpack.c.l.s4 1983009808
    %v329 = vunpack.c.0.s8 %v328
    %v330 = vlaneseq
    %v331 = vshrl.u32 %v330, 7
    %v332 = vsub.s32 %v329, %v331
    %v333 = vrot.slane %v23, %v332
    %v335 = vunpack.c.l.s4 1983009808
    %v336 = vunpack.c.0.s8 %v335
    %v337 = vlaneseq
    %v338 = vshrl.u32 %v337, 7
    %v339 = vsub.s32 %v336, %v338
    %v340 = vrot.slane %v326, %v339
    %v341 = vcombine.high %v333, %v333
    %v342 = vcombine.high %v340, %v340
    %v343 = vcombine.high %v24, %v24
    %v345 = vunpack.c.l.s4 1983009808
    %v346 = vunpack.c.0.s8 %v345
    %v347 = vlaneseq
    %v348 = vshrl.u32 %v347, 7
    %v349 = vsub.s32 %v346, %v348
    %v350 = vrot.slane %v24, %v349
    %v352 = vunpack.c.l.s4 1983009808
    %v353 = vunpack.c.0.s8 %v352
    %v354 = vlaneseq
    %v355 = vshrl.u32 %v354, 7
    %v356 = vsub.s32 %v353, %v355
    %v357 = vrot.slane %v343, %v356
    %v358 = vcombine.high %v350, %v350
    %v359 = vcombine.high %v357, %v357
    %376 = vmatprep.subr.mxu0 0.0
    %377 = vmatpush1.msra.mxu0 %v40
    %378 = vmatprep.subr.mxu0 0.0
    %379 = vmatpush1.msra.mxu0 %v39
    %380 = vmatprep.subr.mxu0 0.0
    %381 = vmatpush1.msra.mxu0 %v38
    %382 = vmatprep.subr.mxu0 0.0
    %383 = vmatpush1.msra.mxu0 %v37
    %384 = vmatprep.subr.mxu0 0.0
    %385 = vmatpush1.msra.mxu0 %v36
    %386 = vmatprep.subr.mxu0 0.0
    %387 = vmatpush1.msra.mxu0 %v35
    %388 = vmatprep.subr.mxu0 0.0
    %389 = vmatpush1.msra.mxu0 %v34
    %390 = vmatprep.subr.mxu0 0.0
    %391 = vmatpush1.msra.mxu0 %v33
    %392 = vmatprep.subr.mxu0 0.0
    %393 = vmatpush1.msra.mxu0 %v32
    %394 = vmatprep.subr.mxu0 0.0
    %395 = vmatpush1.msra.mxu0 %v31
    %396 = vmatprep.subr.mxu0 0.0
    %397 = vmatpush1.msra.mxu0 %v30
    %398 = vmatprep.subr.mxu0 0.0
    %399 = vmatpush1.msra.mxu0 %v29
    %400 = vmatprep.subr.mxu0 0.0
    %401 = vmatpush1.msra.mxu0 %v28
    %402 = vmatprep.subr.mxu0 0.0
    %403 = vmatpush1.msra.mxu0 %v27
    %404 = vmatprep.subr.mxu0 0.0
    %405 = vmatpush1.msra.mxu0 %v26
    %406 = vmatprep.subr.mxu0 0.0
    %407 = vmatpush1.msra.mxu0 %v25
    %408 = vmatprep.subr.mxu0 0.0
    %409 = vmatpush2.msra.mxu0 %v56
    %410 = vmatprep.subr.mxu0 0.0
    %411 = vmatpush2.msra.mxu0 %v55
    %412 = vmatprep.subr.mxu0 0.0
    %413 = vmatpush2.msra.mxu0 %v54
    %414 = vmatprep.subr.mxu0 0.0
    %415 = vmatpush2.msra.mxu0 %v53
    %416 = vmatprep.subr.mxu0 0.0
    %417 = vmatpush2.msra.mxu0 %v52
    %418 = vmatprep.subr.mxu0 0.0
    %419 = vmatpush2.msra.mxu0 %v51
    %420 = vmatprep.subr.mxu0 0.0
    %421 = vmatpush2.msra.mxu0 %v50
    %422 = vmatprep.subr.mxu0 0.0
    %423 = vmatpush2.msra.mxu0 %v49
    %424 = vmatprep.subr.mxu0 0.0
    %425 = vmatpush2.msra.mxu0 %v48
    %426 = vmatprep.subr.mxu0 0.0
    %427 = vmatpush2.msra.mxu0 %v47
    %428 = vmatprep.subr.mxu0 0.0
    %429 = vmatpush2.msra.mxu0 %v46
    %430 = vmatprep.subr.mxu0 0.0
    %431 = vmatpush2.msra.mxu0 %v45
    %432 = vmatprep.subr.mxu0 0.0
    %433 = vmatpush2.msra.mxu0 %v44
    %434 = vmatprep.subr.mxu0 0.0
    %435 = vmatpush2.msra.mxu0 %v43
    %436 = vmatprep.subr.mxu0 0.0
    %437 = vmatpush2.msra.mxu0 %v42
    %438 = vmatprep.subr.mxu0 0.0
    %439 = vmatpush2.msra.mxu0 %v41
    %440 = vmatprep.mubr.f32.mxu0 %v307
    %441 = vmatmul.mubr.f32.gmra.mxu0 %v299
    %v442 = vpop.f32.mrf.mxu0
    %v443 = vadd.f32 %v286, %v442
    %v444 = vpop.f32.mrf.mxu0
    %445 = vdwg.mxu0
    %446 = vmatprep.subr.mxu0 0.0
    %447 = vmatpush1.msra.mxu0 %v72
    %448 = vmatprep.subr.mxu0 0.0
    %449 = vmatpush1.msra.mxu0 %v71
    %450 = vmatprep.subr.mxu0 0.0
    %451 = vmatpush1.msra.mxu0 %v70
    %452 = vmatprep.subr.mxu0 0.0
    %453 = vmatpush1.msra.mxu0 %v69
    %454 = vmatprep.subr.mxu0 0.0
    %455 = vmatpush1.msra.mxu0 %v68
    %456 = vmatprep.subr.mxu0 0.0
    %457 = vmatpush1.msra.mxu0 %v67
    %458 = vmatprep.subr.mxu0 0.0
    %459 = vmatpush1.msra.mxu0 %v66
    %460 = vmatprep.subr.mxu0 0.0
    %461 = vmatpush1.msra.mxu0 %v65
    %462 = vmatprep.subr.mxu0 0.0
    %463 = vmatpush1.msra.mxu0 %v64
    %464 = vmatprep.subr.mxu0 0.0
    %465 = vmatpush1.msra.mxu0 %v63
    %466 = vmatprep.subr.mxu0 0.0
    %467 = vmatpush1.msra.mxu0 %v62
    %468 = vmatprep.subr.mxu0 0.0
    %469 = vmatpush1.msra.mxu0 %v61
    %470 = vmatprep.subr.mxu0 0.0
    %471 = vmatpush1.msra.mxu0 %v60
    %472 = vmatprep.subr.mxu0 0.0
    %473 = vmatpush1.msra.mxu0 %v59
    %474 = vmatprep.subr.mxu0 0.0
    %475 = vmatpush1.msra.mxu0 %v58
    %476 = vmatprep.subr.mxu0 0.0
    %477 = vmatpush1.msra.mxu0 %v57
    %478 = vmatprep.subr.mxu0 0.0
    %479 = vmatpush2.msra.mxu0 %v88
    %480 = vmatprep.subr.mxu0 0.0
    %481 = vmatpush2.msra.mxu0 %v87
    %482 = vmatprep.subr.mxu0 0.0
    %483 = vmatpush2.msra.mxu0 %v86
    %484 = vmatprep.subr.mxu0 0.0
    %485 = vmatpush2.msra.mxu0 %v85
    %486 = vmatprep.subr.mxu0 0.0
    %487 = vmatpush2.msra.mxu0 %v84
    %488 = vmatprep.subr.mxu0 0.0
    %489 = vmatpush2.msra.mxu0 %v83
    %490 = vmatprep.subr.mxu0 0.0
    %491 = vmatpush2.msra.mxu0 %v82
    %492 = vmatprep.subr.mxu0 0.0
    %493 = vmatpush2.msra.mxu0 %v81
    %494 = vmatprep.subr.mxu0 0.0
    %495 = vmatpush2.msra.mxu0 %v80
    %496 = vmatprep.subr.mxu0 0.0
    %497 = vmatpush2.msra.mxu0 %v79
    %498 = vmatprep.subr.mxu0 0.0
    %499 = vmatpush2.msra.mxu0 %v78
    %500 = vmatprep.subr.mxu0 0.0
    %501 = vmatpush2.msra.mxu0 %v77
    %502 = vmatprep.subr.mxu0 0.0
    %503 = vmatpush2.msra.mxu0 %v76
    %504 = vmatprep.subr.mxu0 0.0
    %505 = vmatpush2.msra.mxu0 %v75
    %506 = vmatprep.subr.mxu0 0.0
    %507 = vmatpush2.msra.mxu0 %v74
    %508 = vmatprep.subr.mxu0 0.0
    %509 = vmatpush2.msra.mxu0 %v73
    %510 = vmatprep.mubr.f32.mxu0 %v308
    %511 = vmatmul.mubr.f32.gmra.mxu0 %v306
    %v512 = vpop.f32.mrf.mxu0
    %v513 = vadd.f32 %v443, %v512
    %v514 = vpop.f32.mrf.mxu0
    %515 = vdwg.mxu0
    %516 = vmatprep.subr.mxu0 0.0
    %517 = vmatpush1.msra.mxu0 %v104
    %518 = vmatprep.subr.mxu0 0.0
    %519 = vmatpush1.msra.mxu0 %v103
    %520 = vmatprep.subr.mxu0 0.0
    %521 = vmatpush1.msra.mxu0 %v102
    %522 = vmatprep.subr.mxu0 0.0
    %523 = vmatpush1.msra.mxu0 %v101
    %524 = vmatprep.subr.mxu0 0.0
    %525 = vmatpush1.msra.mxu0 %v100
    %526 = vmatprep.subr.mxu0 0.0
    %527 = vmatpush1.msra.mxu0 %v99
    %528 = vmatprep.subr.mxu0 0.0
    %529 = vmatpush1.msra.mxu0 %v98
    %530 = vmatprep.subr.mxu0 0.0
    %531 = vmatpush1.msra.mxu0 %v97
    %532 = vmatprep.subr.mxu0 0.0
    %533 = vmatpush1.msra.mxu0 %v96
    %534 = vmatprep.subr.mxu0 0.0
    %535 = vmatpush1.msra.mxu0 %v95
    %536 = vmatprep.subr.mxu0 0.0
    %537 = vmatpush1.msra.mxu0 %v94
    %538 = vmatprep.subr.mxu0 0.0
    %539 = vmatpush1.msra.mxu0 %v93
    %540 = vmatprep.subr.mxu0 0.0
    %541 = vmatpush1.msra.mxu0 %v92
    %542 = vmatprep.subr.mxu0 0.0
    %543 = vmatpush1.msra.mxu0 %v91
    %544 = vmatprep.subr.mxu0 0.0
    %545 = vmatpush1.msra.mxu0 %v90
    %546 = vmatprep.subr.mxu0 0.0
    %547 = vmatpush1.msra.mxu0 %v89
    %548 = vmatprep.subr.mxu0 0.0
    %549 = vmatpush2.msra.mxu0 %v120
    %550 = vmatprep.subr.mxu0 0.0
    %551 = vmatpush2.msra.mxu0 %v119
    %552 = vmatprep.subr.mxu0 0.0
    %553 = vmatpush2.msra.mxu0 %v118
    %554 = vmatprep.subr.mxu0 0.0
    %555 = vmatpush2.msra.mxu0 %v117
    %556 = vmatprep.subr.mxu0 0.0
    %557 = vmatpush2.msra.mxu0 %v116
    %558 = vmatprep.subr.mxu0 0.0
    %559 = vmatpush2.msra.mxu0 %v115
    %560 = vmatprep.subr.mxu0 0.0
    %561 = vmatpush2.msra.mxu0 %v114
    %562 = vmatprep.subr.mxu0 0.0
    %563 = vmatpush2.msra.mxu0 %v113
    %564 = vmatprep.subr.mxu0 0.0
    %565 = vmatpush2.msra.mxu0 %v112
    %566 = vmatprep.subr.mxu0 0.0
    %567 = vmatpush2.msra.mxu0 %v111
    %568 = vmatprep.subr.mxu0 0.0
    %569 = vmatpush2.msra.mxu0 %v110
    %570 = vmatprep.subr.mxu0 0.0
    %571 = vmatpush2.msra.mxu0 %v109
    %572 = vmatprep.subr.mxu0 0.0
    %573 = vmatpush2.msra.mxu0 %v108
    %574 = vmatprep.subr.mxu0 0.0
    %575 = vmatpush2.msra.mxu0 %v107
    %576 = vmatprep.subr.mxu0 0.0
    %577 = vmatpush2.msra.mxu0 %v106
    %578 = vmatprep.subr.mxu0 0.0
    %579 = vmatpush2.msra.mxu0 %v105
    %580 = vmatprep.mubr.f32.mxu0 %v324
    %581 = vmatmul.mubr.f32.gmra.mxu0 %v316
    %v582 = vpop.f32.mrf.mxu0
    %v583 = vadd.f32 %v513, %v582
    %v584 = vpop.f32.mrf.mxu0
    %585 = vdwg.mxu0
    %586 = vmatprep.subr.mxu0 0.0
    %587 = vmatpush1.msra.mxu0 %v136
    %588 = vmatprep.subr.mxu0 0.0
    %589 = vmatpush1.msra.mxu0 %v135
    %590 = vmatprep.subr.mxu0 0.0
    %591 = vmatpush1.msra.mxu0 %v134
    %592 = vmatprep.subr.mxu0 0.0
    %593 = vmatpush1.msra.mxu0 %v133
    %594 = vmatprep.subr.mxu0 0.0
    %595 = vmatpush1.msra.mxu0 %v132
    %596 = vmatprep.subr.mxu0 0.0
    %597 = vmatpush1.msra.mxu0 %v131
    %598 = vmatprep.subr.mxu0 0.0
    %599 = vmatpush1.msra.mxu0 %v130
    %600 = vmatprep.subr.mxu0 0.0
    %601 = vmatpush1.msra.mxu0 %v129
    %602 = vmatprep.subr.mxu0 0.0
    %603 = vmatpush1.msra.mxu0 %v128
    %604 = vmatprep.subr.mxu0 0.0
    %605 = vmatpush1.msra.mxu0 %v127
    %606 = vmatprep.subr.mxu0 0.0
    %607 = vmatpush1.msra.mxu0 %v126
    %608 = vmatprep.subr.mxu0 0.0
    %609 = vmatpush1.msra.mxu0 %v125
    %610 = vmatprep.subr.mxu0 0.0
    %611 = vmatpush1.msra.mxu0 %v124
    %612 = vmatprep.subr.mxu0 0.0
    %613 = vmatpush1.msra.mxu0 %v123
    %614 = vmatprep.subr.mxu0 0.0
    %615 = vmatpush1.msra.mxu0 %v122
    %616 = vmatprep.subr.mxu0 0.0
    %617 = vmatpush1.msra.mxu0 %v121
    %618 = vmatprep.subr.mxu0 0.0
    %619 = vmatpush2.msra.mxu0 %v152
    %620 = vmatprep.subr.mxu0 0.0
    %621 = vmatpush2.msra.mxu0 %v151
    %622 = vmatprep.subr.mxu0 0.0
    %623 = vmatpush2.msra.mxu0 %v150
    %624 = vmatprep.subr.mxu0 0.0
    %625 = vmatpush2.msra.mxu0 %v149
    %626 = vmatprep.subr.mxu0 0.0
    %627 = vmatpush2.msra.mxu0 %v148
    %628 = vmatprep.subr.mxu0 0.0
    %629 = vmatpush2.msra.mxu0 %v147
    %630 = vmatprep.subr.mxu0 0.0
    %631 = vmatpush2.msra.mxu0 %v146
    %632 = vmatprep.subr.mxu0 0.0
    %633 = vmatpush2.msra.mxu0 %v145
    %634 = vmatprep.subr.mxu0 0.0
    %635 = vmatpush2.msra.mxu0 %v144
    %636 = vmatprep.subr.mxu0 0.0
    %637 = vmatpush2.msra.mxu0 %v143
    %638 = vmatprep.subr.mxu0 0.0
    %639 = vmatpush2.msra.mxu0 %v142
    %640 = vmatprep.subr.mxu0 0.0
    %641 = vmatpush2.msra.mxu0 %v141
    %642 = vmatprep.subr.mxu0 0.0
    %643 = vmatpush2.msra.mxu0 %v140
    %644 = vmatprep.subr.mxu0 0.0
    %645 = vmatpush2.msra.mxu0 %v139
    %646 = vmatprep.subr.mxu0 0.0
    %647 = vmatpush2.msra.mxu0 %v138
    %648 = vmatprep.subr.mxu0 0.0
    %649 = vmatpush2.msra.mxu0 %v137
    %650 = vmatprep.mubr.f32.mxu0 %v325
    %651 = vmatmul.mubr.f32.gmra.mxu0 %v323
    %v652 = vpop.f32.mrf.mxu0
    %v653 = vadd.f32 %v583, %v652
    %v654 = vpop.f32.mrf.mxu0
    %655 = vdwg.mxu0
    %656 = vmatprep.subr.mxu0 0.0
    %657 = vmatpush1.msra.mxu0 %v168
    %658 = vmatprep.subr.mxu0 0.0
    %659 = vmatpush1.msra.mxu0 %v167
    %660 = vmatprep.subr.mxu0 0.0
    %661 = vmatpush1.msra.mxu0 %v166
    %662 = vmatprep.subr.mxu0 0.0
    %663 = vmatpush1.msra.mxu0 %v165
    %664 = vmatprep.subr.mxu0 0.0
    %665 = vmatpush1.msra.mxu0 %v164
    %666 = vmatprep.subr.mxu0 0.0
    %667 = vmatpush1.msra.mxu0 %v163
    %668 = vmatprep.subr.mxu0 0.0
    %669 = vmatpush1.msra.mxu0 %v162
    %670 = vmatprep.subr.mxu0 0.0
    %671 = vmatpush1.msra.mxu0 %v161
    %672 = vmatprep.subr.mxu0 0.0
    %673 = vmatpush1.msra.mxu0 %v160
    %674 = vmatprep.subr.mxu0 0.0
    %675 = vmatpush1.msra.mxu0 %v159
    %676 = vmatprep.subr.mxu0 0.0
    %677 = vmatpush1.msra.mxu0 %v158
    %678 = vmatprep.subr.mxu0 0.0
    %679 = vmatpush1.msra.mxu0 %v157
    %680 = vmatprep.subr.mxu0 0.0
    %681 = vmatpush1.msra.mxu0 %v156
    %682 = vmatprep.subr.mxu0 0.0
    %683 = vmatpush1.msra.mxu0 %v155
    %684 = vmatprep.subr.mxu0 0.0
    %685 = vmatpush1.msra.mxu0 %v154
    %686 = vmatprep.subr.mxu0 0.0
    %687 = vmatpush1.msra.mxu0 %v153
    %688 = vmatprep.subr.mxu0 0.0
    %689 = vmatpush2.msra.mxu0 %v184
    %690 = vmatprep.subr.mxu0 0.0
    %691 = vmatpush2.msra.mxu0 %v183
    %692 = vmatprep.subr.mxu0 0.0
    %693 = vmatpush2.msra.mxu0 %v182
    %694 = vmatprep.subr.mxu0 0.0
    %695 = vmatpush2.msra.mxu0 %v181
    %696 = vmatprep.subr.mxu0 0.0
    %697 = vmatpush2.msra.mxu0 %v180
    %698 = vmatprep.subr.mxu0 0.0
    %699 = vmatpush2.msra.mxu0 %v179
    %700 = vmatprep.subr.mxu0 0.0
    %701 = vmatpush2.msra.mxu0 %v178
    %702 = vmatprep.subr.mxu0 0.0
    %703 = vmatpush2.msra.mxu0 %v177
    %704 = vmatprep.subr.mxu0 0.0
    %705 = vmatpush2.msra.mxu0 %v176
    %706 = vmatprep.subr.mxu0 0.0
    %707 = vmatpush2.msra.mxu0 %v175
    %708 = vmatprep.subr.mxu0 0.0
    %709 = vmatpush2.msra.mxu0 %v174
    %710 = vmatprep.subr.mxu0 0.0
    %711 = vmatpush2.msra.mxu0 %v173
    %712 = vmatprep.subr.mxu0 0.0
    %713 = vmatpush2.msra.mxu0 %v172
    %714 = vmatprep.subr.mxu0 0.0
    %715 = vmatpush2.msra.mxu0 %v171
    %716 = vmatprep.subr.mxu0 0.0
    %717 = vmatpush2.msra.mxu0 %v170
    %718 = vmatprep.subr.mxu0 0.0
    %719 = vmatpush2.msra.mxu0 %v169
    %720 = vmatprep.mubr.f32.mxu0 %v341
    %721 = vmatmul.mubr.f32.gmra.mxu0 %v333
    %v722 = vpop.f32.mrf.mxu0
    %v723 = vadd.f32 %v653, %v722
    %v724 = vpop.f32.mrf.mxu0
    %725 = vdwg.mxu0
    %726 = vmatprep.subr.mxu0 0.0
    %727 = vmatpush1.msra.mxu0 %v200
    %728 = vmatprep.subr.mxu0 0.0
    %729 = vmatpush1.msra.mxu0 %v199
    %730 = vmatprep.subr.mxu0 0.0
    %731 = vmatpush1.msra.mxu0 %v198
    %732 = vmatprep.subr.mxu0 0.0
    %733 = vmatpush1.msra.mxu0 %v197
    %734 = vmatprep.subr.mxu0 0.0
    %735 = vmatpush1.msra.mxu0 %v196
    %736 = vmatprep.subr.mxu0 0.0
    %737 = vmatpush1.msra.mxu0 %v195
    %738 = vmatprep.subr.mxu0 0.0
    %739 = vmatpush1.msra.mxu0 %v194
    %740 = vmatprep.subr.mxu0 0.0
    %741 = vmatpush1.msra.mxu0 %v193
    %742 = vmatprep.subr.mxu0 0.0
    %743 = vmatpush1.msra.mxu0 %v192
    %744 = vmatprep.subr.mxu0 0.0
    %745 = vmatpush1.msra.mxu0 %v191
    %746 = vmatprep.subr.mxu0 0.0
    %747 = vmatpush1.msra.mxu0 %v190
    %748 = vmatprep.subr.mxu0 0.0
    %749 = vmatpush1.msra.mxu0 %v189
    %750 = vmatprep.subr.mxu0 0.0
    %751 = vmatpush1.msra.mxu0 %v188
    %752 = vmatprep.subr.mxu0 0.0
    %753 = vmatpush1.msra.mxu0 %v187
    %754 = vmatprep.subr.mxu0 0.0
    %755 = vmatpush1.msra.mxu0 %v186
    %756 = vmatprep.subr.mxu0 0.0
    %757 = vmatpush1.msra.mxu0 %v185
    %758 = vmatprep.subr.mxu0 0.0
    %759 = vmatpush2.msra.mxu0 %v216
    %760 = vmatprep.subr.mxu0 0.0
    %761 = vmatpush2.msra.mxu0 %v215
    %762 = vmatprep.subr.mxu0 0.0
    %763 = vmatpush2.msra.mxu0 %v214
    %764 = vmatprep.subr.mxu0 0.0
    %765 = vmatpush2.msra.mxu0 %v213
    %766 = vmatprep.subr.mxu0 0.0
    %767 = vmatpush2.msra.mxu0 %v212
    %768 = vmatprep.subr.mxu0 0.0
    %769 = vmatpush2.msra.mxu0 %v211
    %770 = vmatprep.subr.mxu0 0.0
    %771 = vmatpush2.msra.mxu0 %v210
    %772 = vmatprep.subr.mxu0 0.0
    %773 = vmatpush2.msra.mxu0 %v209
    %774 = vmatprep.subr.mxu0 0.0
    %775 = vmatpush2.msra.mxu0 %v208
    %776 = vmatprep.subr.mxu0 0.0
    %777 = vmatpush2.msra.mxu0 %v207
    %778 = vmatprep.subr.mxu0 0.0
    %779 = vmatpush2.msra.mxu0 %v206
    %780 = vmatprep.subr.mxu0 0.0
    %781 = vmatpush2.msra.mxu0 %v205
    %782 = vmatprep.subr.mxu0 0.0
    %783 = vmatpush2.msra.mxu0 %v204
    %784 = vmatprep.subr.mxu0 0.0
    %785 = vmatpush2.msra.mxu0 %v203
    %786 = vmatprep.subr.mxu0 0.0
    %787 = vmatpush2.msra.mxu0 %v202
    %788 = vmatprep.subr.mxu0 0.0
    %789 = vmatpush2.msra.mxu0 %v201
    %790 = vmatprep.mubr.f32.mxu0 %v342
    %791 = vmatmul.mubr.f32.gmra.mxu0 %v340
    %v792 = vpop.f32.mrf.mxu0
    %v793 = vadd.f32 %v723, %v792
    %v794 = vpop.f32.mrf.mxu0
    %795 = vdwg.mxu0
    %796 = vmatprep.subr.mxu0 0.0
    %797 = vmatpush1.msra.mxu0 %v232
    %798 = vmatprep.subr.mxu0 0.0
    %799 = vmatpush1.msra.mxu0 %v231
    %800 = vmatprep.subr.mxu0 0.0
    %801 = vmatpush1.msra.mxu0 %v230
    %802 = vmatprep.subr.mxu0 0.0
    %803 = vmatpush1.msra.mxu0 %v229
    %804 = vmatprep.subr.mxu0 0.0
    %805 = vmatpush1.msra.mxu0 %v228
    %806 = vmatprep.subr.mxu0 0.0
    %807 = vmatpush1.msra.mxu0 %v227
    %808 = vmatprep.subr.mxu0 0.0
    %809 = vmatpush1.msra.mxu0 %v226
    %810 = vmatprep.subr.mxu0 0.0
    %811 = vmatpush1.msra.mxu0 %v225
    %812 = vmatprep.subr.mxu0 0.0
    %813 = vmatpush1.msra.mxu0 %v224
    %814 = vmatprep.subr.mxu0 0.0
    %815 = vmatpush1.msra.mxu0 %v223
    %816 = vmatprep.subr.mxu0 0.0
    %817 = vmatpush1.msra.mxu0 %v222
    %818 = vmatprep.subr.mxu0 0.0
    %819 = vmatpush1.msra.mxu0 %v221
    %820 = vmatprep.subr.mxu0 0.0
    %821 = vmatpush1.msra.mxu0 %v220
    %822 = vmatprep.subr.mxu0 0.0
    %823 = vmatpush1.msra.mxu0 %v219
    %824 = vmatprep.subr.mxu0 0.0
    %825 = vmatpush1.msra.mxu0 %v218
    %826 = vmatprep.subr.mxu0 0.0
    %827 = vmatpush1.msra.mxu0 %v217
    %828 = vmatprep.subr.mxu0 0.0
    %829 = vmatpush2.msra.mxu0 %v248
    %830 = vmatprep.subr.mxu0 0.0
    %831 = vmatpush2.msra.mxu0 %v247
    %832 = vmatprep.subr.mxu0 0.0
    %833 = vmatpush2.msra.mxu0 %v246
    %834 = vmatprep.subr.mxu0 0.0
    %835 = vmatpush2.msra.mxu0 %v245
    %836 = vmatprep.subr.mxu0 0.0
    %837 = vmatpush2.msra.mxu0 %v244
    %838 = vmatprep.subr.mxu0 0.0
    %839 = vmatpush2.msra.mxu0 %v243
    %840 = vmatprep.subr.mxu0 0.0
    %841 = vmatpush2.msra.mxu0 %v242
    %842 = vmatprep.subr.mxu0 0.0
    %843 = vmatpush2.msra.mxu0 %v241
    %844 = vmatprep.subr.mxu0 0.0
    %845 = vmatpush2.msra.mxu0 %v240
    %846 = vmatprep.subr.mxu0 0.0
    %847 = vmatpush2.msra.mxu0 %v239
    %848 = vmatprep.subr.mxu0 0.0
    %849 = vmatpush2.msra.mxu0 %v238
    %850 = vmatprep.subr.mxu0 0.0
    %851 = vmatpush2.msra.mxu0 %v237
    %852 = vmatprep.subr.mxu0 0.0
    %853 = vmatpush2.msra.mxu0 %v236
    %854 = vmatprep.subr.mxu0 0.0
    %855 = vmatpush2.msra.mxu0 %v235
    %856 = vmatprep.subr.mxu0 0.0
    %857 = vmatpush2.msra.mxu0 %v234
    %858 = vmatprep.subr.mxu0 0.0
    %859 = vmatpush2.msra.mxu0 %v233
    %860 = vmatprep.mubr.f32.mxu0 %v358
    %861 = vmatmul.mubr.f32.gmra.mxu0 %v350
    %v862 = vpop.f32.mrf.mxu0
    %v863 = vadd.f32 %v793, %v862
    %v864 = vpop.f32.mrf.mxu0
    %865 = vdwg.mxu0
    %866 = vmatprep.subr.mxu0 0.0
    %867 = vmatpush1.msra.mxu0 %v264
    %868 = vmatprep.subr.mxu0 0.0
    %869 = vmatpush1.msra.mxu0 %v263
    %870 = vmatprep.subr.mxu0 0.0
    %871 = vmatpush1.msra.mxu0 %v262
    %872 = vmatprep.subr.mxu0 0.0
    %873 = vmatpush1.msra.mxu0 %v261
    %874 = vmatprep.subr.mxu0 0.0
    %875 = vmatpush1.msra.mxu0 %v260
    %876 = vmatprep.subr.mxu0 0.0
    %877 = vmatpush1.msra.mxu0 %v259
    %878 = vmatprep.subr.mxu0 0.0
    %879 = vmatpush1.msra.mxu0 %v258
    %880 = vmatprep.subr.mxu0 0.0
    %881 = vmatpush1.msra.mxu0 %v257
    %882 = vmatprep.subr.mxu0 0.0
    %883 = vmatpush1.msra.mxu0 %v256
    %884 = vmatprep.subr.mxu0 0.0
    %885 = vmatpush1.msra.mxu0 %v255
    %886 = vmatprep.subr.mxu0 0.0
    %887 = vmatpush1.msra.mxu0 %v254
    %888 = vmatprep.subr.mxu0 0.0
    %889 = vmatpush1.msra.mxu0 %v253
    %890 = vmatprep.subr.mxu0 0.0
    %891 = vmatpush1.msra.mxu0 %v252
    %892 = vmatprep.subr.mxu0 0.0
    %893 = vmatpush1.msra.mxu0 %v251
    %894 = vmatprep.subr.mxu0 0.0
    %895 = vmatpush1.msra.mxu0 %v250
    %896 = vmatprep.subr.mxu0 0.0
    %897 = vmatpush1.msra.mxu0 %v249
    %898 = vmatprep.subr.mxu0 0.0
    %899 = vmatpush2.msra.mxu0 %v280
    %900 = vmatprep.subr.mxu0 0.0
    %901 = vmatpush2.msra.mxu0 %v279
    %902 = vmatprep.subr.mxu0 0.0
    %903 = vmatpush2.msra.mxu0 %v278
    %904 = vmatprep.subr.mxu0 0.0
    %905 = vmatpush2.msra.mxu0 %v277
    %906 = vmatprep.subr.mxu0 0.0
    %907 = vmatpush2.msra.mxu0 %v276
    %908 = vmatprep.subr.mxu0 0.0
    %909 = vmatpush2.msra.mxu0 %v275
    %910 = vmatprep.subr.mxu0 0.0
    %911 = vmatpush2.msra.mxu0 %v274
    %912 = vmatprep.subr.mxu0 0.0
    %913 = vmatpush2.msra.mxu0 %v273
    %914 = vmatprep.subr.mxu0 0.0
    %915 = vmatpush2.msra.mxu0 %v272
    %916 = vmatprep.subr.mxu0 0.0
    %917 = vmatpush2.msra.mxu0 %v271
    %918 = vmatprep.subr.mxu0 0.0
    %919 = vmatpush2.msra.mxu0 %v270
    %920 = vmatprep.subr.mxu0 0.0
    %921 = vmatpush2.msra.mxu0 %v269
    %922 = vmatprep.subr.mxu0 0.0
    %923 = vmatpush2.msra.mxu0 %v268
    %924 = vmatprep.subr.mxu0 0.0
    %925 = vmatpush2.msra.mxu0 %v267
    %926 = vmatprep.subr.mxu0 0.0
    %927 = vmatpush2.msra.mxu0 %v266
    %928 = vmatprep.subr.mxu0 0.0
    %929 = vmatpush2.msra.mxu0 %v265
    %930 = vmatprep.mubr.f32.mxu0 %v359
    %931 = vmatmul.mubr.f32.gmra.mxu0 %v357
    %v932 = vpop.f32.mrf.mxu0
    %v933 = vadd.f32 %v863, %v932
    %v934 = vpop.f32.mrf.mxu0
    %935 = vdwg.mxu0
    %v936 = vmax.f32 %v933, 0.0
    %v937 = vld [vmem:[%s3] sm:$0xff]
    %v938 = vld [vmem:[%s3 + $0x8] sm:$0xff]
    %v939 = vld [vmem:[%s3 + $0x10] sm:$0xff]
    %v940 = vld [vmem:[%s3 + $0x18] sm:$0xff]
    %v941 = vld [vmem:[%s3 + $0x20] sm:$0xff]
    %v942 = vld [vmem:[%s3 + $0x28] sm:$0xff]
    %v943 = vld [vmem:[%s3 + $0x30] sm:$0xff]
    %v944 = vld [vmem:[%s3 + $0x38] sm:$0xff]
    %v945 = vld [vmem:[%s3 + $0x40] sm:$0xff]
    %v946 = vld [vmem:[%s3 + $0x48] sm:$0xff]
    %v947 = vld [vmem:[%s3 + $0x50] sm:$0xff]
    %v948 = vld [vmem:[%s3 + $0x58] sm:$0xff]
    %v949 = vld [vmem:[%s3 + $0x60] sm:$0xff]
    %v950 = vld [vmem:[%s3 + $0x68] sm:$0xff]
    %v951 = vld [vmem:[%s3 + $0x70] sm:$0xff]
    %v952 = vld [vmem:[%s3 + $0x78] sm:$0xff]
    %v953 = vld [vmem:[%s4] sm:$0x1]
    %v955 = vlaneseq
    %v956 = vshrl.u32 %v955, 7
    %v957 = vsub.s32 0, %v956
    %v958 = vrot.slane %v953, %v957
    %960 = vmatprep.subr.mxu0 0.0
    %961 = vmatpush1.msra.mxu0 %v952
    %962 = vmatprep.subr.mxu0 0.0
    %963 = vmatpush1.msra.mxu0 %v951
    %964 = vmatprep.subr.mxu0 0.0
    %965 = vmatpush1.msra.mxu0 %v950
    %966 = vmatprep.subr.mxu0 0.0
    %967 = vmatpush1.msra.mxu0 %v949
    %968 = vmatprep.subr.mxu0 0.0
    %969 = vmatpush1.msra.mxu0 %v948
    %970 = vmatprep.subr.mxu0 0.0
    %971 = vmatpush1.msra.mxu0 %v947
    %972 = vmatprep.subr.mxu0 0.0
    %973 = vmatpush1.msra.mxu0 %v946
    %974 = vmatprep.subr.mxu0 0.0
    %975 = vmatpush1.msra.mxu0 %v945
    %976 = vmatprep.subr.mxu0 0.0
    %977 = vmatpush1.msra.mxu0 %v944
    %978 = vmatprep.subr.mxu0 0.0
    %979 = vmatpush1.msra.mxu0 %v943
    %980 = vmatprep.subr.mxu0 0.0
    %981 = vmatpush1.msra.mxu0 %v942
    %982 = vmatprep.subr.mxu0 0.0
    %983 = vmatpush1.msra.mxu0 %v941
    %984 = vmatprep.subr.mxu0 0.0
    %985 = vmatpush1.msra.mxu0 %v940
    %986 = vmatprep.subr.mxu0 0.0
    %987 = vmatpush1.msra.mxu0 %v939
    %988 = vmatprep.subr.mxu0 0.0
    %989 = vmatpush1.msra.mxu0 %v938
    %990 = vmatprep.subr.mxu0 0.0
    %991 = vmatpush1.msra.mxu0 %v937
    %992 = vmatprep.subr.mxu0 0.0
    %993 = vmatpush2.msra.mxu0 0.0
    %994 = vmatprep.subr.mxu0 0.0
    %995 = vmatpush2.msra.mxu0 0.0
    %996 = vmatprep.subr.mxu0 0.0
    %997 = vmatpush2.msra.mxu0 0.0
    %998 = vmatprep.subr.mxu0 0.0
    %999 = vmatpush2.msra.mxu0 0.0
    %1000 = vmatprep.subr.mxu0 0.0
    %1001 = vmatpush2.msra.mxu0 0.0
    %1002 = vmatprep.subr.mxu0 0.0
    %1003 = vmatpush2.msra.mxu0 0.0
    %1004 = vmatprep.subr.mxu0 0.0
    %1005 = vmatpush2.msra.mxu0 0.0
    %1006 = vmatprep.subr.mxu0 0.0
    %1007 = vmatpush2.msra.mxu0 0.0
    %1008 = vmatprep.subr.mxu0 0.0
    %1009 = vmatpush2.msra.mxu0 0.0
    %1010 = vmatprep.subr.mxu0 0.0
    %1011 = vmatpush2.msra.mxu0 0.0
    %1012 = vmatprep.subr.mxu0 0.0
    %1013 = vmatpush2.msra.mxu0 0.0
    %1014 = vmatprep.subr.mxu0 0.0
    %1015 = vmatpush2.msra.mxu0 0.0
    %1016 = vmatprep.subr.mxu0 0.0
    %1017 = vmatpush2.msra.mxu0 0.0
    %1018 = vmatprep.subr.mxu0 0.0
    %1019 = vmatpush2.msra.mxu0 0.0
    %1020 = vmatprep.subr.mxu0 0.0
    %1021 = vmatpush2.msra.mxu0 0.0
    %1022 = vmatprep.subr.mxu0 0.0
    %1023 = vmatpush2.msra.mxu0 0.0
    %1024 = vmatprep.mubr.f32.mxu0 0.0
    %1025 = vmatmul.mubr.f32.gmra.mxu0 %v936
    %v1026 = vpop.f32.mrf.mxu0
    %v1027 = vadd.f32 %v958, %v1026
    %v1028 = vpop.f32.mrf.mxu0
    %1029 = vdwg.mxu0
    %v1030 = vlaneseq
    %v1031 = vand.u32 %v1030, 127
    %vm1032 = vcmp.lt.s32.totalorder %v1031, 10
    %v1033 = vsel %vm1032, %v1027, -1e+30
    %vm1034 = vcmask 1041408
    %v1035 = vsel %vm1034, %v1033, -inf
    %1036 = vmax.xlane.f32.xlu0 %v1035
    %v1037 = vpop.xlane.xlu0 %1036
    %v1038 = vsub.f32 %v1033, %v1037
    %v1039 = vmul.f32 %v1038, 1.442695
    %v1040 = vpow.pop %v1039
    %v1041 = vsel %vm1034, %v1040, 0.0
    %1042 = vadd.xlane.f32.xlu0 %v1041
    %v1043 = vpop.xlane.xlu0 %1042
    %v1044 = vlog2.pop %v1043
    %v1045 = vmul.f32 %v1044, 0.6931472
    %v1046 = vadd.f32 %v1037, %v1045
    %v1047 = vsub.f32 %v1033, %v1046
    %1048 = vst [vmem:[#allocation2] sm:$0x3] %v1047
    // Predicated region
    $region22: #{forward.13} parent=1 // pred_check
      _
    $region23: #{forward.13} parent=1 // pred_check_branch
      %1050 = sbr.rel (0) target = $region25
    $region24: #{forward.13} parent=1 // pred_region
      %s1052 = ssub.s32 32, 32
      %1053 = vsyncadd [#allocation3], %s1052
      %s1055 = sshll.u32 [#allocation2], 4
      %s1056 = int_to_ptr.vmem [resolvable:$true] %s1055
      %1058 = dma.vmem_to_hbm [thread:$0]  %s1056, 32, %s5, [#allocation3]
    $region25: #{forward.13} parent=1 // pred_fallthru
      _
    // Predicated region
    $region26: #{forward.13} parent=1 // pred_check
      _
    $region27: #{forward.13} parent=1 // pred_check_branch
      %1060 = sbr.rel (0) target = $region29
    $region28: #{forward.13} parent=1 // pred_region
      %1061 = dma.done [#allocation3], 32
    $region29: #{forward.13} parent=1 // pred_fallthru
      _
    %1062 = vsyncpa [#allocation3], 1

</llo_original>
